<compile_context>
chip_gen: v7x
topology: tpu7x:2x2x1
jax: 0.10.0
libtpu: 0.0.40
codegen_flags: <defaults>
</compile_context>

<pallas_src>
import jax
import jax.numpy as jnp
from jax import lax
from jax.experimental import pallas as pl
from jax.experimental.pallas import tpu as pltpu


# ----------------------------------------------------------------------------
# Fused DecoderBlock kernel (one batch element per grid step)
# ----------------------------------------------------------------------------
def _decoder_block_kernel(x_ref, skip_ref, w_up_ref, b_up_ref, w_dec_skip_ref,
                          w_dec_up_ref, b_dec_ref, o_ref,
                          xup_pad, skip_pad, up_pad):
    """x_ref:          (1, Hx, Wx, Cx)   low-res input               (bf16)
       skip_ref:       (1, Hs, Ws, Cs)   skip connection, Hs=2Hx     (bf16)
       w_up_ref:       (9, Cx, F)        upsample-conv weights       (bf16)
       b_up_ref:       (1, F)            upsample-conv bias          (f32)
       w_dec_skip_ref: (9, Cs, F)        decoder-conv weights, skip  (bf16)
       w_dec_up_ref:   (9, F, F)         decoder-conv weights, up    (bf16)
       b_dec_ref:      (1, F)            decoder-conv bias           (f32)
       o_ref:          (1, F, Hs*Ws)     output, lane-dense          (f32)
       xup_pad:        (Hs+2, Ws+2, Cx)  VMEM scratch (bf16), padded upsampled x
       skip_pad:       (Hs+2, Ws+2, Cs)  VMEM scratch (bf16), padded skip
       up_pad:         (Hs+2, Ws+2, F)   VMEM scratch (bf16), padded upsample out"""
    Hx, Wx, Cx = x_ref.shape[1], x_ref.shape[2], x_ref.shape[3]
    Hs, Ws, Cs = skip_ref.shape[1], skip_ref.shape[2], skip_ref.shape[3]
    F = b_up_ref.shape[1]

    # ---- zero ONLY the 1-px border of each padded scratch (the interior is
    #      fully overwritten below; no full-buffer store sweeps per step) ----
    for buf in (xup_pad, skip_pad, up_pad):
        Hp, Wp, c = buf.shape
        buf[0:1, :, :] = jnp.zeros((1, Wp, c), buf.dtype)
        buf[Hp - 1:Hp, :, :] = jnp.zeros((1, Wp, c), buf.dtype)
        buf[:, 0:1, :] = jnp.zeros((Hp, 1, c), buf.dtype)
        buf[:, Wp - 1:Wp, :] = jnp.zeros((Hp, 1, c), buf.dtype)

    # ---- nearest-neighbor 2x upsample of x into the padded bf16 scratch ----
    # TODO(synk): at larger shapes replace the sublane interleave with stride-2
    # writes (pl.ds stride) or fold the upsample into the window selection.
    xv = x_ref[0]                                                  # (Hx, Wx, Cx)
    up2 = jnp.broadcast_to(xv[:, :, None, :], (Hx, Wx, 2, Cx)
                           ).reshape(Hx, 2 * Wx, Cx)               # duplicate W
    up2 = jnp.broadcast_to(up2[:, None, :, :], (Hx, 2, 2 * Wx, Cx)
                           ).reshape(Hs, Ws, Cx)                   # duplicate H
    xup_pad[1:1 + Hs, 1:1 + Ws, :] = up2                           # border stays 0
    skip_pad[1:1 + Hs, 1:1 + Ws, :] = skip_ref[0]

    # ---- upsample ConvBlock: 3x3 conv (Cx -> F) + bias + ReLU ----
    # 9 accumulated MXU dots (bf16 operands, f32 accumulation); no im2col
    # lane packing.
    xp = xup_pad[...]
    acc = jnp.zeros((Hs * Ws, F), jnp.float32)
    for kh in range(3):
        for kw in range(3):
            win = xp[kh:kh + Hs, kw:kw + Ws, :].reshape(Hs * Ws, Cx)
            acc = acc + jnp.dot(win, w_up_ref[kh * 3 + kw],
                                preferred_element_type=jnp.float32)
    up = jnp.maximum(acc + b_up_ref[...], 0.0)                     # f32 epilogue

    # Stage the refined upsample path in bf16 (no f32 round-trip in VMEM).
    up_pad[1:1 + Hs, 1:1 + Ws, :] = up.reshape(Hs, Ws, F).astype(jnp.bfloat16)

    # ---- decoder ConvBlock on cat([skip, up], channel) ----
    # The concat is never materialized: split weights, sum the two partial
    # convolutions into the same f32 accumulator (skip channels first, matching
    # torch.cat([skip, x], dim=1)).
    sp = skip_pad[...]
    ud = up_pad[...]
    acc = jnp.zeros((Hs * Ws, F), jnp.float32)
    for kh in range(3):
        for kw in range(3):
            k = kh * 3 + kw
            win_s = sp[kh:kh + Hs, kw:kw + Ws, :].reshape(Hs * Ws, Cs)
            win_u = ud[kh:kh + Hs, kw:kw + Ws, :].reshape(Hs * Ws, F)
            acc = acc + jnp.dot(win_s, w_dec_skip_ref[k],
                                preferred_element_type=jnp.float32)
            acc = acc + jnp.dot(win_u, w_dec_up_ref[k],
                                preferred_element_type=jnp.float32)
    out = jnp.maximum(acc + b_dec_ref[...], 0.0)                   # (Hs*Ws, F) f32

    # Lane-dense store: (F, Hs*Ws) -> 256-lane unmasked vst; the flat
    # (N, F, Hs*Ws) output is already NCHW after a free reshape in the wrapper.
    o_ref[0] = out.T


# ----------------------------------------------------------------------------
# Wrapper: NCHW in / NCHW out, one pallas_call per forward
# ----------------------------------------------------------------------------
def decoder_block_forward(x_nchw, skip_nchw, params):
    # NCHW -> NHWC transpose fused with the bf16 cast (one pass over HBM).
    # TODO(synk): a fully NHWC V-Net would need no pre-kernel transpose at all.
    x = jnp.transpose(x_nchw, (0, 2, 3, 1)).astype(jnp.bfloat16)
    skip = jnp.transpose(skip_nchw, (0, 2, 3, 1)).astype(jnp.bfloat16)
    N, Hx, Wx, Cx = x.shape
    Ns, Hs, Ws, Cs = skip.shape
    F = params["up_b"].shape[0]
    assert N == Ns
    # TODO(synk): the torch crop branch (upsampled x strictly larger than skip)
    # is not implemented; with 2*Hx == Hs, 2*Wx == Ws it is exactly a no-op.
    assert 2 * Hx == Hs and 2 * Wx == Ws

    # Weights per (kh, kw) tap, bf16 for the MXU; decoder weights split into
    # the skip part and the up part (skip channels come first in the concat).
    w_up = params["up_w"].reshape(9, Cx, F).astype(jnp.bfloat16)
    b_up = params["up_b"].reshape(1, F).astype(jnp.float32)
    dec_w = params["dec_w"]                                       # (3,3,Cs+F,F)
    w_dec_skip = dec_w[:, :, :Cs, :].reshape(9, Cs, F).astype(jnp.bfloat16)
    w_dec_up = dec_w[:, :, Cs:, :].reshape(9, F, F).astype(jnp.bfloat16)
    b_dec = params["dec_b"].reshape(1, F).astype(jnp.float32)

    out_flat = pl.pallas_call(
        _decoder_block_kernel,
        out_shape=jax.ShapeDtypeStruct((N, F, Hs * Ws), jnp.float32),
        grid=(N,),
        in_specs=[
            pl.BlockSpec((1, Hx, Wx, Cx), lambda n: (n, 0, 0, 0)),
            pl.BlockSpec((1, Hs, Ws, Cs), lambda n: (n, 0, 0, 0)),
            pl.BlockSpec((9, Cx, F), lambda n: (0, 0, 0)),
            pl.BlockSpec((1, F), lambda n: (0, 0)),
            pl.BlockSpec((9, Cs, F), lambda n: (0, 0, 0)),
            pl.BlockSpec((9, F, F), lambda n: (0, 0, 0)),
            pl.BlockSpec((1, F), lambda n: (0, 0)),
        ],
        out_specs=pl.BlockSpec((1, F, Hs * Ws), lambda n: (n, 0, 0)),
        scratch_shapes=[
            pltpu.VMEM((Hs + 2, Ws + 2, Cx), jnp.bfloat16),  # padded upsampled x
            pltpu.VMEM((Hs + 2, Ws + 2, Cs), jnp.bfloat16),  # padded skip
            pltpu.VMEM((Hs + 2, Ws + 2, F), jnp.bfloat16),   # padded upsample out
        ],
        compiler_params=pltpu.CompilerParams(
            dimension_semantics=("parallel",),                # 2 TCs on v7x, N>=2
            vmem_limit_bytes=32 * 1024 * 1024),
    )(x, skip, w_up, b_up, w_dec_skip, w_dec_up, b_dec)

    # (N, F, Hs*Ws) -> (N, F, Hs, Ws) is a free row-major reshape == NCHW.
    return out_flat.reshape(N, F, Hs, Ws)


# ----------------------------------------------------------------------------
# Parameters (deterministic) + pure-JAX reference for verification
# ----------------------------------------------------------------------------
def init_params(key, c_in, c_skip, filters):
    k1, k2, k3, k4 = jax.random.split(key, 4)
    s_up = 1.0 / jnp.sqrt(9.0 * c_in)
    s_dec = 1.0 / jnp.sqrt(9.0 * (c_skip + filters))
    return {
        "up_w": s_up * jax.random.normal(k1, (3, 3, c_in, filters), jnp.float32),
        "up_b": 0.1 * jax.random.normal(k2, (filters,), jnp.float32),
        "dec_w": s_dec * jax.random.normal(
            k3, (3, 3, c_skip + filters, filters), jnp.float32),
        "dec_b": 0.1 * jax.random.normal(k4, (filters,), jnp.float32),
    }


def _ref_conv(x, w, b):
    y = lax.conv_general_dilated(x, w, (1, 1), ((1, 1), (1, 1)),
                                 dimension_numbers=("NHWC", "HWIO", "NHWC"))
    return jnp.maximum(y + b, 0.0)


def decoder_block_reference(x_nchw, skip_nchw, params):
    x = jnp.transpose(x_nchw, (0, 2, 3, 1)).astype(jnp.float32)
    skip = jnp.transpose(skip_nchw, (0, 2, 3, 1)).astype(jnp.float32)
    up = jnp.repeat(jnp.repeat(x, 2, axis=1), 2, axis=2)       # nearest 2x
    up = _ref_conv(up, params["up_w"], params["up_b"])         # upsample ConvBlock
    cat = jnp.concatenate([skip, up], axis=-1)                 # cat([skip, x], dim=1)
    y = _ref_conv(cat, params["dec_w"], params["dec_b"])       # decoder ConvBlock
    return jnp.transpose(y, (0, 3, 1, 2))


if __name__ == "__main__":
    key = jax.random.PRNGKey(0)
    pkey, xkey, skey = jax.random.split(key, 3)
    C_IN, C_SKIP, FILTERS = 32, 16, 16                  # skip channels == filters
    params = init_params(pkey, C_IN, C_SKIP, FILTERS)

    # NCHW inputs, like the PyTorch module: low-res feature map + skip tensor.
    x = jax.random.normal(xkey, (2, C_IN, 8, 8), jnp.float32)
    skip = jax.random.normal(skey, (2, C_SKIP, 16, 16), jnp.float32)

    out = jax.block_until_ready(jax.jit(decoder_block_forward)(x, skip, params))
    ref = jax.block_until_ready(decoder_block_reference(x, skip, params))

    assert out.shape == (2, FILTERS, 16, 16), out.shape
    assert bool(jnp.all(jnp.isfinite(out)))
    max_err = float(jnp.max(jnp.abs(out - ref)))
    # bf16 activations/weights on the MXU (f32 accumulation) is an intentional
    # precision trade vs. the f32 PyTorch reference.
    assert bool(jnp.allclose(out, ref, rtol=5e-2, atol=5e-2)), max_err
    print("KERNEL_OK")
</pallas_src>

<mosaic_0001>
module attributes {stable_mosaic.version = 11 : i64} {
  func.func @_decoder_block_kernel(%arg0: i32, %arg1: memref<1x8x8x32xbf16, #tpu.memory_space<vmem>>, %arg2: memref<1x16x16x16xbf16, #tpu.memory_space<vmem>>, %arg3: memref<9x32x16xbf16, #tpu.memory_space<vmem>>, %arg4: memref<1x16xf32, #tpu.memory_space<vmem>>, %arg5: memref<9x16x16xbf16, #tpu.memory_space<vmem>>, %arg6: memref<9x16x16xbf16, #tpu.memory_space<vmem>>, %arg7: memref<1x16xf32, #tpu.memory_space<vmem>>, %arg8: memref<1x16x256xf32, #tpu.memory_space<vmem>>, %arg9: memref<18x18x32xbf16, #tpu.memory_space<vmem>>, %arg10: memref<18x18x16xbf16, #tpu.memory_space<vmem>>, %arg11: memref<18x18x16xbf16, #tpu.memory_space<vmem>>) attributes {dimension_semantics = [#tpu.dimension_semantics<parallel>], iteration_bounds = array<i64: 2>, scalar_prefetch = 0 : i64, scratch_operands = 3 : i64, tpu.core_type = #tpu.core_type<tc>, window_params = [{transform_indices = @transform_0, window_bounds = array<i64: 1, 8, 8, 32>}, {transform_indices = @transform_1, window_bounds = array<i64: 1, 16, 16, 16>}, {pipeline_mode = #tpu.pipeline_mode<synchronous>, transform_indices = @transform_2, window_bounds = array<i64: 9, 32, 16>}, {pipeline_mode = #tpu.pipeline_mode<synchronous>, transform_indices = @transform_3, window_bounds = array<i64: 1, 16>}, {pipeline_mode = #tpu.pipeline_mode<synchronous>, transform_indices = @transform_4, window_bounds = array<i64: 9, 16, 16>}, {pipeline_mode = #tpu.pipeline_mode<synchronous>, transform_indices = @transform_5, window_bounds = array<i64: 9, 16, 16>}, {pipeline_mode = #tpu.pipeline_mode<synchronous>, transform_indices = @transform_6, window_bounds = array<i64: 1, 16>}, {transform_indices = @transform_7, window_bounds = array<i64: 1, 16, 256>}]} {
    %cst = arith.constant 0.000000e+00 : bf16
    %0 = vector.broadcast %cst : bf16 to vector<1x18x32xbf16>
    %c0 = arith.constant 0 : index
    %c0_0 = arith.constant 0 : index
    %c0_1 = arith.constant 0 : index
    %1 = vector.load %arg9[%c0, %c0_0, %c0_1] : memref<18x18x32xbf16, #tpu.memory_space<vmem>>, vector<1x18x32xbf16>
    tpu.vector_store %arg9[%c0, %c0_0, %c0_1], %0 {strides = array<i32>} : memref<18x18x32xbf16, #tpu.memory_space<vmem>>, vector<1x18x32xbf16>,
    %cst_2 = arith.constant 0.000000e+00 : bf16
    %2 = vector.broadcast %cst_2 : bf16 to vector<1x18x32xbf16>
    %c17 = arith.constant 17 : index
    %c0_3 = arith.constant 0 : index
    %c0_4 = arith.constant 0 : index
    %3 = vector.load %arg9[%c17, %c0_3, %c0_4] : memref<18x18x32xbf16, #tpu.memory_space<vmem>>, vector<1x18x32xbf16>
    tpu.vector_store %arg9[%c17, %c0_3, %c0_4], %2 {strides = array<i32>} : memref<18x18x32xbf16, #tpu.memory_space<vmem>>, vector<1x18x32xbf16>,
    %cst_5 = arith.constant 0.000000e+00 : bf16
    %4 = vector.broadcast %cst_5 : bf16 to vector<18x1x32xbf16>
    %c0_6 = arith.constant 0 : index
    %c0_7 = arith.constant 0 : index
    %c0_8 = arith.constant 0 : index
    %5 = vector.load %arg9[%c0_6, %c0_7, %c0_8] : memref<18x18x32xbf16, #tpu.memory_space<vmem>>, vector<18x1x32xbf16>
    tpu.vector_store %arg9[%c0_6, %c0_7, %c0_8], %4 {strides = array<i32>} : memref<18x18x32xbf16, #tpu.memory_space<vmem>>, vector<18x1x32xbf16>,
    %cst_9 = arith.constant 0.000000e+00 : bf16
    %6 = vector.broadcast %cst_9 : bf16 to vector<18x1x32xbf16>
    %c0_10 = arith.constant 0 : index
    %c17_11 = arith.constant 17 : index
    %c0_12 = arith.constant 0 : index
    %7 = vector.load %arg9[%c0_10, %c17_11, %c0_12] : memref<18x18x32xbf16, #tpu.memory_space<vmem>>, vector<18x1x32xbf16>
    tpu.vector_store %arg9[%c0_10, %c17_11, %c0_12], %6 {strides = array<i32>} : memref<18x18x32xbf16, #tpu.memory_space<vmem>>, vector<18x1x32xbf16>,
    %cst_13 = arith.constant 0.000000e+00 : bf16
    %8 = vector.broadcast %cst_13 : bf16 to vector<1x18x16xbf16>
    %c0_14 = arith.constant 0 : index
    %c0_15 = arith.constant 0 : index
    %c0_16 = arith.constant 0 : index
    %9 = vector.load %arg10[%c0_14, %c0_15, %c0_16] : memref<18x18x16xbf16, #tpu.memory_space<vmem>>, vector<1x18x16xbf16>
    tpu.vector_store %arg10[%c0_14, %c0_15, %c0_16], %8 {strides = array<i32>} : memref<18x18x16xbf16, #tpu.memory_space<vmem>>, vector<1x18x16xbf16>,
    %cst_17 = arith.constant 0.000000e+00 : bf16
    %10 = vector.broadcast %cst_17 : bf16 to vector<1x18x16xbf16>
    %c17_18 = arith.constant 17 : index
    %c0_19 = arith.constant 0 : index
    %c0_20 = arith.constant 0 : index
    %11 = vector.load %arg10[%c17_18, %c0_19, %c0_20] : memref<18x18x16xbf16, #tpu.memory_space<vmem>>, vector<1x18x16xbf16>
    tpu.vector_store %arg10[%c17_18, %c0_19, %c0_20], %10 {strides = array<i32>} : memref<18x18x16xbf16, #tpu.memory_space<vmem>>, vector<1x18x16xbf16>,
    %cst_21 = arith.constant 0.000000e+00 : bf16
    %12 = vector.broadcast %cst_21 : bf16 to vector<18x1x16xbf16>
    %c0_22 = arith.constant 0 : index
    %c0_23 = arith.constant 0 : index
    %c0_24 = arith.constant 0 : index
    %13 = vector.load %arg10[%c0_22, %c0_23, %c0_24] : memref<18x18x16xbf16, #tpu.memory_space<vmem>>, vector<18x1x16xbf16>
    tpu.vector_store %arg10[%c0_22, %c0_23, %c0_24], %12 {strides = array<i32>} : memref<18x18x16xbf16, #tpu.memory_space<vmem>>, vector<18x1x16xbf16>,
    %cst_25 = arith.constant 0.000000e+00 : bf16
    %14 = vector.broadcast %cst_25 : bf16 to vector<18x1x16xbf16>
    %c0_26 = arith.constant 0 : index
    %c17_27 = arith.constant 17 : index
    %c0_28 = arith.constant 0 : index
    %15 = vector.load %arg10[%c0_26, %c17_27, %c0_28] : memref<18x18x16xbf16, #tpu.memory_space<vmem>>, vector<18x1x16xbf16>
    tpu.vector_store %arg10[%c0_26, %c17_27, %c0_28], %14 {strides = array<i32>} : memref<18x18x16xbf16, #tpu.memory_space<vmem>>, vector<18x1x16xbf16>,
    %cst_29 = arith.constant 0.000000e+00 : bf16
    %16 = vector.broadcast %cst_29 : bf16 to vector<1x18x16xbf16>
    %c0_30 = arith.constant 0 : index
    %c0_31 = arith.constant 0 : index
    %c0_32 = arith.constant 0 : index
    %17 = vector.load %arg11[%c0_30, %c0_31, %c0_32] : memref<18x18x16xbf16, #tpu.memory_space<vmem>>, vector<1x18x16xbf16>
    tpu.vector_store %arg11[%c0_30, %c0_31, %c0_32], %16 {strides = array<i32>} : memref<18x18x16xbf16, #tpu.memory_space<vmem>>, vector<1x18x16xbf16>,
    %cst_33 = arith.constant 0.000000e+00 : bf16
    %18 = vector.broadcast %cst_33 : bf16 to vector<1x18x16xbf16>
    %c17_34 = arith.constant 17 : index
    %c0_35 = arith.constant 0 : index
    %c0_36 = arith.constant 0 : index
    %19 = vector.load %arg11[%c17_34, %c0_35, %c0_36] : memref<18x18x16xbf16, #tpu.memory_space<vmem>>, vector<1x18x16xbf16>
    tpu.vector_store %arg11[%c17_34, %c0_35, %c0_36], %18 {strides = array<i32>} : memref<18x18x16xbf16, #tpu.memory_space<vmem>>, vector<1x18x16xbf16>,
    %cst_37 = arith.constant 0.000000e+00 : bf16
    %20 = vector.broadcast %cst_37 : bf16 to vector<18x1x16xbf16>
    %c0_38 = arith.constant 0 : index
    %c0_39 = arith.constant 0 : index
    %c0_40 = arith.constant 0 : index
    %21 = vector.load %arg11[%c0_38, %c0_39, %c0_40] : memref<18x18x16xbf16, #tpu.memory_space<vmem>>, vector<18x1x16xbf16>
    tpu.vector_store %arg11[%c0_38, %c0_39, %c0_40], %20 {strides = array<i32>} : memref<18x18x16xbf16, #tpu.memory_space<vmem>>, vector<18x1x16xbf16>,
    %cst_41 = arith.constant 0.000000e+00 : bf16
    %22 = vector.broadcast %cst_41 : bf16 to vector<18x1x16xbf16>
    %c0_42 = arith.constant 0 : index
    %c17_43 = arith.constant 17 : index
    %c0_44 = arith.constant 0 : index
    %23 = vector.load %arg11[%c0_42, %c17_43, %c0_44] : memref<18x18x16xbf16, #tpu.memory_space<vmem>>, vector<18x1x16xbf16>
    tpu.vector_store %arg11[%c0_42, %c17_43, %c0_44], %22 {strides = array<i32>} : memref<18x18x16xbf16, #tpu.memory_space<vmem>>, vector<18x1x16xbf16>,
    %c0_45 = arith.constant 0 : index
    %c0_46 = arith.constant 0 : index
    %c0_47 = arith.constant 0 : index
    %c0_48 = arith.constant 0 : index
    %24 = vector.load %arg1[%c0_45, %c0_46, %c0_47, %c0_48] : memref<1x8x8x32xbf16, #tpu.memory_space<vmem>>, vector<1x8x8x32xbf16>
    %25 = vector.shape_cast %24 : vector<1x8x8x32xbf16> to vector<8x8x32xbf16>
    %26 = vector.shape_cast %25 : vector<8x8x32xbf16> to vector<8x8x1x32xbf16>
    %27 = vector.shape_cast %26 : vector<8x8x1x32xbf16> to vector<8x8x1x32xbf16>
    %28 = vector.broadcast %27 : vector<8x8x1x32xbf16> to vector<8x8x2x32xbf16>
    %29 = vector.shape_cast %28 : vector<8x8x2x32xbf16> to vector<8x16x32xbf16>
    %30 = vector.shape_cast %29 : vector<8x16x32xbf16> to vector<8x1x16x32xbf16>
    %31 = vector.shape_cast %30 : vector<8x1x16x32xbf16> to vector<8x1x16x32xbf16>
    %32 = vector.broadcast %31 : vector<8x1x16x32xbf16> to vector<8x2x16x32xbf16>
    %33 = vector.shape_cast %32 : vector<8x2x16x32xbf16> to vector<16x16x32xbf16>
    %c1 = arith.constant 1 : index
    %c1_49 = arith.constant 1 : index
    %c0_50 = arith.constant 0 : index
    %34 = vector.load %arg9[%c1, %c1_49, %c0_50] : memref<18x18x32xbf16, #tpu.memory_space<vmem>>, vector<16x16x32xbf16>
    tpu.vector_store %arg9[%c1, %c1_49, %c0_50], %33 {strides = array<i32>} : memref<18x18x32xbf16, #tpu.memory_space<vmem>>, vector<16x16x32xbf16>,
    %c0_51 = arith.constant 0 : index
    %c0_52 = arith.constant 0 : index
    %c0_53 = arith.constant 0 : index
    %c0_54 = arith.constant 0 : index
    %35 = vector.load %arg2[%c0_51, %c0_52, %c0_53, %c0_54] : memref<1x16x16x16xbf16, #tpu.memory_space<vmem>>, vector<1x16x16x16xbf16>
    %36 = vector.shape_cast %35 : vector<1x16x16x16xbf16> to vector<16x16x16xbf16>
    %c1_55 = arith.constant 1 : index
    %c1_56 = arith.constant 1 : index
    %c0_57 = arith.constant 0 : index
    %37 = vector.load %arg10[%c1_55, %c1_56, %c0_57] : memref<18x18x16xbf16, #tpu.memory_space<vmem>>, vector<16x16x16xbf16>
    tpu.vector_store %arg10[%c1_55, %c1_56, %c0_57], %36 {strides = array<i32>} : memref<18x18x16xbf16, #tpu.memory_space<vmem>>, vector<16x16x16xbf16>,
    %c0_58 = arith.constant 0 : index
    %c0_59 = arith.constant 0 : index
    %c0_60 = arith.constant 0 : index
    %38 = vector.load %arg9[%c0_58, %c0_59, %c0_60] : memref<18x18x32xbf16, #tpu.memory_space<vmem>>, vector<18x18x32xbf16>
    %cst_61 = arith.constant 0.000000e+00 : f32
    %39 = vector.broadcast %cst_61 : f32 to vector<256x16xf32>
    %40 = vector.extract_strided_slice %38 {offsets = [0, 0, 0], sizes = [16, 16, 32], strides = [1, 1, 1]} : vector<18x18x32xbf16> to vector<16x16x32xbf16>
    %41 = vector.shape_cast %40 : vector<16x16x32xbf16> to vector<256x32xbf16>
    %c0_62 = arith.constant 0 : index
    %c0_63 = arith.constant 0 : index
    %c0_64 = arith.constant 0 : index
    %42 = vector.load %arg3[%c0_62, %c0_63, %c0_64] : memref<9x32x16xbf16, #tpu.memory_space<vmem>>, vector<1x32x16xbf16>
    %43 = vector.shape_cast %42 : vector<1x32x16xbf16> to vector<32x16xbf16>
    %cst_65 = arith.constant dense<0.000000e+00> : vector<256x16xf32>
    %44 = tpu.matmul %41, %43, %cst_65 {dimension_numbers = #tpu.dot_dimension_numbers<[1], [0], [0], [1], [0, 0, 1, 1], [], []>} : vector<256x32xbf16>, vector<32x16xbf16>, vector<256x16xf32> -> vector<256x16xf32>
    %45 = arith.addf %39, %44 : vector<256x16xf32>
    %46 = vector.extract_strided_slice %38 {offsets = [0, 1, 0], sizes = [16, 16, 32], strides = [1, 1, 1]} : vector<18x18x32xbf16> to vector<16x16x32xbf16>
    %47 = vector.shape_cast %46 : vector<16x16x32xbf16> to vector<256x32xbf16>
    %c1_66 = arith.constant 1 : index
    %c0_67 = arith.constant 0 : index
    %c0_68 = arith.constant 0 : index
    %48 = vector.load %arg3[%c1_66, %c0_67, %c0_68] : memref<9x32x16xbf16, #tpu.memory_space<vmem>>, vector<1x32x16xbf16>
    %49 = vector.shape_cast %48 : vector<1x32x16xbf16> to vector<32x16xbf16>
    %cst_69 = arith.constant dense<0.000000e+00> : vector<256x16xf32>
    %50 = tpu.matmul %47, %49, %cst_69 {dimension_numbers = #tpu.dot_dimension_numbers<[1], [0], [0], [1], [0, 0, 1, 1], [], []>} : vector<256x32xbf16>, vector<32x16xbf16>, vector<256x16xf32> -> vector<256x16xf32>
    %51 = arith.addf %45, %50 : vector<256x16xf32>
    %52 = vector.extract_strided_slice %38 {offsets = [0, 2, 0], sizes = [16, 16, 32], strides = [1, 1, 1]} : vector<18x18x32xbf16> to vector<16x16x32xbf16>
    %53 = vector.shape_cast %52 : vector<16x16x32xbf16> to vector<256x32xbf16>
    %c2 = arith.constant 2 : index
    %c0_70 = arith.constant 0 : index
    %c0_71 = arith.constant 0 : index
    %54 = vector.load %arg3[%c2, %c0_70, %c0_71] : memref<9x32x16xbf16, #tpu.memory_space<vmem>>, vector<1x32x16xbf16>
    %55 = vector.shape_cast %54 : vector<1x32x16xbf16> to vector<32x16xbf16>
    %cst_72 = arith.constant dense<0.000000e+00> : vector<256x16xf32>
    %56 = tpu.matmul %53, %55, %cst_72 {dimension_numbers = #tpu.dot_dimension_numbers<[1], [0], [0], [1], [0, 0, 1, 1], [], []>} : vector<256x32xbf16>, vector<32x16xbf16>, vector<256x16xf32> -> vector<256x16xf32>
    %57 = arith.addf %51, %56 : vector<256x16xf32>
    %58 = vector.extract_strided_slice %38 {offsets = [1, 0, 0], sizes = [16, 16, 32], strides = [1, 1, 1]} : vector<18x18x32xbf16> to vector<16x16x32xbf16>
    %59 = vector.shape_cast %58 : vector<16x16x32xbf16> to vector<256x32xbf16>
    %c3 = arith.constant 3 : index
    %c0_73 = arith.constant 0 : index
    %c0_74 = arith.constant 0 : index
    %60 = vector.load %arg3[%c3, %c0_73, %c0_74] : memref<9x32x16xbf16, #tpu.memory_space<vmem>>, vector<1x32x16xbf16>
    %61 = vector.shape_cast %60 : vector<1x32x16xbf16> to vector<32x16xbf16>
    %cst_75 = arith.constant dense<0.000000e+00> : vector<256x16xf32>
    %62 = tpu.matmul %59, %61, %cst_75 {dimension_numbers = #tpu.dot_dimension_numbers<[1], [0], [0], [1], [0, 0, 1, 1], [], []>} : vector<256x32xbf16>, vector<32x16xbf16>, vector<256x16xf32> -> vector<256x16xf32>
    %63 = arith.addf %57, %62 : vector<256x16xf32>
    %64 = vector.extract_strided_slice %38 {offsets = [1, 1, 0], sizes = [16, 16, 32], strides = [1, 1, 1]} : vector<18x18x32xbf16> to vector<16x16x32xbf16>
    %65 = vector.shape_cast %64 : vector<16x16x32xbf16> to vector<256x32xbf16>
    %c4 = arith.constant 4 : index
    %c0_76 = arith.constant 0 : index
    %c0_77 = arith.constant 0 : index
    %66 = vector.load %arg3[%c4, %c0_76, %c0_77] : memref<9x32x16xbf16, #tpu.memory_space<vmem>>, vector<1x32x16xbf16>
    %67 = vector.shape_cast %66 : vector<1x32x16xbf16> to vector<32x16xbf16>
    %cst_78 = arith.constant dense<0.000000e+00> : vector<256x16xf32>
    %68 = tpu.matmul %65, %67, %cst_78 {dimension_numbers = #tpu.dot_dimension_numbers<[1], [0], [0], [1], [0, 0, 1, 1], [], []>} : vector<256x32xbf16>, vector<32x16xbf16>, vector<256x16xf32> -> vector<256x16xf32>
    %69 = arith.addf %63, %68 : vector<256x16xf32>
    %70 = vector.extract_strided_slice %38 {offsets = [1, 2, 0], sizes = [16, 16, 32], strides = [1, 1, 1]} : vector<18x18x32xbf16> to vector<16x16x32xbf16>
    %71 = vector.shape_cast %70 : vector<16x16x32xbf16> to vector<256x32xbf16>
    %c5 = arith.constant 5 : index
    %c0_79 = arith.constant 0 : index
    %c0_80 = arith.constant 0 : index
    %72 = vector.load %arg3[%c5, %c0_79, %c0_80] : memref<9x32x16xbf16, #tpu.memory_space<vmem>>, vector<1x32x16xbf16>
    %73 = vector.shape_cast %72 : vector<1x32x16xbf16> to vector<32x16xbf16>
    %cst_81 = arith.constant dense<0.000000e+00> : vector<256x16xf32>
    %74 = tpu.matmul %71, %73, %cst_81 {dimension_numbers = #tpu.dot_dimension_numbers<[1], [0], [0], [1], [0, 0, 1, 1], [], []>} : vector<256x32xbf16>, vector<32x16xbf16>, vector<256x16xf32> -> vector<256x16xf32>
    %75 = arith.addf %69, %74 : vector<256x16xf32>
    %76 = vector.extract_strided_slice %38 {offsets = [2, 0, 0], sizes = [16, 16, 32], strides = [1, 1, 1]} : vector<18x18x32xbf16> to vector<16x16x32xbf16>
    %77 = vector.shape_cast %76 : vector<16x16x32xbf16> to vector<256x32xbf16>
    %c6 = arith.constant 6 : index
    %c0_82 = arith.constant 0 : index
    %c0_83 = arith.constant 0 : index
    %78 = vector.load %arg3[%c6, %c0_82, %c0_83] : memref<9x32x16xbf16, #tpu.memory_space<vmem>>, vector<1x32x16xbf16>
    %79 = vector.shape_cast %78 : vector<1x32x16xbf16> to vector<32x16xbf16>
    %cst_84 = arith.constant dense<0.000000e+00> : vector<256x16xf32>
    %80 = tpu.matmul %77, %79, %cst_84 {dimension_numbers = #tpu.dot_dimension_numbers<[1], [0], [0], [1], [0, 0, 1, 1], [], []>} : vector<256x32xbf16>, vector<32x16xbf16>, vector<256x16xf32> -> vector<256x16xf32>
    %81 = arith.addf %75, %80 : vector<256x16xf32>
    %82 = vector.extract_strided_slice %38 {offsets = [2, 1, 0], sizes = [16, 16, 32], strides = [1, 1, 1]} : vector<18x18x32xbf16> to vector<16x16x32xbf16>
    %83 = vector.shape_cast %82 : vector<16x16x32xbf16> to vector<256x32xbf16>
    %c7 = arith.constant 7 : index
    %c0_85 = arith.constant 0 : index
    %c0_86 = arith.constant 0 : index
    %84 = vector.load %arg3[%c7, %c0_85, %c0_86] : memref<9x32x16xbf16, #tpu.memory_space<vmem>>, vector<1x32x16xbf16>
    %85 = vector.shape_cast %84 : vector<1x32x16xbf16> to vector<32x16xbf16>
    %cst_87 = arith.constant dense<0.000000e+00> : vector<256x16xf32>
    %86 = tpu.matmul %83, %85, %cst_87 {dimension_numbers = #tpu.dot_dimension_numbers<[1], [0], [0], [1], [0, 0, 1, 1], [], []>} : vector<256x32xbf16>, vector<32x16xbf16>, vector<256x16xf32> -> vector<256x16xf32>
    %87 = arith.addf %81, %86 : vector<256x16xf32>
    %88 = vector.extract_strided_slice %38 {offsets = [2, 2, 0], sizes = [16, 16, 32], strides = [1, 1, 1]} : vector<18x18x32xbf16> to vector<16x16x32xbf16>
    %89 = vector.shape_cast %88 : vector<16x16x32xbf16> to vector<256x32xbf16>
    %c8 = arith.constant 8 : index
    %c0_88 = arith.constant 0 : index
    %c0_89 = arith.constant 0 : index
    %90 = vector.load %arg3[%c8, %c0_88, %c0_89] : memref<9x32x16xbf16, #tpu.memory_space<vmem>>, vector<1x32x16xbf16>
    %91 = vector.shape_cast %90 : vector<1x32x16xbf16> to vector<32x16xbf16>
    %cst_90 = arith.constant dense<0.000000e+00> : vector<256x16xf32>
    %92 = tpu.matmul %89, %91, %cst_90 {dimension_numbers = #tpu.dot_dimension_numbers<[1], [0], [0], [1], [0, 0, 1, 1], [], []>} : vector<256x32xbf16>, vector<32x16xbf16>, vector<256x16xf32> -> vector<256x16xf32>
    %93 = arith.addf %87, %92 : vector<256x16xf32>
    %c0_91 = arith.constant 0 : index
    %c0_92 = arith.constant 0 : index
    %94 = vector.load %arg4[%c0_91, %c0_92] : memref<1x16xf32, #tpu.memory_space<vmem>>, vector<1x16xf32>
    %95 = vector.broadcast %94 : vector<1x16xf32> to vector<256x16xf32>
    %96 = arith.addf %93, %95 : vector<256x16xf32>
    %cst_93 = arith.constant 0.000000e+00 : f32
    %97 = vector.broadcast %cst_93 : f32 to vector<256x16xf32>
    %98 = arith.maximumf %96, %97 : vector<256x16xf32>
    %99 = vector.shape_cast %98 : vector<256x16xf32> to vector<16x16x16xf32>
    %100 = arith.truncf %99 : vector<16x16x16xf32> to vector<16x16x16xbf16>
    %c1_94 = arith.constant 1 : index
    %c1_95 = arith.constant 1 : index
    %c0_96 = arith.constant 0 : index
    %101 = vector.load %arg11[%c1_94, %c1_95, %c0_96] : memref<18x18x16xbf16, #tpu.memory_space<vmem>>, vector<16x16x16xbf16>
    tpu.vector_store %arg11[%c1_94, %c1_95, %c0_96], %100 {strides = array<i32>} : memref<18x18x16xbf16, #tpu.memory_space<vmem>>, vector<16x16x16xbf16>,
    %c0_97 = arith.constant 0 : index
    %c0_98 = arith.constant 0 : index
    %c0_99 = arith.constant 0 : index
    %102 = vector.load %arg10[%c0_97, %c0_98, %c0_99] : memref<18x18x16xbf16, #tpu.memory_space<vmem>>, vector<18x18x16xbf16>
    %c0_100 = arith.constant 0 : index
    %c0_101 = arith.constant 0 : index
    %c0_102 = arith.constant 0 : index
    %103 = vector.load %arg11[%c0_100, %c0_101, %c0_102] : memref<18x18x16xbf16, #tpu.memory_space<vmem>>, vector<18x18x16xbf16>
    %cst_103 = arith.constant 0.000000e+00 : f32
    %104 = vector.broadcast %cst_103 : f32 to vector<256x16xf32>
    %105 = vector.extract_strided_slice %102 {offsets = [0, 0, 0], sizes = [16, 16, 16], strides = [1, 1, 1]} : vector<18x18x16xbf16> to vector<16x16x16xbf16>
    %106 = vector.shape_cast %105 : vector<16x16x16xbf16> to vector<256x16xbf16>
    %107 = vector.extract_strided_slice %103 {offsets = [0, 0, 0], sizes = [16, 16, 16], strides = [1, 1, 1]} : vector<18x18x16xbf16> to vector<16x16x16xbf16>
    %108 = vector.shape_cast %107 : vector<16x16x16xbf16> to vector<256x16xbf16>
    %c0_104 = arith.constant 0 : index
    %c0_105 = arith.constant 0 : index
    %c0_106 = arith.constant 0 : index
    %109 = vector.load %arg5[%c0_104, %c0_105, %c0_106] : memref<9x16x16xbf16, #tpu.memory_space<vmem>>, vector<1x16x16xbf16>
    %110 = vector.shape_cast %109 : vector<1x16x16xbf16> to vector<16x16xbf16>
    %cst_107 = arith.constant dense<0.000000e+00> : vector<256x16xf32>
    %111 = tpu.matmul %106, %110, %cst_107 {dimension_numbers = #tpu.dot_dimension_numbers<[1], [0], [0], [1], [0, 0, 1, 1], [], []>} : vector<256x16xbf16>, vector<16x16xbf16>, vector<256x16xf32> -> vector<256x16xf32>
    %112 = arith.addf %104, %111 : vector<256x16xf32>
    %c0_108 = arith.constant 0 : index
    %c0_109 = arith.constant 0 : index
    %c0_110 = arith.constant 0 : index
    %113 = vector.load %arg6[%c0_108, %c0_109, %c0_110] : memref<9x16x16xbf16, #tpu.memory_space<vmem>>, vector<1x16x16xbf16>
    %114 = vector.shape_cast %113 : vector<1x16x16xbf16> to vector<16x16xbf16>
    %cst_111 = arith.constant dense<0.000000e+00> : vector<256x16xf32>
    %115 = tpu.matmul %108, %114, %cst_111 {dimension_numbers = #tpu.dot_dimension_numbers<[1], [0], [0], [1], [0, 0, 1, 1], [], []>} : vector<256x16xbf16>, vector<16x16xbf16>, vector<256x16xf32> -> vector<256x16xf32>
    %116 = arith.addf %112, %115 : vector<256x16xf32>
    %117 = vector.extract_strided_slice %102 {offsets = [0, 1, 0], sizes = [16, 16, 16], strides = [1, 1, 1]} : vector<18x18x16xbf16> to vector<16x16x16xbf16>
    %118 = vector.shape_cast %117 : vector<16x16x16xbf16> to vector<256x16xbf16>
    %119 = vector.extract_strided_slice %103 {offsets = [0, 1, 0], sizes = [16, 16, 16], strides = [1, 1, 1]} : vector<18x18x16xbf16> to vector<16x16x16xbf16>
    %120 = vector.shape_cast %119 : vector<16x16x16xbf16> to vector<256x16xbf16>
    %c1_112 = arith.constant 1 : index
    %c0_113 = arith.constant 0 : index
    %c0_114 = arith.constant 0 : index
    %121 = vector.load %arg5[%c1_112, %c0_113, %c0_114] : memref<9x16x16xbf16, #tpu.memory_space<vmem>>, vector<1x16x16xbf16>
    %122 = vector.shape_cast %121 : vector<1x16x16xbf16> to vector<16x16xbf16>
    %cst_115 = arith.constant dense<0.000000e+00> : vector<256x16xf32>
    %123 = tpu.matmul %118, %122, %cst_115 {dimension_numbers = #tpu.dot_dimension_numbers<[1], [0], [0], [1], [0, 0, 1, 1], [], []>} : vector<256x16xbf16>, vector<16x16xbf16>, vector<256x16xf32> -> vector<256x16xf32>
    %124 = arith.addf %116, %123 : vector<256x16xf32>
    %c1_116 = arith.constant 1 : index
    %c0_117 = arith.constant 0 : index
    %c0_118 = arith.constant 0 : index
    %125 = vector.load %arg6[%c1_116, %c0_117, %c0_118] : memref<9x16x16xbf16, #tpu.memory_space<vmem>>, vector<1x16x16xbf16>
    %126 = vector.shape_cast %125 : vector<1x16x16xbf16> to vector<16x16xbf16>
    %cst_119 = arith.constant dense<0.000000e+00> : vector<256x16xf32>
    %127 = tpu.matmul %120, %126, %cst_119 {dimension_numbers = #tpu.dot_dimension_numbers<[1], [0], [0], [1], [0, 0, 1, 1], [], []>} : vector<256x16xbf16>, vector<16x16xbf16>, vector<256x16xf32> -> vector<256x16xf32>
    %128 = arith.addf %124, %127 : vector<256x16xf32>
    %129 = vector.extract_strided_slice %102 {offsets = [0, 2, 0], sizes = [16, 16, 16], strides = [1, 1, 1]} : vector<18x18x16xbf16> to vector<16x16x16xbf16>
    %130 = vector.shape_cast %129 : vector<16x16x16xbf16> to vector<256x16xbf16>
    %131 = vector.extract_strided_slice %103 {offsets = [0, 2, 0], sizes = [16, 16, 16], strides = [1, 1, 1]} : vector<18x18x16xbf16> to vector<16x16x16xbf16>
    %132 = vector.shape_cast %131 : vector<16x16x16xbf16> to vector<256x16xbf16>
    %c2_120 = arith.constant 2 : index
    %c0_121 = arith.constant 0 : index
    %c0_122 = arith.constant 0 : index
    %133 = vector.load %arg5[%c2_120, %c0_121, %c0_122] : memref<9x16x16xbf16, #tpu.memory_space<vmem>>, vector<1x16x16xbf16>
    %134 = vector.shape_cast %133 : vector<1x16x16xbf16> to vector<16x16xbf16>
    %cst_123 = arith.constant dense<0.000000e+00> : vector<256x16xf32>
    %135 = tpu.matmul %130, %134, %cst_123 {dimension_numbers = #tpu.dot_dimension_numbers<[1], [0], [0], [1], [0, 0, 1, 1], [], []>} : vector<256x16xbf16>, vector<16x16xbf16>, vector<256x16xf32> -> vector<256x16xf32>
    %136 = arith.addf %128, %135 : vector<256x16xf32>
    %c2_124 = arith.constant 2 : index
    %c0_125 = arith.constant 0 : index
    %c0_126 = arith.constant 0 : index
    %137 = vector.load %arg6[%c2_124, %c0_125, %c0_126] : memref<9x16x16xbf16, #tpu.memory_space<vmem>>, vector<1x16x16xbf16>
    %138 = vector.shape_cast %137 : vector<1x16x16xbf16> to vector<16x16xbf16>
    %cst_127 = arith.constant dense<0.000000e+00> : vector<256x16xf32>
    %139 = tpu.matmul %132, %138, %cst_127 {dimension_numbers = #tpu.dot_dimension_numbers<[1], [0], [0], [1], [0, 0, 1, 1], [], []>} : vector<256x16xbf16>, vector<16x16xbf16>, vector<256x16xf32> -> vector<256x16xf32>
    %140 = arith.addf %136, %139 : vector<256x16xf32>
    %141 = vector.extract_strided_slice %102 {offsets = [1, 0, 0], sizes = [16, 16, 16], strides = [1, 1, 1]} : vector<18x18x16xbf16> to vector<16x16x16xbf16>
    %142 = vector.shape_cast %141 : vector<16x16x16xbf16> to vector<256x16xbf16>
    %143 = vector.extract_strided_slice %103 {offsets = [1, 0, 0], sizes = [16, 16, 16], strides = [1, 1, 1]} : vector<18x18x16xbf16> to vector<16x16x16xbf16>
    %144 = vector.shape_cast %143 : vector<16x16x16xbf16> to vector<256x16xbf16>
    %c3_128 = arith.constant 3 : index
    %c0_129 = arith.constant 0 : index
    %c0_130 = arith.constant 0 : index
    %145 = vector.load %arg5[%c3_128, %c0_129, %c0_130] : memref<9x16x16xbf16, #tpu.memory_space<vmem>>, vector<1x16x16xbf16>
    %146 = vector.shape_cast %145 : vector<1x16x16xbf16> to vector<16x16xbf16>
    %cst_131 = arith.constant dense<0.000000e+00> : vector<256x16xf32>
    %147 = tpu.matmul %142, %146, %cst_131 {dimension_numbers = #tpu.dot_dimension_numbers<[1], [0], [0], [1], [0, 0, 1, 1], [], []>} : vector<256x16xbf16>, vector<16x16xbf16>, vector<256x16xf32> -> vector<256x16xf32>
    %148 = arith.addf %140, %147 : vector<256x16xf32>
    %c3_132 = arith.constant 3 : index
    %c0_133 = arith.constant 0 : index
    %c0_134 = arith.constant 0 : index
    %149 = vector.load %arg6[%c3_132, %c0_133, %c0_134] : memref<9x16x16xbf16, #tpu.memory_space<vmem>>, vector<1x16x16xbf16>
    %150 = vector.shape_cast %149 : vector<1x16x16xbf16> to vector<16x16xbf16>
    %cst_135 = arith.constant dense<0.000000e+00> : vector<256x16xf32>
    %151 = tpu.matmul %144, %150, %cst_135 {dimension_numbers = #tpu.dot_dimension_numbers<[1], [0], [0], [1], [0, 0, 1, 1], [], []>} : vector<256x16xbf16>, vector<16x16xbf16>, vector<256x16xf32> -> vector<256x16xf32>
    %152 = arith.addf %148, %151 : vector<256x16xf32>
    %153 = vector.extract_strided_slice %102 {offsets = [1, 1, 0], sizes = [16, 16, 16], strides = [1, 1, 1]} : vector<18x18x16xbf16> to vector<16x16x16xbf16>
    %154 = vector.shape_cast %153 : vector<16x16x16xbf16> to vector<256x16xbf16>
    %155 = vector.extract_strided_slice %103 {offsets = [1, 1, 0], sizes = [16, 16, 16], strides = [1, 1, 1]} : vector<18x18x16xbf16> to vector<16x16x16xbf16>
    %156 = vector.shape_cast %155 : vector<16x16x16xbf16> to vector<256x16xbf16>
    %c4_136 = arith.constant 4 : index
    %c0_137 = arith.constant 0 : index
    %c0_138 = arith.constant 0 : index
    %157 = vector.load %arg5[%c4_136, %c0_137, %c0_138] : memref<9x16x16xbf16, #tpu.memory_space<vmem>>, vector<1x16x16xbf16>
    %158 = vector.shape_cast %157 : vector<1x16x16xbf16> to vector<16x16xbf16>
    %cst_139 = arith.constant dense<0.000000e+00> : vector<256x16xf32>
    %159 = tpu.matmul %154, %158, %cst_139 {dimension_numbers = #tpu.dot_dimension_numbers<[1], [0], [0], [1], [0, 0, 1, 1], [], []>} : vector<256x16xbf16>, vector<16x16xbf16>, vector<256x16xf32> -> vector<256x16xf32>
    %160 = arith.addf %152, %159 : vector<256x16xf32>
    %c4_140 = arith.constant 4 : index
    %c0_141 = arith.constant 0 : index
    %c0_142 = arith.constant 0 : index
    %161 = vector.load %arg6[%c4_140, %c0_141, %c0_142] : memref<9x16x16xbf16, #tpu.memory_space<vmem>>, vector<1x16x16xbf16>
    %162 = vector.shape_cast %161 : vector<1x16x16xbf16> to vector<16x16xbf16>
    %cst_143 = arith.constant dense<0.000000e+00> : vector<256x16xf32>
    %163 = tpu.matmul %156, %162, %cst_143 {dimension_numbers = #tpu.dot_dimension_numbers<[1], [0], [0], [1], [0, 0, 1, 1], [], []>} : vector<256x16xbf16>, vector<16x16xbf16>, vector<256x16xf32> -> vector<256x16xf32>
    %164 = arith.addf %160, %163 : vector<256x16xf32>
    %165 = vector.extract_strided_slice %102 {offsets = [1, 2, 0], sizes = [16, 16, 16], strides = [1, 1, 1]} : vector<18x18x16xbf16> to vector<16x16x16xbf16>
    %166 = vector.shape_cast %165 : vector<16x16x16xbf16> to vector<256x16xbf16>
    %167 = vector.extract_strided_slice %103 {offsets = [1, 2, 0], sizes = [16, 16, 16], strides = [1, 1, 1]} : vector<18x18x16xbf16> to vector<16x16x16xbf16>
    %168 = vector.shape_cast %167 : vector<16x16x16xbf16> to vector<256x16xbf16>
    %c5_144 = arith.constant 5 : index
    %c0_145 = arith.constant 0 : index
    %c0_146 = arith.constant 0 : index
    %169 = vector.load %arg5[%c5_144, %c0_145, %c0_146] : memref<9x16x16xbf16, #tpu.memory_space<vmem>>, vector<1x16x16xbf16>
    %170 = vector.shape_cast %169 : vector<1x16x16xbf16> to vector<16x16xbf16>
    %cst_147 = arith.constant dense<0.000000e+00> : vector<256x16xf32>
    %171 = tpu.matmul %166, %170, %cst_147 {dimension_numbers = #tpu.dot_dimension_numbers<[1], [0], [0], [1], [0, 0, 1, 1], [], []>} : vector<256x16xbf16>, vector<16x16xbf16>, vector<256x16xf32> -> vector<256x16xf32>
    %172 = arith.addf %164, %171 : vector<256x16xf32>
    %c5_148 = arith.constant 5 : index
    %c0_149 = arith.constant 0 : index
    %c0_150 = arith.constant 0 : index
    %173 = vector.load %arg6[%c5_148, %c0_149, %c0_150] : memref<9x16x16xbf16, #tpu.memory_space<vmem>>, vector<1x16x16xbf16>
    %174 = vector.shape_cast %173 : vector<1x16x16xbf16> to vector<16x16xbf16>
    %cst_151 = arith.constant dense<0.000000e+00> : vector<256x16xf32>
    %175 = tpu.matmul %168, %174, %cst_151 {dimension_numbers = #tpu.dot_dimension_numbers<[1], [0], [0], [1], [0, 0, 1, 1], [], []>} : vector<256x16xbf16>, vector<16x16xbf16>, vector<256x16xf32> -> vector<256x16xf32>
    %176 = arith.addf %172, %175 : vector<256x16xf32>
    %177 = vector.extract_strided_slice %102 {offsets = [2, 0, 0], sizes = [16, 16, 16], strides = [1, 1, 1]} : vector<18x18x16xbf16> to vector<16x16x16xbf16>
    %178 = vector.shape_cast %177 : vector<16x16x16xbf16> to vector<256x16xbf16>
    %179 = vector.extract_strided_slice %103 {offsets = [2, 0, 0], sizes = [16, 16, 16], strides = [1, 1, 1]} : vector<18x18x16xbf16> to vector<16x16x16xbf16>
    %180 = vector.shape_cast %179 : vector<16x16x16xbf16> to vector<256x16xbf16>
    %c6_152 = arith.constant 6 : index
    %c0_153 = arith.constant 0 : index
    %c0_154 = arith.constant 0 : index
    %181 = vector.load %arg5[%c6_152, %c0_153, %c0_154] : memref<9x16x16xbf16, #tpu.memory_space<vmem>>, vector<1x16x16xbf16>
    %182 = vector.shape_cast %181 : vector<1x16x16xbf16> to vector<16x16xbf16>
    %cst_155 = arith.constant dense<0.000000e+00> : vector<256x16xf32>
    %183 = tpu.matmul %178, %182, %cst_155 {dimension_numbers = #tpu.dot_dimension_numbers<[1], [0], [0], [1], [0, 0, 1, 1], [], []>} : vector<256x16xbf16>, vector<16x16xbf16>, vector<256x16xf32> -> vector<256x16xf32>
    %184 = arith.addf %176, %183 : vector<256x16xf32>
    %c6_156 = arith.constant 6 : index
    %c0_157 = arith.constant 0 : index
    %c0_158 = arith.constant 0 : index
    %185 = vector.load %arg6[%c6_156, %c0_157, %c0_158] : memref<9x16x16xbf16, #tpu.memory_space<vmem>>, vector<1x16x16xbf16>
    %186 = vector.shape_cast %185 : vector<1x16x16xbf16> to vector<16x16xbf16>
    %cst_159 = arith.constant dense<0.000000e+00> : vector<256x16xf32>
    %187 = tpu.matmul %180, %186, %cst_159 {dimension_numbers = #tpu.dot_dimension_numbers<[1], [0], [0], [1], [0, 0, 1, 1], [], []>} : vector<256x16xbf16>, vector<16x16xbf16>, vector<256x16xf32> -> vector<256x16xf32>
    %188 = arith.addf %184, %187 : vector<256x16xf32>
    %189 = vector.extract_strided_slice %102 {offsets = [2, 1, 0], sizes = [16, 16, 16], strides = [1, 1, 1]} : vector<18x18x16xbf16> to vector<16x16x16xbf16>
    %190 = vector.shape_cast %189 : vector<16x16x16xbf16> to vector<256x16xbf16>
    %191 = vector.extract_strided_slice %103 {offsets = [2, 1, 0], sizes = [16, 16, 16], strides = [1, 1, 1]} : vector<18x18x16xbf16> to vector<16x16x16xbf16>
    %192 = vector.shape_cast %191 : vector<16x16x16xbf16> to vector<256x16xbf16>
    %c7_160 = arith.constant 7 : index
    %c0_161 = arith.constant 0 : index
    %c0_162 = arith.constant 0 : index
    %193 = vector.load %arg5[%c7_160, %c0_161, %c0_162] : memref<9x16x16xbf16, #tpu.memory_space<vmem>>, vector<1x16x16xbf16>
    %194 = vector.shape_cast %193 : vector<1x16x16xbf16> to vector<16x16xbf16>
    %cst_163 = arith.constant dense<0.000000e+00> : vector<256x16xf32>
    %195 = tpu.matmul %190, %194, %cst_163 {dimension_numbers = #tpu.dot_dimension_numbers<[1], [0], [0], [1], [0, 0, 1, 1], [], []>} : vector<256x16xbf16>, vector<16x16xbf16>, vector<256x16xf32> -> vector<256x16xf32>
    %196 = arith.addf %188, %195 : vector<256x16xf32>
    %c7_164 = arith.constant 7 : index
    %c0_165 = arith.constant 0 : index
    %c0_166 = arith.constant 0 : index
    %197 = vector.load %arg6[%c7_164, %c0_165, %c0_166] : memref<9x16x16xbf16, #tpu.memory_space<vmem>>, vector<1x16x16xbf16>
    %198 = vector.shape_cast %197 : vector<1x16x16xbf16> to vector<16x16xbf16>
    %cst_167 = arith.constant dense<0.000000e+00> : vector<256x16xf32>
    %199 = tpu.matmul %192, %198, %cst_167 {dimension_numbers = #tpu.dot_dimension_numbers<[1], [0], [0], [1], [0, 0, 1, 1], [], []>} : vector<256x16xbf16>, vector<16x16xbf16>, vector<256x16xf32> -> vector<256x16xf32>
    %200 = arith.addf %196, %199 : vector<256x16xf32>
    %201 = vector.extract_strided_slice %102 {offsets = [2, 2, 0], sizes = [16, 16, 16], strides = [1, 1, 1]} : vector<18x18x16xbf16> to vector<16x16x16xbf16>
    %202 = vector.shape_cast %201 : vector<16x16x16xbf16> to vector<256x16xbf16>
    %203 = vector.extract_strided_slice %103 {offsets = [2, 2, 0], sizes = [16, 16, 16], strides = [1, 1, 1]} : vector<18x18x16xbf16> to vector<16x16x16xbf16>
    %204 = vector.shape_cast %203 : vector<16x16x16xbf16> to vector<256x16xbf16>
    %c8_168 = arith.constant 8 : index
    %c0_169 = arith.constant 0 : index
    %c0_170 = arith.constant 0 : index
    %205 = vector.load %arg5[%c8_168, %c0_169, %c0_170] : memref<9x16x16xbf16, #tpu.memory_space<vmem>>, vector<1x16x16xbf16>
    %206 = vector.shape_cast %205 : vector<1x16x16xbf16> to vector<16x16xbf16>
    %cst_171 = arith.constant dense<0.000000e+00> : vector<256x16xf32>
    %207 = tpu.matmul %202, %206, %cst_171 {dimension_numbers = #tpu.dot_dimension_numbers<[1], [0], [0], [1], [0, 0, 1, 1], [], []>} : vector<256x16xbf16>, vector<16x16xbf16>, vector<256x16xf32> -> vector<256x16xf32>
    %208 = arith.addf %200, %207 : vector<256x16xf32>
    %c8_172 = arith.constant 8 : index
    %c0_173 = arith.constant 0 : index
    %c0_174 = arith.constant 0 : index
    %209 = vector.load %arg6[%c8_172, %c0_173, %c0_174] : memref<9x16x16xbf16, #tpu.memory_space<vmem>>, vector<1x16x16xbf16>
    %210 = vector.shape_cast %209 : vector<1x16x16xbf16> to vector<16x16xbf16>
    %cst_175 = arith.constant dense<0.000000e+00> : vector<256x16xf32>
    %211 = tpu.matmul %204, %210, %cst_175 {dimension_numbers = #tpu.dot_dimension_numbers<[1], [0], [0], [1], [0, 0, 1, 1], [], []>} : vector<256x16xbf16>, vector<16x16xbf16>, vector<256x16xf32> -> vector<256x16xf32>
    %212 = arith.addf %208, %211 : vector<256x16xf32>
    %c0_176 = arith.constant 0 : index
    %c0_177 = arith.constant 0 : index
    %213 = vector.load %arg7[%c0_176, %c0_177] : memref<1x16xf32, #tpu.memory_space<vmem>>, vector<1x16xf32>
    %214 = vector.broadcast %213 : vector<1x16xf32> to vector<256x16xf32>
    %215 = arith.addf %212, %214 : vector<256x16xf32>
    %cst_178 = arith.constant 0.000000e+00 : f32
    %216 = vector.broadcast %cst_178 : f32 to vector<256x16xf32>
    %217 = arith.maximumf %215, %216 : vector<256x16xf32>
    %218 = tpu.transpose %217, [1, 0] : vector<256x16xf32> -> vector<16x256xf32>
    %c0_179 = arith.constant 0 : index
    %c0_180 = arith.constant 0 : index
    %c0_181 = arith.constant 0 : index
    %219 = vector.load %arg8[%c0_179, %c0_180, %c0_181] : memref<1x16x256xf32, #tpu.memory_space<vmem>>, vector<1x16x256xf32>
    %220 = vector.shape_cast %219 : vector<1x16x256xf32> to vector<16x256xf32>
    %221 = vector.shape_cast %218 : vector<16x256xf32> to vector<1x16x256xf32>
    tpu.vector_store %arg8[%c0_179, %c0_180, %c0_181], %221 {strides = array<i32>} : memref<1x16x256xf32, #tpu.memory_space<vmem>>, vector<1x16x256xf32>,
    return
  }
  func.func @transform_0(%arg0: i32) -> (i32, i32, i32, i32) {
    %c0_i32 = arith.constant 0 : i32
    %c0_i32_0 = arith.constant 0 : i32
    %c0_i32_1 = arith.constant 0 : i32
    %c0_i32_2 = arith.constant 0 : i32
    return %arg0, %c0_i32, %c0_i32_0, %c0_i32_1 : i32, i32, i32, i32
  }
  func.func @transform_1(%arg0: i32) -> (i32, i32, i32, i32) {
    %c0_i32 = arith.constant 0 : i32
    %c0_i32_0 = arith.constant 0 : i32
    %c0_i32_1 = arith.constant 0 : i32
    %c0_i32_2 = arith.constant 0 : i32
    return %arg0, %c0_i32, %c0_i32_0, %c0_i32_1 : i32, i32, i32, i32
  }
  func.func @transform_2(%arg0: i32) -> (i32, i32, i32) {
    %c0_i32 = arith.constant 0 : i32
    %c0_i32_0 = arith.constant 0 : i32
    %c0_i32_1 = arith.constant 0 : i32
    %c0_i32_2 = arith.constant 0 : i32
    return %c0_i32, %c0_i32_0, %c0_i32_1 : i32, i32, i32
  }
  func.func @transform_3(%arg0: i32) -> (i32, i32) {
    %c0_i32 = arith.constant 0 : i32
    %c0_i32_0 = arith.constant 0 : i32
    %c0_i32_1 = arith.constant 0 : i32
    return %c0_i32, %c0_i32_0 : i32, i32
  }
  func.func @transform_4(%arg0: i32) -> (i32, i32, i32) {
    %c0_i32 = arith.constant 0 : i32
    %c0_i32_0 = arith.constant 0 : i32
    %c0_i32_1 = arith.constant 0 : i32
    %c0_i32_2 = arith.constant 0 : i32
    return %c0_i32, %c0_i32_0, %c0_i32_1 : i32, i32, i32
  }
  func.func @transform_5(%arg0: i32) -> (i32, i32, i32) {
    %c0_i32 = arith.constant 0 : i32
    %c0_i32_0 = arith.constant 0 : i32
    %c0_i32_1 = arith.constant 0 : i32
    %c0_i32_2 = arith.constant 0 : i32
    return %c0_i32, %c0_i32_0, %c0_i32_1 : i32, i32, i32
  }
  func.func @transform_6(%arg0: i32) -> (i32, i32) {
    %c0_i32 = arith.constant 0 : i32
    %c0_i32_0 = arith.constant 0 : i32
    %c0_i32_1 = arith.constant 0 : i32
    return %c0_i32, %c0_i32_0 : i32, i32
  }
  func.func @transform_7(%arg0: i32) -> (i32, i32, i32) {
    %c0_i32 = arith.constant 0 : i32
    %c0_i32_0 = arith.constant 0 : i32
    %c0_i32_1 = arith.constant 0 : i32
    return %arg0, %c0_i32, %c0_i32_0 : i32, i32, i32
  }
}

</mosaic_0001>

<llo_original>
// kernel: decoder_block_forward.1
$region0: #{decoder_block_forward.1}
  #allocation0 [shape = 'u32[]', space=smem, size = 0x4, offset = 0x4, fixed_abs, tag = 'smem constant byte address 0x4 - core index']
  #allocation1 [shape = 'u32[144,128]{1,0:T(1,128)}', space=vmem, size = 0x12000, scoped, tag = 'internal scratch']
  #allocation2 [shape = 'bf16[18,18,32]{2,1,0:T(8,128)(2,1)}', space=vmem, size = 0x1b000, scoped, tag = 'scratch operand']
  #allocation3 [shape = 'bf16[18,18,16]{2,1,0:T(8,128)(2,1)}', space=vmem, size = 0x1b000, scoped, tag = 'scratch operand']
  #allocation4 [shape = 'bf16[18,18,16]{2,1,0:T(8,128)(2,1)}', space=vmem, size = 0x1b000, scoped, tag = 'scratch operand']
  %s0 = inlined_call_operand.vmem [shape: bf16[2,8,8,32], index: 0, kind: input, shape index: {}]
  %s1 = inlined_call_operand.vmem [shape: bf16[2,16,16,16], index: 1, kind: input, shape index: {}]
  %s2 = inlined_call_operand.vmem [shape: bf16[9,32,16], index: 2, kind: input, shape index: {}]
  %s3 = inlined_call_operand.vmem [shape: f32[1,16], index: 3, kind: input, shape index: {}]
  %s4 = inlined_call_operand.vmem [shape: bf16[9,16,16], index: 4, kind: input, shape index: {}]
  %s5 = inlined_call_operand.vmem [shape: bf16[9,16,16], index: 5, kind: input, shape index: {}]
  %s6 = inlined_call_operand.vmem [shape: f32[1,16], index: 6, kind: input, shape index: {}]
  %s7 = inlined_call_operand.vmem [shape: f32[2,16,256], index: 7, kind: output, shape index: {}]
  %s8 = sld [smem:[#allocation0]]
  $region61: #{decoder_block_forward.1} parent=0
    _
  %s10 = ssub.s32 1, %s8
  %s11 = scalar_select 0, %s10, %s8
  loop: start=0, step=1, limit=4
  $region2: #{decoder_block_forward.1} parent=0 // loop_pre_header
    _
  $region3: #{decoder_block_forward.1} parent=0 // loop_header
    %s13 = sphi 0, %s17
    %p14 = scmp.ge.s32.totalorder %s13, 4
    %s23 = sphi 0, %s25
    %s26 = sphi 0, %s23
    %s27 = sphi 0, %s26
    %s43 = sphi 0, %s27
    %s49 = sphi 0, %s51
    %s52 = sphi 0, %s49
    %s53 = sphi 0, %s52
    %s69 = sphi 0, %s53
    %s73 = sphi 0, %s73
    %s75 = sphi 0, %s73
    %s76 = sphi 0, %s75
    %s90 = sphi 0, %s76
    %s94 = sphi 0, %s94
    %s96 = sphi 0, %s94
    %s97 = sphi 0, %s96
    %s111 = sphi 0, %s97
    %s115 = sphi 0, %s115
    %s117 = sphi 0, %s115
    %s118 = sphi 0, %s117
    %s132 = sphi 0, %s118
    %s136 = sphi 0, %s136
    %s138 = sphi 0, %s136
    %s139 = sphi 0, %s138
    %s153 = sphi 0, %s139
    %s157 = sphi 0, %s157
    %s159 = sphi 0, %s157
    %s160 = sphi 0, %s159
    %s174 = sphi 0, %s160
    %s180 = sphi 0, %s182
    %s183 = sphi 0, %s180
    %s184 = sphi 0, %s183
    %s200 = sphi 0, %s184
  $region4: #{decoder_block_forward.1} parent=0 // loop_header_branch
    %16 = sbr.rel (%p14) target = $region8
  $region5: #{decoder_block_forward.1} parent=0 // loop_body
    %s18 = ssub.s32 %s13, 1
    %s19 = ssub.s32 %s13, 2
    %s20 = sadd.s32 %s13, 1
    %s21 = ssub.s32 %s13, %s20
    %p22 = scmp.eq.s32.totalorder %s21, 0
    %s24 = sadd.s32 %s23, 1
    %s25 = scalar_select %p22, %s23, %s24
    %p28 = pneg %p22
    %p29 = scmp.eq.s32.totalorder %s13, 1
    %p30 = por %p28, %p29
    %p31 = scmp.ne.s32.totalorder %s23, %s26
    %p32 = scmp.eq.s32.totalorder %s13, 0
    %p33 = por %p31, %p32
    %p34 = scmp.ne.s32.totalorder %s23, %s26
    %p35 = scmp.eq.s32.totalorder %s18, 1
    %p36 = por %p34, %p35
    %p37 = scmp.ne.s32.totalorder %s26, %s27
    %p38 = scmp.eq.s32.totalorder %s18, 0
    %p39 = por %p37, %p38
    %p40 = scmp.ne.s32.totalorder %s26, %s27
    %p41 = scmp.eq.s32.totalorder %s19, 1
    %p42 = por %p40, %p41
    %p44 = scmp.ne.s32.totalorder %s27, %s43
    %p45 = scmp.eq.s32.totalorder %s19, 0
    %p46 = por %p44, %p45
    %s47 = ssub.s32 %s13, %s20
    %p48 = scmp.eq.s32.totalorder %s47, 0
    %s50 = sadd.s32 %s49, 1
    %s51 = scalar_select %p48, %s49, %s50
    %p54 = pneg %p48
    %p55 = scmp.eq.s32.totalorder %s13, 1
    %p56 = por %p54, %p55
    %p57 = scmp.ne.s32.totalorder %s49, %s52
    %p58 = scmp.eq.s32.totalorder %s13, 0
    %p59 = por %p57, %p58
    %p60 = scmp.ne.s32.totalorder %s49, %s52
    %p61 = scmp.eq.s32.totalorder %s18, 1
    %p62 = por %p60, %p61
    %p63 = scmp.ne.s32.totalorder %s52, %s53
    %p64 = scmp.eq.s32.totalorder %s18, 0
    %p65 = por %p63, %p64
    %p66 = scmp.ne.s32.totalorder %s52, %s53
    %p67 = scmp.eq.s32.totalorder %s19, 1
    %p68 = por %p66, %p67
    %p70 = scmp.ne.s32.totalorder %s53, %s69
    %p71 = scmp.eq.s32.totalorder %s19, 0
    %p72 = por %p70, %p71
    %s74 = sadd.s32 %s73, 1
    %p77 = scmp.eq.s32.totalorder %s13, 1
    %p78 = scmp.ne.s32.totalorder %s73, %s75
    %p79 = scmp.eq.s32.totalorder %s13, 0
    %p80 = por %p78, %p79
    %p81 = scmp.ne.s32.totalorder %s73, %s75
    %p82 = scmp.eq.s32.totalorder %s18, 1
    %p83 = por %p81, %p82
    %p84 = scmp.ne.s32.totalorder %s75, %s76
    %p85 = scmp.eq.s32.totalorder %s18, 0
    %p86 = por %p84, %p85
    %p87 = scmp.ne.s32.totalorder %s75, %s76
    %p88 = scmp.eq.s32.totalorder %s19, 1
    %p89 = por %p87, %p88
    %p91 = scmp.ne.s32.totalorder %s76, %s90
    %p92 = scmp.eq.s32.totalorder %s19, 0
    %p93 = por %p91, %p92
    %s95 = sadd.s32 %s94, 1
    %p98 = scmp.eq.s32.totalorder %s13, 1
    %p99 = scmp.ne.s32.totalorder %s94, %s96
    %p100 = scmp.eq.s32.totalorder %s13, 0
    %p101 = por %p99, %p100
    %p102 = scmp.ne.s32.totalorder %s94, %s96
    %p103 = scmp.eq.s32.totalorder %s18, 1
    %p104 = por %p102, %p103
    %p105 = scmp.ne.s32.totalorder %s96, %s97
    %p106 = scmp.eq.s32.totalorder %s18, 0
    %p107 = por %p105, %p106
    %p108 = scmp.ne.s32.totalorder %s96, %s97
    %p109 = scmp.eq.s32.totalorder %s19, 1
    %p110 = por %p108, %p109
    %p112 = scmp.ne.s32.totalorder %s97, %s111
    %p113 = scmp.eq.s32.totalorder %s19, 0
    %p114 = por %p112, %p113
    %s116 = sadd.s32 %s115, 1
    %p119 = scmp.eq.s32.totalorder %s13, 1
    %p120 = scmp.ne.s32.totalorder %s115, %s117
    %p121 = scmp.eq.s32.totalorder %s13, 0
    %p122 = por %p120, %p121
    %p123 = scmp.ne.s32.totalorder %s115, %s117
    %p124 = scmp.eq.s32.totalorder %s18, 1
    %p125 = por %p123, %p124
    %p126 = scmp.ne.s32.totalorder %s117, %s118
    %p127 = scmp.eq.s32.totalorder %s18, 0
    %p128 = por %p126, %p127
    %p129 = scmp.ne.s32.totalorder %s117, %s118
    %p130 = scmp.eq.s32.totalorder %s19, 1
    %p131 = por %p129, %p130
    %p133 = scmp.ne.s32.totalorder %s118, %s132
    %p134 = scmp.eq.s32.totalorder %s19, 0
    %p135 = por %p133, %p134
    %s137 = sadd.s32 %s136, 1
    %p140 = scmp.eq.s32.totalorder %s13, 1
    %p141 = scmp.ne.s32.totalorder %s136, %s138
    %p142 = scmp.eq.s32.totalorder %s13, 0
    %p143 = por %p141, %p142
    %p144 = scmp.ne.s32.totalorder %s136, %s138
    %p145 = scmp.eq.s32.totalorder %s18, 1
    %p146 = por %p144, %p145
    %p147 = scmp.ne.s32.totalorder %s138, %s139
    %p148 = scmp.eq.s32.totalorder %s18, 0
    %p149 = por %p147, %p148
    %p150 = scmp.ne.s32.totalorder %s138, %s139
    %p151 = scmp.eq.s32.totalorder %s19, 1
    %p152 = por %p150, %p151
    %p154 = scmp.ne.s32.totalorder %s139, %s153
    %p155 = scmp.eq.s32.totalorder %s19, 0
    %p156 = por %p154, %p155
    %s158 = sadd.s32 %s157, 1
    %p161 = scmp.eq.s32.totalorder %s13, 1
    %p162 = scmp.ne.s32.totalorder %s157, %s159
    %p163 = scmp.eq.s32.totalorder %s13, 0
    %p164 = por %p162, %p163
    %p165 = scmp.ne.s32.totalorder %s157, %s159
    %p166 = scmp.eq.s32.totalorder %s18, 1
    %p167 = por %p165, %p166
    %p168 = scmp.ne.s32.totalorder %s159, %s160
    %p169 = scmp.eq.s32.totalorder %s18, 0
    %p170 = por %p168, %p169
    %p171 = scmp.ne.s32.totalorder %s159, %s160
    %p172 = scmp.eq.s32.totalorder %s19, 1
    %p173 = por %p171, %p172
    %p175 = scmp.ne.s32.totalorder %s160, %s174
    %p176 = scmp.eq.s32.totalorder %s19, 0
    %p177 = por %p175, %p176
    %s178 = ssub.s32 %s13, %s20
    %p179 = scmp.eq.s32.totalorder %s178, 0
    %s181 = sadd.s32 %s180, 1
    %s182 = scalar_select %p179, %s180, %s181
    %p185 = pneg %p179
    %p186 = scmp.eq.s32.totalorder %s13, 1
    %p187 = por %p185, %p186
    %p188 = scmp.ne.s32.totalorder %s180, %s183
    %p189 = scmp.eq.s32.totalorder %s13, 0
    %p190 = por %p188, %p189
    %p191 = scmp.ne.s32.totalorder %s180, %s183
    %p192 = scmp.eq.s32.totalorder %s18, 1
    %p193 = por %p191, %p192
    %p194 = scmp.ne.s32.totalorder %s183, %s184
    %p195 = scmp.eq.s32.totalorder %s18, 0
    %p196 = por %p194, %p195
    %p197 = scmp.ne.s32.totalorder %s183, %s184
    %p198 = scmp.eq.s32.totalorder %s19, 1
    %p199 = por %p197, %p198
    %p201 = scmp.ne.s32.totalorder %s184, %s200
    %p202 = scmp.eq.s32.totalorder %s19, 0
    %p203 = por %p201, %p202
    %p204 = scmp.le.s32.totalorder 1, %s13
    %p205 = scmp.lt.s32.totalorder %s13, 3
    %p206 = pnand %p204, %p205
    %p207 = pneg %p206
    // Predicated region
    $region9: #{decoder_block_forward.1} parent=5 // pred_check
      _
    $region10: #{decoder_block_forward.1} parent=5 // pred_check_branch
      %209 = sbr.rel (%p206) target = $region12
    $region11: #{decoder_block_forward.1} parent=5 // pred_region
      %s210 = ssub.s32 %s13, 1
      // Predicated region
      $region13: #{decoder_block_forward.1} parent=11 // pred_check
        %p211 = pneg %p86
      $region14: #{decoder_block_forward.1} parent=11 // pred_check_branch
        %213 = sbr.rel (%p211) target = $region16
      $region15: #{decoder_block_forward.1} parent=11 // pred_region
        _
      $region16: #{decoder_block_forward.1} parent=11 // pred_fallthru
        _
      // Predicated region
      $region17: #{decoder_block_forward.1} parent=11 // pred_check
        %p214 = pneg %p107
      $region18: #{decoder_block_forward.1} parent=11 // pred_check_branch
        %216 = sbr.rel (%p214) target = $region20
      $region19: #{decoder_block_forward.1} parent=11 // pred_region
        _
      $region20: #{decoder_block_forward.1} parent=11 // pred_fallthru
        _
      // Predicated region
      $region21: #{decoder_block_forward.1} parent=11 // pred_check
        %p217 = pneg %p128
      $region22: #{decoder_block_forward.1} parent=11 // pred_check_branch
        %219 = sbr.rel (%p217) target = $region24
      $region23: #{decoder_block_forward.1} parent=11 // pred_region
        _
      $region24: #{decoder_block_forward.1} parent=11 // pred_fallthru
        _
      // Predicated region
      $region25: #{decoder_block_forward.1} parent=11 // pred_check
        %p220 = pneg %p149
      $region26: #{decoder_block_forward.1} parent=11 // pred_check_branch
        %222 = sbr.rel (%p220) target = $region28
      $region27: #{decoder_block_forward.1} parent=11 // pred_region
        _
      $region28: #{decoder_block_forward.1} parent=11 // pred_fallthru
        _
      // Predicated region
      $region29: #{decoder_block_forward.1} parent=11 // pred_check
        %p223 = pneg %p170
      $region30: #{decoder_block_forward.1} parent=11 // pred_check_branch
        %225 = sbr.rel (%p223) target = $region32
      $region31: #{decoder_block_forward.1} parent=11 // pred_region
        _
      $region32: #{decoder_block_forward.1} parent=11 // pred_fallthru
        _
    $region12: #{decoder_block_forward.1} parent=5 // pred_fallthru
      _
    %p226 = scmp.lt.s32.totalorder %s13, 2
    // Predicated region
    $region33: #{decoder_block_forward.1} parent=5 // pred_check
      %p227 = pneg %p226
    $region34: #{decoder_block_forward.1} parent=5 // pred_check_branch
      %229 = sbr.rel (%p227) target = $region36
    $region35: #{decoder_block_forward.1} parent=5 // pred_region
      // Predicated region
      $region37: #{decoder_block_forward.1} parent=35 // pred_check
        %p230 = pneg %p33
      $region38: #{decoder_block_forward.1} parent=35 // pred_check_branch
        %232 = sbr.rel (%p230) target = $region40
      $region39: #{decoder_block_forward.1} parent=35 // pred_region
        %p233 = scmp.lt.s32.totalorder %s13, 1
        %s234 = scalar_select %p233, %s13, 1
        %s235 = smul.addr %s234, 8
        %s236 = smul.addr %s235, 4
        %s237 = scalar_lea.vmem %s0, %s236
      $region40: #{decoder_block_forward.1} parent=35 // pred_fallthru
        _
      // Predicated region
      $region41: #{decoder_block_forward.1} parent=35 // pred_check
        %p238 = pneg %p59
      $region42: #{decoder_block_forward.1} parent=35 // pred_check_branch
        %240 = sbr.rel (%p238) target = $region44
      $region43: #{decoder_block_forward.1} parent=35 // pred_region
        %p241 = scmp.lt.s32.totalorder %s13, 1
        %s242 = scalar_select %p241, %s13, 1
        %s243 = smul.addr %s242, 32
        %s244 = smul.addr %s243, 4
        %s245 = scalar_lea.vmem %s1, %s244
      $region44: #{decoder_block_forward.1} parent=35 // pred_fallthru
        _
    $region36: #{decoder_block_forward.1} parent=5 // pred_fallthru
      _
    %p246 = scmp.le.s32.totalorder 1, %s13
    %p247 = scmp.lt.s32.totalorder %s13, 3
    %p248 = pnand %p246, %p247
    %p249 = pneg %p248
    // Predicated region
    $region45: #{decoder_block_forward.1} parent=5 // pred_check
      _
    $region46: #{decoder_block_forward.1} parent=5 // pred_check_branch
      %251 = sbr.rel (%p248) target = $region48
    $region47: #{decoder_block_forward.1} parent=5 // pred_region
      %s252 = ssub.s32 %s13, 1
      %p253 = scmp.lt.s32.totalorder %s18, 1
      %s254 = scalar_select %p253, %s18, 1
      %s255 = smul.addr %s254, 8
      %s256 = smul.addr %s255, 4
      %s257 = scalar_lea.vmem %s0, %s256
      %p258 = pneg %p39
      %p259 = pneg %p36
      %p260 = scmp.lt.s32.totalorder %s18, 1
      %s261 = scalar_select %p260, %s18, 1
      %s262 = smul.addr %s261, 32
      %s263 = smul.addr %s262, 4
      %s264 = scalar_lea.vmem %s1, %s263
      %p265 = pneg %p65
      %p266 = pneg %p62
      %p267 = pneg %p86
      %p268 = pneg %p83
      %p269 = pneg %p107
      %p270 = pneg %p104
      %p271 = pneg %p128
      %p272 = pneg %p125
      %p273 = pneg %p149
      %p274 = pneg %p146
      %p275 = pneg %p170
      %p276 = pneg %p167
      %p277 = pneg %p196
      %p278 = pneg %p193
      %p279 = scmp.lt.s32.totalorder %s18, 1
      %s280 = scalar_select %p279, %s18, 1
      %s281 = smul.addr %s280, 4
      %s282 = smul.addr %s281, 8
      %s283 = scalar_lea.vmem %s7, %s282
      %p284 = scmp.lt.s32.totalorder %s18, 1
      %s285 = scalar_select %p284, %s18, 1
      %s286 = smul.addr %s285, 8
      %s287 = smul.addr %s286, 4
      %s288 = scalar_lea.vmem %s0, %s287
      %p289 = scmp.lt.s32.totalorder %s18, 1
      %s290 = scalar_select %p289, %s18, 1
      %s291 = smul.addr %s290, 32
      %s292 = smul.addr %s291, 4
      %s293 = scalar_lea.vmem %s1, %s292
      %p294 = scmp.lt.s32.totalorder %s18, 1
      %s295 = scalar_select %p294, %s18, 1
      %s296 = smul.addr %s295, 4
      %s297 = smul.addr %s296, 8
      %s298 = scalar_lea.vmem %s7, %s297
      %vm300 = vcmask 257024
      %301 = vst.msk [vmem:[#allocation2] sm:$0xf] %vm300, 0
      %302 = vst.msk [vmem:[#allocation2 + $0x4] sm:$0xf] %vm300, 0
      %vm303 = vcmask 253952
      %304 = vst.msk [vmem:[#allocation2 + $0x8] sm:$0x1] %vm303, 0
      %s305 = scalar_lea.vmem [#allocation2], 204
      %306 = vst.msk [vmem:[%s305] sm:$0xf] %vm300, 0
      %307 = vst.msk [vmem:[%s305 + $0x4] sm:$0xf] %vm300, 0
      %308 = vst.msk [vmem:[%s305 + $0x8] sm:$0x1] %vm303, 0
      %vm309 = vcmask 253952
      %vm310 = vsmask.f32 256
      %vm311 = vmand %vm309, %vm310
      %v312 = vld [vmem:[#allocation2] sm:$0x1]
      %v313 = vsel %vm311, 0, %v312
      %314 = vst [vmem:[#allocation2] sm:$0x1] %v313
      %v315 = vld [vmem:[#allocation2 + $0xc] sm:$0x1]
      %v316 = vsel %vm311, 0, %v315
      %317 = vst [vmem:[#allocation2 + $0xc] sm:$0x1] %v316
      %v318 = vld [vmem:[#allocation2 + $0x18] sm:$0x1]
      %v319 = vsel %vm311, 0, %v318
      %320 = vst [vmem:[#allocation2 + $0x18] sm:$0x1] %v319
      %v321 = vld [vmem:[#allocation2 + $0x24] sm:$0x1]
      %v322 = vsel %vm311, 0, %v321
      %323 = vst [vmem:[#allocation2 + $0x24] sm:$0x1] %v322
      %v324 = vld [vmem:[#allocation2 + $0x30] sm:$0x1]
      %v325 = vsel %vm311, 0, %v324
      %326 = vst [vmem:[#allocation2 + $0x30] sm:$0x1] %v325
      %v327 = vld [vmem:[#allocation2 + $0x3c] sm:$0x1]
      %v328 = vsel %vm311, 0, %v327
      %329 = vst [vmem:[#allocation2 + $0x3c] sm:$0x1] %v328
      %v330 = vld [vmem:[#allocation2 + $0x48] sm:$0x1]
      %v331 = vsel %vm311, 0, %v330
      %332 = vst [vmem:[#allocation2 + $0x48] sm:$0x1] %v331
      %v333 = vld [vmem:[#allocation2 + $0x54] sm:$0x1]
      %v334 = vsel %vm311, 0, %v333
      %335 = vst [vmem:[#allocation2 + $0x54] sm:$0x1] %v334
      %v336 = vld [vmem:[#allocation2 + $0x60] sm:$0x1]
      %v337 = vsel %vm311, 0, %v336
      %338 = vst [vmem:[#allocation2 + $0x60] sm:$0x1] %v337
      %v339 = vld [vmem:[#allocation2 + $0x6c] sm:$0x1]
      %v340 = vsel %vm311, 0, %v339
      %341 = vst [vmem:[#allocation2 + $0x6c] sm:$0x1] %v340
      %v342 = vld [vmem:[#allocation2 + $0x78] sm:$0x1]
      %v343 = vsel %vm311, 0, %v342
      %344 = vst [vmem:[#allocation2 + $0x78] sm:$0x1] %v343
      %v345 = vld [vmem:[#allocation2 + $0x84] sm:$0x1]
      %v346 = vsel %vm311, 0, %v345
      %347 = vst [vmem:[#allocation2 + $0x84] sm:$0x1] %v346
      %v348 = vld [vmem:[#allocation2 + $0x90] sm:$0x1]
      %v349 = vsel %vm311, 0, %v348
      %350 = vst [vmem:[#allocation2 + $0x90] sm:$0x1] %v349
      %v351 = vld [vmem:[#allocation2 + $0x9c] sm:$0x1]
      %v352 = vsel %vm311, 0, %v351
      %353 = vst [vmem:[#allocation2 + $0x9c] sm:$0x1] %v352
      %v354 = vld [vmem:[#allocation2 + $0xa8] sm:$0x1]
      %v355 = vsel %vm311, 0, %v354
      %356 = vst [vmem:[#allocation2 + $0xa8] sm:$0x1] %v355
      %v357 = vld [vmem:[#allocation2 + $0xb4] sm:$0x1]
      %v358 = vsel %vm311, 0, %v357
      %359 = vst [vmem:[#allocation2 + $0xb4] sm:$0x1] %v358
      %v360 = vld [vmem:[#allocation2 + $0xc0] sm:$0x1]
      %v361 = vsel %vm311, 0, %v360
      %362 = vst [vmem:[#allocation2 + $0xc0] sm:$0x1] %v361
      %v363 = vld [vmem:[#allocation2 + $0xcc] sm:$0x1]
      %v364 = vsel %vm311, 0, %v363
      %365 = vst [vmem:[#allocation2 + $0xcc] sm:$0x1] %v364
      %vm366 = vsmask.f32 7938
      %vm367 = vmand %vm309, %vm366
      %v368 = vld [vmem:[#allocation2 + $0x8] sm:$0x1]
      %v369 = vsel %vm367, 0, %v368
      %370 = vst [vmem:[#allocation2 + $0x8] sm:$0x1] %v369
      %v371 = vld [vmem:[#allocation2 + $0x14] sm:$0x1]
      %v372 = vsel %vm367, 0, %v371
      %373 = vst [vmem:[#allocation2 + $0x14] sm:$0x1] %v372
      %v374 = vld [vmem:[#allocation2 + $0x20] sm:$0x1]
      %v375 = vsel %vm367, 0, %v374
      %376 = vst [vmem:[#allocation2 + $0x20] sm:$0x1] %v375
      %v377 = vld [vmem:[#allocation2 + $0x2c] sm:$0x1]
      %v378 = vsel %vm367, 0, %v377
      %379 = vst [vmem:[#allocation2 + $0x2c] sm:$0x1] %v378
      %v380 = vld [vmem:[#allocation2 + $0x38] sm:$0x1]
      %v381 = vsel %vm367, 0, %v380
      %382 = vst [vmem:[#allocation2 + $0x38] sm:$0x1] %v381
      %v383 = vld [vmem:[#allocation2 + $0x44] sm:$0x1]
      %v384 = vsel %vm367, 0, %v383
      %385 = vst [vmem:[#allocation2 + $0x44] sm:$0x1] %v384
      %v386 = vld [vmem:[#allocation2 + $0x50] sm:$0x1]
      %v387 = vsel %vm367, 0, %v386
      %388 = vst [vmem:[#allocation2 + $0x50] sm:$0x1] %v387
      %v389 = vld [vmem:[#allocation2 + $0x5c] sm:$0x1]
      %v390 = vsel %vm367, 0, %v389
      %391 = vst [vmem:[#allocation2 + $0x5c] sm:$0x1] %v390
      %v392 = vld [vmem:[#allocation2 + $0x68] sm:$0x1]
      %v393 = vsel %vm367, 0, %v392
      %394 = vst [vmem:[#allocation2 + $0x68] sm:$0x1] %v393
      %v395 = vld [vmem:[#allocation2 + $0x74] sm:$0x1]
      %v396 = vsel %vm367, 0, %v395
      %397 = vst [vmem:[#allocation2 + $0x74] sm:$0x1] %v396
      %v398 = vld [vmem:[#allocation2 + $0x80] sm:$0x1]
      %v399 = vsel %vm367, 0, %v398
      %400 = vst [vmem:[#allocation2 + $0x80] sm:$0x1] %v399
      %v401 = vld [vmem:[#allocation2 + $0x8c] sm:$0x1]
      %v402 = vsel %vm367, 0, %v401
      %403 = vst [vmem:[#allocation2 + $0x8c] sm:$0x1] %v402
      %v404 = vld [vmem:[#allocation2 + $0x98] sm:$0x1]
      %v405 = vsel %vm367, 0, %v404
      %406 = vst [vmem:[#allocation2 + $0x98] sm:$0x1] %v405
      %v407 = vld [vmem:[#allocation2 + $0xa4] sm:$0x1]
      %v408 = vsel %vm367, 0, %v407
      %409 = vst [vmem:[#allocation2 + $0xa4] sm:$0x1] %v408
      %v410 = vld [vmem:[#allocation2 + $0xb0] sm:$0x1]
      %v411 = vsel %vm367, 0, %v410
      %412 = vst [vmem:[#allocation2 + $0xb0] sm:$0x1] %v411
      %v413 = vld [vmem:[#allocation2 + $0xbc] sm:$0x1]
      %v414 = vsel %vm367, 0, %v413
      %415 = vst [vmem:[#allocation2 + $0xbc] sm:$0x1] %v414
      %v416 = vld [vmem:[#allocation2 + $0xc8] sm:$0x1]
      %v417 = vsel %vm367, 0, %v416
      %418 = vst [vmem:[#allocation2 + $0xc8] sm:$0x1] %v417
      %v419 = vld [vmem:[#allocation2 + $0xd4] sm:$0x1]
      %v420 = vsel %vm367, 0, %v419
      %421 = vst [vmem:[#allocation2 + $0xd4] sm:$0x1] %v420
      %vm422 = vcmask 125952
      %423 = vst.msk [vmem:[#allocation3] sm:$0xf] %vm422, 0
      %424 = vst.msk [vmem:[#allocation3 + $0x4] sm:$0xf] %vm422, 0
      %vm425 = vcmask 122880
      %426 = vst.msk [vmem:[#allocation3 + $0x8] sm:$0x1] %vm425, 0
      %s427 = scalar_lea.vmem [#allocation3], 204
      %428 = vst.msk [vmem:[%s427] sm:$0xf] %vm422, 0
      %429 = vst.msk [vmem:[%s427 + $0x4] sm:$0xf] %vm422, 0
      %430 = vst.msk [vmem:[%s427 + $0x8] sm:$0x1] %vm425, 0
      %vm431 = vcmask 122880
      %vm432 = vmand %vm431, %vm310
      %v433 = vld [vmem:[#allocation3] sm:$0x1]
      %v434 = vsel %vm432, 0, %v433
      %435 = vst [vmem:[#allocation3] sm:$0x1] %v434
      %v436 = vld [vmem:[#allocation3 + $0xc] sm:$0x1]
      %v437 = vsel %vm432, 0, %v436
      %438 = vst [vmem:[#allocation3 + $0xc] sm:$0x1] %v437
      %v439 = vld [vmem:[#allocation3 + $0x18] sm:$0x1]
      %v440 = vsel %vm432, 0, %v439
      %441 = vst [vmem:[#allocation3 + $0x18] sm:$0x1] %v440
      %v442 = vld [vmem:[#allocation3 + $0x24] sm:$0x1]
      %v443 = vsel %vm432, 0, %v442
      %444 = vst [vmem:[#allocation3 + $0x24] sm:$0x1] %v443
      %v445 = vld [vmem:[#allocation3 + $0x30] sm:$0x1]
      %v446 = vsel %vm432, 0, %v445
      %447 = vst [vmem:[#allocation3 + $0x30] sm:$0x1] %v446
      %v448 = vld [vmem:[#allocation3 + $0x3c] sm:$0x1]
      %v449 = vsel %vm432, 0, %v448
      %450 = vst [vmem:[#allocation3 + $0x3c] sm:$0x1] %v449
      %v451 = vld [vmem:[#allocation3 + $0x48] sm:$0x1]
      %v452 = vsel %vm432, 0, %v451
      %453 = vst [vmem:[#allocation3 + $0x48] sm:$0x1] %v452
      %v454 = vld [vmem:[#allocation3 + $0x54] sm:$0x1]
      %v455 = vsel %vm432, 0, %v454
      %456 = vst [vmem:[#allocation3 + $0x54] sm:$0x1] %v455
      %v457 = vld [vmem:[#allocation3 + $0x60] sm:$0x1]
      %v458 = vsel %vm432, 0, %v457
      %459 = vst [vmem:[#allocation3 + $0x60] sm:$0x1] %v458
      %v460 = vld [vmem:[#allocation3 + $0x6c] sm:$0x1]
      %v461 = vsel %vm432, 0, %v460
      %462 = vst [vmem:[#allocation3 + $0x6c] sm:$0x1] %v461
      %v463 = vld [vmem:[#allocation3 + $0x78] sm:$0x1]
      %v464 = vsel %vm432, 0, %v463
      %465 = vst [vmem:[#allocation3 + $0x78] sm:$0x1] %v464
      %v466 = vld [vmem:[#allocation3 + $0x84] sm:$0x1]
      %v467 = vsel %vm432, 0, %v466
      %468 = vst [vmem:[#allocation3 + $0x84] sm:$0x1] %v467
      %v469 = vld [vmem:[#allocation3 + $0x90] sm:$0x1]
      %v470 = vsel %vm432, 0, %v469
      %471 = vst [vmem:[#allocation3 + $0x90] sm:$0x1] %v470
      %v472 = vld [vmem:[#allocation3 + $0x9c] sm:$0x1]
      %v473 = vsel %vm432, 0, %v472
      %474 = vst [vmem:[#allocation3 + $0x9c] sm:$0x1] %v473
      %v475 = vld [vmem:[#allocation3 + $0xa8] sm:$0x1]
      %v476 = vsel %vm432, 0, %v475
      %477 = vst [vmem:[#allocation3 + $0xa8] sm:$0x1] %v476
      %v478 = vld [vmem:[#allocation3 + $0xb4] sm:$0x1]
      %v479 = vsel %vm432, 0, %v478
      %480 = vst [vmem:[#allocation3 + $0xb4] sm:$0x1] %v479
      %v481 = vld [vmem:[#allocation3 + $0xc0] sm:$0x1]
      %v482 = vsel %vm432, 0, %v481
      %483 = vst [vmem:[#allocation3 + $0xc0] sm:$0x1] %v482
      %v484 = vld [vmem:[#allocation3 + $0xcc] sm:$0x1]
      %v485 = vsel %vm432, 0, %v484
      %486 = vst [vmem:[#allocation3 + $0xcc] sm:$0x1] %v485
      %vm487 = vmand %vm431, %vm366
      %v488 = vld [vmem:[#allocation3 + $0x8] sm:$0x1]
      %v489 = vsel %vm487, 0, %v488
      %490 = vst [vmem:[#allocation3 + $0x8] sm:$0x1] %v489
      %v491 = vld [vmem:[#allocation3 + $0x14] sm:$0x1]
      %v492 = vsel %vm487, 0, %v491
      %493 = vst [vmem:[#allocation3 + $0x14] sm:$0x1] %v492
      %v494 = vld [vmem:[#allocation3 + $0x20] sm:$0x1]
      %v495 = vsel %vm487, 0, %v494
      %496 = vst [vmem:[#allocation3 + $0x20] sm:$0x1] %v495
      %v497 = vld [vmem:[#allocation3 + $0x2c] sm:$0x1]
      %v498 = vsel %vm487, 0, %v497
      %499 = vst [vmem:[#allocation3 + $0x2c] sm:$0x1] %v498
      %v500 = vld [vmem:[#allocation3 + $0x38] sm:$0x1]
      %v501 = vsel %vm487, 0, %v500
      %502 = vst [vmem:[#allocation3 + $0x38] sm:$0x1] %v501
      %v503 = vld [vmem:[#allocation3 + $0x44] sm:$0x1]
      %v504 = vsel %vm487, 0, %v503
      %505 = vst [vmem:[#allocation3 + $0x44] sm:$0x1] %v504
      %v506 = vld [vmem:[#allocation3 + $0x50] sm:$0x1]
      %v507 = vsel %vm487, 0, %v506
      %508 = vst [vmem:[#allocation3 + $0x50] sm:$0x1] %v507
      %v509 = vld [vmem:[#allocation3 + $0x5c] sm:$0x1]
      %v510 = vsel %vm487, 0, %v509
      %511 = vst [vmem:[#allocation3 + $0x5c] sm:$0x1] %v510
      %v512 = vld [vmem:[#allocation3 + $0x68] sm:$0x1]
      %v513 = vsel %vm487, 0, %v512
      %514 = vst [vmem:[#allocation3 + $0x68] sm:$0x1] %v513
      %v515 = vld [vmem:[#allocation3 + $0x74] sm:$0x1]
      %v516 = vsel %vm487, 0, %v515
      %517 = vst [vmem:[#allocation3 + $0x74] sm:$0x1] %v516
      %v518 = vld [vmem:[#allocation3 + $0x80] sm:$0x1]
      %v519 = vsel %vm487, 0, %v518
      %520 = vst [vmem:[#allocation3 + $0x80] sm:$0x1] %v519
      %v521 = vld [vmem:[#allocation3 + $0x8c] sm:$0x1]
      %v522 = vsel %vm487, 0, %v521
      %523 = vst [vmem:[#allocation3 + $0x8c] sm:$0x1] %v522
      %v524 = vld [vmem:[#allocation3 + $0x98] sm:$0x1]
      %v525 = vsel %vm487, 0, %v524
      %526 = vst [vmem:[#allocation3 + $0x98] sm:$0x1] %v525
      %v527 = vld [vmem:[#allocation3 + $0xa4] sm:$0x1]
      %v528 = vsel %vm487, 0, %v527
      %529 = vst [vmem:[#allocation3 + $0xa4] sm:$0x1] %v528
      %v530 = vld [vmem:[#allocation3 + $0xb0] sm:$0x1]
      %v531 = vsel %vm487, 0, %v530
      %532 = vst [vmem:[#allocation3 + $0xb0] sm:$0x1] %v531
      %v533 = vld [vmem:[#allocation3 + $0xbc] sm:$0x1]
      %v534 = vsel %vm487, 0, %v533
      %535 = vst [vmem:[#allocation3 + $0xbc] sm:$0x1] %v534
      %v536 = vld [vmem:[#allocation3 + $0xc8] sm:$0x1]
      %v537 = vsel %vm487, 0, %v536
      %538 = vst [vmem:[#allocation3 + $0xc8] sm:$0x1] %v537
      %v539 = vld [vmem:[#allocation3 + $0xd4] sm:$0x1]
      %v540 = vsel %vm487, 0, %v539
      %541 = vst [vmem:[#allocation3 + $0xd4] sm:$0x1] %v540
      %542 = vst.msk [vmem:[#allocation4] sm:$0xf] %vm422, 0
      %543 = vst.msk [vmem:[#allocation4 + $0x4] sm:$0xf] %vm422, 0
      %544 = vst.msk [vmem:[#allocation4 + $0x8] sm:$0x1] %vm425, 0
      %s545 = scalar_lea.vmem [#allocation4], 204
      %546 = vst.msk [vmem:[%s545] sm:$0xf] %vm422, 0
      %547 = vst.msk [vmem:[%s545 + $0x4] sm:$0xf] %vm422, 0
      %548 = vst.msk [vmem:[%s545 + $0x8] sm:$0x1] %vm425, 0
      %v549 = vld [vmem:[#allocation4] sm:$0x1]
      %v550 = vsel %vm432, 0, %v549
      %551 = vst [vmem:[#allocation4] sm:$0x1] %v550
      %v552 = vld [vmem:[#allocation4 + $0xc] sm:$0x1]
      %v553 = vsel %vm432, 0, %v552
      %554 = vst [vmem:[#allocation4 + $0xc] sm:$0x1] %v553
      %v555 = vld [vmem:[#allocation4 + $0x18] sm:$0x1]
      %v556 = vsel %vm432, 0, %v555
      %557 = vst [vmem:[#allocation4 + $0x18] sm:$0x1] %v556
      %v558 = vld [vmem:[#allocation4 + $0x24] sm:$0x1]
      %v559 = vsel %vm432, 0, %v558
      %560 = vst [vmem:[#allocation4 + $0x24] sm:$0x1] %v559
      %v561 = vld [vmem:[#allocation4 + $0x30] sm:$0x1]
      %v562 = vsel %vm432, 0, %v561
      %563 = vst [vmem:[#allocation4 + $0x30] sm:$0x1] %v562
      %v564 = vld [vmem:[#allocation4 + $0x3c] sm:$0x1]
      %v565 = vsel %vm432, 0, %v564
      %566 = vst [vmem:[#allocation4 + $0x3c] sm:$0x1] %v565
      %v567 = vld [vmem:[#allocation4 + $0x48] sm:$0x1]
      %v568 = vsel %vm432, 0, %v567
      %569 = vst [vmem:[#allocation4 + $0x48] sm:$0x1] %v568
      %v570 = vld [vmem:[#allocation4 + $0x54] sm:$0x1]
      %v571 = vsel %vm432, 0, %v570
      %572 = vst [vmem:[#allocation4 + $0x54] sm:$0x1] %v571
      %v573 = vld [vmem:[#allocation4 + $0x60] sm:$0x1]
      %v574 = vsel %vm432, 0, %v573
      %575 = vst [vmem:[#allocation4 + $0x60] sm:$0x1] %v574
      %v576 = vld [vmem:[#allocation4 + $0x6c] sm:$0x1]
      %v577 = vsel %vm432, 0, %v576
      %578 = vst [vmem:[#allocation4 + $0x6c] sm:$0x1] %v577
      %v579 = vld [vmem:[#allocation4 + $0x78] sm:$0x1]
      %v580 = vsel %vm432, 0, %v579
      %581 = vst [vmem:[#allocation4 + $0x78] sm:$0x1] %v580
      %v582 = vld [vmem:[#allocation4 + $0x84] sm:$0x1]
      %v583 = vsel %vm432, 0, %v582
      %584 = vst [vmem:[#allocation4 + $0x84] sm:$0x1] %v583
      %v585 = vld [vmem:[#allocation4 + $0x90] sm:$0x1]
      %v586 = vsel %vm432, 0, %v585
      %587 = vst [vmem:[#allocation4 + $0x90] sm:$0x1] %v586
      %v588 = vld [vmem:[#allocation4 + $0x9c] sm:$0x1]
      %v589 = vsel %vm432, 0, %v588
      %590 = vst [vmem:[#allocation4 + $0x9c] sm:$0x1] %v589
      %v591 = vld [vmem:[#allocation4 + $0xa8] sm:$0x1]
      %v592 = vsel %vm432, 0, %v591
      %593 = vst [vmem:[#allocation4 + $0xa8] sm:$0x1] %v592
      %v594 = vld [vmem:[#allocation4 + $0xb4] sm:$0x1]
      %v595 = vsel %vm432, 0, %v594
      %596 = vst [vmem:[#allocation4 + $0xb4] sm:$0x1] %v595
      %v597 = vld [vmem:[#allocation4 + $0xc0] sm:$0x1]
      %v598 = vsel %vm432, 0, %v597
      %599 = vst [vmem:[#allocation4 + $0xc0] sm:$0x1] %v598
      %v600 = vld [vmem:[#allocation4 + $0xcc] sm:$0x1]
      %v601 = vsel %vm432, 0, %v600
      %602 = vst [vmem:[#allocation4 + $0xcc] sm:$0x1] %v601
      %v603 = vld [vmem:[#allocation4 + $0x8] sm:$0x1]
      %v604 = vsel %vm487, 0, %v603
      %605 = vst [vmem:[#allocation4 + $0x8] sm:$0x1] %v604
      %v606 = vld [vmem:[#allocation4 + $0x14] sm:$0x1]
      %v607 = vsel %vm487, 0, %v606
      %608 = vst [vmem:[#allocation4 + $0x14] sm:$0x1] %v607
      %v609 = vld [vmem:[#allocation4 + $0x20] sm:$0x1]
      %v610 = vsel %vm487, 0, %v609
      %611 = vst [vmem:[#allocation4 + $0x20] sm:$0x1] %v610
      %v612 = vld [vmem:[#allocation4 + $0x2c] sm:$0x1]
      %v613 = vsel %vm487, 0, %v612
      %614 = vst [vmem:[#allocation4 + $0x2c] sm:$0x1] %v613
      %v615 = vld [vmem:[#allocation4 + $0x38] sm:$0x1]
      %v616 = vsel %vm487, 0, %v615
      %617 = vst [vmem:[#allocation4 + $0x38] sm:$0x1] %v616
      %v618 = vld [vmem:[#allocation4 + $0x44] sm:$0x1]
      %v619 = vsel %vm487, 0, %v618
      %620 = vst [vmem:[#allocation4 + $0x44] sm:$0x1] %v619
      %v621 = vld [vmem:[#allocation4 + $0x50] sm:$0x1]
      %v622 = vsel %vm487, 0, %v621
      %623 = vst [vmem:[#allocation4 + $0x50] sm:$0x1] %v622
      %v624 = vld [vmem:[#allocation4 + $0x5c] sm:$0x1]
      %v625 = vsel %vm487, 0, %v624
      %626 = vst [vmem:[#allocation4 + $0x5c] sm:$0x1] %v625
      %v627 = vld [vmem:[#allocation4 + $0x68] sm:$0x1]
      %v628 = vsel %vm487, 0, %v627
      %629 = vst [vmem:[#allocation4 + $0x68] sm:$0x1] %v628
      %v630 = vld [vmem:[#allocation4 + $0x74] sm:$0x1]
      %v631 = vsel %vm487, 0, %v630
      %632 = vst [vmem:[#allocation4 + $0x74] sm:$0x1] %v631
      %v633 = vld [vmem:[#allocation4 + $0x80] sm:$0x1]
      %v634 = vsel %vm487, 0, %v633
      %635 = vst [vmem:[#allocation4 + $0x80] sm:$0x1] %v634
      %v636 = vld [vmem:[#allocation4 + $0x8c] sm:$0x1]
      %v637 = vsel %vm487, 0, %v636
      %638 = vst [vmem:[#allocation4 + $0x8c] sm:$0x1] %v637
      %v639 = vld [vmem:[#allocation4 + $0x98] sm:$0x1]
      %v640 = vsel %vm487, 0, %v639
      %641 = vst [vmem:[#allocation4 + $0x98] sm:$0x1] %v640
      %v642 = vld [vmem:[#allocation4 + $0xa4] sm:$0x1]
      %v643 = vsel %vm487, 0, %v642
      %644 = vst [vmem:[#allocation4 + $0xa4] sm:$0x1] %v643
      %v645 = vld [vmem:[#allocation4 + $0xb0] sm:$0x1]
      %v646 = vsel %vm487, 0, %v645
      %647 = vst [vmem:[#allocation4 + $0xb0] sm:$0x1] %v646
      %v648 = vld [vmem:[#allocation4 + $0xbc] sm:$0x1]
      %v649 = vsel %vm487, 0, %v648
      %650 = vst [vmem:[#allocation4 + $0xbc] sm:$0x1] %v649
      %v651 = vld [vmem:[#allocation4 + $0xc8] sm:$0x1]
      %v652 = vsel %vm487, 0, %v651
      %653 = vst [vmem:[#allocation4 + $0xc8] sm:$0x1] %v652
      %v654 = vld [vmem:[#allocation4 + $0xd4] sm:$0x1]
      %v655 = vsel %vm487, 0, %v654
      %656 = vst [vmem:[#allocation4 + $0xd4] sm:$0x1] %v655
      %v657 = vld [vmem:[%s288] sm:$0xf]
      %v658 = vld [vmem:[%s288 + $0x4] sm:$0xf]
      %v659 = vld [vmem:[%s288 + $0x8] sm:$0xf]
      %v660 = vld [vmem:[%s288 + $0xc] sm:$0xf]
      %v661 = vld [vmem:[%s288 + $0x10] sm:$0xf]
      %v662 = vld [vmem:[%s288 + $0x14] sm:$0xf]
      %v663 = vld [vmem:[%s288 + $0x18] sm:$0xf]
      %v664 = vld [vmem:[%s288 + $0x1c] sm:$0xf]
      %v674 = vunpack.c.l.s4 1966171168
      %v675 = vunpack.c.0.s8 %v674
      %v676 = vlaneseq
      %v677 = vshrl.u32 %v676, 7
      %v678 = vsub.s32 %v675, %v677
      %v679 = vrot.slane %v657, %v678
      %v680 = vcombine.high %v679, %v679
      %v682 = vunpack.c.l.s4 1966171168
      %v683 = vunpack.c.0.s8 %v682
      %v684 = vlaneseq
      %v685 = vshrl.u32 %v684, 7
      %v686 = vsub.s32 %v683, %v685
      %v687 = vrot.slane %v679, %v686
      %v689 = vunpack.c.l.s4 1966171168
      %v690 = vunpack.c.0.s8 %v689
      %v691 = vlaneseq
      %v692 = vshrl.u32 %v691, 7
      %v693 = vsub.s32 %v690, %v692
      %v694 = vrot.slane %v680, %v693
      %v695 = vcombine.high %v687, %v687
      %v696 = vcombine.high %v694, %v694
      %v698 = vunpack.c.l.s4 1966171168
      %v699 = vunpack.c.0.s8 %v698
      %v700 = vlaneseq
      %v701 = vshrl.u32 %v700, 7
      %v702 = vsub.s32 %v699, %v701
      %v703 = vrot.slane %v658, %v702
      %v704 = vcombine.high %v703, %v703
      %v706 = vunpack.c.l.s4 1966171168
      %v707 = vunpack.c.0.s8 %v706
      %v708 = vlaneseq
      %v709 = vshrl.u32 %v708, 7
      %v710 = vsub.s32 %v707, %v709
      %v711 = vrot.slane %v703, %v710
      %v713 = vunpack.c.l.s4 1966171168
      %v714 = vunpack.c.0.s8 %v713
      %v715 = vlaneseq
      %v716 = vshrl.u32 %v715, 7
      %v717 = vsub.s32 %v714, %v716
      %v718 = vrot.slane %v704, %v717
      %v719 = vcombine.high %v711, %v711
      %v720 = vcombine.high %v718, %v718
      %v722 = vunpack.c.l.s4 1966171168
      %v723 = vunpack.c.0.s8 %v722
      %v724 = vlaneseq
      %v725 = vshrl.u32 %v724, 7
      %v726 = vsub.s32 %v723, %v725
      %v727 = vrot.slane %v659, %v726
      %v728 = vcombine.high %v727, %v727
      %v730 = vunpack.c.l.s4 1966171168
      %v731 = vunpack.c.0.s8 %v730
      %v732 = vlaneseq
      %v733 = vshrl.u32 %v732, 7
      %v734 = vsub.s32 %v731, %v733
      %v735 = vrot.slane %v727, %v734
      %v737 = vunpack.c.l.s4 1966171168
      %v738 = vunpack.c.0.s8 %v737
      %v739 = vlaneseq
      %v740 = vshrl.u32 %v739, 7
      %v741 = vsub.s32 %v738, %v740
      %v742 = vrot.slane %v728, %v741
      %v743 = vcombine.high %v735, %v735
      %v744 = vcombine.high %v742, %v742
      %v746 = vunpack.c.l.s4 1966171168
      %v747 = vunpack.c.0.s8 %v746
      %v748 = vlaneseq
      %v749 = vshrl.u32 %v748, 7
      %v750 = vsub.s32 %v747, %v749
      %v751 = vrot.slane %v660, %v750
      %v752 = vcombine.high %v751, %v751
      %v754 = vunpack.c.l.s4 1966171168
      %v755 = vunpack.c.0.s8 %v754
      %v756 = vlaneseq
      %v757 = vshrl.u32 %v756, 7
      %v758 = vsub.s32 %v755, %v757
      %v759 = vrot.slane %v751, %v758
      %v761 = vunpack.c.l.s4 1966171168
      %v762 = vunpack.c.0.s8 %v761
      %v763 = vlaneseq
      %v764 = vshrl.u32 %v763, 7
      %v765 = vsub.s32 %v762, %v764
      %v766 = vrot.slane %v752, %v765
      %v767 = vcombine.high %v759, %v759
      %v768 = vcombine.high %v766, %v766
      %v770 = vunpack.c.l.s4 1966171168
      %v771 = vunpack.c.0.s8 %v770
      %v772 = vlaneseq
      %v773 = vshrl.u32 %v772, 7
      %v774 = vsub.s32 %v771, %v773
      %v775 = vrot.slane %v661, %v774
      %v776 = vcombine.high %v775, %v775
      %v778 = vunpack.c.l.s4 1966171168
      %v779 = vunpack.c.0.s8 %v778
      %v780 = vlaneseq
      %v781 = vshrl.u32 %v780, 7
      %v782 = vsub.s32 %v779, %v781
      %v783 = vrot.slane %v775, %v782
      %v785 = vunpack.c.l.s4 1966171168
      %v786 = vunpack.c.0.s8 %v785
      %v787 = vlaneseq
      %v788 = vshrl.u32 %v787, 7
      %v789 = vsub.s32 %v786, %v788
      %v790 = vrot.slane %v776, %v789
      %v791 = vcombine.high %v783, %v783
      %v792 = vcombine.high %v790, %v790
      %v794 = vunpack.c.l.s4 1966171168
      %v795 = vunpack.c.0.s8 %v794
      %v796 = vlaneseq
      %v797 = vshrl.u32 %v796, 7
      %v798 = vsub.s32 %v795, %v797
      %v799 = vrot.slane %v662, %v798
      %v800 = vcombine.high %v799, %v799
      %v802 = vunpack.c.l.s4 1966171168
      %v803 = vunpack.c.0.s8 %v802
      %v804 = vlaneseq
      %v805 = vshrl.u32 %v804, 7
      %v806 = vsub.s32 %v803, %v805
      %v807 = vrot.slane %v799, %v806
      %v809 = vunpack.c.l.s4 1966171168
      %v810 = vunpack.c.0.s8 %v809
      %v811 = vlaneseq
      %v812 = vshrl.u32 %v811, 7
      %v813 = vsub.s32 %v810, %v812
      %v814 = vrot.slane %v800, %v813
      %v815 = vcombine.high %v807, %v807
      %v816 = vcombine.high %v814, %v814
      %v818 = vunpack.c.l.s4 1966171168
      %v819 = vunpack.c.0.s8 %v818
      %v820 = vlaneseq
      %v821 = vshrl.u32 %v820, 7
      %v822 = vsub.s32 %v819, %v821
      %v823 = vrot.slane %v663, %v822
      %v824 = vcombine.high %v823, %v823
      %v826 = vunpack.c.l.s4 1966171168
      %v827 = vunpack.c.0.s8 %v826
      %v828 = vlaneseq
      %v829 = vshrl.u32 %v828, 7
      %v830 = vsub.s32 %v827, %v829
      %v831 = vrot.slane %v823, %v830
      %v833 = vunpack.c.l.s4 1966171168
      %v834 = vunpack.c.0.s8 %v833
      %v835 = vlaneseq
      %v836 = vshrl.u32 %v835, 7
      %v837 = vsub.s32 %v834, %v836
      %v838 = vrot.slane %v824, %v837
      %v839 = vcombine.high %v831, %v831
      %v840 = vcombine.high %v838, %v838
      %v842 = vunpack.c.l.s4 1966171168
      %v843 = vunpack.c.0.s8 %v842
      %v844 = vlaneseq
      %v845 = vshrl.u32 %v844, 7
      %v846 = vsub.s32 %v843, %v845
      %v847 = vrot.slane %v664, %v846
      %v848 = vcombine.high %v847, %v847
      %v850 = vunpack.c.l.s4 1966171168
      %v851 = vunpack.c.0.s8 %v850
      %v852 = vlaneseq
      %v853 = vshrl.u32 %v852, 7
      %v854 = vsub.s32 %v851, %v853
      %v855 = vrot.slane %v847, %v854
      %v857 = vunpack.c.l.s4 1966171168
      %v858 = vunpack.c.0.s8 %v857
      %v859 = vlaneseq
      %v860 = vshrl.u32 %v859, 7
      %v861 = vsub.s32 %v858, %v860
      %v862 = vrot.slane %v848, %v861
      %v863 = vcombine.high %v855, %v855
      %v864 = vcombine.high %v862, %v862
      %v865 = vunpack.i.l.s16 %v687
      %v866 = vunpack.i.h.s16 %v687
      %v867 = vunpack.i.l.s16 %v694
      %v868 = vunpack.i.h.s16 %v694
      %v869 = vunpack.i.l.s16 %v695
      %v870 = vunpack.i.h.s16 %v695
      %v871 = vunpack.i.l.s16 %v696
      %v872 = vunpack.i.h.s16 %v696
      %v873 = vunpack.i.l.s16 %v711
      %v874 = vunpack.i.h.s16 %v711
      %v875 = vunpack.i.l.s16 %v718
      %v876 = vunpack.i.h.s16 %v718
      %v877 = vunpack.i.l.s16 %v719
      %v878 = vunpack.i.h.s16 %v719
      %v879 = vunpack.i.l.s16 %v720
      %v880 = vunpack.i.h.s16 %v720
      %v881 = vunpack.i.l.s16 %v735
      %v882 = vunpack.i.h.s16 %v735
      %v883 = vunpack.i.l.s16 %v742
      %v884 = vunpack.i.h.s16 %v742
      %v885 = vunpack.i.l.s16 %v743
      %v886 = vunpack.i.h.s16 %v743
      %v887 = vunpack.i.l.s16 %v744
      %v888 = vunpack.i.h.s16 %v744
      %v889 = vunpack.i.l.s16 %v759
      %v890 = vunpack.i.h.s16 %v759
      %v891 = vunpack.i.l.s16 %v766
      %v892 = vunpack.i.h.s16 %v766
      %v893 = vunpack.i.l.s16 %v767
      %v894 = vunpack.i.h.s16 %v767
      %v895 = vunpack.i.l.s16 %v768
      %v896 = vunpack.i.h.s16 %v768
      %v897 = vunpack.i.l.s16 %v783
      %v898 = vunpack.i.h.s16 %v783
      %v899 = vunpack.i.l.s16 %v790
      %v900 = vunpack.i.h.s16 %v790
      %v901 = vunpack.i.l.s16 %v791
      %v902 = vunpack.i.h.s16 %v791
      %v903 = vunpack.i.l.s16 %v792
      %v904 = vunpack.i.h.s16 %v792
      %v905 = vunpack.i.l.s16 %v807
      %v906 = vunpack.i.h.s16 %v807
      %v907 = vunpack.i.l.s16 %v814
      %v908 = vunpack.i.h.s16 %v814
      %v909 = vunpack.i.l.s16 %v815
      %v910 = vunpack.i.h.s16 %v815
      %v911 = vunpack.i.l.s16 %v816
      %v912 = vunpack.i.h.s16 %v816
      %v913 = vunpack.i.l.s16 %v831
      %v914 = vunpack.i.h.s16 %v831
      %v915 = vunpack.i.l.s16 %v838
      %v916 = vunpack.i.h.s16 %v838
      %v917 = vunpack.i.l.s16 %v839
      %v918 = vunpack.i.h.s16 %v839
      %v919 = vunpack.i.l.s16 %v840
      %v920 = vunpack.i.h.s16 %v840
      %v921 = vunpack.i.l.s16 %v855
      %v922 = vunpack.i.h.s16 %v855
      %v923 = vunpack.i.l.s16 %v862
      %v924 = vunpack.i.h.s16 %v862
      %v925 = vunpack.i.l.s16 %v863
      %v926 = vunpack.i.h.s16 %v863
      %v927 = vunpack.i.l.s16 %v864
      %v928 = vunpack.i.h.s16 %v864
      %v929 = vpack.i.b16 %v865, %v865
      %v930 = vpack.i.b16 %v866, %v866
      %v931 = vpack.i.b16 %v867, %v867
      %v932 = vpack.i.b16 %v868, %v868
      %v933 = vpack.i.b16 %v869, %v869
      %v934 = vpack.i.b16 %v870, %v870
      %v935 = vpack.i.b16 %v871, %v871
      %v936 = vpack.i.b16 %v872, %v872
      %v937 = vpack.i.b16 %v873, %v873
      %v938 = vpack.i.b16 %v874, %v874
      %v939 = vpack.i.b16 %v875, %v875
      %v940 = vpack.i.b16 %v876, %v876
      %v941 = vpack.i.b16 %v877, %v877
      %v942 = vpack.i.b16 %v878, %v878
      %v943 = vpack.i.b16 %v879, %v879
      %v944 = vpack.i.b16 %v880, %v880
      %v945 = vpack.i.b16 %v881, %v881
      %v946 = vpack.i.b16 %v882, %v882
      %v947 = vpack.i.b16 %v883, %v883
      %v948 = vpack.i.b16 %v884, %v884
      %v949 = vpack.i.b16 %v885, %v885
      %v950 = vpack.i.b16 %v886, %v886
      %v951 = vpack.i.b16 %v887, %v887
      %v952 = vpack.i.b16 %v888, %v888
      %v953 = vpack.i.b16 %v889, %v889
      %v954 = vpack.i.b16 %v890, %v890
      %v955 = vpack.i.b16 %v891, %v891
      %v956 = vpack.i.b16 %v892, %v892
      %v957 = vpack.i.b16 %v893, %v893
      %v958 = vpack.i.b16 %v894, %v894
      %v959 = vpack.i.b16 %v895, %v895
      %v960 = vpack.i.b16 %v896, %v896
      %v961 = vpack.i.b16 %v897, %v897
      %v962 = vpack.i.b16 %v898, %v898
      %v963 = vpack.i.b16 %v899, %v899
      %v964 = vpack.i.b16 %v900, %v900
      %v965 = vpack.i.b16 %v901, %v901
      %v966 = vpack.i.b16 %v902, %v902
      %v967 = vpack.i.b16 %v903, %v903
      %v968 = vpack.i.b16 %v904, %v904
      %v969 = vpack.i.b16 %v905, %v905
      %v970 = vpack.i.b16 %v906, %v906
      %v971 = vpack.i.b16 %v907, %v907
      %v972 = vpack.i.b16 %v908, %v908
      %v973 = vpack.i.b16 %v909, %v909
      %v974 = vpack.i.b16 %v910, %v910
      %v975 = vpack.i.b16 %v911, %v911
      %v976 = vpack.i.b16 %v912, %v912
      %v977 = vpack.i.b16 %v913, %v913
      %v978 = vpack.i.b16 %v914, %v914
      %v979 = vpack.i.b16 %v915, %v915
      %v980 = vpack.i.b16 %v916, %v916
      %v981 = vpack.i.b16 %v917, %v917
      %v982 = vpack.i.b16 %v918, %v918
      %v983 = vpack.i.b16 %v919, %v919
      %v984 = vpack.i.b16 %v920, %v920
      %v985 = vpack.i.b16 %v921, %v921
      %v986 = vpack.i.b16 %v922, %v922
      %v987 = vpack.i.b16 %v923, %v923
      %v988 = vpack.i.b16 %v924, %v924
      %v989 = vpack.i.b16 %v925, %v925
      %v990 = vpack.i.b16 %v926, %v926
      %v991 = vpack.i.b16 %v927, %v927
      %v992 = vpack.i.b16 %v928, %v928
      %v993 = vlaneseq
      %v994 = vshrl.u32 %v993, 7
      %v995 = vsub.s32 0, %v994
      %v996 = vrot.slane %v929, %v995
      %v997 = vlaneseq
      %v998 = vshrl.u32 %v997, 7
      %v999 = vsub.s32 0, %v998
      %v1000 = vrot.slane %v930, %v999
      %v1001 = vlaneseq
      %v1002 = vshrl.u32 %v1001, 7
      %v1003 = vsub.s32 0, %v1002
      %v1004 = vrot.slane %v931, %v1003
      %v1005 = vlaneseq
      %v1006 = vshrl.u32 %v1005, 7
      %v1007 = vsub.s32 0, %v1006
      %v1008 = vrot.slane %v932, %v1007
      %v1009 = vlaneseq
      %v1010 = vshrl.u32 %v1009, 7
      %v1011 = vsub.s32 0, %v1010
      %v1012 = vrot.slane %v933, %v1011
      %v1013 = vlaneseq
      %v1014 = vshrl.u32 %v1013, 7
      %v1015 = vsub.s32 0, %v1014
      %v1016 = vrot.slane %v934, %v1015
      %v1017 = vlaneseq
      %v1018 = vshrl.u32 %v1017, 7
      %v1019 = vsub.s32 0, %v1018
      %v1020 = vrot.slane %v935, %v1019
      %v1021 = vlaneseq
      %v1022 = vshrl.u32 %v1021, 7
      %v1023 = vsub.s32 0, %v1022
      %v1024 = vrot.slane %v936, %v1023
      %v1025 = vlaneseq
      %v1026 = vshrl.u32 %v1025, 7
      %v1027 = vsub.s32 0, %v1026
      %v1028 = vrot.slane %v937, %v1027
      %v1029 = vlaneseq
      %v1030 = vshrl.u32 %v1029, 7
      %v1031 = vsub.s32 0, %v1030
      %v1032 = vrot.slane %v938, %v1031
      %v1033 = vlaneseq
      %v1034 = vshrl.u32 %v1033, 7
      %v1035 = vsub.s32 0, %v1034
      %v1036 = vrot.slane %v939, %v1035
      %v1037 = vlaneseq
      %v1038 = vshrl.u32 %v1037, 7
      %v1039 = vsub.s32 0, %v1038
      %v1040 = vrot.slane %v940, %v1039
      %v1041 = vlaneseq
      %v1042 = vshrl.u32 %v1041, 7
      %v1043 = vsub.s32 0, %v1042
      %v1044 = vrot.slane %v941, %v1043
      %v1045 = vlaneseq
      %v1046 = vshrl.u32 %v1045, 7
      %v1047 = vsub.s32 0, %v1046
      %v1048 = vrot.slane %v942, %v1047
      %v1049 = vlaneseq
      %v1050 = vshrl.u32 %v1049, 7
      %v1051 = vsub.s32 0, %v1050
      %v1052 = vrot.slane %v943, %v1051
      %v1053 = vlaneseq
      %v1054 = vshrl.u32 %v1053, 7
      %v1055 = vsub.s32 0, %v1054
      %v1056 = vrot.slane %v944, %v1055
      %v1057 = vlaneseq
      %v1058 = vshrl.u32 %v1057, 7
      %v1059 = vsub.s32 0, %v1058
      %v1060 = vrot.slane %v945, %v1059
      %v1061 = vlaneseq
      %v1062 = vshrl.u32 %v1061, 7
      %v1063 = vsub.s32 0, %v1062
      %v1064 = vrot.slane %v946, %v1063
      %v1065 = vlaneseq
      %v1066 = vshrl.u32 %v1065, 7
      %v1067 = vsub.s32 0, %v1066
      %v1068 = vrot.slane %v947, %v1067
      %v1069 = vlaneseq
      %v1070 = vshrl.u32 %v1069, 7
      %v1071 = vsub.s32 0, %v1070
      %v1072 = vrot.slane %v948, %v1071
      %v1073 = vlaneseq
      %v1074 = vshrl.u32 %v1073, 7
      %v1075 = vsub.s32 0, %v1074
      %v1076 = vrot.slane %v949, %v1075
      %v1077 = vlaneseq
      %v1078 = vshrl.u32 %v1077, 7
      %v1079 = vsub.s32 0, %v1078
      %v1080 = vrot.slane %v950, %v1079
      %v1081 = vlaneseq
      %v1082 = vshrl.u32 %v1081, 7
      %v1083 = vsub.s32 0, %v1082
      %v1084 = vrot.slane %v951, %v1083
      %v1085 = vlaneseq
      %v1086 = vshrl.u32 %v1085, 7
      %v1087 = vsub.s32 0, %v1086
      %v1088 = vrot.slane %v952, %v1087
      %v1089 = vlaneseq
      %v1090 = vshrl.u32 %v1089, 7
      %v1091 = vsub.s32 0, %v1090
      %v1092 = vrot.slane %v953, %v1091
      %v1093 = vlaneseq
      %v1094 = vshrl.u32 %v1093, 7
      %v1095 = vsub.s32 0, %v1094
      %v1096 = vrot.slane %v954, %v1095
      %v1097 = vlaneseq
      %v1098 = vshrl.u32 %v1097, 7
      %v1099 = vsub.s32 0, %v1098
      %v1100 = vrot.slane %v955, %v1099
      %v1101 = vlaneseq
      %v1102 = vshrl.u32 %v1101, 7
      %v1103 = vsub.s32 0, %v1102
      %v1104 = vrot.slane %v956, %v1103
      %v1105 = vlaneseq
      %v1106 = vshrl.u32 %v1105, 7
      %v1107 = vsub.s32 0, %v1106
      %v1108 = vrot.slane %v957, %v1107
      %v1109 = vlaneseq
      %v1110 = vshrl.u32 %v1109, 7
      %v1111 = vsub.s32 0, %v1110
      %v1112 = vrot.slane %v958, %v1111
      %v1113 = vlaneseq
      %v1114 = vshrl.u32 %v1113, 7
      %v1115 = vsub.s32 0, %v1114
      %v1116 = vrot.slane %v959, %v1115
      %v1117 = vlaneseq
      %v1118 = vshrl.u32 %v1117, 7
      %v1119 = vsub.s32 0, %v1118
      %v1120 = vrot.slane %v960, %v1119
      %v1121 = vlaneseq
      %v1122 = vshrl.u32 %v1121, 7
      %v1123 = vsub.s32 0, %v1122
      %v1124 = vrot.slane %v961, %v1123
      %v1125 = vlaneseq
      %v1126 = vshrl.u32 %v1125, 7
      %v1127 = vsub.s32 0, %v1126
      %v1128 = vrot.slane %v962, %v1127
      %v1129 = vlaneseq
      %v1130 = vshrl.u32 %v1129, 7
      %v1131 = vsub.s32 0, %v1130
      %v1132 = vrot.slane %v963, %v1131
      %v1133 = vlaneseq
      %v1134 = vshrl.u32 %v1133, 7
      %v1135 = vsub.s32 0, %v1134
      %v1136 = vrot.slane %v964, %v1135
      %v1137 = vlaneseq
      %v1138 = vshrl.u32 %v1137, 7
      %v1139 = vsub.s32 0, %v1138
      %v1140 = vrot.slane %v965, %v1139
      %v1141 = vlaneseq
      %v1142 = vshrl.u32 %v1141, 7
      %v1143 = vsub.s32 0, %v1142
      %v1144 = vrot.slane %v966, %v1143
      %v1145 = vlaneseq
      %v1146 = vshrl.u32 %v1145, 7
      %v1147 = vsub.s32 0, %v1146
      %v1148 = vrot.slane %v967, %v1147
      %v1149 = vlaneseq
      %v1150 = vshrl.u32 %v1149, 7
      %v1151 = vsub.s32 0, %v1150
      %v1152 = vrot.slane %v968, %v1151
      %v1153 = vlaneseq
      %v1154 = vshrl.u32 %v1153, 7
      %v1155 = vsub.s32 0, %v1154
      %v1156 = vrot.slane %v969, %v1155
      %v1157 = vlaneseq
      %v1158 = vshrl.u32 %v1157, 7
      %v1159 = vsub.s32 0, %v1158
      %v1160 = vrot.slane %v970, %v1159
      %v1161 = vlaneseq
      %v1162 = vshrl.u32 %v1161, 7
      %v1163 = vsub.s32 0, %v1162
      %v1164 = vrot.slane %v971, %v1163
      %v1165 = vlaneseq
      %v1166 = vshrl.u32 %v1165, 7
      %v1167 = vsub.s32 0, %v1166
      %v1168 = vrot.slane %v972, %v1167
      %v1169 = vlaneseq
      %v1170 = vshrl.u32 %v1169, 7
      %v1171 = vsub.s32 0, %v1170
      %v1172 = vrot.slane %v973, %v1171
      %v1173 = vlaneseq
      %v1174 = vshrl.u32 %v1173, 7
      %v1175 = vsub.s32 0, %v1174
      %v1176 = vrot.slane %v974, %v1175
      %v1177 = vlaneseq
      %v1178 = vshrl.u32 %v1177, 7
      %v1179 = vsub.s32 0, %v1178
      %v1180 = vrot.slane %v975, %v1179
      %v1181 = vlaneseq
      %v1182 = vshrl.u32 %v1181, 7
      %v1183 = vsub.s32 0, %v1182
      %v1184 = vrot.slane %v976, %v1183
      %v1185 = vlaneseq
      %v1186 = vshrl.u32 %v1185, 7
      %v1187 = vsub.s32 0, %v1186
      %v1188 = vrot.slane %v977, %v1187
      %v1189 = vlaneseq
      %v1190 = vshrl.u32 %v1189, 7
      %v1191 = vsub.s32 0, %v1190
      %v1192 = vrot.slane %v978, %v1191
      %v1193 = vlaneseq
      %v1194 = vshrl.u32 %v1193, 7
      %v1195 = vsub.s32 0, %v1194
      %v1196 = vrot.slane %v979, %v1195
      %v1197 = vlaneseq
      %v1198 = vshrl.u32 %v1197, 7
      %v1199 = vsub.s32 0, %v1198
      %v1200 = vrot.slane %v980, %v1199
      %v1201 = vlaneseq
      %v1202 = vshrl.u32 %v1201, 7
      %v1203 = vsub.s32 0, %v1202
      %v1204 = vrot.slane %v981, %v1203
      %v1205 = vlaneseq
      %v1206 = vshrl.u32 %v1205, 7
      %v1207 = vsub.s32 0, %v1206
      %v1208 = vrot.slane %v982, %v1207
      %v1209 = vlaneseq
      %v1210 = vshrl.u32 %v1209, 7
      %v1211 = vsub.s32 0, %v1210
      %v1212 = vrot.slane %v983, %v1211
      %v1213 = vlaneseq
      %v1214 = vshrl.u32 %v1213, 7
      %v1215 = vsub.s32 0, %v1214
      %v1216 = vrot.slane %v984, %v1215
      %v1217 = vlaneseq
      %v1218 = vshrl.u32 %v1217, 7
      %v1219 = vsub.s32 0, %v1218
      %v1220 = vrot.slane %v985, %v1219
      %v1221 = vlaneseq
      %v1222 = vshrl.u32 %v1221, 7
      %v1223 = vsub.s32 0, %v1222
      %v1224 = vrot.slane %v986, %v1223
      %v1225 = vlaneseq
      %v1226 = vshrl.u32 %v1225, 7
      %v1227 = vsub.s32 0, %v1226
      %v1228 = vrot.slane %v987, %v1227
      %v1229 = vlaneseq
      %v1230 = vshrl.u32 %v1229, 7
      %v1231 = vsub.s32 0, %v1230
      %v1232 = vrot.slane %v988, %v1231
      %v1233 = vlaneseq
      %v1234 = vshrl.u32 %v1233, 7
      %v1235 = vsub.s32 0, %v1234
      %v1236 = vrot.slane %v989, %v1235
      %v1237 = vlaneseq
      %v1238 = vshrl.u32 %v1237, 7
      %v1239 = vsub.s32 0, %v1238
      %v1240 = vrot.slane %v990, %v1239
      %v1241 = vlaneseq
      %v1242 = vshrl.u32 %v1241, 7
      %v1243 = vsub.s32 0, %v1242
      %v1244 = vrot.slane %v991, %v1243
      %v1245 = vlaneseq
      %v1246 = vshrl.u32 %v1245, 7
      %v1247 = vsub.s32 0, %v1246
      %v1248 = vrot.slane %v992, %v1247
      %v1250 = vpack.i.b16 %v996, %v996
      %v1252 = vlaneseq
      %v1253 = vshrl.u32 %v1252, 7
      %v1254 = vsub.s32 0, %v1253
      %v1255 = vrot.slane %v1250, %v1254
      %v1257 = vpack.i.b16 %v1000, %v1000
      %v1259 = vlaneseq
      %v1260 = vshrl.u32 %v1259, 7
      %v1261 = vsub.s32 0, %v1260
      %v1262 = vrot.slane %v1257, %v1261
      %v1264 = vpack.i.b16 %v1004, %v1004
      %v1266 = vlaneseq
      %v1267 = vshrl.u32 %v1266, 7
      %v1268 = vsub.s32 0, %v1267
      %v1269 = vrot.slane %v1264, %v1268
      %v1271 = vpack.i.b16 %v1008, %v1008
      %v1273 = vlaneseq
      %v1274 = vshrl.u32 %v1273, 7
      %v1275 = vsub.s32 0, %v1274
      %v1276 = vrot.slane %v1271, %v1275
      %v1278 = vpack.i.b16 %v1012, %v1012
      %v1280 = vlaneseq
      %v1281 = vshrl.u32 %v1280, 7
      %v1282 = vsub.s32 0, %v1281
      %v1283 = vrot.slane %v1278, %v1282
      %v1285 = vpack.i.b16 %v1016, %v1016
      %v1287 = vlaneseq
      %v1288 = vshrl.u32 %v1287, 7
      %v1289 = vsub.s32 0, %v1288
      %v1290 = vrot.slane %v1285, %v1289
      %v1292 = vpack.i.b16 %v1020, %v1020
      %v1294 = vlaneseq
      %v1295 = vshrl.u32 %v1294, 7
      %v1296 = vsub.s32 0, %v1295
      %v1297 = vrot.slane %v1292, %v1296
      %v1299 = vpack.i.b16 %v1024, %v1024
      %v1301 = vlaneseq
      %v1302 = vshrl.u32 %v1301, 7
      %v1303 = vsub.s32 0, %v1302
      %v1304 = vrot.slane %v1299, %v1303
      %v1306 = vpack.i.b16 %v1028, %v1028
      %v1308 = vlaneseq
      %v1309 = vshrl.u32 %v1308, 7
      %v1310 = vsub.s32 0, %v1309
      %v1311 = vrot.slane %v1306, %v1310
      %v1313 = vpack.i.b16 %v1032, %v1032
      %v1315 = vlaneseq
      %v1316 = vshrl.u32 %v1315, 7
      %v1317 = vsub.s32 0, %v1316
      %v1318 = vrot.slane %v1313, %v1317
      %v1320 = vpack.i.b16 %v1036, %v1036
      %v1322 = vlaneseq
      %v1323 = vshrl.u32 %v1322, 7
      %v1324 = vsub.s32 0, %v1323
      %v1325 = vrot.slane %v1320, %v1324
      %v1327 = vpack.i.b16 %v1040, %v1040
      %v1329 = vlaneseq
      %v1330 = vshrl.u32 %v1329, 7
      %v1331 = vsub.s32 0, %v1330
      %v1332 = vrot.slane %v1327, %v1331
      %v1334 = vpack.i.b16 %v1044, %v1044
      %v1336 = vlaneseq
      %v1337 = vshrl.u32 %v1336, 7
      %v1338 = vsub.s32 0, %v1337
      %v1339 = vrot.slane %v1334, %v1338
      %v1341 = vpack.i.b16 %v1048, %v1048
      %v1343 = vlaneseq
      %v1344 = vshrl.u32 %v1343, 7
      %v1345 = vsub.s32 0, %v1344
      %v1346 = vrot.slane %v1341, %v1345
      %v1348 = vpack.i.b16 %v1052, %v1052
      %v1350 = vlaneseq
      %v1351 = vshrl.u32 %v1350, 7
      %v1352 = vsub.s32 0, %v1351
      %v1353 = vrot.slane %v1348, %v1352
      %v1355 = vpack.i.b16 %v1056, %v1056
      %v1357 = vlaneseq
      %v1358 = vshrl.u32 %v1357, 7
      %v1359 = vsub.s32 0, %v1358
      %v1360 = vrot.slane %v1355, %v1359
      %v1362 = vpack.i.b16 %v1060, %v1060
      %v1364 = vlaneseq
      %v1365 = vshrl.u32 %v1364, 7
      %v1366 = vsub.s32 0, %v1365
      %v1367 = vrot.slane %v1362, %v1366
      %v1369 = vpack.i.b16 %v1064, %v1064
      %v1371 = vlaneseq
      %v1372 = vshrl.u32 %v1371, 7
      %v1373 = vsub.s32 0, %v1372
      %v1374 = vrot.slane %v1369, %v1373
      %v1376 = vpack.i.b16 %v1068, %v1068
      %v1378 = vlaneseq
      %v1379 = vshrl.u32 %v1378, 7
      %v1380 = vsub.s32 0, %v1379
      %v1381 = vrot.slane %v1376, %v1380
      %v1383 = vpack.i.b16 %v1072, %v1072
      %v1385 = vlaneseq
      %v1386 = vshrl.u32 %v1385, 7
      %v1387 = vsub.s32 0, %v1386
      %v1388 = vrot.slane %v1383, %v1387
      %v1390 = vpack.i.b16 %v1076, %v1076
      %v1392 = vlaneseq
      %v1393 = vshrl.u32 %v1392, 7
      %v1394 = vsub.s32 0, %v1393
      %v1395 = vrot.slane %v1390, %v1394
      %v1397 = vpack.i.b16 %v1080, %v1080
      %v1399 = vlaneseq
      %v1400 = vshrl.u32 %v1399, 7
      %v1401 = vsub.s32 0, %v1400
      %v1402 = vrot.slane %v1397, %v1401
      %v1404 = vpack.i.b16 %v1084, %v1084
      %v1406 = vlaneseq
      %v1407 = vshrl.u32 %v1406, 7
      %v1408 = vsub.s32 0, %v1407
      %v1409 = vrot.slane %v1404, %v1408
      %v1411 = vpack.i.b16 %v1088, %v1088
      %v1413 = vlaneseq
      %v1414 = vshrl.u32 %v1413, 7
      %v1415 = vsub.s32 0, %v1414
      %v1416 = vrot.slane %v1411, %v1415
      %v1418 = vpack.i.b16 %v1092, %v1092
      %v1420 = vlaneseq
      %v1421 = vshrl.u32 %v1420, 7
      %v1422 = vsub.s32 0, %v1421
      %v1423 = vrot.slane %v1418, %v1422
      %v1425 = vpack.i.b16 %v1096, %v1096
      %v1427 = vlaneseq
      %v1428 = vshrl.u32 %v1427, 7
      %v1429 = vsub.s32 0, %v1428
      %v1430 = vrot.slane %v1425, %v1429
      %v1432 = vpack.i.b16 %v1100, %v1100
      %v1434 = vlaneseq
      %v1435 = vshrl.u32 %v1434, 7
      %v1436 = vsub.s32 0, %v1435
      %v1437 = vrot.slane %v1432, %v1436
      %v1439 = vpack.i.b16 %v1104, %v1104
      %v1441 = vlaneseq
      %v1442 = vshrl.u32 %v1441, 7
      %v1443 = vsub.s32 0, %v1442
      %v1444 = vrot.slane %v1439, %v1443
      %v1446 = vpack.i.b16 %v1108, %v1108
      %v1448 = vlaneseq
      %v1449 = vshrl.u32 %v1448, 7
      %v1450 = vsub.s32 0, %v1449
      %v1451 = vrot.slane %v1446, %v1450
      %v1453 = vpack.i.b16 %v1112, %v1112
      %v1455 = vlaneseq
      %v1456 = vshrl.u32 %v1455, 7
      %v1457 = vsub.s32 0, %v1456
      %v1458 = vrot.slane %v1453, %v1457
      %v1460 = vpack.i.b16 %v1116, %v1116
      %v1462 = vlaneseq
      %v1463 = vshrl.u32 %v1462, 7
      %v1464 = vsub.s32 0, %v1463
      %v1465 = vrot.slane %v1460, %v1464
      %v1467 = vpack.i.b16 %v1120, %v1120
      %v1469 = vlaneseq
      %v1470 = vshrl.u32 %v1469, 7
      %v1471 = vsub.s32 0, %v1470
      %v1472 = vrot.slane %v1467, %v1471
      %v1474 = vpack.i.b16 %v1124, %v1124
      %v1476 = vlaneseq
      %v1477 = vshrl.u32 %v1476, 7
      %v1478 = vsub.s32 0, %v1477
      %v1479 = vrot.slane %v1474, %v1478
      %v1481 = vpack.i.b16 %v1128, %v1128
      %v1483 = vlaneseq
      %v1484 = vshrl.u32 %v1483, 7
      %v1485 = vsub.s32 0, %v1484
      %v1486 = vrot.slane %v1481, %v1485
      %v1488 = vpack.i.b16 %v1132, %v1132
      %v1490 = vlaneseq
      %v1491 = vshrl.u32 %v1490, 7
      %v1492 = vsub.s32 0, %v1491
      %v1493 = vrot.slane %v1488, %v1492
      %v1495 = vpack.i.b16 %v1136, %v1136
      %v1497 = vlaneseq
      %v1498 = vshrl.u32 %v1497, 7
      %v1499 = vsub.s32 0, %v1498
      %v1500 = vrot.slane %v1495, %v1499
      %v1502 = vpack.i.b16 %v1140, %v1140
      %v1504 = vlaneseq
      %v1505 = vshrl.u32 %v1504, 7
      %v1506 = vsub.s32 0, %v1505
      %v1507 = vrot.slane %v1502, %v1506
      %v1509 = vpack.i.b16 %v1144, %v1144
      %v1511 = vlaneseq
      %v1512 = vshrl.u32 %v1511, 7
      %v1513 = vsub.s32 0, %v1512
      %v1514 = vrot.slane %v1509, %v1513
      %v1516 = vpack.i.b16 %v1148, %v1148
      %v1518 = vlaneseq
      %v1519 = vshrl.u32 %v1518, 7
      %v1520 = vsub.s32 0, %v1519
      %v1521 = vrot.slane %v1516, %v1520
      %v1523 = vpack.i.b16 %v1152, %v1152
      %v1525 = vlaneseq
      %v1526 = vshrl.u32 %v1525, 7
      %v1527 = vsub.s32 0, %v1526
      %v1528 = vrot.slane %v1523, %v1527
      %v1530 = vpack.i.b16 %v1156, %v1156
      %v1532 = vlaneseq
      %v1533 = vshrl.u32 %v1532, 7
      %v1534 = vsub.s32 0, %v1533
      %v1535 = vrot.slane %v1530, %v1534
      %v1537 = vpack.i.b16 %v1160, %v1160
      %v1539 = vlaneseq
      %v1540 = vshrl.u32 %v1539, 7
      %v1541 = vsub.s32 0, %v1540
      %v1542 = vrot.slane %v1537, %v1541
      %v1544 = vpack.i.b16 %v1164, %v1164
      %v1546 = vlaneseq
      %v1547 = vshrl.u32 %v1546, 7
      %v1548 = vsub.s32 0, %v1547
      %v1549 = vrot.slane %v1544, %v1548
      %v1551 = vpack.i.b16 %v1168, %v1168
      %v1553 = vlaneseq
      %v1554 = vshrl.u32 %v1553, 7
      %v1555 = vsub.s32 0, %v1554
      %v1556 = vrot.slane %v1551, %v1555
      %v1558 = vpack.i.b16 %v1172, %v1172
      %v1560 = vlaneseq
      %v1561 = vshrl.u32 %v1560, 7
      %v1562 = vsub.s32 0, %v1561
      %v1563 = vrot.slane %v1558, %v1562
      %v1565 = vpack.i.b16 %v1176, %v1176
      %v1567 = vlaneseq
      %v1568 = vshrl.u32 %v1567, 7
      %v1569 = vsub.s32 0, %v1568
      %v1570 = vrot.slane %v1565, %v1569
      %v1572 = vpack.i.b16 %v1180, %v1180
      %v1574 = vlaneseq
      %v1575 = vshrl.u32 %v1574, 7
      %v1576 = vsub.s32 0, %v1575
      %v1577 = vrot.slane %v1572, %v1576
      %v1579 = vpack.i.b16 %v1184, %v1184
      %v1581 = vlaneseq
      %v1582 = vshrl.u32 %v1581, 7
      %v1583 = vsub.s32 0, %v1582
      %v1584 = vrot.slane %v1579, %v1583
      %v1586 = vpack.i.b16 %v1188, %v1188
      %v1588 = vlaneseq
      %v1589 = vshrl.u32 %v1588, 7
      %v1590 = vsub.s32 0, %v1589
      %v1591 = vrot.slane %v1586, %v1590
      %v1593 = vpack.i.b16 %v1192, %v1192
      %v1595 = vlaneseq
      %v1596 = vshrl.u32 %v1595, 7
      %v1597 = vsub.s32 0, %v1596
      %v1598 = vrot.slane %v1593, %v1597
      %v1600 = vpack.i.b16 %v1196, %v1196
      %v1602 = vlaneseq
      %v1603 = vshrl.u32 %v1602, 7
      %v1604 = vsub.s32 0, %v1603
      %v1605 = vrot.slane %v1600, %v1604
      %v1607 = vpack.i.b16 %v1200, %v1200
      %v1609 = vlaneseq
      %v1610 = vshrl.u32 %v1609, 7
      %v1611 = vsub.s32 0, %v1610
      %v1612 = vrot.slane %v1607, %v1611
      %v1614 = vpack.i.b16 %v1204, %v1204
      %v1616 = vlaneseq
      %v1617 = vshrl.u32 %v1616, 7
      %v1618 = vsub.s32 0, %v1617
      %v1619 = vrot.slane %v1614, %v1618
      %v1621 = vpack.i.b16 %v1208, %v1208
      %v1623 = vlaneseq
      %v1624 = vshrl.u32 %v1623, 7
      %v1625 = vsub.s32 0, %v1624
      %v1626 = vrot.slane %v1621, %v1625
      %v1628 = vpack.i.b16 %v1212, %v1212
      %v1630 = vlaneseq
      %v1631 = vshrl.u32 %v1630, 7
      %v1632 = vsub.s32 0, %v1631
      %v1633 = vrot.slane %v1628, %v1632
      %v1635 = vpack.i.b16 %v1216, %v1216
      %v1637 = vlaneseq
      %v1638 = vshrl.u32 %v1637, 7
      %v1639 = vsub.s32 0, %v1638
      %v1640 = vrot.slane %v1635, %v1639
      %v1642 = vpack.i.b16 %v1220, %v1220
      %v1644 = vlaneseq
      %v1645 = vshrl.u32 %v1644, 7
      %v1646 = vsub.s32 0, %v1645
      %v1647 = vrot.slane %v1642, %v1646
      %v1649 = vpack.i.b16 %v1224, %v1224
      %v1651 = vlaneseq
      %v1652 = vshrl.u32 %v1651, 7
      %v1653 = vsub.s32 0, %v1652
      %v1654 = vrot.slane %v1649, %v1653
      %v1656 = vpack.i.b16 %v1228, %v1228
      %v1658 = vlaneseq
      %v1659 = vshrl.u32 %v1658, 7
      %v1660 = vsub.s32 0, %v1659
      %v1661 = vrot.slane %v1656, %v1660
      %v1663 = vpack.i.b16 %v1232, %v1232
      %v1665 = vlaneseq
      %v1666 = vshrl.u32 %v1665, 7
      %v1667 = vsub.s32 0, %v1666
      %v1668 = vrot.slane %v1663, %v1667
      %v1670 = vpack.i.b16 %v1236, %v1236
      %v1672 = vlaneseq
      %v1673 = vshrl.u32 %v1672, 7
      %v1674 = vsub.s32 0, %v1673
      %v1675 = vrot.slane %v1670, %v1674
      %v1677 = vpack.i.b16 %v1240, %v1240
      %v1679 = vlaneseq
      %v1680 = vshrl.u32 %v1679, 7
      %v1681 = vsub.s32 0, %v1680
      %v1682 = vrot.slane %v1677, %v1681
      %v1684 = vpack.i.b16 %v1244, %v1244
      %v1686 = vlaneseq
      %v1687 = vshrl.u32 %v1686, 7
      %v1688 = vsub.s32 0, %v1687
      %v1689 = vrot.slane %v1684, %v1688
      %v1691 = vpack.i.b16 %v1248, %v1248
      %v1693 = vlaneseq
      %v1694 = vshrl.u32 %v1693, 7
      %v1695 = vsub.s32 0, %v1694
      %v1696 = vrot.slane %v1691, %v1695
      %v1761 = vcombine.low %v1255, %v1269
      %v1762 = vcombine.low %v1262, %v1276
      %v1764 = vunpack.c.l.s4 1935823168
      %v1765 = vunpack.c.0.s8 %v1764
      %v1766 = vlaneseq
      %v1767 = vshrl.u32 %v1766, 7
      %v1768 = vsub.s32 %v1765, %v1767
      %v1769 = vrot.slane %v1761, %v1768
      %v1771 = vunpack.c.l.s4 1935823168
      %v1772 = vunpack.c.0.s8 %v1771
      %v1773 = vlaneseq
      %v1774 = vshrl.u32 %v1773, 7
      %v1775 = vsub.s32 %v1772, %v1774
      %v1776 = vrot.slane %v1762, %v1775
      %v1777 = vcombine.low %v1769, %v1776
      %v1779 = vunpack.c.l.s4 1935823168
      %v1780 = vunpack.c.0.s8 %v1779
      %v1781 = vlaneseq
      %v1782 = vshrl.u32 %v1781, 7
      %v1783 = vsub.s32 %v1780, %v1782
      %v1784 = vrot.slane %v1777, %v1783
      %v1785 = vcombine.low %v1283, %v1297
      %v1786 = vcombine.low %v1290, %v1304
      %v1788 = vunpack.c.l.s4 1935823168
      %v1789 = vunpack.c.0.s8 %v1788
      %v1790 = vlaneseq
      %v1791 = vshrl.u32 %v1790, 7
      %v1792 = vsub.s32 %v1789, %v1791
      %v1793 = vrot.slane %v1785, %v1792
      %v1795 = vunpack.c.l.s4 1935823168
      %v1796 = vunpack.c.0.s8 %v1795
      %v1797 = vlaneseq
      %v1798 = vshrl.u32 %v1797, 7
      %v1799 = vsub.s32 %v1796, %v1798
      %v1800 = vrot.slane %v1786, %v1799
      %v1801 = vcombine.low %v1793, %v1800
      %v1803 = vunpack.c.l.s4 1935823168
      %v1804 = vunpack.c.0.s8 %v1803
      %v1805 = vlaneseq
      %v1806 = vshrl.u32 %v1805, 7
      %v1807 = vsub.s32 %v1804, %v1806
      %v1808 = vrot.slane %v1801, %v1807
      %v1809 = vcombine.low %v1311, %v1325
      %v1810 = vcombine.low %v1318, %v1332
      %v1812 = vunpack.c.l.s4 1935823168
      %v1813 = vunpack.c.0.s8 %v1812
      %v1814 = vlaneseq
      %v1815 = vshrl.u32 %v1814, 7
      %v1816 = vsub.s32 %v1813, %v1815
      %v1817 = vrot.slane %v1809, %v1816
      %v1819 = vunpack.c.l.s4 1935823168
      %v1820 = vunpack.c.0.s8 %v1819
      %v1821 = vlaneseq
      %v1822 = vshrl.u32 %v1821, 7
      %v1823 = vsub.s32 %v1820, %v1822
      %v1824 = vrot.slane %v1810, %v1823
      %v1825 = vcombine.low %v1817, %v1824
      %v1827 = vunpack.c.l.s4 1935823168
      %v1828 = vunpack.c.0.s8 %v1827
      %v1829 = vlaneseq
      %v1830 = vshrl.u32 %v1829, 7
      %v1831 = vsub.s32 %v1828, %v1830
      %v1832 = vrot.slane %v1825, %v1831
      %v1833 = vcombine.low %v1339, %v1353
      %v1834 = vcombine.low %v1346, %v1360
      %v1836 = vunpack.c.l.s4 1935823168
      %v1837 = vunpack.c.0.s8 %v1836
      %v1838 = vlaneseq
      %v1839 = vshrl.u32 %v1838, 7
      %v1840 = vsub.s32 %v1837, %v1839
      %v1841 = vrot.slane %v1833, %v1840
      %v1843 = vunpack.c.l.s4 1935823168
      %v1844 = vunpack.c.0.s8 %v1843
      %v1845 = vlaneseq
      %v1846 = vshrl.u32 %v1845, 7
      %v1847 = vsub.s32 %v1844, %v1846
      %v1848 = vrot.slane %v1834, %v1847
      %v1849 = vcombine.low %v1841, %v1848
      %v1851 = vunpack.c.l.s4 1935823168
      %v1852 = vunpack.c.0.s8 %v1851
      %v1853 = vlaneseq
      %v1854 = vshrl.u32 %v1853, 7
      %v1855 = vsub.s32 %v1852, %v1854
      %v1856 = vrot.slane %v1849, %v1855
      %v1857 = vcombine.low %v1367, %v1381
      %v1858 = vcombine.low %v1374, %v1388
      %v1860 = vunpack.c.l.s4 1935823168
      %v1861 = vunpack.c.0.s8 %v1860
      %v1862 = vlaneseq
      %v1863 = vshrl.u32 %v1862, 7
      %v1864 = vsub.s32 %v1861, %v1863
      %v1865 = vrot.slane %v1857, %v1864
      %v1867 = vunpack.c.l.s4 1935823168
      %v1868 = vunpack.c.0.s8 %v1867
      %v1869 = vlaneseq
      %v1870 = vshrl.u32 %v1869, 7
      %v1871 = vsub.s32 %v1868, %v1870
      %v1872 = vrot.slane %v1858, %v1871
      %v1873 = vcombine.low %v1865, %v1872
      %v1875 = vunpack.c.l.s4 1935823168
      %v1876 = vunpack.c.0.s8 %v1875
      %v1877 = vlaneseq
      %v1878 = vshrl.u32 %v1877, 7
      %v1879 = vsub.s32 %v1876, %v1878
      %v1880 = vrot.slane %v1873, %v1879
      %v1881 = vcombine.low %v1395, %v1409
      %v1882 = vcombine.low %v1402, %v1416
      %v1884 = vunpack.c.l.s4 1935823168
      %v1885 = vunpack.c.0.s8 %v1884
      %v1886 = vlaneseq
      %v1887 = vshrl.u32 %v1886, 7
      %v1888 = vsub.s32 %v1885, %v1887
      %v1889 = vrot.slane %v1881, %v1888
      %v1891 = vunpack.c.l.s4 1935823168
      %v1892 = vunpack.c.0.s8 %v1891
      %v1893 = vlaneseq
      %v1894 = vshrl.u32 %v1893, 7
      %v1895 = vsub.s32 %v1892, %v1894
      %v1896 = vrot.slane %v1882, %v1895
      %v1897 = vcombine.low %v1889, %v1896
      %v1899 = vunpack.c.l.s4 1935823168
      %v1900 = vunpack.c.0.s8 %v1899
      %v1901 = vlaneseq
      %v1902 = vshrl.u32 %v1901, 7
      %v1903 = vsub.s32 %v1900, %v1902
      %v1904 = vrot.slane %v1897, %v1903
      %v1905 = vcombine.low %v1423, %v1437
      %v1906 = vcombine.low %v1430, %v1444
      %v1908 = vunpack.c.l.s4 1935823168
      %v1909 = vunpack.c.0.s8 %v1908
      %v1910 = vlaneseq
      %v1911 = vshrl.u32 %v1910, 7
      %v1912 = vsub.s32 %v1909, %v1911
      %v1913 = vrot.slane %v1905, %v1912
      %v1915 = vunpack.c.l.s4 1935823168
      %v1916 = vunpack.c.0.s8 %v1915
      %v1917 = vlaneseq
      %v1918 = vshrl.u32 %v1917, 7
      %v1919 = vsub.s32 %v1916, %v1918
      %v1920 = vrot.slane %v1906, %v1919
      %v1921 = vcombine.low %v1913, %v1920
      %v1923 = vunpack.c.l.s4 1935823168
      %v1924 = vunpack.c.0.s8 %v1923
      %v1925 = vlaneseq
      %v1926 = vshrl.u32 %v1925, 7
      %v1927 = vsub.s32 %v1924, %v1926
      %v1928 = vrot.slane %v1921, %v1927
      %v1929 = vcombine.low %v1451, %v1465
      %v1930 = vcombine.low %v1458, %v1472
      %v1932 = vunpack.c.l.s4 1935823168
      %v1933 = vunpack.c.0.s8 %v1932
      %v1934 = vlaneseq
      %v1935 = vshrl.u32 %v1934, 7
      %v1936 = vsub.s32 %v1933, %v1935
      %v1937 = vrot.slane %v1929, %v1936
      %v1939 = vunpack.c.l.s4 1935823168
      %v1940 = vunpack.c.0.s8 %v1939
      %v1941 = vlaneseq
      %v1942 = vshrl.u32 %v1941, 7
      %v1943 = vsub.s32 %v1940, %v1942
      %v1944 = vrot.slane %v1930, %v1943
      %v1945 = vcombine.low %v1937, %v1944
      %v1947 = vunpack.c.l.s4 1935823168
      %v1948 = vunpack.c.0.s8 %v1947
      %v1949 = vlaneseq
      %v1950 = vshrl.u32 %v1949, 7
      %v1951 = vsub.s32 %v1948, %v1950
      %v1952 = vrot.slane %v1945, %v1951
      %v1953 = vcombine.low %v1479, %v1493
      %v1954 = vcombine.low %v1486, %v1500
      %v1956 = vunpack.c.l.s4 1935823168
      %v1957 = vunpack.c.0.s8 %v1956
      %v1958 = vlaneseq
      %v1959 = vshrl.u32 %v1958, 7
      %v1960 = vsub.s32 %v1957, %v1959
      %v1961 = vrot.slane %v1953, %v1960
      %v1963 = vunpack.c.l.s4 1935823168
      %v1964 = vunpack.c.0.s8 %v1963
      %v1965 = vlaneseq
      %v1966 = vshrl.u32 %v1965, 7
      %v1967 = vsub.s32 %v1964, %v1966
      %v1968 = vrot.slane %v1954, %v1967
      %v1969 = vcombine.low %v1961, %v1968
      %v1971 = vunpack.c.l.s4 1935823168
      %v1972 = vunpack.c.0.s8 %v1971
      %v1973 = vlaneseq
      %v1974 = vshrl.u32 %v1973, 7
      %v1975 = vsub.s32 %v1972, %v1974
      %v1976 = vrot.slane %v1969, %v1975
      %v1977 = vcombine.low %v1507, %v1521
      %v1978 = vcombine.low %v1514, %v1528
      %v1980 = vunpack.c.l.s4 1935823168
      %v1981 = vunpack.c.0.s8 %v1980
      %v1982 = vlaneseq
      %v1983 = vshrl.u32 %v1982, 7
      %v1984 = vsub.s32 %v1981, %v1983
      %v1985 = vrot.slane %v1977, %v1984
      %v1987 = vunpack.c.l.s4 1935823168
      %v1988 = vunpack.c.0.s8 %v1987
      %v1989 = vlaneseq
      %v1990 = vshrl.u32 %v1989, 7
      %v1991 = vsub.s32 %v1988, %v1990
      %v1992 = vrot.slane %v1978, %v1991
      %v1993 = vcombine.low %v1985, %v1992
      %v1995 = vunpack.c.l.s4 1935823168
      %v1996 = vunpack.c.0.s8 %v1995
      %v1997 = vlaneseq
      %v1998 = vshrl.u32 %v1997, 7
      %v1999 = vsub.s32 %v1996, %v1998
      %v2000 = vrot.slane %v1993, %v1999
      %v2001 = vcombine.low %v1535, %v1549
      %v2002 = vcombine.low %v1542, %v1556
      %v2004 = vunpack.c.l.s4 1935823168
      %v2005 = vunpack.c.0.s8 %v2004
      %v2006 = vlaneseq
      %v2007 = vshrl.u32 %v2006, 7
      %v2008 = vsub.s32 %v2005, %v2007
      %v2009 = vrot.slane %v2001, %v2008
      %v2011 = vunpack.c.l.s4 1935823168
      %v2012 = vunpack.c.0.s8 %v2011
      %v2013 = vlaneseq
      %v2014 = vshrl.u32 %v2013, 7
      %v2015 = vsub.s32 %v2012, %v2014
      %v2016 = vrot.slane %v2002, %v2015
      %v2017 = vcombine.low %v2009, %v2016
      %v2019 = vunpack.c.l.s4 1935823168
      %v2020 = vunpack.c.0.s8 %v2019
      %v2021 = vlaneseq
      %v2022 = vshrl.u32 %v2021, 7
      %v2023 = vsub.s32 %v2020, %v2022
      %v2024 = vrot.slane %v2017, %v2023
      %v2025 = vcombine.low %v1563, %v1577
      %v2026 = vcombine.low %v1570, %v1584
      %v2028 = vunpack.c.l.s4 1935823168
      %v2029 = vunpack.c.0.s8 %v2028
      %v2030 = vlaneseq
      %v2031 = vshrl.u32 %v2030, 7
      %v2032 = vsub.s32 %v2029, %v2031
      %v2033 = vrot.slane %v2025, %v2032
      %v2035 = vunpack.c.l.s4 1935823168
      %v2036 = vunpack.c.0.s8 %v2035
      %v2037 = vlaneseq
      %v2038 = vshrl.u32 %v2037, 7
      %v2039 = vsub.s32 %v2036, %v2038
      %v2040 = vrot.slane %v2026, %v2039
      %v2041 = vcombine.low %v2033, %v2040
      %v2043 = vunpack.c.l.s4 1935823168
      %v2044 = vunpack.c.0.s8 %v2043
      %v2045 = vlaneseq
      %v2046 = vshrl.u32 %v2045, 7
      %v2047 = vsub.s32 %v2044, %v2046
      %v2048 = vrot.slane %v2041, %v2047
      %v2049 = vcombine.low %v1591, %v1605
      %v2050 = vcombine.low %v1598, %v1612
      %v2052 = vunpack.c.l.s4 1935823168
      %v2053 = vunpack.c.0.s8 %v2052
      %v2054 = vlaneseq
      %v2055 = vshrl.u32 %v2054, 7
      %v2056 = vsub.s32 %v2053, %v2055
      %v2057 = vrot.slane %v2049, %v2056
      %v2059 = vunpack.c.l.s4 1935823168
      %v2060 = vunpack.c.0.s8 %v2059
      %v2061 = vlaneseq
      %v2062 = vshrl.u32 %v2061, 7
      %v2063 = vsub.s32 %v2060, %v2062
      %v2064 = vrot.slane %v2050, %v2063
      %v2065 = vcombine.low %v2057, %v2064
      %v2067 = vunpack.c.l.s4 1935823168
      %v2068 = vunpack.c.0.s8 %v2067
      %v2069 = vlaneseq
      %v2070 = vshrl.u32 %v2069, 7
      %v2071 = vsub.s32 %v2068, %v2070
      %v2072 = vrot.slane %v2065, %v2071
      %v2073 = vcombine.low %v1619, %v1633
      %v2074 = vcombine.low %v1626, %v1640
      %v2076 = vunpack.c.l.s4 1935823168
      %v2077 = vunpack.c.0.s8 %v2076
      %v2078 = vlaneseq
      %v2079 = vshrl.u32 %v2078, 7
      %v2080 = vsub.s32 %v2077, %v2079
      %v2081 = vrot.slane %v2073, %v2080
      %v2083 = vunpack.c.l.s4 1935823168
      %v2084 = vunpack.c.0.s8 %v2083
      %v2085 = vlaneseq
      %v2086 = vshrl.u32 %v2085, 7
      %v2087 = vsub.s32 %v2084, %v2086
      %v2088 = vrot.slane %v2074, %v2087
      %v2089 = vcombine.low %v2081, %v2088
      %v2091 = vunpack.c.l.s4 1935823168
      %v2092 = vunpack.c.0.s8 %v2091
      %v2093 = vlaneseq
      %v2094 = vshrl.u32 %v2093, 7
      %v2095 = vsub.s32 %v2092, %v2094
      %v2096 = vrot.slane %v2089, %v2095
      %v2097 = vcombine.low %v1647, %v1661
      %v2098 = vcombine.low %v1654, %v1668
      %v2100 = vunpack.c.l.s4 1935823168
      %v2101 = vunpack.c.0.s8 %v2100
      %v2102 = vlaneseq
      %v2103 = vshrl.u32 %v2102, 7
      %v2104 = vsub.s32 %v2101, %v2103
      %v2105 = vrot.slane %v2097, %v2104
      %v2107 = vunpack.c.l.s4 1935823168
      %v2108 = vunpack.c.0.s8 %v2107
      %v2109 = vlaneseq
      %v2110 = vshrl.u32 %v2109, 7
      %v2111 = vsub.s32 %v2108, %v2110
      %v2112 = vrot.slane %v2098, %v2111
      %v2113 = vcombine.low %v2105, %v2112
      %v2115 = vunpack.c.l.s4 1935823168
      %v2116 = vunpack.c.0.s8 %v2115
      %v2117 = vlaneseq
      %v2118 = vshrl.u32 %v2117, 7
      %v2119 = vsub.s32 %v2116, %v2118
      %v2120 = vrot.slane %v2113, %v2119
      %v2121 = vcombine.low %v1675, %v1689
      %v2122 = vcombine.low %v1682, %v1696
      %v2124 = vunpack.c.l.s4 1935823168
      %v2125 = vunpack.c.0.s8 %v2124
      %v2126 = vlaneseq
      %v2127 = vshrl.u32 %v2126, 7
      %v2128 = vsub.s32 %v2125, %v2127
      %v2129 = vrot.slane %v2121, %v2128
      %v2131 = vunpack.c.l.s4 1935823168
      %v2132 = vunpack.c.0.s8 %v2131
      %v2133 = vlaneseq
      %v2134 = vshrl.u32 %v2133, 7
      %v2135 = vsub.s32 %v2132, %v2134
      %v2136 = vrot.slane %v2122, %v2135
      %v2137 = vcombine.low %v2129, %v2136
      %v2139 = vunpack.c.l.s4 1935823168
      %v2140 = vunpack.c.0.s8 %v2139
      %v2141 = vlaneseq
      %v2142 = vshrl.u32 %v2141, 7
      %v2143 = vsub.s32 %v2140, %v2142
      %v2144 = vrot.slane %v2137, %v2143
      %vm2145 = vsmask.f32 4368
      %vm2146 = vmor %vm310, %vm2145
      %v2148 = vshrl.u32 %v1784, 16
      %v2150 = vrot.slane %v2148, 7
      %v2151 = vshll.u32 %v1784, 16
      %v2153 = vor.u32 %v2150, %v2151
      %v2154 = vrot.slane %v2150, 4
      %v2156 = vshrl.u32 %v1808, 16
      %v2158 = vrot.slane %v2156, 7
      %v2159 = vshll.u32 %v1808, 16
      %v2161 = vor.u32 %v2158, %v2159
      %v2162 = vsel %vm2146, %v2154, %v2161
      %v2163 = vrot.slane %v2158, 4
      %v2165 = vshrl.u32 %v1832, 16
      %v2167 = vrot.slane %v2165, 7
      %v2168 = vshll.u32 %v1832, 16
      %v2170 = vor.u32 %v2167, %v2168
      %v2171 = vrot.slane %v2167, 4
      %v2173 = vshrl.u32 %v1856, 16
      %v2175 = vrot.slane %v2173, 7
      %v2176 = vshll.u32 %v1856, 16
      %v2178 = vor.u32 %v2175, %v2176
      %v2179 = vsel %vm2146, %v2171, %v2178
      %v2180 = vrot.slane %v2175, 4
      %v2182 = vshrl.u32 %v1880, 16
      %v2184 = vrot.slane %v2182, 7
      %v2185 = vshll.u32 %v1880, 16
      %v2187 = vor.u32 %v2184, %v2185
      %v2188 = vrot.slane %v2184, 4
      %v2190 = vshrl.u32 %v1904, 16
      %v2192 = vrot.slane %v2190, 7
      %v2193 = vshll.u32 %v1904, 16
      %v2195 = vor.u32 %v2192, %v2193
      %v2196 = vsel %vm2146, %v2188, %v2195
      %v2197 = vrot.slane %v2192, 4
      %v2199 = vshrl.u32 %v1928, 16
      %v2201 = vrot.slane %v2199, 7
      %v2202 = vshll.u32 %v1928, 16
      %v2204 = vor.u32 %v2201, %v2202
      %v2205 = vrot.slane %v2201, 4
      %v2207 = vshrl.u32 %v1952, 16
      %v2209 = vrot.slane %v2207, 7
      %v2210 = vshll.u32 %v1952, 16
      %v2212 = vor.u32 %v2209, %v2210
      %v2213 = vsel %vm2146, %v2205, %v2212
      %v2214 = vrot.slane %v2209, 4
      %v2216 = vshrl.u32 %v1976, 16
      %v2218 = vrot.slane %v2216, 7
      %v2219 = vshll.u32 %v1976, 16
      %v2221 = vor.u32 %v2218, %v2219
      %v2222 = vrot.slane %v2218, 4
      %v2224 = vshrl.u32 %v2000, 16
      %v2226 = vrot.slane %v2224, 7
      %v2227 = vshll.u32 %v2000, 16
      %v2229 = vor.u32 %v2226, %v2227
      %v2230 = vsel %vm2146, %v2222, %v2229
      %v2231 = vrot.slane %v2226, 4
      %v2233 = vshrl.u32 %v2024, 16
      %v2235 = vrot.slane %v2233, 7
      %v2236 = vshll.u32 %v2024, 16
      %v2238 = vor.u32 %v2235, %v2236
      %v2239 = vrot.slane %v2235, 4
      %v2241 = vshrl.u32 %v2048, 16
      %v2243 = vrot.slane %v2241, 7
      %v2244 = vshll.u32 %v2048, 16
      %v2246 = vor.u32 %v2243, %v2244
      %v2247 = vsel %vm2146, %v2239, %v2246
      %v2248 = vrot.slane %v2243, 4
      %v2250 = vshrl.u32 %v2072, 16
      %v2252 = vrot.slane %v2250, 7
      %v2253 = vshll.u32 %v2072, 16
      %v2255 = vor.u32 %v2252, %v2253
      %v2256 = vrot.slane %v2252, 4
      %v2258 = vshrl.u32 %v2096, 16
      %v2260 = vrot.slane %v2258, 7
      %v2261 = vshll.u32 %v2096, 16
      %v2263 = vor.u32 %v2260, %v2261
      %v2264 = vsel %vm2146, %v2256, %v2263
      %v2265 = vrot.slane %v2260, 4
      %v2267 = vshrl.u32 %v2120, 16
      %v2269 = vrot.slane %v2267, 7
      %v2270 = vshll.u32 %v2120, 16
      %v2272 = vor.u32 %v2269, %v2270
      %v2273 = vrot.slane %v2269, 4
      %v2275 = vshrl.u32 %v2144, 16
      %v2277 = vrot.slane %v2275, 7
      %v2278 = vshll.u32 %v2144, 16
      %v2280 = vor.u32 %v2277, %v2278
      %v2281 = vsel %vm2146, %v2273, %v2280
      %v2282 = vrot.slane %v2277, 4
      %s2307 = scalar_lea.vmem [#allocation2], 12
      %vm2308 = vcmask 257024
      %vm2309 = vmand %vm2308, %vm366
      %v2310 = vld [vmem:[%s2307] sm:$0xf]
      %v2311 = vsel %vm2309, %v2153, %v2310
      %2312 = vst [vmem:[%s2307] sm:$0xf] %v2311
      %2313 = vst.msk [vmem:[%s2307 + $0x4] sm:$0xf] %vm300, %v2162
      %v2314 = vld [vmem:[%s2307 + $0x8] sm:$0x1]
      %v2315 = vsel %vm311, %v2163, %v2314
      %2316 = vst [vmem:[%s2307 + $0x8] sm:$0x1] %v2315
      %v2317 = vld [vmem:[%s2307 + $0xc] sm:$0xf]
      %v2318 = vsel %vm2309, %v2153, %v2317
      %2319 = vst [vmem:[%s2307 + $0xc] sm:$0xf] %v2318
      %2320 = vst.msk [vmem:[%s2307 + $0x10] sm:$0xf] %vm300, %v2162
      %v2321 = vld [vmem:[%s2307 + $0x14] sm:$0x1]
      %v2322 = vsel %vm311, %v2163, %v2321
      %2323 = vst [vmem:[%s2307 + $0x14] sm:$0x1] %v2322
      %v2324 = vld [vmem:[%s2307 + $0x18] sm:$0xf]
      %v2325 = vsel %vm2309, %v2170, %v2324
      %2326 = vst [vmem:[%s2307 + $0x18] sm:$0xf] %v2325
      %2327 = vst.msk [vmem:[%s2307 + $0x1c] sm:$0xf] %vm300, %v2179
      %v2328 = vld [vmem:[%s2307 + $0x20] sm:$0x1]
      %v2329 = vsel %vm311, %v2180, %v2328
      %2330 = vst [vmem:[%s2307 + $0x20] sm:$0x1] %v2329
      %v2331 = vld [vmem:[%s2307 + $0x24] sm:$0xf]
      %v2332 = vsel %vm2309, %v2170, %v2331
      %2333 = vst [vmem:[%s2307 + $0x24] sm:$0xf] %v2332
      %2334 = vst.msk [vmem:[%s2307 + $0x28] sm:$0xf] %vm300, %v2179
      %v2335 = vld [vmem:[%s2307 + $0x2c] sm:$0x1]
      %v2336 = vsel %vm311, %v2180, %v2335
      %2337 = vst [vmem:[%s2307 + $0x2c] sm:$0x1] %v2336
      %v2338 = vld [vmem:[%s2307 + $0x30] sm:$0xf]
      %v2339 = vsel %vm2309, %v2187, %v2338
      %2340 = vst [vmem:[%s2307 + $0x30] sm:$0xf] %v2339
      %2341 = vst.msk [vmem:[%s2307 + $0x34] sm:$0xf] %vm300, %v2196
      %v2342 = vld [vmem:[%s2307 + $0x38] sm:$0x1]
      %v2343 = vsel %vm311, %v2197, %v2342
      %2344 = vst [vmem:[%s2307 + $0x38] sm:$0x1] %v2343
      %v2345 = vld [vmem:[%s2307 + $0x3c] sm:$0xf]
      %v2346 = vsel %vm2309, %v2187, %v2345
      %2347 = vst [vmem:[%s2307 + $0x3c] sm:$0xf] %v2346
      %2348 = vst.msk [vmem:[%s2307 + $0x40] sm:$0xf] %vm300, %v2196
      %v2349 = vld [vmem:[%s2307 + $0x44] sm:$0x1]
      %v2350 = vsel %vm311, %v2197, %v2349
      %2351 = vst [vmem:[%s2307 + $0x44] sm:$0x1] %v2350
      %v2352 = vld [vmem:[%s2307 + $0x48] sm:$0xf]
      %v2353 = vsel %vm2309, %v2204, %v2352
      %2354 = vst [vmem:[%s2307 + $0x48] sm:$0xf] %v2353
      %2355 = vst.msk [vmem:[%s2307 + $0x4c] sm:$0xf] %vm300, %v2213
      %v2356 = vld [vmem:[%s2307 + $0x50] sm:$0x1]
      %v2357 = vsel %vm311, %v2214, %v2356
      %2358 = vst [vmem:[%s2307 + $0x50] sm:$0x1] %v2357
      %v2359 = vld [vmem:[%s2307 + $0x54] sm:$0xf]
      %v2360 = vsel %vm2309, %v2204, %v2359
      %2361 = vst [vmem:[%s2307 + $0x54] sm:$0xf] %v2360
      %2362 = vst.msk [vmem:[%s2307 + $0x58] sm:$0xf] %vm300, %v2213
      %v2363 = vld [vmem:[%s2307 + $0x5c] sm:$0x1]
      %v2364 = vsel %vm311, %v2214, %v2363
      %2365 = vst [vmem:[%s2307 + $0x5c] sm:$0x1] %v2364
      %v2366 = vld [vmem:[%s2307 + $0x60] sm:$0xf]
      %v2367 = vsel %vm2309, %v2221, %v2366
      %2368 = vst [vmem:[%s2307 + $0x60] sm:$0xf] %v2367
      %2369 = vst.msk [vmem:[%s2307 + $0x64] sm:$0xf] %vm300, %v2230
      %v2370 = vld [vmem:[%s2307 + $0x68] sm:$0x1]
      %v2371 = vsel %vm311, %v2231, %v2370
      %2372 = vst [vmem:[%s2307 + $0x68] sm:$0x1] %v2371
      %v2373 = vld [vmem:[%s2307 + $0x6c] sm:$0xf]
      %v2374 = vsel %vm2309, %v2221, %v2373
      %2375 = vst [vmem:[%s2307 + $0x6c] sm:$0xf] %v2374
      %2376 = vst.msk [vmem:[%s2307 + $0x70] sm:$0xf] %vm300, %v2230
      %v2377 = vld [vmem:[%s2307 + $0x74] sm:$0x1]
      %v2378 = vsel %vm311, %v2231, %v2377
      %2379 = vst [vmem:[%s2307 + $0x74] sm:$0x1] %v2378
      %v2380 = vld [vmem:[%s2307 + $0x78] sm:$0xf]
      %v2381 = vsel %vm2309, %v2238, %v2380
      %2382 = vst [vmem:[%s2307 + $0x78] sm:$0xf] %v2381
      %2383 = vst.msk [vmem:[%s2307 + $0x7c] sm:$0xf] %vm300, %v2247
      %v2384 = vld [vmem:[%s2307 + $0x80] sm:$0x1]
      %v2385 = vsel %vm311, %v2248, %v2384
      %2386 = vst [vmem:[%s2307 + $0x80] sm:$0x1] %v2385
      %v2387 = vld [vmem:[%s2307 + $0x84] sm:$0xf]
      %v2388 = vsel %vm2309, %v2238, %v2387
      %2389 = vst [vmem:[%s2307 + $0x84] sm:$0xf] %v2388
      %2390 = vst.msk [vmem:[%s2307 + $0x88] sm:$0xf] %vm300, %v2247
      %v2391 = vld [vmem:[%s2307 + $0x8c] sm:$0x1]
      %v2392 = vsel %vm311, %v2248, %v2391
      %2393 = vst [vmem:[%s2307 + $0x8c] sm:$0x1] %v2392
      %v2394 = vld [vmem:[%s2307 + $0x90] sm:$0xf]
      %v2395 = vsel %vm2309, %v2255, %v2394
      %2396 = vst [vmem:[%s2307 + $0x90] sm:$0xf] %v2395
      %2397 = vst.msk [vmem:[%s2307 + $0x94] sm:$0xf] %vm300, %v2264
      %v2398 = vld [vmem:[%s2307 + $0x98] sm:$0x1]
      %v2399 = vsel %vm311, %v2265, %v2398
      %2400 = vst [vmem:[%s2307 + $0x98] sm:$0x1] %v2399
      %v2401 = vld [vmem:[%s2307 + $0x9c] sm:$0xf]
      %v2402 = vsel %vm2309, %v2255, %v2401
      %2403 = vst [vmem:[%s2307 + $0x9c] sm:$0xf] %v2402
      %2404 = vst.msk [vmem:[%s2307 + $0xa0] sm:$0xf] %vm300, %v2264
      %v2405 = vld [vmem:[%s2307 + $0xa4] sm:$0x1]
      %v2406 = vsel %vm311, %v2265, %v2405
      %2407 = vst [vmem:[%s2307 + $0xa4] sm:$0x1] %v2406
      %v2408 = vld [vmem:[%s2307 + $0xa8] sm:$0xf]
      %v2409 = vsel %vm2309, %v2272, %v2408
      %2410 = vst [vmem:[%s2307 + $0xa8] sm:$0xf] %v2409
      %2411 = vst.msk [vmem:[%s2307 + $0xac] sm:$0xf] %vm300, %v2281
      %v2412 = vld [vmem:[%s2307 + $0xb0] sm:$0x1]
      %v2413 = vsel %vm311, %v2282, %v2412
      %2414 = vst [vmem:[%s2307 + $0xb0] sm:$0x1] %v2413
      %v2415 = vld [vmem:[%s2307 + $0xb4] sm:$0xf]
      %v2416 = vsel %vm2309, %v2272, %v2415
      %2417 = vst [vmem:[%s2307 + $0xb4] sm:$0xf] %v2416
      %2418 = vst.msk [vmem:[%s2307 + $0xb8] sm:$0xf] %vm300, %v2281
      %v2419 = vld [vmem:[%s2307 + $0xbc] sm:$0x1]
      %v2420 = vsel %vm311, %v2282, %v2419
      %2421 = vst [vmem:[%s2307 + $0xbc] sm:$0x1] %v2420
      %v2422 = vld [vmem:[%s293] sm:$0xf]
      %v2423 = vld [vmem:[%s293 + $0x4] sm:$0xf]
      %v2424 = vld [vmem:[%s293 + $0x8] sm:$0xf]
      %v2425 = vld [vmem:[%s293 + $0xc] sm:$0xf]
      %v2426 = vld [vmem:[%s293 + $0x10] sm:$0xf]
      %v2427 = vld [vmem:[%s293 + $0x14] sm:$0xf]
      %v2428 = vld [vmem:[%s293 + $0x18] sm:$0xf]
      %v2429 = vld [vmem:[%s293 + $0x1c] sm:$0xf]
      %v2430 = vld [vmem:[%s293 + $0x20] sm:$0xf]
      %v2431 = vld [vmem:[%s293 + $0x24] sm:$0xf]
      %v2432 = vld [vmem:[%s293 + $0x28] sm:$0xf]
      %v2433 = vld [vmem:[%s293 + $0x2c] sm:$0xf]
      %v2434 = vld [vmem:[%s293 + $0x30] sm:$0xf]
      %v2435 = vld [vmem:[%s293 + $0x34] sm:$0xf]
      %v2436 = vld [vmem:[%s293 + $0x38] sm:$0xf]
      %v2437 = vld [vmem:[%s293 + $0x3c] sm:$0xf]
      %v2438 = vld [vmem:[%s293 + $0x40] sm:$0xf]
      %v2439 = vld [vmem:[%s293 + $0x44] sm:$0xf]
      %v2440 = vld [vmem:[%s293 + $0x48] sm:$0xf]
      %v2441 = vld [vmem:[%s293 + $0x4c] sm:$0xf]
      %v2442 = vld [vmem:[%s293 + $0x50] sm:$0xf]
      %v2443 = vld [vmem:[%s293 + $0x54] sm:$0xf]
      %v2444 = vld [vmem:[%s293 + $0x58] sm:$0xf]
      %v2445 = vld [vmem:[%s293 + $0x5c] sm:$0xf]
      %v2446 = vld [vmem:[%s293 + $0x60] sm:$0xf]
      %v2447 = vld [vmem:[%s293 + $0x64] sm:$0xf]
      %v2448 = vld [vmem:[%s293 + $0x68] sm:$0xf]
      %v2449 = vld [vmem:[%s293 + $0x6c] sm:$0xf]
      %v2450 = vld [vmem:[%s293 + $0x70] sm:$0xf]
      %v2451 = vld [vmem:[%s293 + $0x74] sm:$0xf]
      %v2452 = vld [vmem:[%s293 + $0x78] sm:$0xf]
      %v2453 = vld [vmem:[%s293 + $0x7c] sm:$0xf]
      %v2455 = vshrl.u32 %v2422, 16
      %v2457 = vrot.slane %v2455, 7
      %v2458 = vshll.u32 %v2422, 16
      %v2460 = vor.u32 %v2457, %v2458
      %v2461 = vrot.slane %v2457, 4
      %v2463 = vshrl.u32 %v2423, 16
      %v2465 = vrot.slane %v2463, 7
      %v2466 = vshll.u32 %v2423, 16
      %v2468 = vor.u32 %v2465, %v2466
      %v2469 = vsel %vm2146, %v2461, %v2468
      %v2470 = vrot.slane %v2465, 4
      %v2472 = vshrl.u32 %v2424, 16
      %v2474 = vrot.slane %v2472, 7
      %v2475 = vshll.u32 %v2424, 16
      %v2477 = vor.u32 %v2474, %v2475
      %v2478 = vrot.slane %v2474, 4
      %v2480 = vshrl.u32 %v2425, 16
      %v2482 = vrot.slane %v2480, 7
      %v2483 = vshll.u32 %v2425, 16
      %v2485 = vor.u32 %v2482, %v2483
      %v2486 = vsel %vm2146, %v2478, %v2485
      %v2487 = vrot.slane %v2482, 4
      %v2489 = vshrl.u32 %v2426, 16
      %v2491 = vrot.slane %v2489, 7
      %v2492 = vshll.u32 %v2426, 16
      %v2494 = vor.u32 %v2491, %v2492
      %v2495 = vrot.slane %v2491, 4
      %v2497 = vshrl.u32 %v2427, 16
      %v2499 = vrot.slane %v2497, 7
      %v2500 = vshll.u32 %v2427, 16
      %v2502 = vor.u32 %v2499, %v2500
      %v2503 = vsel %vm2146, %v2495, %v2502
      %v2504 = vrot.slane %v2499, 4
      %v2506 = vshrl.u32 %v2428, 16
      %v2508 = vrot.slane %v2506, 7
      %v2509 = vshll.u32 %v2428, 16
      %v2511 = vor.u32 %v2508, %v2509
      %v2512 = vrot.slane %v2508, 4
      %v2514 = vshrl.u32 %v2429, 16
      %v2516 = vrot.slane %v2514, 7
      %v2517 = vshll.u32 %v2429, 16
      %v2519 = vor.u32 %v2516, %v2517
      %v2520 = vsel %vm2146, %v2512, %v2519
      %v2521 = vrot.slane %v2516, 4
      %v2523 = vshrl.u32 %v2430, 16
      %v2525 = vrot.slane %v2523, 7
      %v2526 = vshll.u32 %v2430, 16
      %v2528 = vor.u32 %v2525, %v2526
      %v2529 = vrot.slane %v2525, 4
      %v2531 = vshrl.u32 %v2431, 16
      %v2533 = vrot.slane %v2531, 7
      %v2534 = vshll.u32 %v2431, 16
      %v2536 = vor.u32 %v2533, %v2534
      %v2537 = vsel %vm2146, %v2529, %v2536
      %v2538 = vrot.slane %v2533, 4
      %v2540 = vshrl.u32 %v2432, 16
      %v2542 = vrot.slane %v2540, 7
      %v2543 = vshll.u32 %v2432, 16
      %v2545 = vor.u32 %v2542, %v2543
      %v2546 = vrot.slane %v2542, 4
      %v2548 = vshrl.u32 %v2433, 16
      %v2550 = vrot.slane %v2548, 7
      %v2551 = vshll.u32 %v2433, 16
      %v2553 = vor.u32 %v2550, %v2551
      %v2554 = vsel %vm2146, %v2546, %v2553
      %v2555 = vrot.slane %v2550, 4
      %v2557 = vshrl.u32 %v2434, 16
      %v2559 = vrot.slane %v2557, 7
      %v2560 = vshll.u32 %v2434, 16
      %v2562 = vor.u32 %v2559, %v2560
      %v2563 = vrot.slane %v2559, 4
      %v2565 = vshrl.u32 %v2435, 16
      %v2567 = vrot.slane %v2565, 7
      %v2568 = vshll.u32 %v2435, 16
      %v2570 = vor.u32 %v2567, %v2568
      %v2571 = vsel %vm2146, %v2563, %v2570
      %v2572 = vrot.slane %v2567, 4
      %v2574 = vshrl.u32 %v2436, 16
      %v2576 = vrot.slane %v2574, 7
      %v2577 = vshll.u32 %v2436, 16
      %v2579 = vor.u32 %v2576, %v2577
      %v2580 = vrot.slane %v2576, 4
      %v2582 = vshrl.u32 %v2437, 16
      %v2584 = vrot.slane %v2582, 7
      %v2585 = vshll.u32 %v2437, 16
      %v2587 = vor.u32 %v2584, %v2585
      %v2588 = vsel %vm2146, %v2580, %v2587
      %v2589 = vrot.slane %v2584, 4
      %v2591 = vshrl.u32 %v2438, 16
      %v2593 = vrot.slane %v2591, 7
      %v2594 = vshll.u32 %v2438, 16
      %v2596 = vor.u32 %v2593, %v2594
      %v2597 = vrot.slane %v2593, 4
      %v2599 = vshrl.u32 %v2439, 16
      %v2601 = vrot.slane %v2599, 7
      %v2602 = vshll.u32 %v2439, 16
      %v2604 = vor.u32 %v2601, %v2602
      %v2605 = vsel %vm2146, %v2597, %v2604
      %v2606 = vrot.slane %v2601, 4
      %v2608 = vshrl.u32 %v2440, 16
      %v2610 = vrot.slane %v2608, 7
      %v2611 = vshll.u32 %v2440, 16
      %v2613 = vor.u32 %v2610, %v2611
      %v2614 = vrot.slane %v2610, 4
      %v2616 = vshrl.u32 %v2441, 16
      %v2618 = vrot.slane %v2616, 7
      %v2619 = vshll.u32 %v2441, 16
      %v2621 = vor.u32 %v2618, %v2619
      %v2622 = vsel %vm2146, %v2614, %v2621
      %v2623 = vrot.slane %v2618, 4
      %v2625 = vshrl.u32 %v2442, 16
      %v2627 = vrot.slane %v2625, 7
      %v2628 = vshll.u32 %v2442, 16
      %v2630 = vor.u32 %v2627, %v2628
      %v2631 = vrot.slane %v2627, 4
      %v2633 = vshrl.u32 %v2443, 16
      %v2635 = vrot.slane %v2633, 7
      %v2636 = vshll.u32 %v2443, 16
      %v2638 = vor.u32 %v2635, %v2636
      %v2639 = vsel %vm2146, %v2631, %v2638
      %v2640 = vrot.slane %v2635, 4
      %v2642 = vshrl.u32 %v2444, 16
      %v2644 = vrot.slane %v2642, 7
      %v2645 = vshll.u32 %v2444, 16
      %v2647 = vor.u32 %v2644, %v2645
      %v2648 = vrot.slane %v2644, 4
      %v2650 = vshrl.u32 %v2445, 16
      %v2652 = vrot.slane %v2650, 7
      %v2653 = vshll.u32 %v2445, 16
      %v2655 = vor.u32 %v2652, %v2653
      %v2656 = vsel %vm2146, %v2648, %v2655
      %v2657 = vrot.slane %v2652, 4
      %v2659 = vshrl.u32 %v2446, 16
      %v2661 = vrot.slane %v2659, 7
      %v2662 = vshll.u32 %v2446, 16
      %v2664 = vor.u32 %v2661, %v2662
      %v2665 = vrot.slane %v2661, 4
      %v2667 = vshrl.u32 %v2447, 16
      %v2669 = vrot.slane %v2667, 7
      %v2670 = vshll.u32 %v2447, 16
      %v2672 = vor.u32 %v2669, %v2670
      %v2673 = vsel %vm2146, %v2665, %v2672
      %v2674 = vrot.slane %v2669, 4
      %v2676 = vshrl.u32 %v2448, 16
      %v2678 = vrot.slane %v2676, 7
      %v2679 = vshll.u32 %v2448, 16
      %v2681 = vor.u32 %v2678, %v2679
      %v2682 = vrot.slane %v2678, 4
      %v2684 = vshrl.u32 %v2449, 16
      %v2686 = vrot.slane %v2684, 7
      %v2687 = vshll.u32 %v2449, 16
      %v2689 = vor.u32 %v2686, %v2687
      %v2690 = vsel %vm2146, %v2682, %v2689
      %v2691 = vrot.slane %v2686, 4
      %v2693 = vshrl.u32 %v2450, 16
      %v2695 = vrot.slane %v2693, 7
      %v2696 = vshll.u32 %v2450, 16
      %v2698 = vor.u32 %v2695, %v2696
      %v2699 = vrot.slane %v2695, 4
      %v2701 = vshrl.u32 %v2451, 16
      %v2703 = vrot.slane %v2701, 7
      %v2704 = vshll.u32 %v2451, 16
      %v2706 = vor.u32 %v2703, %v2704
      %v2707 = vsel %vm2146, %v2699, %v2706
      %v2708 = vrot.slane %v2703, 4
      %v2710 = vshrl.u32 %v2452, 16
      %v2712 = vrot.slane %v2710, 7
      %v2713 = vshll.u32 %v2452, 16
      %v2715 = vor.u32 %v2712, %v2713
      %v2716 = vrot.slane %v2712, 4
      %v2718 = vshrl.u32 %v2453, 16
      %v2720 = vrot.slane %v2718, 7
      %v2721 = vshll.u32 %v2453, 16
      %v2723 = vor.u32 %v2720, %v2721
      %v2724 = vsel %vm2146, %v2716, %v2723
      %v2725 = vrot.slane %v2720, 4
      %s2774 = scalar_lea.vmem [#allocation3], 12
      %vm2775 = vcmask 125952
      %vm2776 = vmand %vm2775, %vm366
      %v2777 = vld [vmem:[%s2774] sm:$0xf]
      %v2778 = vsel %vm2776, %v2460, %v2777
      %2779 = vst [vmem:[%s2774] sm:$0xf] %v2778
      %2780 = vst.msk [vmem:[%s2774 + $0x4] sm:$0xf] %vm422, %v2469
      %v2781 = vld [vmem:[%s2774 + $0x8] sm:$0x1]
      %v2782 = vsel %vm432, %v2470, %v2781
      %2783 = vst [vmem:[%s2774 + $0x8] sm:$0x1] %v2782
      %v2784 = vld [vmem:[%s2774 + $0xc] sm:$0xf]
      %v2785 = vsel %vm2776, %v2477, %v2784
      %2786 = vst [vmem:[%s2774 + $0xc] sm:$0xf] %v2785
      %2787 = vst.msk [vmem:[%s2774 + $0x10] sm:$0xf] %vm422, %v2486
      %v2788 = vld [vmem:[%s2774 + $0x14] sm:$0x1]
      %v2789 = vsel %vm432, %v2487, %v2788
      %2790 = vst [vmem:[%s2774 + $0x14] sm:$0x1] %v2789
      %v2791 = vld [vmem:[%s2774 + $0x18] sm:$0xf]
      %v2792 = vsel %vm2776, %v2494, %v2791
      %2793 = vst [vmem:[%s2774 + $0x18] sm:$0xf] %v2792
      %2794 = vst.msk [vmem:[%s2774 + $0x1c] sm:$0xf] %vm422, %v2503
      %v2795 = vld [vmem:[%s2774 + $0x20] sm:$0x1]
      %v2796 = vsel %vm432, %v2504, %v2795
      %2797 = vst [vmem:[%s2774 + $0x20] sm:$0x1] %v2796
      %v2798 = vld [vmem:[%s2774 + $0x24] sm:$0xf]
      %v2799 = vsel %vm2776, %v2511, %v2798
      %2800 = vst [vmem:[%s2774 + $0x24] sm:$0xf] %v2799
      %2801 = vst.msk [vmem:[%s2774 + $0x28] sm:$0xf] %vm422, %v2520
      %v2802 = vld [vmem:[%s2774 + $0x2c] sm:$0x1]
      %v2803 = vsel %vm432, %v2521, %v2802
      %2804 = vst [vmem:[%s2774 + $0x2c] sm:$0x1] %v2803
      %v2805 = vld [vmem:[%s2774 + $0x30] sm:$0xf]
      %v2806 = vsel %vm2776, %v2528, %v2805
      %2807 = vst [vmem:[%s2774 + $0x30] sm:$0xf] %v2806
      %2808 = vst.msk [vmem:[%s2774 + $0x34] sm:$0xf] %vm422, %v2537
      %v2809 = vld [vmem:[%s2774 + $0x38] sm:$0x1]
      %v2810 = vsel %vm432, %v2538, %v2809
      %2811 = vst [vmem:[%s2774 + $0x38] sm:$0x1] %v2810
      %v2812 = vld [vmem:[%s2774 + $0x3c] sm:$0xf]
      %v2813 = vsel %vm2776, %v2545, %v2812
      %2814 = vst [vmem:[%s2774 + $0x3c] sm:$0xf] %v2813
      %2815 = vst.msk [vmem:[%s2774 + $0x40] sm:$0xf] %vm422, %v2554
      %v2816 = vld [vmem:[%s2774 + $0x44] sm:$0x1]
      %v2817 = vsel %vm432, %v2555, %v2816
      %2818 = vst [vmem:[%s2774 + $0x44] sm:$0x1] %v2817
      %v2819 = vld [vmem:[%s2774 + $0x48] sm:$0xf]
      %v2820 = vsel %vm2776, %v2562, %v2819
      %2821 = vst [vmem:[%s2774 + $0x48] sm:$0xf] %v2820
      %2822 = vst.msk [vmem:[%s2774 + $0x4c] sm:$0xf] %vm422, %v2571
      %v2823 = vld [vmem:[%s2774 + $0x50] sm:$0x1]
      %v2824 = vsel %vm432, %v2572, %v2823
      %2825 = vst [vmem:[%s2774 + $0x50] sm:$0x1] %v2824
      %v2826 = vld [vmem:[%s2774 + $0x54] sm:$0xf]
      %v2827 = vsel %vm2776, %v2579, %v2826
      %2828 = vst [vmem:[%s2774 + $0x54] sm:$0xf] %v2827
      %2829 = vst.msk [vmem:[%s2774 + $0x58] sm:$0xf] %vm422, %v2588
      %v2830 = vld [vmem:[%s2774 + $0x5c] sm:$0x1]
      %v2831 = vsel %vm432, %v2589, %v2830
      %2832 = vst [vmem:[%s2774 + $0x5c] sm:$0x1] %v2831
      %v2833 = vld [vmem:[%s2774 + $0x60] sm:$0xf]
      %v2834 = vsel %vm2776, %v2596, %v2833
      %2835 = vst [vmem:[%s2774 + $0x60] sm:$0xf] %v2834
      %2836 = vst.msk [vmem:[%s2774 + $0x64] sm:$0xf] %vm422, %v2605
      %v2837 = vld [vmem:[%s2774 + $0x68] sm:$0x1]
      %v2838 = vsel %vm432, %v2606, %v2837
      %2839 = vst [vmem:[%s2774 + $0x68] sm:$0x1] %v2838
      %v2840 = vld [vmem:[%s2774 + $0x6c] sm:$0xf]
      %v2841 = vsel %vm2776, %v2613, %v2840
      %2842 = vst [vmem:[%s2774 + $0x6c] sm:$0xf] %v2841
      %2843 = vst.msk [vmem:[%s2774 + $0x70] sm:$0xf] %vm422, %v2622
      %v2844 = vld [vmem:[%s2774 + $0x74] sm:$0x1]
      %v2845 = vsel %vm432, %v2623, %v2844
      %2846 = vst [vmem:[%s2774 + $0x74] sm:$0x1] %v2845
      %v2847 = vld [vmem:[%s2774 + $0x78] sm:$0xf]
      %v2848 = vsel %vm2776, %v2630, %v2847
      %2849 = vst [vmem:[%s2774 + $0x78] sm:$0xf] %v2848
      %2850 = vst.msk [vmem:[%s2774 + $0x7c] sm:$0xf] %vm422, %v2639
      %v2851 = vld [vmem:[%s2774 + $0x80] sm:$0x1]
      %v2852 = vsel %vm432, %v2640, %v2851
      %2853 = vst [vmem:[%s2774 + $0x80] sm:$0x1] %v2852
      %v2854 = vld [vmem:[%s2774 + $0x84] sm:$0xf]
      %v2855 = vsel %vm2776, %v2647, %v2854
      %2856 = vst [vmem:[%s2774 + $0x84] sm:$0xf] %v2855
      %2857 = vst.msk [vmem:[%s2774 + $0x88] sm:$0xf] %vm422, %v2656
      %v2858 = vld [vmem:[%s2774 + $0x8c] sm:$0x1]
      %v2859 = vsel %vm432, %v2657, %v2858
      %2860 = vst [vmem:[%s2774 + $0x8c] sm:$0x1] %v2859
      %v2861 = vld [vmem:[%s2774 + $0x90] sm:$0xf]
      %v2862 = vsel %vm2776, %v2664, %v2861
      %2863 = vst [vmem:[%s2774 + $0x90] sm:$0xf] %v2862
      %2864 = vst.msk [vmem:[%s2774 + $0x94] sm:$0xf] %vm422, %v2673
      %v2865 = vld [vmem:[%s2774 + $0x98] sm:$0x1]
      %v2866 = vsel %vm432, %v2674, %v2865
      %2867 = vst [vmem:[%s2774 + $0x98] sm:$0x1] %v2866
      %v2868 = vld [vmem:[%s2774 + $0x9c] sm:$0xf]
      %v2869 = vsel %vm2776, %v2681, %v2868
      %2870 = vst [vmem:[%s2774 + $0x9c] sm:$0xf] %v2869
      %2871 = vst.msk [vmem:[%s2774 + $0xa0] sm:$0xf] %vm422, %v2690
      %v2872 = vld [vmem:[%s2774 + $0xa4] sm:$0x1]
      %v2873 = vsel %vm432, %v2691, %v2872
      %2874 = vst [vmem:[%s2774 + $0xa4] sm:$0x1] %v2873
      %v2875 = vld [vmem:[%s2774 + $0xa8] sm:$0xf]
      %v2876 = vsel %vm2776, %v2698, %v2875
      %2877 = vst [vmem:[%s2774 + $0xa8] sm:$0xf] %v2876
      %2878 = vst.msk [vmem:[%s2774 + $0xac] sm:$0xf] %vm422, %v2707
      %v2879 = vld [vmem:[%s2774 + $0xb0] sm:$0x1]
      %v2880 = vsel %vm432, %v2708, %v2879
      %2881 = vst [vmem:[%s2774 + $0xb0] sm:$0x1] %v2880
      %v2882 = vld [vmem:[%s2774 + $0xb4] sm:$0xf]
      %v2883 = vsel %vm2776, %v2715, %v2882
      %2884 = vst [vmem:[%s2774 + $0xb4] sm:$0xf] %v2883
      %2885 = vst.msk [vmem:[%s2774 + $0xb8] sm:$0xf] %vm422, %v2724
      %v2886 = vld [vmem:[%s2774 + $0xbc] sm:$0x1]
      %v2887 = vsel %vm432, %v2725, %v2886
      %2888 = vst [vmem:[%s2774 + $0xbc] sm:$0x1] %v2887
      %v2889 = vld [vmem:[#allocation2] sm:$0xf]
      %v2890 = vld [vmem:[#allocation2 + $0x4] sm:$0xf]
      %v2891 = vld [vmem:[#allocation2 + $0x8] sm:$0x1]
      %v2892 = vld [vmem:[#allocation2 + $0xc] sm:$0xf]
      %v2893 = vld [vmem:[#allocation2 + $0x10] sm:$0xf]
      %v2894 = vld [vmem:[#allocation2 + $0x14] sm:$0x1]
      %v2895 = vld [vmem:[#allocation2 + $0x18] sm:$0xf]
      %v2896 = vld [vmem:[#allocation2 + $0x1c] sm:$0xf]
      %v2897 = vld [vmem:[#allocation2 + $0x20] sm:$0x1]
      %v2898 = vld [vmem:[#allocation2 + $0x24] sm:$0xf]
      %v2899 = vld [vmem:[#allocation2 + $0x28] sm:$0xf]
      %v2900 = vld [vmem:[#allocation2 + $0x2c] sm:$0x1]
      %v2901 = vld [vmem:[#allocation2 + $0x30] sm:$0xf]
      %v2902 = vld [vmem:[#allocation2 + $0x34] sm:$0xf]
      %v2903 = vld [vmem:[#allocation2 + $0x38] sm:$0x1]
      %v2904 = vld [vmem:[#allocation2 + $0x3c] sm:$0xf]
      %v2905 = vld [vmem:[#allocation2 + $0x40] sm:$0xf]
      %v2906 = vld [vmem:[#allocation2 + $0x44] sm:$0x1]
      %v2907 = vld [vmem:[#allocation2 + $0x48] sm:$0xf]
      %v2908 = vld [vmem:[#allocation2 + $0x4c] sm:$0xf]
      %v2909 = vld [vmem:[#allocation2 + $0x50] sm:$0x1]
      %v2910 = vld [vmem:[#allocation2 + $0x54] sm:$0xf]
      %v2911 = vld [vmem:[#allocation2 + $0x58] sm:$0xf]
      %v2912 = vld [vmem:[#allocation2 + $0x5c] sm:$0x1]
      %v2913 = vld [vmem:[#allocation2 + $0x60] sm:$0xf]
      %v2914 = vld [vmem:[#allocation2 + $0x64] sm:$0xf]
      %v2915 = vld [vmem:[#allocation2 + $0x68] sm:$0x1]
      %v2916 = vld [vmem:[#allocation2 + $0x6c] sm:$0xf]
      %v2917 = vld [vmem:[#allocation2 + $0x70] sm:$0xf]
      %v2918 = vld [vmem:[#allocation2 + $0x74] sm:$0x1]
      %v2919 = vld [vmem:[#allocation2 + $0x78] sm:$0xf]
      %v2920 = vld [vmem:[#allocation2 + $0x7c] sm:$0xf]
      %v2921 = vld [vmem:[#allocation2 + $0x80] sm:$0x1]
      %v2922 = vld [vmem:[#allocation2 + $0x84] sm:$0xf]
      %v2923 = vld [vmem:[#allocation2 + $0x88] sm:$0xf]
      %v2924 = vld [vmem:[#allocation2 + $0x8c] sm:$0x1]
      %v2925 = vld [vmem:[#allocation2 + $0x90] sm:$0xf]
      %v2926 = vld [vmem:[#allocation2 + $0x94] sm:$0xf]
      %v2927 = vld [vmem:[#allocation2 + $0x98] sm:$0x1]
      %v2928 = vld [vmem:[#allocation2 + $0x9c] sm:$0xf]
      %v2929 = vld [vmem:[#allocation2 + $0xa0] sm:$0xf]
      %v2930 = vld [vmem:[#allocation2 + $0xa4] sm:$0x1]
      %v2931 = vld [vmem:[#allocation2 + $0xa8] sm:$0xf]
      %v2932 = vld [vmem:[#allocation2 + $0xac] sm:$0xf]
      %v2933 = vld [vmem:[#allocation2 + $0xb0] sm:$0x1]
      %v2934 = vld [vmem:[#allocation2 + $0xb4] sm:$0xf]
      %v2935 = vld [vmem:[#allocation2 + $0xb8] sm:$0xf]
      %v2936 = vld [vmem:[#allocation2 + $0xbc] sm:$0x1]
      %v2937 = vld [vmem:[#allocation2 + $0xc0] sm:$0xf]
      %v2938 = vld [vmem:[#allocation2 + $0xc4] sm:$0xf]
      %v2939 = vld [vmem:[#allocation2 + $0xc8] sm:$0x1]
      %v2940 = vld [vmem:[#allocation2 + $0xcc] sm:$0xf]
      %v2941 = vld [vmem:[#allocation2 + $0xd0] sm:$0xf]
      %v2942 = vld [vmem:[#allocation2 + $0xd4] sm:$0x1]
      %v2943 = vld [vmem:[%s2] sm:$0xf]
      %v2944 = vld [vmem:[%s2 + $0x4] sm:$0xf]
      %v2945 = vld [vmem:[%s2 + $0x8] sm:$0xf]
      %v2946 = vld [vmem:[%s2 + $0xc] sm:$0xf]
      %vm2947 = vsmask.f32 3328
      %vm2948 = vsmask.f32 7440
      %vm2949 = vmor %vm2947, %vm2948
      %v2951 = vshrl.u32 %v2889, 16
      %v2953 = vrot.slane %v2951, 4
      %v2954 = vshll.u32 %v2889, 16
      %v2956 = vrot.slane %v2954, 5
      %v2957 = vor.u32 %v2953, %v2956
      %v2958 = vrot.slane %v2957, 4
      %v2960 = vshll.u32 %v2890, 16
      %v2962 = vrot.slane %v2960, 5
      %v2963 = vsel %vm2949, %v2958, %v2962
      %v2964 = vshrl.u32 %v2890, 16
      %v2966 = vrot.slane %v2964, 4
      %v2967 = vor.u32 %v2966, %v2962
      %v2968 = vrot.slane %v2967, 4
      %v2970 = vshll.u32 %v2891, 16
      %v2972 = vrot.slane %v2970, 5
      %v2973 = vsel %vm2949, %v2968, %v2972
      %v2975 = vshrl.u32 %v2892, 16
      %v2977 = vrot.slane %v2975, 4
      %v2978 = vshll.u32 %v2892, 16
      %v2980 = vrot.slane %v2978, 5
      %v2981 = vor.u32 %v2977, %v2980
      %v2982 = vrot.slane %v2981, 4
      %v2984 = vshll.u32 %v2893, 16
      %v2986 = vrot.slane %v2984, 5
      %v2987 = vsel %vm2949, %v2982, %v2986
      %v2988 = vshrl.u32 %v2893, 16
      %v2990 = vrot.slane %v2988, 4
      %v2991 = vor.u32 %v2990, %v2986
      %v2992 = vrot.slane %v2991, 4
      %v2994 = vshll.u32 %v2894, 16
      %v2996 = vrot.slane %v2994, 5
      %v2997 = vsel %vm2949, %v2992, %v2996
      %v2999 = vshrl.u32 %v2895, 16
      %v3001 = vrot.slane %v2999, 4
      %v3002 = vshll.u32 %v2895, 16
      %v3004 = vrot.slane %v3002, 5
      %v3005 = vor.u32 %v3001, %v3004
      %v3006 = vrot.slane %v3005, 4
      %v3008 = vshll.u32 %v2896, 16
      %v3010 = vrot.slane %v3008, 5
      %v3011 = vsel %vm2949, %v3006, %v3010
      %v3012 = vshrl.u32 %v2896, 16
      %v3014 = vrot.slane %v3012, 4
      %v3015 = vor.u32 %v3014, %v3010
      %v3016 = vrot.slane %v3015, 4
      %v3018 = vshll.u32 %v2897, 16
      %v3020 = vrot.slane %v3018, 5
      %v3021 = vsel %vm2949, %v3016, %v3020
      %v3023 = vshrl.u32 %v2898, 16
      %v3025 = vrot.slane %v3023, 4
      %v3026 = vshll.u32 %v2898, 16
      %v3028 = vrot.slane %v3026, 5
      %v3029 = vor.u32 %v3025, %v3028
      %v3030 = vrot.slane %v3029, 4
      %v3032 = vshll.u32 %v2899, 16
      %v3034 = vrot.slane %v3032, 5
      %v3035 = vsel %vm2949, %v3030, %v3034
      %v3036 = vshrl.u32 %v2899, 16
      %v3038 = vrot.slane %v3036, 4
      %v3039 = vor.u32 %v3038, %v3034
      %v3040 = vrot.slane %v3039, 4
      %v3042 = vshll.u32 %v2900, 16
      %v3044 = vrot.slane %v3042, 5
      %v3045 = vsel %vm2949, %v3040, %v3044
      %v3047 = vshrl.u32 %v2901, 16
      %v3049 = vrot.slane %v3047, 4
      %v3050 = vshll.u32 %v2901, 16
      %v3052 = vrot.slane %v3050, 5
      %v3053 = vor.u32 %v3049, %v3052
      %v3054 = vrot.slane %v3053, 4
      %v3056 = vshll.u32 %v2902, 16
      %v3058 = vrot.slane %v3056, 5
      %v3059 = vsel %vm2949, %v3054, %v3058
      %v3060 = vshrl.u32 %v2902, 16
      %v3062 = vrot.slane %v3060, 4
      %v3063 = vor.u32 %v3062, %v3058
      %v3064 = vrot.slane %v3063, 4
      %v3066 = vshll.u32 %v2903, 16
      %v3068 = vrot.slane %v3066, 5
      %v3069 = vsel %vm2949, %v3064, %v3068
      %v3071 = vshrl.u32 %v2904, 16
      %v3073 = vrot.slane %v3071, 4
      %v3074 = vshll.u32 %v2904, 16
      %v3076 = vrot.slane %v3074, 5
      %v3077 = vor.u32 %v3073, %v3076
      %v3078 = vrot.slane %v3077, 4
      %v3080 = vshll.u32 %v2905, 16
      %v3082 = vrot.slane %v3080, 5
      %v3083 = vsel %vm2949, %v3078, %v3082
      %v3084 = vshrl.u32 %v2905, 16
      %v3086 = vrot.slane %v3084, 4
      %v3087 = vor.u32 %v3086, %v3082
      %v3088 = vrot.slane %v3087, 4
      %v3090 = vshll.u32 %v2906, 16
      %v3092 = vrot.slane %v3090, 5
      %v3093 = vsel %vm2949, %v3088, %v3092
      %v3095 = vshrl.u32 %v2907, 16
      %v3097 = vrot.slane %v3095, 4
      %v3098 = vshll.u32 %v2907, 16
      %v3100 = vrot.slane %v3098, 5
      %v3101 = vor.u32 %v3097, %v3100
      %v3102 = vrot.slane %v3101, 4
      %v3104 = vshll.u32 %v2908, 16
      %v3106 = vrot.slane %v3104, 5
      %v3107 = vsel %vm2949, %v3102, %v3106
      %v3108 = vshrl.u32 %v2908, 16
      %v3110 = vrot.slane %v3108, 4
      %v3111 = vor.u32 %v3110, %v3106
      %v3112 = vrot.slane %v3111, 4
      %v3114 = vshll.u32 %v2909, 16
      %v3116 = vrot.slane %v3114, 5
      %v3117 = vsel %vm2949, %v3112, %v3116
      %v3119 = vshrl.u32 %v2910, 16
      %v3121 = vrot.slane %v3119, 4
      %v3122 = vshll.u32 %v2910, 16
      %v3124 = vrot.slane %v3122, 5
      %v3125 = vor.u32 %v3121, %v3124
      %v3126 = vrot.slane %v3125, 4
      %v3128 = vshll.u32 %v2911, 16
      %v3130 = vrot.slane %v3128, 5
      %v3131 = vsel %vm2949, %v3126, %v3130
      %v3132 = vshrl.u32 %v2911, 16
      %v3134 = vrot.slane %v3132, 4
      %v3135 = vor.u32 %v3134, %v3130
      %v3136 = vrot.slane %v3135, 4
      %v3138 = vshll.u32 %v2912, 16
      %v3140 = vrot.slane %v3138, 5
      %v3141 = vsel %vm2949, %v3136, %v3140
      %v3143 = vshrl.u32 %v2913, 16
      %v3145 = vrot.slane %v3143, 4
      %v3146 = vshll.u32 %v2913, 16
      %v3148 = vrot.slane %v3146, 5
      %v3149 = vor.u32 %v3145, %v3148
      %v3150 = vrot.slane %v3149, 4
      %v3152 = vshll.u32 %v2914, 16
      %v3154 = vrot.slane %v3152, 5
      %v3155 = vsel %vm2949, %v3150, %v3154
      %v3156 = vshrl.u32 %v2914, 16
      %v3158 = vrot.slane %v3156, 4
      %v3159 = vor.u32 %v3158, %v3154
      %v3160 = vrot.slane %v3159, 4
      %v3162 = vshll.u32 %v2915, 16
      %v3164 = vrot.slane %v3162, 5
      %v3165 = vsel %vm2949, %v3160, %v3164
      %v3167 = vshrl.u32 %v2916, 16
      %v3169 = vrot.slane %v3167, 4
      %v3170 = vshll.u32 %v2916, 16
      %v3172 = vrot.slane %v3170, 5
      %v3173 = vor.u32 %v3169, %v3172
      %v3174 = vrot.slane %v3173, 4
      %v3176 = vshll.u32 %v2917, 16
      %v3178 = vrot.slane %v3176, 5
      %v3179 = vsel %vm2949, %v3174, %v3178
      %v3180 = vshrl.u32 %v2917, 16
      %v3182 = vrot.slane %v3180, 4
      %v3183 = vor.u32 %v3182, %v3178
      %v3184 = vrot.slane %v3183, 4
      %v3186 = vshll.u32 %v2918, 16
      %v3188 = vrot.slane %v3186, 5
      %v3189 = vsel %vm2949, %v3184, %v3188
      %v3191 = vshrl.u32 %v2919, 16
      %v3193 = vrot.slane %v3191, 4
      %v3194 = vshll.u32 %v2919, 16
      %v3196 = vrot.slane %v3194, 5
      %v3197 = vor.u32 %v3193, %v3196
      %v3198 = vrot.slane %v3197, 4
      %v3200 = vshll.u32 %v2920, 16
      %v3202 = vrot.slane %v3200, 5
      %v3203 = vsel %vm2949, %v3198, %v3202
      %v3204 = vshrl.u32 %v2920, 16
      %v3206 = vrot.slane %v3204, 4
      %v3207 = vor.u32 %v3206, %v3202
      %v3208 = vrot.slane %v3207, 4
      %v3210 = vshll.u32 %v2921, 16
      %v3212 = vrot.slane %v3210, 5
      %v3213 = vsel %vm2949, %v3208, %v3212
      %v3215 = vshrl.u32 %v2922, 16
      %v3217 = vrot.slane %v3215, 4
      %v3218 = vshll.u32 %v2922, 16
      %v3220 = vrot.slane %v3218, 5
      %v3221 = vor.u32 %v3217, %v3220
      %v3222 = vrot.slane %v3221, 4
      %v3224 = vshll.u32 %v2923, 16
      %v3226 = vrot.slane %v3224, 5
      %v3227 = vsel %vm2949, %v3222, %v3226
      %v3228 = vshrl.u32 %v2923, 16
      %v3230 = vrot.slane %v3228, 4
      %v3231 = vor.u32 %v3230, %v3226
      %v3232 = vrot.slane %v3231, 4
      %v3234 = vshll.u32 %v2924, 16
      %v3236 = vrot.slane %v3234, 5
      %v3237 = vsel %vm2949, %v3232, %v3236
      %v3239 = vshrl.u32 %v2925, 16
      %v3241 = vrot.slane %v3239, 4
      %v3242 = vshll.u32 %v2925, 16
      %v3244 = vrot.slane %v3242, 5
      %v3245 = vor.u32 %v3241, %v3244
      %v3246 = vrot.slane %v3245, 4
      %v3248 = vshll.u32 %v2926, 16
      %v3250 = vrot.slane %v3248, 5
      %v3251 = vsel %vm2949, %v3246, %v3250
      %v3252 = vshrl.u32 %v2926, 16
      %v3254 = vrot.slane %v3252, 4
      %v3255 = vor.u32 %v3254, %v3250
      %v3256 = vrot.slane %v3255, 4
      %v3258 = vshll.u32 %v2927, 16
      %v3260 = vrot.slane %v3258, 5
      %v3261 = vsel %vm2949, %v3256, %v3260
      %v3263 = vshrl.u32 %v2928, 16
      %v3265 = vrot.slane %v3263, 4
      %v3266 = vshll.u32 %v2928, 16
      %v3268 = vrot.slane %v3266, 5
      %v3269 = vor.u32 %v3265, %v3268
      %v3270 = vrot.slane %v3269, 4
      %v3272 = vshll.u32 %v2929, 16
      %v3274 = vrot.slane %v3272, 5
      %v3275 = vsel %vm2949, %v3270, %v3274
      %v3276 = vshrl.u32 %v2929, 16
      %v3278 = vrot.slane %v3276, 4
      %v3279 = vor.u32 %v3278, %v3274
      %v3280 = vrot.slane %v3279, 4
      %v3282 = vshll.u32 %v2930, 16
      %v3284 = vrot.slane %v3282, 5
      %v3285 = vsel %vm2949, %v3280, %v3284
      %v3287 = vshrl.u32 %v2931, 16
      %v3289 = vrot.slane %v3287, 4
      %v3290 = vshll.u32 %v2931, 16
      %v3292 = vrot.slane %v3290, 5
      %v3293 = vor.u32 %v3289, %v3292
      %v3294 = vrot.slane %v3293, 4
      %v3296 = vshll.u32 %v2932, 16
      %v3298 = vrot.slane %v3296, 5
      %v3299 = vsel %vm2949, %v3294, %v3298
      %v3300 = vshrl.u32 %v2932, 16
      %v3302 = vrot.slane %v3300, 4
      %v3303 = vor.u32 %v3302, %v3298
      %v3304 = vrot.slane %v3303, 4
      %v3306 = vshll.u32 %v2933, 16
      %v3308 = vrot.slane %v3306, 5
      %v3309 = vsel %vm2949, %v3304, %v3308
      %v3311 = vshrl.u32 %v2934, 16
      %v3313 = vrot.slane %v3311, 4
      %v3314 = vshll.u32 %v2934, 16
      %v3316 = vrot.slane %v3314, 5
      %v3317 = vor.u32 %v3313, %v3316
      %v3318 = vrot.slane %v3317, 4
      %v3320 = vshll.u32 %v2935, 16
      %v3322 = vrot.slane %v3320, 5
      %v3323 = vsel %vm2949, %v3318, %v3322
      %v3324 = vshrl.u32 %v2935, 16
      %v3326 = vrot.slane %v3324, 4
      %v3327 = vor.u32 %v3326, %v3322
      %v3328 = vrot.slane %v3327, 4
      %v3330 = vshll.u32 %v2936, 16
      %v3332 = vrot.slane %v3330, 5
      %v3333 = vsel %vm2949, %v3328, %v3332
      %s3334 = scalar_lea.vmem %s2, 16
      %v3335 = vld [vmem:[%s3334] sm:$0xf]
      %v3336 = vld [vmem:[%s3334 + $0x4] sm:$0xf]
      %v3337 = vld [vmem:[%s3334 + $0x8] sm:$0xf]
      %v3338 = vld [vmem:[%s3334 + $0xc] sm:$0xf]
      %v3339 = vunpack.c.l.b16 %v2963
      %v3340 = vunpack.c.l.b16 %v2973
      %v3341 = vunpack.c.l.b16 %v2987
      %v3342 = vunpack.c.l.b16 %v2997
      %v3343 = vunpack.c.l.b16 %v3011
      %v3344 = vunpack.c.l.b16 %v3021
      %v3345 = vunpack.c.l.b16 %v3035
      %v3346 = vunpack.c.l.b16 %v3045
      %v3347 = vunpack.c.l.b16 %v3059
      %v3348 = vunpack.c.l.b16 %v3069
      %v3349 = vunpack.c.l.b16 %v3083
      %v3350 = vunpack.c.l.b16 %v3093
      %v3351 = vunpack.c.l.b16 %v3107
      %v3352 = vunpack.c.l.b16 %v3117
      %v3353 = vunpack.c.l.b16 %v3131
      %v3354 = vunpack.c.l.b16 %v3141
      %v3355 = vunpack.c.l.b16 %v3155
      %v3356 = vunpack.c.l.b16 %v3165
      %v3357 = vunpack.c.l.b16 %v3179
      %v3358 = vunpack.c.l.b16 %v3189
      %v3359 = vunpack.c.l.b16 %v3203
      %v3360 = vunpack.c.l.b16 %v3213
      %v3361 = vunpack.c.l.b16 %v3227
      %v3362 = vunpack.c.l.b16 %v3237
      %v3363 = vunpack.c.l.b16 %v3251
      %v3364 = vunpack.c.l.b16 %v3261
      %v3365 = vunpack.c.l.b16 %v3275
      %v3366 = vunpack.c.l.b16 %v3285
      %v3367 = vunpack.c.l.b16 %v3299
      %v3368 = vunpack.c.l.b16 %v3309
      %v3369 = vunpack.c.l.b16 %v3323
      %v3370 = vunpack.c.l.b16 %v3333
      %v3371 = vpack.c.b16 %v3340, %v3339
      %v3372 = vpack.c.b16 %v3342, %v3341
      %v3373 = vpack.c.b16 %v3344, %v3343
      %v3374 = vpack.c.b16 %v3346, %v3345
      %v3375 = vpack.c.b16 %v3348, %v3347
      %v3376 = vpack.c.b16 %v3350, %v3349
      %v3377 = vpack.c.b16 %v3352, %v3351
      %v3378 = vpack.c.b16 %v3354, %v3353
      %v3379 = vpack.c.b16 %v3356, %v3355
      %v3380 = vpack.c.b16 %v3358, %v3357
      %v3381 = vpack.c.b16 %v3360, %v3359
      %v3382 = vpack.c.b16 %v3362, %v3361
      %v3383 = vpack.c.b16 %v3364, %v3363
      %v3384 = vpack.c.b16 %v3366, %v3365
      %v3385 = vpack.c.b16 %v3368, %v3367
      %v3386 = vpack.c.b16 %v3370, %v3369
      %v3391 = vunpack.c.l.b16 %v3335
      %v3392 = vunpack.c.l.b16 %v3336
      %v3393 = vunpack.c.l.b16 %v3337
      %v3394 = vunpack.c.l.b16 %v3338
      %v3395 = vpack.c.b16 %v3392, %v3391
      %v3396 = vpack.c.b16 %v3394, %v3393
      %vm3399 = vcmask 261120
      %v3401 = vsel %vm3399, %v3371, 0
      %v3404 = vsel %vm3399, %v3372, 0
      %v3407 = vsel %vm3399, %v3373, 0
      %v3410 = vsel %vm3399, %v3374, 0
      %v3413 = vsel %vm3399, %v3375, 0
      %v3416 = vsel %vm3399, %v3376, 0
      %v3419 = vsel %vm3399, %v3377, 0
      %v3422 = vsel %vm3399, %v3378, 0
      %v3425 = vsel %vm3399, %v3379, 0
      %v3428 = vsel %vm3399, %v3380, 0
      %v3431 = vsel %vm3399, %v3381, 0
      %v3434 = vsel %vm3399, %v3382, 0
      %v3437 = vsel %vm3399, %v3383, 0
      %v3440 = vsel %vm3399, %v3384, 0
      %v3443 = vsel %vm3399, %v3385, 0
      %v3446 = vsel %vm3399, %v3386, 0
      %3448 = vmatprep.subr.bf16.mxu0 0
      %3449 = vmatpush1.bf16.msra.mxu0 %v3395
      %3450 = vmatprep.subr.bf16.mxu0 0
      %3451 = vmatpush1.bf16.msra.mxu0 %v3396
      %3452 = vmatprep.subr.bf16.mxu0 0
      %3453 = vmatpush1.bf16.msra.mxu0 0
      %3454 = vmatprep.subr.bf16.mxu0 0
      %3455 = vmatpush1.bf16.msra.mxu0 0
      %3456 = vmatprep.subr.bf16.mxu0 0
      %3457 = vmatpush1.bf16.msra.mxu0 0
      %3458 = vmatprep.subr.bf16.mxu0 0
      %3459 = vmatpush1.bf16.msra.mxu0 0
      %3460 = vmatprep.subr.bf16.mxu0 0
      %3461 = vmatpush1.bf16.msra.mxu0 0
      %3462 = vmatprep.subr.bf16.mxu0 0
      %3463 = vmatpush1.bf16.msra.mxu0 0
      %3464 = vmatprep.subr.bf16.mxu0 0
      %3465 = vmatpush1.bf16.msra.mxu0 0
      %3466 = vmatprep.subr.bf16.mxu0 0
      %3467 = vmatpush1.bf16.msra.mxu0 0
      %3468 = vmatprep.subr.bf16.mxu0 0
      %3469 = vmatpush1.bf16.msra.mxu0 0
      %3470 = vmatprep.subr.bf16.mxu0 0
      %3471 = vmatpush1.bf16.msra.mxu0 0
      %3472 = vmatprep.subr.bf16.mxu0 0
      %3473 = vmatpush1.bf16.msra.mxu0 0
      %3474 = vmatprep.subr.bf16.mxu0 0
      %3475 = vmatpush1.bf16.msra.mxu0 0
      %3476 = vmatprep.subr.bf16.mxu0 0
      %3477 = vmatpush1.bf16.msra.mxu0 0
      %3478 = vmatprep.subr.bf16.mxu0 0
      %3479 = vmatpush1.bf16.msra.mxu0 0
      %3480 = vmatprep.mubr.bf16.mxu0 0
      %3481 = vmatmul.mubr.bf16.gmra.mrb[0].mxu0 %v3401
      %v3482 = vpop.f32.mrb[0].mxu0
      %v3483 = vadd.f32 0.0, %v3482
      %v3484 = vpop.f32.mrb[0].mxu0
      %v3485 = vpop.f32.mrb[0].mxu0
      %v3486 = vadd.f32 0.0, %v3485
      %v3487 = vpop.f32.mrb[0].mxu0
      %3488 = vmatprep.mubr.bf16.mxu0 0
      %3489 = vmatmul.mubr.bf16.gmra.mrb[0].mxu0 %v3404
      %v3490 = vpop.f32.mrb[0].mxu0
      %v3491 = vadd.f32 0.0, %v3490
      %v3492 = vpop.f32.mrb[0].mxu0
      %v3493 = vpop.f32.mrb[0].mxu0
      %v3494 = vadd.f32 0.0, %v3493
      %v3495 = vpop.f32.mrb[0].mxu0
      %3496 = vmatprep.mubr.bf16.mxu0 0
      %3497 = vmatmul.mubr.bf16.gmra.mrb[0].mxu0 %v3407
      %v3498 = vpop.f32.mrb[0].mxu0
      %v3499 = vadd.f32 0.0, %v3498
      %v3500 = vpop.f32.mrb[0].mxu0
      %v3501 = vpop.f32.mrb[0].mxu0
      %v3502 = vadd.f32 0.0, %v3501
      %v3503 = vpop.f32.mrb[0].mxu0
      %3504 = vmatprep.mubr.bf16.mxu0 0
      %3505 = vmatmul.mubr.bf16.gmra.mrb[0].mxu0 %v3410
      %v3506 = vpop.f32.mrb[0].mxu0
      %v3507 = vadd.f32 0.0, %v3506
      %v3508 = vpop.f32.mrb[0].mxu0
      %v3509 = vpop.f32.mrb[0].mxu0
      %v3510 = vadd.f32 0.0, %v3509
      %v3511 = vpop.f32.mrb[0].mxu0
      %3512 = vmatprep.mubr.bf16.mxu0 0
      %3513 = vmatmul.mubr.bf16.gmra.mrb[0].mxu0 %v3413
      %v3514 = vpop.f32.mrb[0].mxu0
      %v3515 = vadd.f32 0.0, %v3514
      %v3516 = vpop.f32.mrb[0].mxu0
      %v3517 = vpop.f32.mrb[0].mxu0
      %v3518 = vadd.f32 0.0, %v3517
      %v3519 = vpop.f32.mrb[0].mxu0
      %3520 = vmatprep.mubr.bf16.mxu0 0
      %3521 = vmatmul.mubr.bf16.gmra.mrb[0].mxu0 %v3416
      %v3522 = vpop.f32.mrb[0].mxu0
      %v3523 = vadd.f32 0.0, %v3522
      %v3524 = vpop.f32.mrb[0].mxu0
      %v3525 = vpop.f32.mrb[0].mxu0
      %v3526 = vadd.f32 0.0, %v3525
      %v3527 = vpop.f32.mrb[0].mxu0
      %3528 = vmatprep.mubr.bf16.mxu0 0
      %3529 = vmatmul.mubr.bf16.gmra.mrb[0].mxu0 %v3419
      %v3530 = vpop.f32.mrb[0].mxu0
      %v3531 = vadd.f32 0.0, %v3530
      %v3532 = vpop.f32.mrb[0].mxu0
      %v3533 = vpop.f32.mrb[0].mxu0
      %v3534 = vadd.f32 0.0, %v3533
      %v3535 = vpop.f32.mrb[0].mxu0
      %3536 = vmatprep.mubr.bf16.mxu0 0
      %3537 = vmatmul.mubr.bf16.gmra.mrb[0].mxu0 %v3422
      %v3538 = vpop.f32.mrb[0].mxu0
      %v3539 = vadd.f32 0.0, %v3538
      %v3540 = vpop.f32.mrb[0].mxu0
      %v3541 = vpop.f32.mrb[0].mxu0
      %v3542 = vadd.f32 0.0, %v3541
      %v3543 = vpop.f32.mrb[0].mxu0
      %3544 = vmatprep.mubr.bf16.mxu0 0
      %3545 = vmatmul.mubr.bf16.gmra.mrb[0].mxu0 %v3425
      %v3546 = vpop.f32.mrb[0].mxu0
      %v3547 = vadd.f32 0.0, %v3546
      %v3548 = vpop.f32.mrb[0].mxu0
      %v3549 = vpop.f32.mrb[0].mxu0
      %v3550 = vadd.f32 0.0, %v3549
      %v3551 = vpop.f32.mrb[0].mxu0
      %3552 = vmatprep.mubr.bf16.mxu0 0
      %3553 = vmatmul.mubr.bf16.gmra.mrb[0].mxu0 %v3428
      %v3554 = vpop.f32.mrb[0].mxu0
      %v3555 = vadd.f32 0.0, %v3554
      %v3556 = vpop.f32.mrb[0].mxu0
      %v3557 = vpop.f32.mrb[0].mxu0
      %v3558 = vadd.f32 0.0, %v3557
      %v3559 = vpop.f32.mrb[0].mxu0
      %3560 = vmatprep.mubr.bf16.mxu0 0
      %3561 = vmatmul.mubr.bf16.gmra.mrb[0].mxu0 %v3431
      %v3562 = vpop.f32.mrb[0].mxu0
      %v3563 = vadd.f32 0.0, %v3562
      %v3564 = vpop.f32.mrb[0].mxu0
      %v3565 = vpop.f32.mrb[0].mxu0
      %v3566 = vadd.f32 0.0, %v3565
      %v3567 = vpop.f32.mrb[0].mxu0
      %3568 = vmatprep.mubr.bf16.mxu0 0
      %3569 = vmatmul.mubr.bf16.gmra.mrb[0].mxu0 %v3434
      %v3570 = vpop.f32.mrb[0].mxu0
      %v3571 = vadd.f32 0.0, %v3570
      %v3572 = vpop.f32.mrb[0].mxu0
      %v3573 = vpop.f32.mrb[0].mxu0
      %v3574 = vadd.f32 0.0, %v3573
      %v3575 = vpop.f32.mrb[0].mxu0
      %3576 = vmatprep.mubr.bf16.mxu0 0
      %3577 = vmatmul.mubr.bf16.gmra.mrb[0].mxu0 %v3437
      %v3578 = vpop.f32.mrb[0].mxu0
      %v3579 = vadd.f32 0.0, %v3578
      %v3580 = vpop.f32.mrb[0].mxu0
      %v3581 = vpop.f32.mrb[0].mxu0
      %v3582 = vadd.f32 0.0, %v3581
      %v3583 = vpop.f32.mrb[0].mxu0
      %3584 = vmatprep.mubr.bf16.mxu0 0
      %3585 = vmatmul.mubr.bf16.gmra.mrb[0].mxu0 %v3440
      %v3586 = vpop.f32.mrb[0].mxu0
      %v3587 = vadd.f32 0.0, %v3586
      %v3588 = vpop.f32.mrb[0].mxu0
      %v3589 = vpop.f32.mrb[0].mxu0
      %v3590 = vadd.f32 0.0, %v3589
      %v3591 = vpop.f32.mrb[0].mxu0
      %3592 = vmatprep.mubr.bf16.mxu0 0
      %3593 = vmatmul.mubr.bf16.gmra.mrb[0].mxu0 %v3443
      %v3594 = vpop.f32.mrb[0].mxu0
      %v3595 = vadd.f32 0.0, %v3594
      %v3596 = vpop.f32.mrb[0].mxu0
      %v3597 = vpop.f32.mrb[0].mxu0
      %v3598 = vadd.f32 0.0, %v3597
      %v3599 = vpop.f32.mrb[0].mxu0
      %3600 = vmatprep.mubr.bf16.mxu0 0
      %3601 = vmatmul.mubr.bf16.gmra.mrb[0].mxu0 %v3446
      %v3602 = vpop.f32.mrb[0].mxu0
      %v3603 = vadd.f32 0.0, %v3602
      %v3604 = vpop.f32.mrb[0].mxu0
      %v3605 = vpop.f32.mrb[0].mxu0
      %v3606 = vadd.f32 0.0, %v3605
      %v3607 = vpop.f32.mrb[0].mxu0
      %3608 = vdwg.mxu0
      %v3641 = vunpack.c.l.b16 %v2889
      %v3642 = vunpack.c.l.b16 %v2890
      %v3643 = vunpack.c.l.b16 %v2892
      %v3644 = vunpack.c.l.b16 %v2893
      %v3645 = vunpack.c.l.b16 %v2895
      %v3646 = vunpack.c.l.b16 %v2896
      %v3647 = vunpack.c.l.b16 %v2898
      %v3648 = vunpack.c.l.b16 %v2899
      %v3649 = vunpack.c.l.b16 %v2901
      %v3650 = vunpack.c.l.b16 %v2902
      %v3651 = vunpack.c.l.b16 %v2904
      %v3652 = vunpack.c.l.b16 %v2905
      %v3653 = vunpack.c.l.b16 %v2907
      %v3654 = vunpack.c.l.b16 %v2908
      %v3655 = vunpack.c.l.b16 %v2910
      %v3656 = vunpack.c.l.b16 %v2911
      %v3657 = vunpack.c.l.b16 %v2913
      %v3658 = vunpack.c.l.b16 %v2914
      %v3659 = vunpack.c.l.b16 %v2916
      %v3660 = vunpack.c.l.b16 %v2917
      %v3661 = vunpack.c.l.b16 %v2919
      %v3662 = vunpack.c.l.b16 %v2920
      %v3663 = vunpack.c.l.b16 %v2922
      %v3664 = vunpack.c.l.b16 %v2923
      %v3665 = vunpack.c.l.b16 %v2925
      %v3666 = vunpack.c.l.b16 %v2926
      %v3667 = vunpack.c.l.b16 %v2928
      %v3668 = vunpack.c.l.b16 %v2929
      %v3669 = vunpack.c.l.b16 %v2931
      %v3670 = vunpack.c.l.b16 %v2932
      %v3671 = vunpack.c.l.b16 %v2934
      %v3672 = vunpack.c.l.b16 %v2935
      %v3673 = vpack.c.b16 %v3642, %v3641
      %v3674 = vpack.c.b16 %v3644, %v3643
      %v3675 = vpack.c.b16 %v3646, %v3645
      %v3676 = vpack.c.b16 %v3648, %v3647
      %v3677 = vpack.c.b16 %v3650, %v3649
      %v3678 = vpack.c.b16 %v3652, %v3651
      %v3679 = vpack.c.b16 %v3654, %v3653
      %v3680 = vpack.c.b16 %v3656, %v3655
      %v3681 = vpack.c.b16 %v3658, %v3657
      %v3682 = vpack.c.b16 %v3660, %v3659
      %v3683 = vpack.c.b16 %v3662, %v3661
      %v3684 = vpack.c.b16 %v3664, %v3663
      %v3685 = vpack.c.b16 %v3666, %v3665
      %v3686 = vpack.c.b16 %v3668, %v3667
      %v3687 = vpack.c.b16 %v3670, %v3669
      %v3688 = vpack.c.b16 %v3672, %v3671
      %v3693 = vunpack.c.l.b16 %v2943
      %v3694 = vunpack.c.l.b16 %v2944
      %v3695 = vunpack.c.l.b16 %v2945
      %v3696 = vunpack.c.l.b16 %v2946
      %v3697 = vpack.c.b16 %v3694, %v3693
      %v3698 = vpack.c.b16 %v3696, %v3695
      %v3702 = vsel %vm3399, %v3673, 0
      %v3705 = vsel %vm3399, %v3674, 0
      %v3708 = vsel %vm3399, %v3675, 0
      %v3711 = vsel %vm3399, %v3676, 0
      %v3714 = vsel %vm3399, %v3677, 0
      %v3717 = vsel %vm3399, %v3678, 0
      %v3720 = vsel %vm3399, %v3679, 0
      %v3723 = vsel %vm3399, %v3680, 0
      %v3726 = vsel %vm3399, %v3681, 0
      %v3729 = vsel %vm3399, %v3682, 0
      %v3732 = vsel %vm3399, %v3683, 0
      %v3735 = vsel %vm3399, %v3684, 0
      %v3738 = vsel %vm3399, %v3685, 0
      %v3741 = vsel %vm3399, %v3686, 0
      %v3744 = vsel %vm3399, %v3687, 0
      %v3747 = vsel %vm3399, %v3688, 0
      %3749 = vmatprep.subr.bf16.mxu0 0
      %3750 = vmatpush1.bf16.msra.mxu0 %v3697
      %3751 = vmatprep.subr.bf16.mxu0 0
      %3752 = vmatpush1.bf16.msra.mxu0 %v3698
      %3753 = vmatprep.subr.bf16.mxu0 0
      %3754 = vmatpush1.bf16.msra.mxu0 0
      %3755 = vmatprep.subr.bf16.mxu0 0
      %3756 = vmatpush1.bf16.msra.mxu0 0
      %3757 = vmatprep.subr.bf16.mxu0 0
      %3758 = vmatpush1.bf16.msra.mxu0 0
      %3759 = vmatprep.subr.bf16.mxu0 0
      %3760 = vmatpush1.bf16.msra.mxu0 0
      %3761 = vmatprep.subr.bf16.mxu0 0
      %3762 = vmatpush1.bf16.msra.mxu0 0
      %3763 = vmatprep.subr.bf16.mxu0 0
      %3764 = vmatpush1.bf16.msra.mxu0 0
      %3765 = vmatprep.subr.bf16.mxu0 0
      %3766 = vmatpush1.bf16.msra.mxu0 0
      %3767 = vmatprep.subr.bf16.mxu0 0
      %3768 = vmatpush1.bf16.msra.mxu0 0
      %3769 = vmatprep.subr.bf16.mxu0 0
      %3770 = vmatpush1.bf16.msra.mxu0 0
      %3771 = vmatprep.subr.bf16.mxu0 0
      %3772 = vmatpush1.bf16.msra.mxu0 0
      %3773 = vmatprep.subr.bf16.mxu0 0
      %3774 = vmatpush1.bf16.msra.mxu0 0
      %3775 = vmatprep.subr.bf16.mxu0 0
      %3776 = vmatpush1.bf16.msra.mxu0 0
      %3777 = vmatprep.subr.bf16.mxu0 0
      %3778 = vmatpush1.bf16.msra.mxu0 0
      %3779 = vmatprep.subr.bf16.mxu0 0
      %3780 = vmatpush1.bf16.msra.mxu0 0
      %3781 = vmatprep.mubr.bf16.mxu0 0
      %3782 = vmatmul.mubr.bf16.gmra.mrb[0].mxu0 %v3702
      %v3783 = vpop.f32.mrb[0].mxu0
      %v3784 = vadd.f32 %v3483, %v3783
      %v3785 = vpop.f32.mrb[0].mxu0
      %v3786 = vpop.f32.mrb[0].mxu0
      %v3787 = vadd.f32 %v3486, %v3786
      %v3788 = vpop.f32.mrb[0].mxu0
      %3789 = vmatprep.mubr.bf16.mxu0 0
      %3790 = vmatmul.mubr.bf16.gmra.mrb[0].mxu0 %v3705
      %v3791 = vpop.f32.mrb[0].mxu0
      %v3792 = vadd.f32 %v3491, %v3791
      %v3793 = vpop.f32.mrb[0].mxu0
      %v3794 = vpop.f32.mrb[0].mxu0
      %v3795 = vadd.f32 %v3494, %v3794
      %v3796 = vpop.f32.mrb[0].mxu0
      %3797 = vmatprep.mubr.bf16.mxu0 0
      %3798 = vmatmul.mubr.bf16.gmra.mrb[0].mxu0 %v3708
      %v3799 = vpop.f32.mrb[0].mxu0
      %v3800 = vadd.f32 %v3499, %v3799
      %v3801 = vpop.f32.mrb[0].mxu0
      %v3802 = vpop.f32.mrb[0].mxu0
      %v3803 = vadd.f32 %v3502, %v3802
      %v3804 = vpop.f32.mrb[0].mxu0
      %3805 = vmatprep.mubr.bf16.mxu0 0
      %3806 = vmatmul.mubr.bf16.gmra.mrb[0].mxu0 %v3711
      %v3807 = vpop.f32.mrb[0].mxu0
      %v3808 = vadd.f32 %v3507, %v3807
      %v3809 = vpop.f32.mrb[0].mxu0
      %v3810 = vpop.f32.mrb[0].mxu0
      %v3811 = vadd.f32 %v3510, %v3810
      %v3812 = vpop.f32.mrb[0].mxu0
      %3813 = vmatprep.mubr.bf16.mxu0 0
      %3814 = vmatmul.mubr.bf16.gmra.mrb[0].mxu0 %v3714
      %v3815 = vpop.f32.mrb[0].mxu0
      %v3816 = vadd.f32 %v3515, %v3815
      %v3817 = vpop.f32.mrb[0].mxu0
      %v3818 = vpop.f32.mrb[0].mxu0
      %v3819 = vadd.f32 %v3518, %v3818
      %v3820 = vpop.f32.mrb[0].mxu0
      %3821 = vmatprep.mubr.bf16.mxu0 0
      %3822 = vmatmul.mubr.bf16.gmra.mrb[0].mxu0 %v3717
      %v3823 = vpop.f32.mrb[0].mxu0
      %v3824 = vadd.f32 %v3523, %v3823
      %v3825 = vpop.f32.mrb[0].mxu0
      %v3826 = vpop.f32.mrb[0].mxu0
      %v3827 = vadd.f32 %v3526, %v3826
      %v3828 = vpop.f32.mrb[0].mxu0
      %3829 = vmatprep.mubr.bf16.mxu0 0
      %3830 = vmatmul.mubr.bf16.gmra.mrb[0].mxu0 %v3720
      %v3831 = vpop.f32.mrb[0].mxu0
      %v3832 = vadd.f32 %v3531, %v3831
      %v3833 = vpop.f32.mrb[0].mxu0
      %v3834 = vpop.f32.mrb[0].mxu0
      %v3835 = vadd.f32 %v3534, %v3834
      %v3836 = vpop.f32.mrb[0].mxu0
      %3837 = vmatprep.mubr.bf16.mxu0 0
      %3838 = vmatmul.mubr.bf16.gmra.mrb[0].mxu0 %v3723
      %v3839 = vpop.f32.mrb[0].mxu0
      %v3840 = vadd.f32 %v3539, %v3839
      %v3841 = vpop.f32.mrb[0].mxu0
      %v3842 = vpop.f32.mrb[0].mxu0
      %v3843 = vadd.f32 %v3542, %v3842
      %v3844 = vpop.f32.mrb[0].mxu0
      %3845 = vmatprep.mubr.bf16.mxu0 0
      %3846 = vmatmul.mubr.bf16.gmra.mrb[0].mxu0 %v3726
      %v3847 = vpop.f32.mrb[0].mxu0
      %v3848 = vadd.f32 %v3547, %v3847
      %v3849 = vpop.f32.mrb[0].mxu0
      %v3850 = vpop.f32.mrb[0].mxu0
      %v3851 = vadd.f32 %v3550, %v3850
      %v3852 = vpop.f32.mrb[0].mxu0
      %3853 = vmatprep.mubr.bf16.mxu0 0
      %3854 = vmatmul.mubr.bf16.gmra.mrb[0].mxu0 %v3729
      %v3855 = vpop.f32.mrb[0].mxu0
      %v3856 = vadd.f32 %v3555, %v3855
      %v3857 = vpop.f32.mrb[0].mxu0
      %v3858 = vpop.f32.mrb[0].mxu0
      %v3859 = vadd.f32 %v3558, %v3858
      %v3860 = vpop.f32.mrb[0].mxu0
      %3861 = vmatprep.mubr.bf16.mxu0 0
      %3862 = vmatmul.mubr.bf16.gmra.mrb[0].mxu0 %v3732
      %v3863 = vpop.f32.mrb[0].mxu0
      %v3864 = vadd.f32 %v3563, %v3863
      %v3865 = vpop.f32.mrb[0].mxu0
      %v3866 = vpop.f32.mrb[0].mxu0
      %v3867 = vadd.f32 %v3566, %v3866
      %v3868 = vpop.f32.mrb[0].mxu0
      %3869 = vmatprep.mubr.bf16.mxu0 0
      %3870 = vmatmul.mubr.bf16.gmra.mrb[0].mxu0 %v3735
      %v3871 = vpop.f32.mrb[0].mxu0
      %v3872 = vadd.f32 %v3571, %v3871
      %v3873 = vpop.f32.mrb[0].mxu0
      %v3874 = vpop.f32.mrb[0].mxu0
      %v3875 = vadd.f32 %v3574, %v3874
      %v3876 = vpop.f32.mrb[0].mxu0
      %3877 = vmatprep.mubr.bf16.mxu0 0
      %3878 = vmatmul.mubr.bf16.gmra.mrb[0].mxu0 %v3738
      %v3879 = vpop.f32.mrb[0].mxu0
      %v3880 = vadd.f32 %v3579, %v3879
      %v3881 = vpop.f32.mrb[0].mxu0
      %v3882 = vpop.f32.mrb[0].mxu0
      %v3883 = vadd.f32 %v3582, %v3882
      %v3884 = vpop.f32.mrb[0].mxu0
      %3885 = vmatprep.mubr.bf16.mxu0 0
      %3886 = vmatmul.mubr.bf16.gmra.mrb[0].mxu0 %v3741
      %v3887 = vpop.f32.mrb[0].mxu0
      %v3888 = vadd.f32 %v3587, %v3887
      %v3889 = vpop.f32.mrb[0].mxu0
      %v3890 = vpop.f32.mrb[0].mxu0
      %v3891 = vadd.f32 %v3590, %v3890
      %v3892 = vpop.f32.mrb[0].mxu0
      %3893 = vmatprep.mubr.bf16.mxu0 0
      %3894 = vmatmul.mubr.bf16.gmra.mrb[0].mxu0 %v3744
      %v3895 = vpop.f32.mrb[0].mxu0
      %v3896 = vadd.f32 %v3595, %v3895
      %v3897 = vpop.f32.mrb[0].mxu0
      %v3898 = vpop.f32.mrb[0].mxu0
      %v3899 = vadd.f32 %v3598, %v3898
      %v3900 = vpop.f32.mrb[0].mxu0
      %3901 = vmatprep.mubr.bf16.mxu0 0
      %3902 = vmatmul.mubr.bf16.gmra.mrb[0].mxu0 %v3747
      %v3903 = vpop.f32.mrb[0].mxu0
      %v3904 = vadd.f32 %v3603, %v3903
      %v3905 = vpop.f32.mrb[0].mxu0
      %v3906 = vpop.f32.mrb[0].mxu0
      %v3907 = vadd.f32 %v3606, %v3906
      %v3908 = vpop.f32.mrb[0].mxu0
      %3909 = vdwg.mxu0
      %vm3926 = vcmask 1042432
      %vm3927 = vcmask 1046532
      %vm3928 = vmor %vm3926, %vm3927
      %v3929 = vrot.slane %v2889, 5
      %v3930 = vrot.slane %v3929, 4
      %v3931 = vrot.slane %v2890, 5
      %v3932 = vsel %vm3928, %v3930, %v3931
      %v3933 = vrot.slane %v3931, 4
      %v3934 = vrot.slane %v2891, 5
      %v3935 = vsel %vm3928, %v3933, %v3934
      %v3936 = vrot.slane %v2892, 5
      %v3937 = vrot.slane %v3936, 4
      %v3938 = vrot.slane %v2893, 5
      %v3939 = vsel %vm3928, %v3937, %v3938
      %v3940 = vrot.slane %v3938, 4
      %v3941 = vrot.slane %v2894, 5
      %v3942 = vsel %vm3928, %v3940, %v3941
      %v3943 = vrot.slane %v2895, 5
      %v3944 = vrot.slane %v3943, 4
      %v3945 = vrot.slane %v2896, 5
      %v3946 = vsel %vm3928, %v3944, %v3945
      %v3947 = vrot.slane %v3945, 4
      %v3948 = vrot.slane %v2897, 5
      %v3949 = vsel %vm3928, %v3947, %v3948
      %v3950 = vrot.slane %v2898, 5
      %v3951 = vrot.slane %v3950, 4
      %v3952 = vrot.slane %v2899, 5
      %v3953 = vsel %vm3928, %v3951, %v3952
      %v3954 = vrot.slane %v3952, 4
      %v3955 = vrot.slane %v2900, 5
      %v3956 = vsel %vm3928, %v3954, %v3955
      %v3957 = vrot.slane %v2901, 5
      %v3958 = vrot.slane %v3957, 4
      %v3959 = vrot.slane %v2902, 5
      %v3960 = vsel %vm3928, %v3958, %v3959
      %v3961 = vrot.slane %v3959, 4
      %v3962 = vrot.slane %v2903, 5
      %v3963 = vsel %vm3928, %v3961, %v3962
      %v3964 = vrot.slane %v2904, 5
      %v3965 = vrot.slane %v3964, 4
      %v3966 = vrot.slane %v2905, 5
      %v3967 = vsel %vm3928, %v3965, %v3966
      %v3968 = vrot.slane %v3966, 4
      %v3969 = vrot.slane %v2906, 5
      %v3970 = vsel %vm3928, %v3968, %v3969
      %v3971 = vrot.slane %v2907, 5
      %v3972 = vrot.slane %v3971, 4
      %v3973 = vrot.slane %v2908, 5
      %v3974 = vsel %vm3928, %v3972, %v3973
      %v3975 = vrot.slane %v3973, 4
      %v3976 = vrot.slane %v2909, 5
      %v3977 = vsel %vm3928, %v3975, %v3976
      %v3978 = vrot.slane %v2910, 5
      %v3979 = vrot.slane %v3978, 4
      %v3980 = vrot.slane %v2911, 5
      %v3981 = vsel %vm3928, %v3979, %v3980
      %v3982 = vrot.slane %v3980, 4
      %v3983 = vrot.slane %v2912, 5
      %v3984 = vsel %vm3928, %v3982, %v3983
      %v3985 = vrot.slane %v2913, 5
      %v3986 = vrot.slane %v3985, 4
      %v3987 = vrot.slane %v2914, 5
      %v3988 = vsel %vm3928, %v3986, %v3987
      %v3989 = vrot.slane %v3987, 4
      %v3990 = vrot.slane %v2915, 5
      %v3991 = vsel %vm3928, %v3989, %v3990
      %v3992 = vrot.slane %v2916, 5
      %v3993 = vrot.slane %v3992, 4
      %v3994 = vrot.slane %v2917, 5
      %v3995 = vsel %vm3928, %v3993, %v3994
      %v3996 = vrot.slane %v3994, 4
      %v3997 = vrot.slane %v2918, 5
      %v3998 = vsel %vm3928, %v3996, %v3997
      %v3999 = vrot.slane %v2919, 5
      %v4000 = vrot.slane %v3999, 4
      %v4001 = vrot.slane %v2920, 5
      %v4002 = vsel %vm3928, %v4000, %v4001
      %v4003 = vrot.slane %v4001, 4
      %v4004 = vrot.slane %v2921, 5
      %v4005 = vsel %vm3928, %v4003, %v4004
      %v4006 = vrot.slane %v2922, 5
      %v4007 = vrot.slane %v4006, 4
      %v4008 = vrot.slane %v2923, 5
      %v4009 = vsel %vm3928, %v4007, %v4008
      %v4010 = vrot.slane %v4008, 4
      %v4011 = vrot.slane %v2924, 5
      %v4012 = vsel %vm3928, %v4010, %v4011
      %v4013 = vrot.slane %v2925, 5
      %v4014 = vrot.slane %v4013, 4
      %v4015 = vrot.slane %v2926, 5
      %v4016 = vsel %vm3928, %v4014, %v4015
      %v4017 = vrot.slane %v4015, 4
      %v4018 = vrot.slane %v2927, 5
      %v4019 = vsel %vm3928, %v4017, %v4018
      %v4020 = vrot.slane %v2928, 5
      %v4021 = vrot.slane %v4020, 4
      %v4022 = vrot.slane %v2929, 5
      %v4023 = vsel %vm3928, %v4021, %v4022
      %v4024 = vrot.slane %v4022, 4
      %v4025 = vrot.slane %v2930, 5
      %v4026 = vsel %vm3928, %v4024, %v4025
      %v4027 = vrot.slane %v2931, 5
      %v4028 = vrot.slane %v4027, 4
      %v4029 = vrot.slane %v2932, 5
      %v4030 = vsel %vm3928, %v4028, %v4029
      %v4031 = vrot.slane %v4029, 4
      %v4032 = vrot.slane %v2933, 5
      %v4033 = vsel %vm3928, %v4031, %v4032
      %v4034 = vrot.slane %v2934, 5
      %v4035 = vrot.slane %v4034, 4
      %v4036 = vrot.slane %v2935, 5
      %v4037 = vsel %vm3928, %v4035, %v4036
      %v4038 = vrot.slane %v4036, 4
      %v4039 = vrot.slane %v2936, 5
      %v4040 = vsel %vm3928, %v4038, %v4039
      %s4041 = scalar_lea.vmem %s2, 32
      %v4042 = vld [vmem:[%s4041] sm:$0xf]
      %v4043 = vld [vmem:[%s4041 + $0x4] sm:$0xf]
      %v4044 = vld [vmem:[%s4041 + $0x8] sm:$0xf]
      %v4045 = vld [vmem:[%s4041 + $0xc] sm:$0xf]
      %v4046 = vunpack.c.l.b16 %v3932
      %v4047 = vunpack.c.l.b16 %v3935
      %v4048 = vunpack.c.l.b16 %v3939
      %v4049 = vunpack.c.l.b16 %v3942
      %v4050 = vunpack.c.l.b16 %v3946
      %v4051 = vunpack.c.l.b16 %v3949
      %v4052 = vunpack.c.l.b16 %v3953
      %v4053 = vunpack.c.l.b16 %v3956
      %v4054 = vunpack.c.l.b16 %v3960
      %v4055 = vunpack.c.l.b16 %v3963
      %v4056 = vunpack.c.l.b16 %v3967
      %v4057 = vunpack.c.l.b16 %v3970
      %v4058 = vunpack.c.l.b16 %v3974
      %v4059 = vunpack.c.l.b16 %v3977
      %v4060 = vunpack.c.l.b16 %v3981
      %v4061 = vunpack.c.l.b16 %v3984
      %v4062 = vunpack.c.l.b16 %v3988
      %v4063 = vunpack.c.l.b16 %v3991
      %v4064 = vunpack.c.l.b16 %v3995
      %v4065 = vunpack.c.l.b16 %v3998
      %v4066 = vunpack.c.l.b16 %v4002
      %v4067 = vunpack.c.l.b16 %v4005
      %v4068 = vunpack.c.l.b16 %v4009
      %v4069 = vunpack.c.l.b16 %v4012
      %v4070 = vunpack.c.l.b16 %v4016
      %v4071 = vunpack.c.l.b16 %v4019
      %v4072 = vunpack.c.l.b16 %v4023
      %v4073 = vunpack.c.l.b16 %v4026
      %v4074 = vunpack.c.l.b16 %v4030
      %v4075 = vunpack.c.l.b16 %v4033
      %v4076 = vunpack.c.l.b16 %v4037
      %v4077 = vunpack.c.l.b16 %v4040
      %v4078 = vpack.c.b16 %v4047, %v4046
      %v4079 = vpack.c.b16 %v4049, %v4048
      %v4080 = vpack.c.b16 %v4051, %v4050
      %v4081 = vpack.c.b16 %v4053, %v4052
      %v4082 = vpack.c.b16 %v4055, %v4054
      %v4083 = vpack.c.b16 %v4057, %v4056
      %v4084 = vpack.c.b16 %v4059, %v4058
      %v4085 = vpack.c.b16 %v4061, %v4060
      %v4086 = vpack.c.b16 %v4063, %v4062
      %v4087 = vpack.c.b16 %v4065, %v4064
      %v4088 = vpack.c.b16 %v4067, %v4066
      %v4089 = vpack.c.b16 %v4069, %v4068
      %v4090 = vpack.c.b16 %v4071, %v4070
      %v4091 = vpack.c.b16 %v4073, %v4072
      %v4092 = vpack.c.b16 %v4075, %v4074
      %v4093 = vpack.c.b16 %v4077, %v4076
      %v4098 = vunpack.c.l.b16 %v4042
      %v4099 = vunpack.c.l.b16 %v4043
      %v4100 = vunpack.c.l.b16 %v4044
      %v4101 = vunpack.c.l.b16 %v4045
      %v4102 = vpack.c.b16 %v4099, %v4098
      %v4103 = vpack.c.b16 %v4101, %v4100
      %v4107 = vsel %vm3399, %v4078, 0
      %v4110 = vsel %vm3399, %v4079, 0
      %v4113 = vsel %vm3399, %v4080, 0
      %v4116 = vsel %vm3399, %v4081, 0
      %v4119 = vsel %vm3399, %v4082, 0
      %v4122 = vsel %vm3399, %v4083, 0
      %v4125 = vsel %vm3399, %v4084, 0
      %v4128 = vsel %vm3399, %v4085, 0
      %v4131 = vsel %vm3399, %v4086, 0
      %v4134 = vsel %vm3399, %v4087, 0
      %v4137 = vsel %vm3399, %v4088, 0
      %v4140 = vsel %vm3399, %v4089, 0
      %v4143 = vsel %vm3399, %v4090, 0
      %v4146 = vsel %vm3399, %v4091, 0
      %v4149 = vsel %vm3399, %v4092, 0
      %v4152 = vsel %vm3399, %v4093, 0
      %4154 = vmatprep.subr.bf16.mxu0 0
      %4155 = vmatpush1.bf16.msra.mxu0 %v4102
      %4156 = vmatprep.subr.bf16.mxu0 0
      %4157 = vmatpush1.bf16.msra.mxu0 %v4103
      %4158 = vmatprep.subr.bf16.mxu0 0
      %4159 = vmatpush1.bf16.msra.mxu0 0
      %4160 = vmatprep.subr.bf16.mxu0 0
      %4161 = vmatpush1.bf16.msra.mxu0 0
      %4162 = vmatprep.subr.bf16.mxu0 0
      %4163 = vmatpush1.bf16.msra.mxu0 0
      %4164 = vmatprep.subr.bf16.mxu0 0
      %4165 = vmatpush1.bf16.msra.mxu0 0
      %4166 = vmatprep.subr.bf16.mxu0 0
      %4167 = vmatpush1.bf16.msra.mxu0 0
      %4168 = vmatprep.subr.bf16.mxu0 0
      %4169 = vmatpush1.bf16.msra.mxu0 0
      %4170 = vmatprep.subr.bf16.mxu0 0
      %4171 = vmatpush1.bf16.msra.mxu0 0
      %4172 = vmatprep.subr.bf16.mxu0 0
      %4173 = vmatpush1.bf16.msra.mxu0 0
      %4174 = vmatprep.subr.bf16.mxu0 0
      %4175 = vmatpush1.bf16.msra.mxu0 0
      %4176 = vmatprep.subr.bf16.mxu0 0
      %4177 = vmatpush1.bf16.msra.mxu0 0
      %4178 = vmatprep.subr.bf16.mxu0 0
      %4179 = vmatpush1.bf16.msra.mxu0 0
      %4180 = vmatprep.subr.bf16.mxu0 0
      %4181 = vmatpush1.bf16.msra.mxu0 0
      %4182 = vmatprep.subr.bf16.mxu0 0
      %4183 = vmatpush1.bf16.msra.mxu0 0
      %4184 = vmatprep.subr.bf16.mxu0 0
      %4185 = vmatpush1.bf16.msra.mxu0 0
      %4186 = vmatprep.mubr.bf16.mxu0 0
      %4187 = vmatmul.mubr.bf16.gmra.mrb[0].mxu0 %v4107
      %v4188 = vpop.f32.mrb[0].mxu0
      %v4189 = vadd.f32 0.0, %v4188
      %v4190 = vpop.f32.mrb[0].mxu0
      %v4191 = vpop.f32.mrb[0].mxu0
      %v4192 = vadd.f32 0.0, %v4191
      %v4193 = vpop.f32.mrb[0].mxu0
      %4194 = vmatprep.mubr.bf16.mxu0 0
      %4195 = vmatmul.mubr.bf16.gmra.mrb[0].mxu0 %v4110
      %v4196 = vpop.f32.mrb[0].mxu0
      %v4197 = vadd.f32 0.0, %v4196
      %v4198 = vpop.f32.mrb[0].mxu0
      %v4199 = vpop.f32.mrb[0].mxu0
      %v4200 = vadd.f32 0.0, %v4199
      %v4201 = vpop.f32.mrb[0].mxu0
      %4202 = vmatprep.mubr.bf16.mxu0 0
      %4203 = vmatmul.mubr.bf16.gmra.mrb[0].mxu0 %v4113
      %v4204 = vpop.f32.mrb[0].mxu0
      %v4205 = vadd.f32 0.0, %v4204
      %v4206 = vpop.f32.mrb[0].mxu0
      %v4207 = vpop.f32.mrb[0].mxu0
      %v4208 = vadd.f32 0.0, %v4207
      %v4209 = vpop.f32.mrb[0].mxu0
      %4210 = vmatprep.mubr.bf16.mxu0 0
      %4211 = vmatmul.mubr.bf16.gmra.mrb[0].mxu0 %v4116
      %v4212 = vpop.f32.mrb[0].mxu0
      %v4213 = vadd.f32 0.0, %v4212
      %v4214 = vpop.f32.mrb[0].mxu0
      %v4215 = vpop.f32.mrb[0].mxu0
      %v4216 = vadd.f32 0.0, %v4215
      %v4217 = vpop.f32.mrb[0].mxu0
      %4218 = vmatprep.mubr.bf16.mxu0 0
      %4219 = vmatmul.mubr.bf16.gmra.mrb[0].mxu0 %v4119
      %v4220 = vpop.f32.mrb[0].mxu0
      %v4221 = vadd.f32 0.0, %v4220
      %v4222 = vpop.f32.mrb[0].mxu0
      %v4223 = vpop.f32.mrb[0].mxu0
      %v4224 = vadd.f32 0.0, %v4223
      %v4225 = vpop.f32.mrb[0].mxu0
      %4226 = vmatprep.mubr.bf16.mxu0 0
      %4227 = vmatmul.mubr.bf16.gmra.mrb[0].mxu0 %v4122
      %v4228 = vpop.f32.mrb[0].mxu0
      %v4229 = vadd.f32 0.0, %v4228
      %v4230 = vpop.f32.mrb[0].mxu0
      %v4231 = vpop.f32.mrb[0].mxu0
      %v4232 = vadd.f32 0.0, %v4231
      %v4233 = vpop.f32.mrb[0].mxu0
      %4234 = vmatprep.mubr.bf16.mxu0 0
      %4235 = vmatmul.mubr.bf16.gmra.mrb[0].mxu0 %v4125
      %v4236 = vpop.f32.mrb[0].mxu0
      %v4237 = vadd.f32 0.0, %v4236
      %v4238 = vpop.f32.mrb[0].mxu0
      %v4239 = vpop.f32.mrb[0].mxu0
      %v4240 = vadd.f32 0.0, %v4239
      %v4241 = vpop.f32.mrb[0].mxu0
      %4242 = vmatprep.mubr.bf16.mxu0 0
      %4243 = vmatmul.mubr.bf16.gmra.mrb[0].mxu0 %v4128
      %v4244 = vpop.f32.mrb[0].mxu0
      %v4245 = vadd.f32 0.0, %v4244
      %v4246 = vpop.f32.mrb[0].mxu0
      %v4247 = vpop.f32.mrb[0].mxu0
      %v4248 = vadd.f32 0.0, %v4247
      %v4249 = vpop.f32.mrb[0].mxu0
      %4250 = vmatprep.mubr.bf16.mxu0 0
      %4251 = vmatmul.mubr.bf16.gmra.mrb[0].mxu0 %v4131
      %v4252 = vpop.f32.mrb[0].mxu0
      %v4253 = vadd.f32 0.0, %v4252
      %v4254 = vpop.f32.mrb[0].mxu0
      %v4255 = vpop.f32.mrb[0].mxu0
      %v4256 = vadd.f32 0.0, %v4255
      %v4257 = vpop.f32.mrb[0].mxu0
      %4258 = vmatprep.mubr.bf16.mxu0 0
      %4259 = vmatmul.mubr.bf16.gmra.mrb[0].mxu0 %v4134
      %v4260 = vpop.f32.mrb[0].mxu0
      %v4261 = vadd.f32 0.0, %v4260
      %v4262 = vpop.f32.mrb[0].mxu0
      %v4263 = vpop.f32.mrb[0].mxu0
      %v4264 = vadd.f32 0.0, %v4263
      %v4265 = vpop.f32.mrb[0].mxu0
      %4266 = vmatprep.mubr.bf16.mxu0 0
      %4267 = vmatmul.mubr.bf16.gmra.mrb[0].mxu0 %v4137
      %v4268 = vpop.f32.mrb[0].mxu0
      %v4269 = vadd.f32 0.0, %v4268
      %v4270 = vpop.f32.mrb[0].mxu0
      %v4271 = vpop.f32.mrb[0].mxu0
      %v4272 = vadd.f32 0.0, %v4271
      %v4273 = vpop.f32.mrb[0].mxu0
      %4274 = vmatprep.mubr.bf16.mxu0 0
      %4275 = vmatmul.mubr.bf16.gmra.mrb[0].mxu0 %v4140
      %v4276 = vpop.f32.mrb[0].mxu0
      %v4277 = vadd.f32 0.0, %v4276
      %v4278 = vpop.f32.mrb[0].mxu0
      %v4279 = vpop.f32.mrb[0].mxu0
      %v4280 = vadd.f32 0.0, %v4279
      %v4281 = vpop.f32.mrb[0].mxu0
      %4282 = vmatprep.mubr.bf16.mxu0 0
      %4283 = vmatmul.mubr.bf16.gmra.mrb[0].mxu0 %v4143
      %v4284 = vpop.f32.mrb[0].mxu0
      %v4285 = vadd.f32 0.0, %v4284
      %v4286 = vpop.f32.mrb[0].mxu0
      %v4287 = vpop.f32.mrb[0].mxu0
      %v4288 = vadd.f32 0.0, %v4287
      %v4289 = vpop.f32.mrb[0].mxu0
      %4290 = vmatprep.mubr.bf16.mxu0 0
      %4291 = vmatmul.mubr.bf16.gmra.mrb[0].mxu0 %v4146
      %v4292 = vpop.f32.mrb[0].mxu0
      %v4293 = vadd.f32 0.0, %v4292
      %v4294 = vpop.f32.mrb[0].mxu0
      %v4295 = vpop.f32.mrb[0].mxu0
      %v4296 = vadd.f32 0.0, %v4295
      %v4297 = vpop.f32.mrb[0].mxu0
      %4298 = vmatprep.mubr.bf16.mxu0 0
      %4299 = vmatmul.mubr.bf16.gmra.mrb[0].mxu0 %v4149
      %v4300 = vpop.f32.mrb[0].mxu0
      %v4301 = vadd.f32 0.0, %v4300
      %v4302 = vpop.f32.mrb[0].mxu0
      %v4303 = vpop.f32.mrb[0].mxu0
      %v4304 = vadd.f32 0.0, %v4303
      %v4305 = vpop.f32.mrb[0].mxu0
      %4306 = vmatprep.mubr.bf16.mxu0 0
      %4307 = vmatmul.mubr.bf16.gmra.mrb[0].mxu0 %v4152
      %v4308 = vpop.f32.mrb[0].mxu0
      %v4309 = vadd.f32 0.0, %v4308
      %v4310 = vpop.f32.mrb[0].mxu0
      %v4311 = vpop.f32.mrb[0].mxu0
      %v4312 = vadd.f32 0.0, %v4311
      %v4313 = vpop.f32.mrb[0].mxu0
      %4314 = vdwg.mxu0
      %v4315 = vadd.f32 %v3784, %v4189
      %v4316 = vadd.f32 %v3787, %v4192
      %v4317 = vadd.f32 %v3792, %v4197
      %v4318 = vadd.f32 %v3795, %v4200
      %v4319 = vadd.f32 %v3800, %v4205
      %v4320 = vadd.f32 %v3803, %v4208
      %v4321 = vadd.f32 %v3808, %v4213
      %v4322 = vadd.f32 %v3811, %v4216
      %v4323 = vadd.f32 %v3816, %v4221
      %v4324 = vadd.f32 %v3819, %v4224
      %v4325 = vadd.f32 %v3824, %v4229
      %v4326 = vadd.f32 %v3827, %v4232
      %v4327 = vadd.f32 %v3832, %v4237
      %v4328 = vadd.f32 %v3835, %v4240
      %v4329 = vadd.f32 %v3840, %v4245
      %v4330 = vadd.f32 %v3843, %v4248
      %v4331 = vadd.f32 %v3848, %v4253
      %v4332 = vadd.f32 %v3851, %v4256
      %v4333 = vadd.f32 %v3856, %v4261
      %v4334 = vadd.f32 %v3859, %v4264
      %v4335 = vadd.f32 %v3864, %v4269
      %v4336 = vadd.f32 %v3867, %v4272
      %v4337 = vadd.f32 %v3872, %v4277
      %v4338 = vadd.f32 %v3875, %v4280
      %v4339 = vadd.f32 %v3880, %v4285
      %v4340 = vadd.f32 %v3883, %v4288
      %v4341 = vadd.f32 %v3888, %v4293
      %v4342 = vadd.f32 %v3891, %v4296
      %v4343 = vadd.f32 %v3896, %v4301
      %v4344 = vadd.f32 %v3899, %v4304
      %v4345 = vadd.f32 %v3904, %v4309
      %v4346 = vadd.f32 %v3907, %v4312
      %s4347 = scalar_lea.vmem %s2, 48
      %v4348 = vld [vmem:[%s4347] sm:$0xf]
      %v4349 = vld [vmem:[%s4347 + $0x4] sm:$0xf]
      %v4350 = vld [vmem:[%s4347 + $0x8] sm:$0xf]
      %v4351 = vld [vmem:[%s4347 + $0xc] sm:$0xf]
      %v4354 = vunpack.c.l.b16 %v2937
      %v4355 = vunpack.c.l.b16 %v2938
      %v4356 = vpack.c.b16 %v4355, %v4354
      %v4361 = vunpack.c.l.b16 %v4348
      %v4362 = vunpack.c.l.b16 %v4349
      %v4363 = vunpack.c.l.b16 %v4350
      %v4364 = vunpack.c.l.b16 %v4351
      %v4365 = vpack.c.b16 %v4362, %v4361
      %v4366 = vpack.c.b16 %v4364, %v4363
      %v4370 = vsel %vm3399, %v4356, 0
      %4372 = vmatprep.subr.bf16.mxu0 0
      %4373 = vmatpush1.bf16.msra.mxu0 %v4365
      %4374 = vmatprep.subr.bf16.mxu0 0
      %4375 = vmatpush1.bf16.msra.mxu0 %v4366
      %4376 = vmatprep.subr.bf16.mxu0 0
      %4377 = vmatpush1.bf16.msra.mxu0 0
      %4378 = vmatprep.subr.bf16.mxu0 0
      %4379 = vmatpush1.bf16.msra.mxu0 0
      %4380 = vmatprep.subr.bf16.mxu0 0
      %4381 = vmatpush1.bf16.msra.mxu0 0
      %4382 = vmatprep.subr.bf16.mxu0 0
      %4383 = vmatpush1.bf16.msra.mxu0 0
      %4384 = vmatprep.subr.bf16.mxu0 0
      %4385 = vmatpush1.bf16.msra.mxu0 0
      %4386 = vmatprep.subr.bf16.mxu0 0
      %4387 = vmatpush1.bf16.msra.mxu0 0
      %4388 = vmatprep.subr.bf16.mxu0 0
      %4389 = vmatpush1.bf16.msra.mxu0 0
      %4390 = vmatprep.subr.bf16.mxu0 0
      %4391 = vmatpush1.bf16.msra.mxu0 0
      %4392 = vmatprep.subr.bf16.mxu0 0
      %4393 = vmatpush1.bf16.msra.mxu0 0
      %4394 = vmatprep.subr.bf16.mxu0 0
      %4395 = vmatpush1.bf16.msra.mxu0 0
      %4396 = vmatprep.subr.bf16.mxu0 0
      %4397 = vmatpush1.bf16.msra.mxu0 0
      %4398 = vmatprep.subr.bf16.mxu0 0
      %4399 = vmatpush1.bf16.msra.mxu0 0
      %4400 = vmatprep.subr.bf16.mxu0 0
      %4401 = vmatpush1.bf16.msra.mxu0 0
      %4402 = vmatprep.subr.bf16.mxu0 0
      %4403 = vmatpush1.bf16.msra.mxu0 0
      %4404 = vmatprep.mubr.bf16.mxu0 0
      %4405 = vmatmul.mubr.bf16.gmra.mrb[0].mxu0 %v3705
      %v4406 = vpop.f32.mrb[0].mxu0
      %v4407 = vadd.f32 0.0, %v4406
      %v4408 = vpop.f32.mrb[0].mxu0
      %v4409 = vpop.f32.mrb[0].mxu0
      %v4410 = vadd.f32 0.0, %v4409
      %v4411 = vpop.f32.mrb[0].mxu0
      %4412 = vmatprep.mubr.bf16.mxu0 0
      %4413 = vmatmul.mubr.bf16.gmra.mrb[0].mxu0 %v3708
      %v4414 = vpop.f32.mrb[0].mxu0
      %v4415 = vadd.f32 0.0, %v4414
      %v4416 = vpop.f32.mrb[0].mxu0
      %v4417 = vpop.f32.mrb[0].mxu0
      %v4418 = vadd.f32 0.0, %v4417
      %v4419 = vpop.f32.mrb[0].mxu0
      %4420 = vmatprep.mubr.bf16.mxu0 0
      %4421 = vmatmul.mubr.bf16.gmra.mrb[0].mxu0 %v3711
      %v4422 = vpop.f32.mrb[0].mxu0
      %v4423 = vadd.f32 0.0, %v4422
      %v4424 = vpop.f32.mrb[0].mxu0
      %v4425 = vpop.f32.mrb[0].mxu0
      %v4426 = vadd.f32 0.0, %v4425
      %v4427 = vpop.f32.mrb[0].mxu0
      %4428 = vmatprep.mubr.bf16.mxu0 0
      %4429 = vmatmul.mubr.bf16.gmra.mrb[0].mxu0 %v3714
      %v4430 = vpop.f32.mrb[0].mxu0
      %v4431 = vadd.f32 0.0, %v4430
      %v4432 = vpop.f32.mrb[0].mxu0
      %v4433 = vpop.f32.mrb[0].mxu0
      %v4434 = vadd.f32 0.0, %v4433
      %v4435 = vpop.f32.mrb[0].mxu0
      %4436 = vmatprep.mubr.bf16.mxu0 0
      %4437 = vmatmul.mubr.bf16.gmra.mrb[0].mxu0 %v3717
      %v4438 = vpop.f32.mrb[0].mxu0
      %v4439 = vadd.f32 0.0, %v4438
      %v4440 = vpop.f32.mrb[0].mxu0
      %v4441 = vpop.f32.mrb[0].mxu0
      %v4442 = vadd.f32 0.0, %v4441
      %v4443 = vpop.f32.mrb[0].mxu0
      %4444 = vmatprep.mubr.bf16.mxu0 0
      %4445 = vmatmul.mubr.bf16.gmra.mrb[0].mxu0 %v3720
      %v4446 = vpop.f32.mrb[0].mxu0
      %v4447 = vadd.f32 0.0, %v4446
      %v4448 = vpop.f32.mrb[0].mxu0
      %v4449 = vpop.f32.mrb[0].mxu0
      %v4450 = vadd.f32 0.0, %v4449
      %v4451 = vpop.f32.mrb[0].mxu0
      %4452 = vmatprep.mubr.bf16.mxu0 0
      %4453 = vmatmul.mubr.bf16.gmra.mrb[0].mxu0 %v3723
      %v4454 = vpop.f32.mrb[0].mxu0
      %v4455 = vadd.f32 0.0, %v4454
      %v4456 = vpop.f32.mrb[0].mxu0
      %v4457 = vpop.f32.mrb[0].mxu0
      %v4458 = vadd.f32 0.0, %v4457
      %v4459 = vpop.f32.mrb[0].mxu0
      %4460 = vmatprep.mubr.bf16.mxu0 0
      %4461 = vmatmul.mubr.bf16.gmra.mrb[0].mxu0 %v3726
      %v4462 = vpop.f32.mrb[0].mxu0
      %v4463 = vadd.f32 0.0, %v4462
      %v4464 = vpop.f32.mrb[0].mxu0
      %v4465 = vpop.f32.mrb[0].mxu0
      %v4466 = vadd.f32 0.0, %v4465
      %v4467 = vpop.f32.mrb[0].mxu0
      %4468 = vmatprep.mubr.bf16.mxu0 0
      %4469 = vmatmul.mubr.bf16.gmra.mrb[0].mxu0 %v3729
      %v4470 = vpop.f32.mrb[0].mxu0
      %v4471 = vadd.f32 0.0, %v4470
      %v4472 = vpop.f32.mrb[0].mxu0
      %v4473 = vpop.f32.mrb[0].mxu0
      %v4474 = vadd.f32 0.0, %v4473
      %v4475 = vpop.f32.mrb[0].mxu0
      %4476 = vmatprep.mubr.bf16.mxu0 0
      %4477 = vmatmul.mubr.bf16.gmra.mrb[0].mxu0 %v3732
      %v4478 = vpop.f32.mrb[0].mxu0
      %v4479 = vadd.f32 0.0, %v4478
      %v4480 = vpop.f32.mrb[0].mxu0
      %v4481 = vpop.f32.mrb[0].mxu0
      %v4482 = vadd.f32 0.0, %v4481
      %v4483 = vpop.f32.mrb[0].mxu0
      %4484 = vmatprep.mubr.bf16.mxu0 0
      %4485 = vmatmul.mubr.bf16.gmra.mrb[0].mxu0 %v3735
      %v4486 = vpop.f32.mrb[0].mxu0
      %v4487 = vadd.f32 0.0, %v4486
      %v4488 = vpop.f32.mrb[0].mxu0
      %v4489 = vpop.f32.mrb[0].mxu0
      %v4490 = vadd.f32 0.0, %v4489
      %v4491 = vpop.f32.mrb[0].mxu0
      %4492 = vmatprep.mubr.bf16.mxu0 0
      %4493 = vmatmul.mubr.bf16.gmra.mrb[0].mxu0 %v3738
      %v4494 = vpop.f32.mrb[0].mxu0
      %v4495 = vadd.f32 0.0, %v4494
      %v4496 = vpop.f32.mrb[0].mxu0
      %v4497 = vpop.f32.mrb[0].mxu0
      %v4498 = vadd.f32 0.0, %v4497
      %v4499 = vpop.f32.mrb[0].mxu0
      %4500 = vmatprep.mubr.bf16.mxu0 0
      %4501 = vmatmul.mubr.bf16.gmra.mrb[0].mxu0 %v3741
      %v4502 = vpop.f32.mrb[0].mxu0
      %v4503 = vadd.f32 0.0, %v4502
      %v4504 = vpop.f32.mrb[0].mxu0
      %v4505 = vpop.f32.mrb[0].mxu0
      %v4506 = vadd.f32 0.0, %v4505
      %v4507 = vpop.f32.mrb[0].mxu0
      %4508 = vmatprep.mubr.bf16.mxu0 0
      %4509 = vmatmul.mubr.bf16.gmra.mrb[0].mxu0 %v3744
      %v4510 = vpop.f32.mrb[0].mxu0
      %v4511 = vadd.f32 0.0, %v4510
      %v4512 = vpop.f32.mrb[0].mxu0
      %v4513 = vpop.f32.mrb[0].mxu0
      %v4514 = vadd.f32 0.0, %v4513
      %v4515 = vpop.f32.mrb[0].mxu0
      %4516 = vmatprep.mubr.bf16.mxu0 0
      %4517 = vmatmul.mubr.bf16.gmra.mrb[0].mxu0 %v3747
      %v4518 = vpop.f32.mrb[0].mxu0
      %v4519 = vadd.f32 0.0, %v4518
      %v4520 = vpop.f32.mrb[0].mxu0
      %v4521 = vpop.f32.mrb[0].mxu0
      %v4522 = vadd.f32 0.0, %v4521
      %v4523 = vpop.f32.mrb[0].mxu0
      %4524 = vmatprep.mubr.bf16.mxu0 0
      %4525 = vmatmul.mubr.bf16.gmra.mrb[0].mxu0 %v4370
      %v4526 = vpop.f32.mrb[0].mxu0
      %v4527 = vadd.f32 0.0, %v4526
      %v4528 = vpop.f32.mrb[0].mxu0
      %v4529 = vpop.f32.mrb[0].mxu0
      %v4530 = vadd.f32 0.0, %v4529
      %v4531 = vpop.f32.mrb[0].mxu0
      %4532 = vdwg.mxu0
      %v4533 = vadd.f32 %v4315, %v4407
      %v4534 = vadd.f32 %v4316, %v4410
      %v4535 = vadd.f32 %v4317, %v4415
      %v4536 = vadd.f32 %v4318, %v4418
      %v4537 = vadd.f32 %v4319, %v4423
      %v4538 = vadd.f32 %v4320, %v4426
      %v4539 = vadd.f32 %v4321, %v4431
      %v4540 = vadd.f32 %v4322, %v4434
      %v4541 = vadd.f32 %v4323, %v4439
      %v4542 = vadd.f32 %v4324, %v4442
      %v4543 = vadd.f32 %v4325, %v4447
      %v4544 = vadd.f32 %v4326, %v4450
      %v4545 = vadd.f32 %v4327, %v4455
      %v4546 = vadd.f32 %v4328, %v4458
      %v4547 = vadd.f32 %v4329, %v4463
      %v4548 = vadd.f32 %v4330, %v4466
      %v4549 = vadd.f32 %v4331, %v4471
      %v4550 = vadd.f32 %v4332, %v4474
      %v4551 = vadd.f32 %v4333, %v4479
      %v4552 = vadd.f32 %v4334, %v4482
      %v4553 = vadd.f32 %v4335, %v4487
      %v4554 = vadd.f32 %v4336, %v4490
      %v4555 = vadd.f32 %v4337, %v4495
      %v4556 = vadd.f32 %v4338, %v4498
      %v4557 = vadd.f32 %v4339, %v4503
      %v4558 = vadd.f32 %v4340, %v4506
      %v4559 = vadd.f32 %v4341, %v4511
      %v4560 = vadd.f32 %v4342, %v4514
      %v4561 = vadd.f32 %v4343, %v4519
      %v4562 = vadd.f32 %v4344, %v4522
      %v4563 = vadd.f32 %v4345, %v4527
      %v4564 = vadd.f32 %v4346, %v4530
      %v4566 = vshrl.u32 %v2937, 16
      %v4568 = vrot.slane %v4566, 4
      %v4569 = vshll.u32 %v2937, 16
      %v4571 = vrot.slane %v4569, 5
      %v4572 = vor.u32 %v4568, %v4571
      %v4573 = vrot.slane %v4572, 4
      %v4575 = vshll.u32 %v2938, 16
      %v4577 = vrot.slane %v4575, 5
      %v4578 = vsel %vm2949, %v4573, %v4577
      %v4579 = vshrl.u32 %v2938, 16
      %v4581 = vrot.slane %v4579, 4
      %v4582 = vor.u32 %v4581, %v4577
      %v4583 = vrot.slane %v4582, 4
      %v4585 = vshll.u32 %v2939, 16
      %v4587 = vrot.slane %v4585, 5
      %v4588 = vsel %vm2949, %v4583, %v4587
      %s4589 = scalar_lea.vmem %s2, 64
      %v4590 = vld [vmem:[%s4589] sm:$0xf]
      %v4591 = vld [vmem:[%s4589 + $0x4] sm:$0xf]
      %v4592 = vld [vmem:[%s4589 + $0x8] sm:$0xf]
      %v4593 = vld [vmem:[%s4589 + $0xc] sm:$0xf]
      %v4594 = vunpack.c.l.b16 %v4578
      %v4595 = vunpack.c.l.b16 %v4588
      %v4596 = vpack.c.b16 %v4595, %v4594
      %v4601 = vunpack.c.l.b16 %v4590
      %v4602 = vunpack.c.l.b16 %v4591
      %v4603 = vunpack.c.l.b16 %v4592
      %v4604 = vunpack.c.l.b16 %v4593
      %v4605 = vpack.c.b16 %v4602, %v4601
      %v4606 = vpack.c.b16 %v4604, %v4603
      %v4610 = vsel %vm3399, %v4596, 0
      %4612 = vmatprep.subr.bf16.mxu0 0
      %4613 = vmatpush1.bf16.msra.mxu0 %v4605
      %4614 = vmatprep.subr.bf16.mxu0 0
      %4615 = vmatpush1.bf16.msra.mxu0 %v4606
      %4616 = vmatprep.subr.bf16.mxu0 0
      %4617 = vmatpush1.bf16.msra.mxu0 0
      %4618 = vmatprep.subr.bf16.mxu0 0
      %4619 = vmatpush1.bf16.msra.mxu0 0
      %4620 = vmatprep.subr.bf16.mxu0 0
      %4621 = vmatpush1.bf16.msra.mxu0 0
      %4622 = vmatprep.subr.bf16.mxu0 0
      %4623 = vmatpush1.bf16.msra.mxu0 0
      %4624 = vmatprep.subr.bf16.mxu0 0
      %4625 = vmatpush1.bf16.msra.mxu0 0
      %4626 = vmatprep.subr.bf16.mxu0 0
      %4627 = vmatpush1.bf16.msra.mxu0 0
      %4628 = vmatprep.subr.bf16.mxu0 0
      %4629 = vmatpush1.bf16.msra.mxu0 0
      %4630 = vmatprep.subr.bf16.mxu0 0
      %4631 = vmatpush1.bf16.msra.mxu0 0
      %4632 = vmatprep.subr.bf16.mxu0 0
      %4633 = vmatpush1.bf16.msra.mxu0 0
      %4634 = vmatprep.subr.bf16.mxu0 0
      %4635 = vmatpush1.bf16.msra.mxu0 0
      %4636 = vmatprep.subr.bf16.mxu0 0
      %4637 = vmatpush1.bf16.msra.mxu0 0
      %4638 = vmatprep.subr.bf16.mxu0 0
      %4639 = vmatpush1.bf16.msra.mxu0 0
      %4640 = vmatprep.subr.bf16.mxu0 0
      %4641 = vmatpush1.bf16.msra.mxu0 0
      %4642 = vmatprep.subr.bf16.mxu0 0
      %4643 = vmatpush1.bf16.msra.mxu0 0
      %4644 = vmatprep.mubr.bf16.mxu0 0
      %4645 = vmatmul.mubr.bf16.gmra.mrb[0].mxu0 %v3404
      %v4646 = vpop.f32.mrb[0].mxu0
      %v4647 = vadd.f32 0.0, %v4646
      %v4648 = vpop.f32.mrb[0].mxu0
      %v4649 = vpop.f32.mrb[0].mxu0
      %v4650 = vadd.f32 0.0, %v4649
      %v4651 = vpop.f32.mrb[0].mxu0
      %4652 = vmatprep.mubr.bf16.mxu0 0
      %4653 = vmatmul.mubr.bf16.gmra.mrb[0].mxu0 %v3407
      %v4654 = vpop.f32.mrb[0].mxu0
      %v4655 = vadd.f32 0.0, %v4654
      %v4656 = vpop.f32.mrb[0].mxu0
      %v4657 = vpop.f32.mrb[0].mxu0
      %v4658 = vadd.f32 0.0, %v4657
      %v4659 = vpop.f32.mrb[0].mxu0
      %4660 = vmatprep.mubr.bf16.mxu0 0
      %4661 = vmatmul.mubr.bf16.gmra.mrb[0].mxu0 %v3410
      %v4662 = vpop.f32.mrb[0].mxu0
      %v4663 = vadd.f32 0.0, %v4662
      %v4664 = vpop.f32.mrb[0].mxu0
      %v4665 = vpop.f32.mrb[0].mxu0
      %v4666 = vadd.f32 0.0, %v4665
      %v4667 = vpop.f32.mrb[0].mxu0
      %4668 = vmatprep.mubr.bf16.mxu0 0
      %4669 = vmatmul.mubr.bf16.gmra.mrb[0].mxu0 %v3413
      %v4670 = vpop.f32.mrb[0].mxu0
      %v4671 = vadd.f32 0.0, %v4670
      %v4672 = vpop.f32.mrb[0].mxu0
      %v4673 = vpop.f32.mrb[0].mxu0
      %v4674 = vadd.f32 0.0, %v4673
      %v4675 = vpop.f32.mrb[0].mxu0
      %4676 = vmatprep.mubr.bf16.mxu0 0
      %4677 = vmatmul.mubr.bf16.gmra.mrb[0].mxu0 %v3416
      %v4678 = vpop.f32.mrb[0].mxu0
      %v4679 = vadd.f32 0.0, %v4678
      %v4680 = vpop.f32.mrb[0].mxu0
      %v4681 = vpop.f32.mrb[0].mxu0
      %v4682 = vadd.f32 0.0, %v4681
      %v4683 = vpop.f32.mrb[0].mxu0
      %4684 = vmatprep.mubr.bf16.mxu0 0
      %4685 = vmatmul.mubr.bf16.gmra.mrb[0].mxu0 %v3419
      %v4686 = vpop.f32.mrb[0].mxu0
      %v4687 = vadd.f32 0.0, %v4686
      %v4688 = vpop.f32.mrb[0].mxu0
      %v4689 = vpop.f32.mrb[0].mxu0
      %v4690 = vadd.f32 0.0, %v4689
      %v4691 = vpop.f32.mrb[0].mxu0
      %4692 = vmatprep.mubr.bf16.mxu0 0
      %4693 = vmatmul.mubr.bf16.gmra.mrb[0].mxu0 %v3422
      %v4694 = vpop.f32.mrb[0].mxu0
      %v4695 = vadd.f32 0.0, %v4694
      %v4696 = vpop.f32.mrb[0].mxu0
      %v4697 = vpop.f32.mrb[0].mxu0
      %v4698 = vadd.f32 0.0, %v4697
      %v4699 = vpop.f32.mrb[0].mxu0
      %4700 = vmatprep.mubr.bf16.mxu0 0
      %4701 = vmatmul.mubr.bf16.gmra.mrb[0].mxu0 %v3425
      %v4702 = vpop.f32.mrb[0].mxu0
      %v4703 = vadd.f32 0.0, %v4702
      %v4704 = vpop.f32.mrb[0].mxu0
      %v4705 = vpop.f32.mrb[0].mxu0
      %v4706 = vadd.f32 0.0, %v4705
      %v4707 = vpop.f32.mrb[0].mxu0
      %4708 = vmatprep.mubr.bf16.mxu0 0
      %4709 = vmatmul.mubr.bf16.gmra.mrb[0].mxu0 %v3428
      %v4710 = vpop.f32.mrb[0].mxu0
      %v4711 = vadd.f32 0.0, %v4710
      %v4712 = vpop.f32.mrb[0].mxu0
      %v4713 = vpop.f32.mrb[0].mxu0
      %v4714 = vadd.f32 0.0, %v4713
      %v4715 = vpop.f32.mrb[0].mxu0
      %4716 = vmatprep.mubr.bf16.mxu0 0
      %4717 = vmatmul.mubr.bf16.gmra.mrb[0].mxu0 %v3431
      %v4718 = vpop.f32.mrb[0].mxu0
      %v4719 = vadd.f32 0.0, %v4718
      %v4720 = vpop.f32.mrb[0].mxu0
      %v4721 = vpop.f32.mrb[0].mxu0
      %v4722 = vadd.f32 0.0, %v4721
      %v4723 = vpop.f32.mrb[0].mxu0
      %4724 = vmatprep.mubr.bf16.mxu0 0
      %4725 = vmatmul.mubr.bf16.gmra.mrb[0].mxu0 %v3434
      %v4726 = vpop.f32.mrb[0].mxu0
      %v4727 = vadd.f32 0.0, %v4726
      %v4728 = vpop.f32.mrb[0].mxu0
      %v4729 = vpop.f32.mrb[0].mxu0
      %v4730 = vadd.f32 0.0, %v4729
      %v4731 = vpop.f32.mrb[0].mxu0
      %4732 = vmatprep.mubr.bf16.mxu0 0
      %4733 = vmatmul.mubr.bf16.gmra.mrb[0].mxu0 %v3437
      %v4734 = vpop.f32.mrb[0].mxu0
      %v4735 = vadd.f32 0.0, %v4734
      %v4736 = vpop.f32.mrb[0].mxu0
      %v4737 = vpop.f32.mrb[0].mxu0
      %v4738 = vadd.f32 0.0, %v4737
      %v4739 = vpop.f32.mrb[0].mxu0
      %4740 = vmatprep.mubr.bf16.mxu0 0
      %4741 = vmatmul.mubr.bf16.gmra.mrb[0].mxu0 %v3440
      %v4742 = vpop.f32.mrb[0].mxu0
      %v4743 = vadd.f32 0.0, %v4742
      %v4744 = vpop.f32.mrb[0].mxu0
      %v4745 = vpop.f32.mrb[0].mxu0
      %v4746 = vadd.f32 0.0, %v4745
      %v4747 = vpop.f32.mrb[0].mxu0
      %4748 = vmatprep.mubr.bf16.mxu0 0
      %4749 = vmatmul.mubr.bf16.gmra.mrb[0].mxu0 %v3443
      %v4750 = vpop.f32.mrb[0].mxu0
      %v4751 = vadd.f32 0.0, %v4750
      %v4752 = vpop.f32.mrb[0].mxu0
      %v4753 = vpop.f32.mrb[0].mxu0
      %v4754 = vadd.f32 0.0, %v4753
      %v4755 = vpop.f32.mrb[0].mxu0
      %4756 = vmatprep.mubr.bf16.mxu0 0
      %4757 = vmatmul.mubr.bf16.gmra.mrb[0].mxu0 %v3446
      %v4758 = vpop.f32.mrb[0].mxu0
      %v4759 = vadd.f32 0.0, %v4758
      %v4760 = vpop.f32.mrb[0].mxu0
      %v4761 = vpop.f32.mrb[0].mxu0
      %v4762 = vadd.f32 0.0, %v4761
      %v4763 = vpop.f32.mrb[0].mxu0
      %4764 = vmatprep.mubr.bf16.mxu0 0
      %4765 = vmatmul.mubr.bf16.gmra.mrb[0].mxu0 %v4610
      %v4766 = vpop.f32.mrb[0].mxu0
      %v4767 = vadd.f32 0.0, %v4766
      %v4768 = vpop.f32.mrb[0].mxu0
      %v4769 = vpop.f32.mrb[0].mxu0
      %v4770 = vadd.f32 0.0, %v4769
      %v4771 = vpop.f32.mrb[0].mxu0
      %4772 = vdwg.mxu0
      %v4773 = vadd.f32 %v4533, %v4647
      %v4774 = vadd.f32 %v4534, %v4650
      %v4775 = vadd.f32 %v4535, %v4655
      %v4776 = vadd.f32 %v4536, %v4658
      %v4777 = vadd.f32 %v4537, %v4663
      %v4778 = vadd.f32 %v4538, %v4666
      %v4779 = vadd.f32 %v4539, %v4671
      %v4780 = vadd.f32 %v4540, %v4674
      %v4781 = vadd.f32 %v4541, %v4679
      %v4782 = vadd.f32 %v4542, %v4682
      %v4783 = vadd.f32 %v4543, %v4687
      %v4784 = vadd.f32 %v4544, %v4690
      %v4785 = vadd.f32 %v4545, %v4695
      %v4786 = vadd.f32 %v4546, %v4698
      %v4787 = vadd.f32 %v4547, %v4703
      %v4788 = vadd.f32 %v4548, %v4706
      %v4789 = vadd.f32 %v4549, %v4711
      %v4790 = vadd.f32 %v4550, %v4714
      %v4791 = vadd.f32 %v4551, %v4719
      %v4792 = vadd.f32 %v4552, %v4722
      %v4793 = vadd.f32 %v4553, %v4727
      %v4794 = vadd.f32 %v4554, %v4730
      %v4795 = vadd.f32 %v4555, %v4735
      %v4796 = vadd.f32 %v4556, %v4738
      %v4797 = vadd.f32 %v4557, %v4743
      %v4798 = vadd.f32 %v4558, %v4746
      %v4799 = vadd.f32 %v4559, %v4751
      %v4800 = vadd.f32 %v4560, %v4754
      %v4801 = vadd.f32 %v4561, %v4759
      %v4802 = vadd.f32 %v4562, %v4762
      %v4803 = vadd.f32 %v4563, %v4767
      %v4804 = vadd.f32 %v4564, %v4770
      %v4806 = vrot.slane %v2937, 5
      %v4807 = vrot.slane %v4806, 4
      %v4808 = vrot.slane %v2938, 5
      %v4809 = vsel %vm3928, %v4807, %v4808
      %v4810 = vrot.slane %v4808, 4
      %v4811 = vrot.slane %v2939, 5
      %v4812 = vsel %vm3928, %v4810, %v4811
      %s4813 = scalar_lea.vmem %s2, 80
      %v4814 = vld [vmem:[%s4813] sm:$0xf]
      %v4815 = vld [vmem:[%s4813 + $0x4] sm:$0xf]
      %v4816 = vld [vmem:[%s4813 + $0x8] sm:$0xf]
      %v4817 = vld [vmem:[%s4813 + $0xc] sm:$0xf]
      %v4818 = vunpack.c.l.b16 %v4809
      %v4819 = vunpack.c.l.b16 %v4812
      %v4820 = vpack.c.b16 %v4819, %v4818
      %v4825 = vunpack.c.l.b16 %v4814
      %v4826 = vunpack.c.l.b16 %v4815
      %v4827 = vunpack.c.l.b16 %v4816
      %v4828 = vunpack.c.l.b16 %v4817
      %v4829 = vpack.c.b16 %v4826, %v4825
      %v4830 = vpack.c.b16 %v4828, %v4827
      %v4834 = vsel %vm3399, %v4820, 0
      %4836 = vmatprep.subr.bf16.mxu0 0
      %4837 = vmatpush1.bf16.msra.mxu0 %v4829
      %4838 = vmatprep.subr.bf16.mxu0 0
      %4839 = vmatpush1.bf16.msra.mxu0 %v4830
      %4840 = vmatprep.subr.bf16.mxu0 0
      %4841 = vmatpush1.bf16.msra.mxu0 0
      %4842 = vmatprep.subr.bf16.mxu0 0
      %4843 = vmatpush1.bf16.msra.mxu0 0
      %4844 = vmatprep.subr.bf16.mxu0 0
      %4845 = vmatpush1.bf16.msra.mxu0 0
      %4846 = vmatprep.subr.bf16.mxu0 0
      %4847 = vmatpush1.bf16.msra.mxu0 0
      %4848 = vmatprep.subr.bf16.mxu0 0
      %4849 = vmatpush1.bf16.msra.mxu0 0
      %4850 = vmatprep.subr.bf16.mxu0 0
      %4851 = vmatpush1.bf16.msra.mxu0 0
      %4852 = vmatprep.subr.bf16.mxu0 0
      %4853 = vmatpush1.bf16.msra.mxu0 0
      %4854 = vmatprep.subr.bf16.mxu0 0
      %4855 = vmatpush1.bf16.msra.mxu0 0
      %4856 = vmatprep.subr.bf16.mxu0 0
      %4857 = vmatpush1.bf16.msra.mxu0 0
      %4858 = vmatprep.subr.bf16.mxu0 0
      %4859 = vmatpush1.bf16.msra.mxu0 0
      %4860 = vmatprep.subr.bf16.mxu0 0
      %4861 = vmatpush1.bf16.msra.mxu0 0
      %4862 = vmatprep.subr.bf16.mxu0 0
      %4863 = vmatpush1.bf16.msra.mxu0 0
      %4864 = vmatprep.subr.bf16.mxu0 0
      %4865 = vmatpush1.bf16.msra.mxu0 0
      %4866 = vmatprep.subr.bf16.mxu0 0
      %4867 = vmatpush1.bf16.msra.mxu0 0
      %4868 = vmatprep.mubr.bf16.mxu0 0
      %4869 = vmatmul.mubr.bf16.gmra.mrb[0].mxu0 %v4110
      %v4870 = vpop.f32.mrb[0].mxu0
      %v4871 = vadd.f32 0.0, %v4870
      %v4872 = vpop.f32.mrb[0].mxu0
      %v4873 = vpop.f32.mrb[0].mxu0
      %v4874 = vadd.f32 0.0, %v4873
      %v4875 = vpop.f32.mrb[0].mxu0
      %4876 = vmatprep.mubr.bf16.mxu0 0
      %4877 = vmatmul.mubr.bf16.gmra.mrb[0].mxu0 %v4113
      %v4878 = vpop.f32.mrb[0].mxu0
      %v4879 = vadd.f32 0.0, %v4878
      %v4880 = vpop.f32.mrb[0].mxu0
      %v4881 = vpop.f32.mrb[0].mxu0
      %v4882 = vadd.f32 0.0, %v4881
      %v4883 = vpop.f32.mrb[0].mxu0
      %4884 = vmatprep.mubr.bf16.mxu0 0
      %4885 = vmatmul.mubr.bf16.gmra.mrb[0].mxu0 %v4116
      %v4886 = vpop.f32.mrb[0].mxu0
      %v4887 = vadd.f32 0.0, %v4886
      %v4888 = vpop.f32.mrb[0].mxu0
      %v4889 = vpop.f32.mrb[0].mxu0
      %v4890 = vadd.f32 0.0, %v4889
      %v4891 = vpop.f32.mrb[0].mxu0
      %4892 = vmatprep.mubr.bf16.mxu0 0
      %4893 = vmatmul.mubr.bf16.gmra.mrb[0].mxu0 %v4119
      %v4894 = vpop.f32.mrb[0].mxu0
      %v4895 = vadd.f32 0.0, %v4894
      %v4896 = vpop.f32.mrb[0].mxu0
      %v4897 = vpop.f32.mrb[0].mxu0
      %v4898 = vadd.f32 0.0, %v4897
      %v4899 = vpop.f32.mrb[0].mxu0
      %4900 = vmatprep.mubr.bf16.mxu0 0
      %4901 = vmatmul.mubr.bf16.gmra.mrb[0].mxu0 %v4122
      %v4902 = vpop.f32.mrb[0].mxu0
      %v4903 = vadd.f32 0.0, %v4902
      %v4904 = vpop.f32.mrb[0].mxu0
      %v4905 = vpop.f32.mrb[0].mxu0
      %v4906 = vadd.f32 0.0, %v4905
      %v4907 = vpop.f32.mrb[0].mxu0
      %4908 = vmatprep.mubr.bf16.mxu0 0
      %4909 = vmatmul.mubr.bf16.gmra.mrb[0].mxu0 %v4125
      %v4910 = vpop.f32.mrb[0].mxu0
      %v4911 = vadd.f32 0.0, %v4910
      %v4912 = vpop.f32.mrb[0].mxu0
      %v4913 = vpop.f32.mrb[0].mxu0
      %v4914 = vadd.f32 0.0, %v4913
      %v4915 = vpop.f32.mrb[0].mxu0
      %4916 = vmatprep.mubr.bf16.mxu0 0
      %4917 = vmatmul.mubr.bf16.gmra.mrb[0].mxu0 %v4128
      %v4918 = vpop.f32.mrb[0].mxu0
      %v4919 = vadd.f32 0.0, %v4918
      %v4920 = vpop.f32.mrb[0].mxu0
      %v4921 = vpop.f32.mrb[0].mxu0
      %v4922 = vadd.f32 0.0, %v4921
      %v4923 = vpop.f32.mrb[0].mxu0
      %4924 = vmatprep.mubr.bf16.mxu0 0
      %4925 = vmatmul.mubr.bf16.gmra.mrb[0].mxu0 %v4131
      %v4926 = vpop.f32.mrb[0].mxu0
      %v4927 = vadd.f32 0.0, %v4926
      %v4928 = vpop.f32.mrb[0].mxu0
      %v4929 = vpop.f32.mrb[0].mxu0
      %v4930 = vadd.f32 0.0, %v4929
      %v4931 = vpop.f32.mrb[0].mxu0
      %4932 = vmatprep.mubr.bf16.mxu0 0
      %4933 = vmatmul.mubr.bf16.gmra.mrb[0].mxu0 %v4134
      %v4934 = vpop.f32.mrb[0].mxu0
      %v4935 = vadd.f32 0.0, %v4934
      %v4936 = vpop.f32.mrb[0].mxu0
      %v4937 = vpop.f32.mrb[0].mxu0
      %v4938 = vadd.f32 0.0, %v4937
      %v4939 = vpop.f32.mrb[0].mxu0
      %4940 = vmatprep.mubr.bf16.mxu0 0
      %4941 = vmatmul.mubr.bf16.gmra.mrb[0].mxu0 %v4137
      %v4942 = vpop.f32.mrb[0].mxu0
      %v4943 = vadd.f32 0.0, %v4942
      %v4944 = vpop.f32.mrb[0].mxu0
      %v4945 = vpop.f32.mrb[0].mxu0
      %v4946 = vadd.f32 0.0, %v4945
      %v4947 = vpop.f32.mrb[0].mxu0
      %4948 = vmatprep.mubr.bf16.mxu0 0
      %4949 = vmatmul.mubr.bf16.gmra.mrb[0].mxu0 %v4140
      %v4950 = vpop.f32.mrb[0].mxu0
      %v4951 = vadd.f32 0.0, %v4950
      %v4952 = vpop.f32.mrb[0].mxu0
      %v4953 = vpop.f32.mrb[0].mxu0
      %v4954 = vadd.f32 0.0, %v4953
      %v4955 = vpop.f32.mrb[0].mxu0
      %4956 = vmatprep.mubr.bf16.mxu0 0
      %4957 = vmatmul.mubr.bf16.gmra.mrb[0].mxu0 %v4143
      %v4958 = vpop.f32.mrb[0].mxu0
      %v4959 = vadd.f32 0.0, %v4958
      %v4960 = vpop.f32.mrb[0].mxu0
      %v4961 = vpop.f32.mrb[0].mxu0
      %v4962 = vadd.f32 0.0, %v4961
      %v4963 = vpop.f32.mrb[0].mxu0
      %4964 = vmatprep.mubr.bf16.mxu0 0
      %4965 = vmatmul.mubr.bf16.gmra.mrb[0].mxu0 %v4146
      %v4966 = vpop.f32.mrb[0].mxu0
      %v4967 = vadd.f32 0.0, %v4966
      %v4968 = vpop.f32.mrb[0].mxu0
      %v4969 = vpop.f32.mrb[0].mxu0
      %v4970 = vadd.f32 0.0, %v4969
      %v4971 = vpop.f32.mrb[0].mxu0
      %4972 = vmatprep.mubr.bf16.mxu0 0
      %4973 = vmatmul.mubr.bf16.gmra.mrb[0].mxu0 %v4149
      %v4974 = vpop.f32.mrb[0].mxu0
      %v4975 = vadd.f32 0.0, %v4974
      %v4976 = vpop.f32.mrb[0].mxu0
      %v4977 = vpop.f32.mrb[0].mxu0
      %v4978 = vadd.f32 0.0, %v4977
      %v4979 = vpop.f32.mrb[0].mxu0
      %4980 = vmatprep.mubr.bf16.mxu0 0
      %4981 = vmatmul.mubr.bf16.gmra.mrb[0].mxu0 %v4152
      %v4982 = vpop.f32.mrb[0].mxu0
      %v4983 = vadd.f32 0.0, %v4982
      %v4984 = vpop.f32.mrb[0].mxu0
      %v4985 = vpop.f32.mrb[0].mxu0
      %v4986 = vadd.f32 0.0, %v4985
      %v4987 = vpop.f32.mrb[0].mxu0
      %4988 = vmatprep.mubr.bf16.mxu0 0
      %4989 = vmatmul.mubr.bf16.gmra.mrb[0].mxu0 %v4834
      %v4990 = vpop.f32.mrb[0].mxu0
      %v4991 = vadd.f32 0.0, %v4990
      %v4992 = vpop.f32.mrb[0].mxu0
      %v4993 = vpop.f32.mrb[0].mxu0
      %v4994 = vadd.f32 0.0, %v4993
      %v4995 = vpop.f32.mrb[0].mxu0
      %4996 = vdwg.mxu0
      %v4997 = vadd.f32 %v4773, %v4871
      %v4998 = vadd.f32 %v4774, %v4874
      %v4999 = vadd.f32 %v4775, %v4879
      %v5000 = vadd.f32 %v4776, %v4882
      %v5001 = vadd.f32 %v4777, %v4887
      %v5002 = vadd.f32 %v4778, %v4890
      %v5003 = vadd.f32 %v4779, %v4895
      %v5004 = vadd.f32 %v4780, %v4898
      %v5005 = vadd.f32 %v4781, %v4903
      %v5006 = vadd.f32 %v4782, %v4906
      %v5007 = vadd.f32 %v4783, %v4911
      %v5008 = vadd.f32 %v4784, %v4914
      %v5009 = vadd.f32 %v4785, %v4919
      %v5010 = vadd.f32 %v4786, %v4922
      %v5011 = vadd.f32 %v4787, %v4927
      %v5012 = vadd.f32 %v4788, %v4930
      %v5013 = vadd.f32 %v4789, %v4935
      %v5014 = vadd.f32 %v4790, %v4938
      %v5015 = vadd.f32 %v4791, %v4943
      %v5016 = vadd.f32 %v4792, %v4946
      %v5017 = vadd.f32 %v4793, %v4951
      %v5018 = vadd.f32 %v4794, %v4954
      %v5019 = vadd.f32 %v4795, %v4959
      %v5020 = vadd.f32 %v4796, %v4962
      %v5021 = vadd.f32 %v4797, %v4967
      %v5022 = vadd.f32 %v4798, %v4970
      %v5023 = vadd.f32 %v4799, %v4975
      %v5024 = vadd.f32 %v4800, %v4978
      %v5025 = vadd.f32 %v4801, %v4983
      %v5026 = vadd.f32 %v4802, %v4986
      %v5027 = vadd.f32 %v4803, %v4991
      %v5028 = vadd.f32 %v4804, %v4994
      %s5029 = scalar_lea.vmem %s2, 96
      %v5030 = vld [vmem:[%s5029] sm:$0xf]
      %v5031 = vld [vmem:[%s5029 + $0x4] sm:$0xf]
      %v5032 = vld [vmem:[%s5029 + $0x8] sm:$0xf]
      %v5033 = vld [vmem:[%s5029 + $0xc] sm:$0xf]
      %v5036 = vunpack.c.l.b16 %v2940
      %v5037 = vunpack.c.l.b16 %v2941
      %v5038 = vpack.c.b16 %v5037, %v5036
      %v5043 = vunpack.c.l.b16 %v5030
      %v5044 = vunpack.c.l.b16 %v5031
      %v5045 = vunpack.c.l.b16 %v5032
      %v5046 = vunpack.c.l.b16 %v5033
      %v5047 = vpack.c.b16 %v5044, %v5043
      %v5048 = vpack.c.b16 %v5046, %v5045
      %v5052 = vsel %vm3399, %v5038, 0
      %5054 = vmatprep.subr.bf16.mxu0 0
      %5055 = vmatpush1.bf16.msra.mxu0 %v5047
      %5056 = vmatprep.subr.bf16.mxu0 0
      %5057 = vmatpush1.bf16.msra.mxu0 %v5048
      %5058 = vmatprep.subr.bf16.mxu0 0
      %5059 = vmatpush1.bf16.msra.mxu0 0
      %5060 = vmatprep.subr.bf16.mxu0 0
      %5061 = vmatpush1.bf16.msra.mxu0 0
      %5062 = vmatprep.subr.bf16.mxu0 0
      %5063 = vmatpush1.bf16.msra.mxu0 0
      %5064 = vmatprep.subr.bf16.mxu0 0
      %5065 = vmatpush1.bf16.msra.mxu0 0
      %5066 = vmatprep.subr.bf16.mxu0 0
      %5067 = vmatpush1.bf16.msra.mxu0 0
      %5068 = vmatprep.subr.bf16.mxu0 0
      %5069 = vmatpush1.bf16.msra.mxu0 0
      %5070 = vmatprep.subr.bf16.mxu0 0
      %5071 = vmatpush1.bf16.msra.mxu0 0
      %5072 = vmatprep.subr.bf16.mxu0 0
      %5073 = vmatpush1.bf16.msra.mxu0 0
      %5074 = vmatprep.subr.bf16.mxu0 0
      %5075 = vmatpush1.bf16.msra.mxu0 0
      %5076 = vmatprep.subr.bf16.mxu0 0
      %5077 = vmatpush1.bf16.msra.mxu0 0
      %5078 = vmatprep.subr.bf16.mxu0 0
      %5079 = vmatpush1.bf16.msra.mxu0 0
      %5080 = vmatprep.subr.bf16.mxu0 0
      %5081 = vmatpush1.bf16.msra.mxu0 0
      %5082 = vmatprep.subr.bf16.mxu0 0
      %5083 = vmatpush1.bf16.msra.mxu0 0
      %5084 = vmatprep.subr.bf16.mxu0 0
      %5085 = vmatpush1.bf16.msra.mxu0 0
      %5086 = vmatprep.mubr.bf16.mxu0 0
      %5087 = vmatmul.mubr.bf16.gmra.mrb[0].mxu0 %v3708
      %v5088 = vpop.f32.mrb[0].mxu0
      %v5089 = vadd.f32 0.0, %v5088
      %v5090 = vpop.f32.mrb[0].mxu0
      %v5091 = vpop.f32.mrb[0].mxu0
      %v5092 = vadd.f32 0.0, %v5091
      %v5093 = vpop.f32.mrb[0].mxu0
      %5094 = vmatprep.mubr.bf16.mxu0 0
      %5095 = vmatmul.mubr.bf16.gmra.mrb[0].mxu0 %v3711
      %v5096 = vpop.f32.mrb[0].mxu0
      %v5097 = vadd.f32 0.0, %v5096
      %v5098 = vpop.f32.mrb[0].mxu0
      %v5099 = vpop.f32.mrb[0].mxu0
      %v5100 = vadd.f32 0.0, %v5099
      %v5101 = vpop.f32.mrb[0].mxu0
      %5102 = vmatprep.mubr.bf16.mxu0 0
      %5103 = vmatmul.mubr.bf16.gmra.mrb[0].mxu0 %v3714
      %v5104 = vpop.f32.mrb[0].mxu0
      %v5105 = vadd.f32 0.0, %v5104
      %v5106 = vpop.f32.mrb[0].mxu0
      %v5107 = vpop.f32.mrb[0].mxu0
      %v5108 = vadd.f32 0.0, %v5107
      %v5109 = vpop.f32.mrb[0].mxu0
      %5110 = vmatprep.mubr.bf16.mxu0 0
      %5111 = vmatmul.mubr.bf16.gmra.mrb[0].mxu0 %v3717
      %v5112 = vpop.f32.mrb[0].mxu0
      %v5113 = vadd.f32 0.0, %v5112
      %v5114 = vpop.f32.mrb[0].mxu0
      %v5115 = vpop.f32.mrb[0].mxu0
      %v5116 = vadd.f32 0.0, %v5115
      %v5117 = vpop.f32.mrb[0].mxu0
      %5118 = vmatprep.mubr.bf16.mxu0 0
      %5119 = vmatmul.mubr.bf16.gmra.mrb[0].mxu0 %v3720
      %v5120 = vpop.f32.mrb[0].mxu0
      %v5121 = vadd.f32 0.0, %v5120
      %v5122 = vpop.f32.mrb[0].mxu0
      %v5123 = vpop.f32.mrb[0].mxu0
      %v5124 = vadd.f32 0.0, %v5123
      %v5125 = vpop.f32.mrb[0].mxu0
      %5126 = vmatprep.mubr.bf16.mxu0 0
      %5127 = vmatmul.mubr.bf16.gmra.mrb[0].mxu0 %v3723
      %v5128 = vpop.f32.mrb[0].mxu0
      %v5129 = vadd.f32 0.0, %v5128
      %v5130 = vpop.f32.mrb[0].mxu0
      %v5131 = vpop.f32.mrb[0].mxu0
      %v5132 = vadd.f32 0.0, %v5131
      %v5133 = vpop.f32.mrb[0].mxu0
      %5134 = vmatprep.mubr.bf16.mxu0 0
      %5135 = vmatmul.mubr.bf16.gmra.mrb[0].mxu0 %v3726
      %v5136 = vpop.f32.mrb[0].mxu0
      %v5137 = vadd.f32 0.0, %v5136
      %v5138 = vpop.f32.mrb[0].mxu0
      %v5139 = vpop.f32.mrb[0].mxu0
      %v5140 = vadd.f32 0.0, %v5139
      %v5141 = vpop.f32.mrb[0].mxu0
      %5142 = vmatprep.mubr.bf16.mxu0 0
      %5143 = vmatmul.mubr.bf16.gmra.mrb[0].mxu0 %v3729
      %v5144 = vpop.f32.mrb[0].mxu0
      %v5145 = vadd.f32 0.0, %v5144
      %v5146 = vpop.f32.mrb[0].mxu0
      %v5147 = vpop.f32.mrb[0].mxu0
      %v5148 = vadd.f32 0.0, %v5147
      %v5149 = vpop.f32.mrb[0].mxu0
      %5150 = vmatprep.mubr.bf16.mxu0 0
      %5151 = vmatmul.mubr.bf16.gmra.mrb[0].mxu0 %v3732
      %v5152 = vpop.f32.mrb[0].mxu0
      %v5153 = vadd.f32 0.0, %v5152
      %v5154 = vpop.f32.mrb[0].mxu0
      %v5155 = vpop.f32.mrb[0].mxu0
      %v5156 = vadd.f32 0.0, %v5155
      %v5157 = vpop.f32.mrb[0].mxu0
      %5158 = vmatprep.mubr.bf16.mxu0 0
      %5159 = vmatmul.mubr.bf16.gmra.mrb[0].mxu0 %v3735
      %v5160 = vpop.f32.mrb[0].mxu0
      %v5161 = vadd.f32 0.0, %v5160
      %v5162 = vpop.f32.mrb[0].mxu0
      %v5163 = vpop.f32.mrb[0].mxu0
      %v5164 = vadd.f32 0.0, %v5163
      %v5165 = vpop.f32.mrb[0].mxu0
      %5166 = vmatprep.mubr.bf16.mxu0 0
      %5167 = vmatmul.mubr.bf16.gmra.mrb[0].mxu0 %v3738
      %v5168 = vpop.f32.mrb[0].mxu0
      %v5169 = vadd.f32 0.0, %v5168
      %v5170 = vpop.f32.mrb[0].mxu0
      %v5171 = vpop.f32.mrb[0].mxu0
      %v5172 = vadd.f32 0.0, %v5171
      %v5173 = vpop.f32.mrb[0].mxu0
      %5174 = vmatprep.mubr.bf16.mxu0 0
      %5175 = vmatmul.mubr.bf16.gmra.mrb[0].mxu0 %v3741
      %v5176 = vpop.f32.mrb[0].mxu0
      %v5177 = vadd.f32 0.0, %v5176
      %v5178 = vpop.f32.mrb[0].mxu0
      %v5179 = vpop.f32.mrb[0].mxu0
      %v5180 = vadd.f32 0.0, %v5179
      %v5181 = vpop.f32.mrb[0].mxu0
      %5182 = vmatprep.mubr.bf16.mxu0 0
      %5183 = vmatmul.mubr.bf16.gmra.mrb[0].mxu0 %v3744
      %v5184 = vpop.f32.mrb[0].mxu0
      %v5185 = vadd.f32 0.0, %v5184
      %v5186 = vpop.f32.mrb[0].mxu0
      %v5187 = vpop.f32.mrb[0].mxu0
      %v5188 = vadd.f32 0.0, %v5187
      %v5189 = vpop.f32.mrb[0].mxu0
      %5190 = vmatprep.mubr.bf16.mxu0 0
      %5191 = vmatmul.mubr.bf16.gmra.mrb[0].mxu0 %v3747
      %v5192 = vpop.f32.mrb[0].mxu0
      %v5193 = vadd.f32 0.0, %v5192
      %v5194 = vpop.f32.mrb[0].mxu0
      %v5195 = vpop.f32.mrb[0].mxu0
      %v5196 = vadd.f32 0.0, %v5195
      %v5197 = vpop.f32.mrb[0].mxu0
      %5198 = vmatprep.mubr.bf16.mxu0 0
      %5199 = vmatmul.mubr.bf16.gmra.mrb[0].mxu0 %v4370
      %v5200 = vpop.f32.mrb[0].mxu0
      %v5201 = vadd.f32 0.0, %v5200
      %v5202 = vpop.f32.mrb[0].mxu0
      %v5203 = vpop.f32.mrb[0].mxu0
      %v5204 = vadd.f32 0.0, %v5203
      %v5205 = vpop.f32.mrb[0].mxu0
      %5206 = vmatprep.mubr.bf16.mxu0 0
      %5207 = vmatmul.mubr.bf16.gmra.mrb[0].mxu0 %v5052
      %v5208 = vpop.f32.mrb[0].mxu0
      %v5209 = vadd.f32 0.0, %v5208
      %v5210 = vpop.f32.mrb[0].mxu0
      %v5211 = vpop.f32.mrb[0].mxu0
      %v5212 = vadd.f32 0.0, %v5211
      %v5213 = vpop.f32.mrb[0].mxu0
      %5214 = vdwg.mxu0
      %v5215 = vadd.f32 %v4997, %v5089
      %v5216 = vadd.f32 %v4998, %v5092
      %v5217 = vadd.f32 %v4999, %v5097
      %v5218 = vadd.f32 %v5000, %v5100
      %v5219 = vadd.f32 %v5001, %v5105
      %v5220 = vadd.f32 %v5002, %v5108
      %v5221 = vadd.f32 %v5003, %v5113
      %v5222 = vadd.f32 %v5004, %v5116
      %v5223 = vadd.f32 %v5005, %v5121
      %v5224 = vadd.f32 %v5006, %v5124
      %v5225 = vadd.f32 %v5007, %v5129
      %v5226 = vadd.f32 %v5008, %v5132
      %v5227 = vadd.f32 %v5009, %v5137
      %v5228 = vadd.f32 %v5010, %v5140
      %v5229 = vadd.f32 %v5011, %v5145
      %v5230 = vadd.f32 %v5012, %v5148
      %v5231 = vadd.f32 %v5013, %v5153
      %v5232 = vadd.f32 %v5014, %v5156
      %v5233 = vadd.f32 %v5015, %v5161
      %v5234 = vadd.f32 %v5016, %v5164
      %v5235 = vadd.f32 %v5017, %v5169
      %v5236 = vadd.f32 %v5018, %v5172
      %v5237 = vadd.f32 %v5019, %v5177
      %v5238 = vadd.f32 %v5020, %v5180
      %v5239 = vadd.f32 %v5021, %v5185
      %v5240 = vadd.f32 %v5022, %v5188
      %v5241 = vadd.f32 %v5023, %v5193
      %v5242 = vadd.f32 %v5024, %v5196
      %v5243 = vadd.f32 %v5025, %v5201
      %v5244 = vadd.f32 %v5026, %v5204
      %v5245 = vadd.f32 %v5027, %v5209
      %v5246 = vadd.f32 %v5028, %v5212
      %v5248 = vshrl.u32 %v2940, 16
      %v5250 = vrot.slane %v5248, 4
      %v5251 = vshll.u32 %v2940, 16
      %v5253 = vrot.slane %v5251, 5
      %v5254 = vor.u32 %v5250, %v5253
      %v5255 = vrot.slane %v5254, 4
      %v5257 = vshll.u32 %v2941, 16
      %v5259 = vrot.slane %v5257, 5
      %v5260 = vsel %vm2949, %v5255, %v5259
      %v5261 = vshrl.u32 %v2941, 16
      %v5263 = vrot.slane %v5261, 4
      %v5264 = vor.u32 %v5263, %v5259
      %v5265 = vrot.slane %v5264, 4
      %v5267 = vshll.u32 %v2942, 16
      %v5269 = vrot.slane %v5267, 5
      %v5270 = vsel %vm2949, %v5265, %v5269
      %s5271 = scalar_lea.vmem %s2, 112
      %v5272 = vld [vmem:[%s5271] sm:$0xf]
      %v5273 = vld [vmem:[%s5271 + $0x4] sm:$0xf]
      %v5274 = vld [vmem:[%s5271 + $0x8] sm:$0xf]
      %v5275 = vld [vmem:[%s5271 + $0xc] sm:$0xf]
      %v5276 = vunpack.c.l.b16 %v5260
      %v5277 = vunpack.c.l.b16 %v5270
      %v5278 = vpack.c.b16 %v5277, %v5276
      %v5283 = vunpack.c.l.b16 %v5272
      %v5284 = vunpack.c.l.b16 %v5273
      %v5285 = vunpack.c.l.b16 %v5274
      %v5286 = vunpack.c.l.b16 %v5275
      %v5287 = vpack.c.b16 %v5284, %v5283
      %v5288 = vpack.c.b16 %v5286, %v5285
      %v5292 = vsel %vm3399, %v5278, 0
      %5294 = vmatprep.subr.bf16.mxu0 0
      %5295 = vmatpush1.bf16.msra.mxu0 %v5287
      %5296 = vmatprep.subr.bf16.mxu0 0
      %5297 = vmatpush1.bf16.msra.mxu0 %v5288
      %5298 = vmatprep.subr.bf16.mxu0 0
      %5299 = vmatpush1.bf16.msra.mxu0 0
      %5300 = vmatprep.subr.bf16.mxu0 0
      %5301 = vmatpush1.bf16.msra.mxu0 0
      %5302 = vmatprep.subr.bf16.mxu0 0
      %5303 = vmatpush1.bf16.msra.mxu0 0
      %5304 = vmatprep.subr.bf16.mxu0 0
      %5305 = vmatpush1.bf16.msra.mxu0 0
      %5306 = vmatprep.subr.bf16.mxu0 0
      %5307 = vmatpush1.bf16.msra.mxu0 0
      %5308 = vmatprep.subr.bf16.mxu0 0
      %5309 = vmatpush1.bf16.msra.mxu0 0
      %5310 = vmatprep.subr.bf16.mxu0 0
      %5311 = vmatpush1.bf16.msra.mxu0 0
      %5312 = vmatprep.subr.bf16.mxu0 0
      %5313 = vmatpush1.bf16.msra.mxu0 0
      %5314 = vmatprep.subr.bf16.mxu0 0
      %5315 = vmatpush1.bf16.msra.mxu0 0
      %5316 = vmatprep.subr.bf16.mxu0 0
      %5317 = vmatpush1.bf16.msra.mxu0 0
      %5318 = vmatprep.subr.bf16.mxu0 0
      %5319 = vmatpush1.bf16.msra.mxu0 0
      %5320 = vmatprep.subr.bf16.mxu0 0
      %5321 = vmatpush1.bf16.msra.mxu0 0
      %5322 = vmatprep.subr.bf16.mxu0 0
      %5323 = vmatpush1.bf16.msra.mxu0 0
      %5324 = vmatprep.subr.bf16.mxu0 0
      %5325 = vmatpush1.bf16.msra.mxu0 0
      %5326 = vmatprep.mubr.bf16.mxu0 0
      %5327 = vmatmul.mubr.bf16.gmra.mrb[0].mxu0 %v3407
      %v5328 = vpop.f32.mrb[0].mxu0
      %v5329 = vadd.f32 0.0, %v5328
      %v5330 = vpop.f32.mrb[0].mxu0
      %v5331 = vpop.f32.mrb[0].mxu0
      %v5332 = vadd.f32 0.0, %v5331
      %v5333 = vpop.f32.mrb[0].mxu0
      %5334 = vmatprep.mubr.bf16.mxu0 0
      %5335 = vmatmul.mubr.bf16.gmra.mrb[0].mxu0 %v3410
      %v5336 = vpop.f32.mrb[0].mxu0
      %v5337 = vadd.f32 0.0, %v5336
      %v5338 = vpop.f32.mrb[0].mxu0
      %v5339 = vpop.f32.mrb[0].mxu0
      %v5340 = vadd.f32 0.0, %v5339
      %v5341 = vpop.f32.mrb[0].mxu0
      %5342 = vmatprep.mubr.bf16.mxu0 0
      %5343 = vmatmul.mubr.bf16.gmra.mrb[0].mxu0 %v3413
      %v5344 = vpop.f32.mrb[0].mxu0
      %v5345 = vadd.f32 0.0, %v5344
      %v5346 = vpop.f32.mrb[0].mxu0
      %v5347 = vpop.f32.mrb[0].mxu0
      %v5348 = vadd.f32 0.0, %v5347
      %v5349 = vpop.f32.mrb[0].mxu0
      %5350 = vmatprep.mubr.bf16.mxu0 0
      %5351 = vmatmul.mubr.bf16.gmra.mrb[0].mxu0 %v3416
      %v5352 = vpop.f32.mrb[0].mxu0
      %v5353 = vadd.f32 0.0, %v5352
      %v5354 = vpop.f32.mrb[0].mxu0
      %v5355 = vpop.f32.mrb[0].mxu0
      %v5356 = vadd.f32 0.0, %v5355
      %v5357 = vpop.f32.mrb[0].mxu0
      %5358 = vmatprep.mubr.bf16.mxu0 0
      %5359 = vmatmul.mubr.bf16.gmra.mrb[0].mxu0 %v3419
      %v5360 = vpop.f32.mrb[0].mxu0
      %v5361 = vadd.f32 0.0, %v5360
      %v5362 = vpop.f32.mrb[0].mxu0
      %v5363 = vpop.f32.mrb[0].mxu0
      %v5364 = vadd.f32 0.0, %v5363
      %v5365 = vpop.f32.mrb[0].mxu0
      %5366 = vmatprep.mubr.bf16.mxu0 0
      %5367 = vmatmul.mubr.bf16.gmra.mrb[0].mxu0 %v3422
      %v5368 = vpop.f32.mrb[0].mxu0
      %v5369 = vadd.f32 0.0, %v5368
      %v5370 = vpop.f32.mrb[0].mxu0
      %v5371 = vpop.f32.mrb[0].mxu0
      %v5372 = vadd.f32 0.0, %v5371
      %v5373 = vpop.f32.mrb[0].mxu0
      %5374 = vmatprep.mubr.bf16.mxu0 0
      %5375 = vmatmul.mubr.bf16.gmra.mrb[0].mxu0 %v3425
      %v5376 = vpop.f32.mrb[0].mxu0
      %v5377 = vadd.f32 0.0, %v5376
      %v5378 = vpop.f32.mrb[0].mxu0
      %v5379 = vpop.f32.mrb[0].mxu0
      %v5380 = vadd.f32 0.0, %v5379
      %v5381 = vpop.f32.mrb[0].mxu0
      %5382 = vmatprep.mubr.bf16.mxu0 0
      %5383 = vmatmul.mubr.bf16.gmra.mrb[0].mxu0 %v3428
      %v5384 = vpop.f32.mrb[0].mxu0
      %v5385 = vadd.f32 0.0, %v5384
      %v5386 = vpop.f32.mrb[0].mxu0
      %v5387 = vpop.f32.mrb[0].mxu0
      %v5388 = vadd.f32 0.0, %v5387
      %v5389 = vpop.f32.mrb[0].mxu0
      %5390 = vmatprep.mubr.bf16.mxu0 0
      %5391 = vmatmul.mubr.bf16.gmra.mrb[0].mxu0 %v3431
      %v5392 = vpop.f32.mrb[0].mxu0
      %v5393 = vadd.f32 0.0, %v5392
      %v5394 = vpop.f32.mrb[0].mxu0
      %v5395 = vpop.f32.mrb[0].mxu0
      %v5396 = vadd.f32 0.0, %v5395
      %v5397 = vpop.f32.mrb[0].mxu0
      %5398 = vmatprep.mubr.bf16.mxu0 0
      %5399 = vmatmul.mubr.bf16.gmra.mrb[0].mxu0 %v3434
      %v5400 = vpop.f32.mrb[0].mxu0
      %v5401 = vadd.f32 0.0, %v5400
      %v5402 = vpop.f32.mrb[0].mxu0
      %v5403 = vpop.f32.mrb[0].mxu0
      %v5404 = vadd.f32 0.0, %v5403
      %v5405 = vpop.f32.mrb[0].mxu0
      %5406 = vmatprep.mubr.bf16.mxu0 0
      %5407 = vmatmul.mubr.bf16.gmra.mrb[0].mxu0 %v3437
      %v5408 = vpop.f32.mrb[0].mxu0
      %v5409 = vadd.f32 0.0, %v5408
      %v5410 = vpop.f32.mrb[0].mxu0
      %v5411 = vpop.f32.mrb[0].mxu0
      %v5412 = vadd.f32 0.0, %v5411
      %v5413 = vpop.f32.mrb[0].mxu0
      %5414 = vmatprep.mubr.bf16.mxu0 0
      %5415 = vmatmul.mubr.bf16.gmra.mrb[0].mxu0 %v3440
      %v5416 = vpop.f32.mrb[0].mxu0
      %v5417 = vadd.f32 0.0, %v5416
      %v5418 = vpop.f32.mrb[0].mxu0
      %v5419 = vpop.f32.mrb[0].mxu0
      %v5420 = vadd.f32 0.0, %v5419
      %v5421 = vpop.f32.mrb[0].mxu0
      %5422 = vmatprep.mubr.bf16.mxu0 0
      %5423 = vmatmul.mubr.bf16.gmra.mrb[0].mxu0 %v3443
      %v5424 = vpop.f32.mrb[0].mxu0
      %v5425 = vadd.f32 0.0, %v5424
      %v5426 = vpop.f32.mrb[0].mxu0
      %v5427 = vpop.f32.mrb[0].mxu0
      %v5428 = vadd.f32 0.0, %v5427
      %v5429 = vpop.f32.mrb[0].mxu0
      %5430 = vmatprep.mubr.bf16.mxu0 0
      %5431 = vmatmul.mubr.bf16.gmra.mrb[0].mxu0 %v3446
      %v5432 = vpop.f32.mrb[0].mxu0
      %v5433 = vadd.f32 0.0, %v5432
      %v5434 = vpop.f32.mrb[0].mxu0
      %v5435 = vpop.f32.mrb[0].mxu0
      %v5436 = vadd.f32 0.0, %v5435
      %v5437 = vpop.f32.mrb[0].mxu0
      %5438 = vmatprep.mubr.bf16.mxu0 0
      %5439 = vmatmul.mubr.bf16.gmra.mrb[0].mxu0 %v4610
      %v5440 = vpop.f32.mrb[0].mxu0
      %v5441 = vadd.f32 0.0, %v5440
      %v5442 = vpop.f32.mrb[0].mxu0
      %v5443 = vpop.f32.mrb[0].mxu0
      %v5444 = vadd.f32 0.0, %v5443
      %v5445 = vpop.f32.mrb[0].mxu0
      %5446 = vmatprep.mubr.bf16.mxu0 0
      %5447 = vmatmul.mubr.bf16.gmra.mrb[0].mxu0 %v5292
      %v5448 = vpop.f32.mrb[0].mxu0
      %v5449 = vadd.f32 0.0, %v5448
      %v5450 = vpop.f32.mrb[0].mxu0
      %v5451 = vpop.f32.mrb[0].mxu0
      %v5452 = vadd.f32 0.0, %v5451
      %v5453 = vpop.f32.mrb[0].mxu0
      %5454 = vdwg.mxu0
      %v5455 = vadd.f32 %v5215, %v5329
      %v5456 = vadd.f32 %v5216, %v5332
      %v5457 = vadd.f32 %v5217, %v5337
      %v5458 = vadd.f32 %v5218, %v5340
      %v5459 = vadd.f32 %v5219, %v5345
      %v5460 = vadd.f32 %v5220, %v5348
      %v5461 = vadd.f32 %v5221, %v5353
      %v5462 = vadd.f32 %v5222, %v5356
      %v5463 = vadd.f32 %v5223, %v5361
      %v5464 = vadd.f32 %v5224, %v5364
      %v5465 = vadd.f32 %v5225, %v5369
      %v5466 = vadd.f32 %v5226, %v5372
      %v5467 = vadd.f32 %v5227, %v5377
      %v5468 = vadd.f32 %v5228, %v5380
      %v5469 = vadd.f32 %v5229, %v5385
      %v5470 = vadd.f32 %v5230, %v5388
      %v5471 = vadd.f32 %v5231, %v5393
      %v5472 = vadd.f32 %v5232, %v5396
      %v5473 = vadd.f32 %v5233, %v5401
      %v5474 = vadd.f32 %v5234, %v5404
      %v5475 = vadd.f32 %v5235, %v5409
      %v5476 = vadd.f32 %v5236, %v5412
      %v5477 = vadd.f32 %v5237, %v5417
      %v5478 = vadd.f32 %v5238, %v5420
      %v5479 = vadd.f32 %v5239, %v5425
      %v5480 = vadd.f32 %v5240, %v5428
      %v5481 = vadd.f32 %v5241, %v5433
      %v5482 = vadd.f32 %v5242, %v5436
      %v5483 = vadd.f32 %v5243, %v5441
      %v5484 = vadd.f32 %v5244, %v5444
      %v5485 = vadd.f32 %v5245, %v5449
      %v5486 = vadd.f32 %v5246, %v5452
      %v5488 = vrot.slane %v2940, 5
      %v5489 = vrot.slane %v5488, 4
      %v5490 = vrot.slane %v2941, 5
      %v5491 = vsel %vm3928, %v5489, %v5490
      %v5492 = vrot.slane %v5490, 4
      %v5493 = vrot.slane %v2942, 5
      %v5494 = vsel %vm3928, %v5492, %v5493
      %s5495 = scalar_lea.vmem %s2, 128
      %v5496 = vld [vmem:[%s5495] sm:$0xf]
      %v5497 = vld [vmem:[%s5495 + $0x4] sm:$0xf]
      %v5498 = vld [vmem:[%s5495 + $0x8] sm:$0xf]
      %v5499 = vld [vmem:[%s5495 + $0xc] sm:$0xf]
      %v5500 = vunpack.c.l.b16 %v5491
      %v5501 = vunpack.c.l.b16 %v5494
      %v5502 = vpack.c.b16 %v5501, %v5500
      %v5507 = vunpack.c.l.b16 %v5496
      %v5508 = vunpack.c.l.b16 %v5497
      %v5509 = vunpack.c.l.b16 %v5498
      %v5510 = vunpack.c.l.b16 %v5499
      %v5511 = vpack.c.b16 %v5508, %v5507
      %v5512 = vpack.c.b16 %v5510, %v5509
      %v5516 = vsel %vm3399, %v5502, 0
      %5518 = vmatprep.subr.bf16.mxu0 0
      %5519 = vmatpush1.bf16.msra.mxu0 %v5511
      %5520 = vmatprep.subr.bf16.mxu0 0
      %5521 = vmatpush1.bf16.msra.mxu0 %v5512
      %5522 = vmatprep.subr.bf16.mxu0 0
      %5523 = vmatpush1.bf16.msra.mxu0 0
      %5524 = vmatprep.subr.bf16.mxu0 0
      %5525 = vmatpush1.bf16.msra.mxu0 0
      %5526 = vmatprep.subr.bf16.mxu0 0
      %5527 = vmatpush1.bf16.msra.mxu0 0
      %5528 = vmatprep.subr.bf16.mxu0 0
      %5529 = vmatpush1.bf16.msra.mxu0 0
      %5530 = vmatprep.subr.bf16.mxu0 0
      %5531 = vmatpush1.bf16.msra.mxu0 0
      %5532 = vmatprep.subr.bf16.mxu0 0
      %5533 = vmatpush1.bf16.msra.mxu0 0
      %5534 = vmatprep.subr.bf16.mxu0 0
      %5535 = vmatpush1.bf16.msra.mxu0 0
      %5536 = vmatprep.subr.bf16.mxu0 0
      %5537 = vmatpush1.bf16.msra.mxu0 0
      %5538 = vmatprep.subr.bf16.mxu0 0
      %5539 = vmatpush1.bf16.msra.mxu0 0
      %5540 = vmatprep.subr.bf16.mxu0 0
      %5541 = vmatpush1.bf16.msra.mxu0 0
      %5542 = vmatprep.subr.bf16.mxu0 0
      %5543 = vmatpush1.bf16.msra.mxu0 0
      %5544 = vmatprep.subr.bf16.mxu0 0
      %5545 = vmatpush1.bf16.msra.mxu0 0
      %5546 = vmatprep.subr.bf16.mxu0 0
      %5547 = vmatpush1.bf16.msra.mxu0 0
      %5548 = vmatprep.subr.bf16.mxu0 0
      %5549 = vmatpush1.bf16.msra.mxu0 0
      %5550 = vmatprep.mubr.bf16.mxu0 0
      %5551 = vmatmul.mubr.bf16.gmra.mrb[0].mxu0 %v4113
      %v5552 = vpop.f32.mrb[0].mxu0
      %v5553 = vadd.f32 0.0, %v5552
      %v5554 = vpop.f32.mrb[0].mxu0
      %v5555 = vpop.f32.mrb[0].mxu0
      %v5556 = vadd.f32 0.0, %v5555
      %v5557 = vpop.f32.mrb[0].mxu0
      %5558 = vmatprep.mubr.bf16.mxu0 0
      %5559 = vmatmul.mubr.bf16.gmra.mrb[0].mxu0 %v4116
      %v5560 = vpop.f32.mrb[0].mxu0
      %v5561 = vadd.f32 0.0, %v5560
      %v5562 = vpop.f32.mrb[0].mxu0
      %v5563 = vpop.f32.mrb[0].mxu0
      %v5564 = vadd.f32 0.0, %v5563
      %v5565 = vpop.f32.mrb[0].mxu0
      %5566 = vmatprep.mubr.bf16.mxu0 0
      %5567 = vmatmul.mubr.bf16.gmra.mrb[0].mxu0 %v4119
      %v5568 = vpop.f32.mrb[0].mxu0
      %v5569 = vadd.f32 0.0, %v5568
      %v5570 = vpop.f32.mrb[0].mxu0
      %v5571 = vpop.f32.mrb[0].mxu0
      %v5572 = vadd.f32 0.0, %v5571
      %v5573 = vpop.f32.mrb[0].mxu0
      %5574 = vmatprep.mubr.bf16.mxu0 0
      %5575 = vmatmul.mubr.bf16.gmra.mrb[0].mxu0 %v4122
      %v5576 = vpop.f32.mrb[0].mxu0
      %v5577 = vadd.f32 0.0, %v5576
      %v5578 = vpop.f32.mrb[0].mxu0
      %v5579 = vpop.f32.mrb[0].mxu0
      %v5580 = vadd.f32 0.0, %v5579
      %v5581 = vpop.f32.mrb[0].mxu0
      %5582 = vmatprep.mubr.bf16.mxu0 0
      %5583 = vmatmul.mubr.bf16.gmra.mrb[0].mxu0 %v4125
      %v5584 = vpop.f32.mrb[0].mxu0
      %v5585 = vadd.f32 0.0, %v5584
      %v5586 = vpop.f32.mrb[0].mxu0
      %v5587 = vpop.f32.mrb[0].mxu0
      %v5588 = vadd.f32 0.0, %v5587
      %v5589 = vpop.f32.mrb[0].mxu0
      %5590 = vmatprep.mubr.bf16.mxu0 0
      %5591 = vmatmul.mubr.bf16.gmra.mrb[0].mxu0 %v4128
      %v5592 = vpop.f32.mrb[0].mxu0
      %v5593 = vadd.f32 0.0, %v5592
      %v5594 = vpop.f32.mrb[0].mxu0
      %v5595 = vpop.f32.mrb[0].mxu0
      %v5596 = vadd.f32 0.0, %v5595
      %v5597 = vpop.f32.mrb[0].mxu0
      %5598 = vmatprep.mubr.bf16.mxu0 0
      %5599 = vmatmul.mubr.bf16.gmra.mrb[0].mxu0 %v4131
      %v5600 = vpop.f32.mrb[0].mxu0
      %v5601 = vadd.f32 0.0, %v5600
      %v5602 = vpop.f32.mrb[0].mxu0
      %v5603 = vpop.f32.mrb[0].mxu0
      %v5604 = vadd.f32 0.0, %v5603
      %v5605 = vpop.f32.mrb[0].mxu0
      %5606 = vmatprep.mubr.bf16.mxu0 0
      %5607 = vmatmul.mubr.bf16.gmra.mrb[0].mxu0 %v4134
      %v5608 = vpop.f32.mrb[0].mxu0
      %v5609 = vadd.f32 0.0, %v5608
      %v5610 = vpop.f32.mrb[0].mxu0
      %v5611 = vpop.f32.mrb[0].mxu0
      %v5612 = vadd.f32 0.0, %v5611
      %v5613 = vpop.f32.mrb[0].mxu0
      %5614 = vmatprep.mubr.bf16.mxu0 0
      %5615 = vmatmul.mubr.bf16.gmra.mrb[0].mxu0 %v4137
      %v5616 = vpop.f32.mrb[0].mxu0
      %v5617 = vadd.f32 0.0, %v5616
      %v5618 = vpop.f32.mrb[0].mxu0
      %v5619 = vpop.f32.mrb[0].mxu0
      %v5620 = vadd.f32 0.0, %v5619
      %v5621 = vpop.f32.mrb[0].mxu0
      %5622 = vmatprep.mubr.bf16.mxu0 0
      %5623 = vmatmul.mubr.bf16.gmra.mrb[0].mxu0 %v4140
      %v5624 = vpop.f32.mrb[0].mxu0
      %v5625 = vadd.f32 0.0, %v5624
      %v5626 = vpop.f32.mrb[0].mxu0
      %v5627 = vpop.f32.mrb[0].mxu0
      %v5628 = vadd.f32 0.0, %v5627
      %v5629 = vpop.f32.mrb[0].mxu0
      %5630 = vmatprep.mubr.bf16.mxu0 0
      %5631 = vmatmul.mubr.bf16.gmra.mrb[0].mxu0 %v4143
      %v5632 = vpop.f32.mrb[0].mxu0
      %v5633 = vadd.f32 0.0, %v5632
      %v5634 = vpop.f32.mrb[0].mxu0
      %v5635 = vpop.f32.mrb[0].mxu0
      %v5636 = vadd.f32 0.0, %v5635
      %v5637 = vpop.f32.mrb[0].mxu0
      %5638 = vmatprep.mubr.bf16.mxu0 0
      %5639 = vmatmul.mubr.bf16.gmra.mrb[0].mxu0 %v4146
      %v5640 = vpop.f32.mrb[0].mxu0
      %v5641 = vadd.f32 0.0, %v5640
      %v5642 = vpop.f32.mrb[0].mxu0
      %v5643 = vpop.f32.mrb[0].mxu0
      %v5644 = vadd.f32 0.0, %v5643
      %v5645 = vpop.f32.mrb[0].mxu0
      %5646 = vmatprep.mubr.bf16.mxu0 0
      %5647 = vmatmul.mubr.bf16.gmra.mrb[0].mxu0 %v4149
      %v5648 = vpop.f32.mrb[0].mxu0
      %v5649 = vadd.f32 0.0, %v5648
      %v5650 = vpop.f32.mrb[0].mxu0
      %v5651 = vpop.f32.mrb[0].mxu0
      %v5652 = vadd.f32 0.0, %v5651
      %v5653 = vpop.f32.mrb[0].mxu0
      %5654 = vmatprep.mubr.bf16.mxu0 0
      %5655 = vmatmul.mubr.bf16.gmra.mrb[0].mxu0 %v4152
      %v5656 = vpop.f32.mrb[0].mxu0
      %v5657 = vadd.f32 0.0, %v5656
      %v5658 = vpop.f32.mrb[0].mxu0
      %v5659 = vpop.f32.mrb[0].mxu0
      %v5660 = vadd.f32 0.0, %v5659
      %v5661 = vpop.f32.mrb[0].mxu0
      %5662 = vmatprep.mubr.bf16.mxu0 0
      %5663 = vmatmul.mubr.bf16.gmra.mrb[0].mxu0 %v4834
      %v5664 = vpop.f32.mrb[0].mxu0
      %v5665 = vadd.f32 0.0, %v5664
      %v5666 = vpop.f32.mrb[0].mxu0
      %v5667 = vpop.f32.mrb[0].mxu0
      %v5668 = vadd.f32 0.0, %v5667
      %v5669 = vpop.f32.mrb[0].mxu0
      %5670 = vmatprep.mubr.bf16.mxu0 0
      %5671 = vmatmul.mubr.bf16.gmra.mrb[0].mxu0 %v5516
      %v5672 = vpop.f32.mrb[0].mxu0
      %v5673 = vadd.f32 0.0, %v5672
      %v5674 = vpop.f32.mrb[0].mxu0
      %v5675 = vpop.f32.mrb[0].mxu0
      %v5676 = vadd.f32 0.0, %v5675
      %v5677 = vpop.f32.mrb[0].mxu0
      %5678 = vdwg.mxu0
      %v5679 = vadd.f32 %v5455, %v5553
      %v5680 = vadd.f32 %v5456, %v5556
      %v5681 = vadd.f32 %v5457, %v5561
      %v5682 = vadd.f32 %v5458, %v5564
      %v5683 = vadd.f32 %v5459, %v5569
      %v5684 = vadd.f32 %v5460, %v5572
      %v5685 = vadd.f32 %v5461, %v5577
      %v5686 = vadd.f32 %v5462, %v5580
      %v5687 = vadd.f32 %v5463, %v5585
      %v5688 = vadd.f32 %v5464, %v5588
      %v5689 = vadd.f32 %v5465, %v5593
      %v5690 = vadd.f32 %v5466, %v5596
      %v5691 = vadd.f32 %v5467, %v5601
      %v5692 = vadd.f32 %v5468, %v5604
      %v5693 = vadd.f32 %v5469, %v5609
      %v5694 = vadd.f32 %v5470, %v5612
      %v5695 = vadd.f32 %v5471, %v5617
      %v5696 = vadd.f32 %v5472, %v5620
      %v5697 = vadd.f32 %v5473, %v5625
      %v5698 = vadd.f32 %v5474, %v5628
      %v5699 = vadd.f32 %v5475, %v5633
      %v5700 = vadd.f32 %v5476, %v5636
      %v5701 = vadd.f32 %v5477, %v5641
      %v5702 = vadd.f32 %v5478, %v5644
      %v5703 = vadd.f32 %v5479, %v5649
      %v5704 = vadd.f32 %v5480, %v5652
      %v5705 = vadd.f32 %v5481, %v5657
      %v5706 = vadd.f32 %v5482, %v5660
      %v5707 = vadd.f32 %v5483, %v5665
      %v5708 = vadd.f32 %v5484, %v5668
      %v5709 = vadd.f32 %v5485, %v5673
      %v5710 = vadd.f32 %v5486, %v5676
      %v5711 = vld [vmem:[%s3] sm:$0x1]
      %v5713 = vlaneseq
      %v5714 = vshrl.u32 %v5713, 7
      %v5715 = vsub.s32 0, %v5714
      %v5716 = vrot.slane %v5711, %v5715
      %v5718 = vadd.f32 %v5679, %v5716
      %v5719 = vadd.f32 %v5680, %v5716
      %v5720 = vadd.f32 %v5681, %v5716
      %v5721 = vadd.f32 %v5682, %v5716
      %v5722 = vadd.f32 %v5683, %v5716
      %v5723 = vadd.f32 %v5684, %v5716
      %v5724 = vadd.f32 %v5685, %v5716
      %v5725 = vadd.f32 %v5686, %v5716
      %v5726 = vadd.f32 %v5687, %v5716
      %v5727 = vadd.f32 %v5688, %v5716
      %v5728 = vadd.f32 %v5689, %v5716
      %v5729 = vadd.f32 %v5690, %v5716
      %v5730 = vadd.f32 %v5691, %v5716
      %v5731 = vadd.f32 %v5692, %v5716
      %v5732 = vadd.f32 %v5693, %v5716
      %v5733 = vadd.f32 %v5694, %v5716
      %v5734 = vadd.f32 %v5695, %v5716
      %v5735 = vadd.f32 %v5696, %v5716
      %v5736 = vadd.f32 %v5697, %v5716
      %v5737 = vadd.f32 %v5698, %v5716
      %v5738 = vadd.f32 %v5699, %v5716
      %v5739 = vadd.f32 %v5700, %v5716
      %v5740 = vadd.f32 %v5701, %v5716
      %v5741 = vadd.f32 %v5702, %v5716
      %v5742 = vadd.f32 %v5703, %v5716
      %v5743 = vadd.f32 %v5704, %v5716
      %v5744 = vadd.f32 %v5705, %v5716
      %v5745 = vadd.f32 %v5706, %v5716
      %v5746 = vadd.f32 %v5707, %v5716
      %v5747 = vadd.f32 %v5708, %v5716
      %v5748 = vadd.f32 %v5709, %v5716
      %v5749 = vadd.f32 %v5710, %v5716
      %v5750 = vmax.f32 %v5718, 0.0
      %v5751 = vmax.f32 %v5719, 0.0
      %v5752 = vmax.f32 %v5720, 0.0
      %v5753 = vmax.f32 %v5721, 0.0
      %v5754 = vmax.f32 %v5722, 0.0
      %v5755 = vmax.f32 %v5723, 0.0
      %v5756 = vmax.f32 %v5724, 0.0
      %v5757 = vmax.f32 %v5725, 0.0
      %v5758 = vmax.f32 %v5726, 0.0
      %v5759 = vmax.f32 %v5727, 0.0
      %v5760 = vmax.f32 %v5728, 0.0
      %v5761 = vmax.f32 %v5729, 0.0
      %v5762 = vmax.f32 %v5730, 0.0
      %v5763 = vmax.f32 %v5731, 0.0
      %v5764 = vmax.f32 %v5732, 0.0
      %v5765 = vmax.f32 %v5733, 0.0
      %v5766 = vmax.f32 %v5734, 0.0
      %v5767 = vmax.f32 %v5735, 0.0
      %v5768 = vmax.f32 %v5736, 0.0
      %v5769 = vmax.f32 %v5737, 0.0
      %v5770 = vmax.f32 %v5738, 0.0
      %v5771 = vmax.f32 %v5739, 0.0
      %v5772 = vmax.f32 %v5740, 0.0
      %v5773 = vmax.f32 %v5741, 0.0
      %v5774 = vmax.f32 %v5742, 0.0
      %v5775 = vmax.f32 %v5743, 0.0
      %v5776 = vmax.f32 %v5744, 0.0
      %v5777 = vmax.f32 %v5745, 0.0
      %v5778 = vmax.f32 %v5746, 0.0
      %v5779 = vmax.f32 %v5747, 0.0
      %v5780 = vmax.f32 %v5748, 0.0
      %v5781 = vmax.f32 %v5749, 0.0
      %v5782 = vpack.c.bf16 %v5751, %v5750
      %v5783 = vpack.c.bf16 %v5753, %v5752
      %v5784 = vpack.c.bf16 %v5755, %v5754
      %v5785 = vpack.c.bf16 %v5757, %v5756
      %v5786 = vpack.c.bf16 %v5759, %v5758
      %v5787 = vpack.c.bf16 %v5761, %v5760
      %v5788 = vpack.c.bf16 %v5763, %v5762
      %v5789 = vpack.c.bf16 %v5765, %v5764
      %v5790 = vpack.c.bf16 %v5767, %v5766
      %v5791 = vpack.c.bf16 %v5769, %v5768
      %v5792 = vpack.c.bf16 %v5771, %v5770
      %v5793 = vpack.c.bf16 %v5773, %v5772
      %v5794 = vpack.c.bf16 %v5775, %v5774
      %v5795 = vpack.c.bf16 %v5777, %v5776
      %v5796 = vpack.c.bf16 %v5779, %v5778
      %v5797 = vpack.c.bf16 %v5781, %v5780
      %v5814 = vunpack.c.l.b16 %v5782
      %v5815 = vunpack.c.h.b16 %v5782
      %v5816 = vunpack.c.l.b16 %v5783
      %v5817 = vunpack.c.h.b16 %v5783
      %v5818 = vunpack.c.l.b16 %v5784
      %v5819 = vunpack.c.h.b16 %v5784
      %v5820 = vunpack.c.l.b16 %v5785
      %v5821 = vunpack.c.h.b16 %v5785
      %v5822 = vunpack.c.l.b16 %v5786
      %v5823 = vunpack.c.h.b16 %v5786
      %v5824 = vunpack.c.l.b16 %v5787
      %v5825 = vunpack.c.h.b16 %v5787
      %v5826 = vunpack.c.l.b16 %v5788
      %v5827 = vunpack.c.h.b16 %v5788
      %v5828 = vunpack.c.l.b16 %v5789
      %v5829 = vunpack.c.h.b16 %v5789
      %v5830 = vunpack.c.l.b16 %v5790
      %v5831 = vunpack.c.h.b16 %v5790
      %v5832 = vunpack.c.l.b16 %v5791
      %v5833 = vunpack.c.h.b16 %v5791
      %v5834 = vunpack.c.l.b16 %v5792
      %v5835 = vunpack.c.h.b16 %v5792
      %v5836 = vunpack.c.l.b16 %v5793
      %v5837 = vunpack.c.h.b16 %v5793
      %v5838 = vunpack.c.l.b16 %v5794
      %v5839 = vunpack.c.h.b16 %v5794
      %v5840 = vunpack.c.l.b16 %v5795
      %v5841 = vunpack.c.h.b16 %v5795
      %v5842 = vunpack.c.l.b16 %v5796
      %v5843 = vunpack.c.h.b16 %v5796
      %v5844 = vunpack.c.l.b16 %v5797
      %v5845 = vunpack.c.h.b16 %v5797
      %v5846 = vpack.c.b16 %v5814, %v5814
      %v5847 = vpack.c.b16 %v5815, %v5815
      %v5848 = vpack.c.b16 %v5816, %v5816
      %v5849 = vpack.c.b16 %v5817, %v5817
      %v5850 = vpack.c.b16 %v5818, %v5818
      %v5851 = vpack.c.b16 %v5819, %v5819
      %v5852 = vpack.c.b16 %v5820, %v5820
      %v5853 = vpack.c.b16 %v5821, %v5821
      %v5854 = vpack.c.b16 %v5822, %v5822
      %v5855 = vpack.c.b16 %v5823, %v5823
      %v5856 = vpack.c.b16 %v5824, %v5824
      %v5857 = vpack.c.b16 %v5825, %v5825
      %v5858 = vpack.c.b16 %v5826, %v5826
      %v5859 = vpack.c.b16 %v5827, %v5827
      %v5860 = vpack.c.b16 %v5828, %v5828
      %v5861 = vpack.c.b16 %v5829, %v5829
      %v5862 = vpack.c.b16 %v5830, %v5830
      %v5863 = vpack.c.b16 %v5831, %v5831
      %v5864 = vpack.c.b16 %v5832, %v5832
      %v5865 = vpack.c.b16 %v5833, %v5833
      %v5866 = vpack.c.b16 %v5834, %v5834
      %v5867 = vpack.c.b16 %v5835, %v5835
      %v5868 = vpack.c.b16 %v5836, %v5836
      %v5869 = vpack.c.b16 %v5837, %v5837
      %v5870 = vpack.c.b16 %v5838, %v5838
      %v5871 = vpack.c.b16 %v5839, %v5839
      %v5872 = vpack.c.b16 %v5840, %v5840
      %v5873 = vpack.c.b16 %v5841, %v5841
      %v5874 = vpack.c.b16 %v5842, %v5842
      %v5875 = vpack.c.b16 %v5843, %v5843
      %v5876 = vpack.c.b16 %v5844, %v5844
      %v5877 = vpack.c.b16 %v5845, %v5845
      %v5879 = vshrl.u32 %v5846, 16
      %v5881 = vrot.slane %v5879, 7
      %v5882 = vshll.u32 %v5846, 16
      %v5884 = vor.u32 %v5881, %v5882
      %v5885 = vrot.slane %v5881, 4
      %v5887 = vshrl.u32 %v5847, 16
      %v5889 = vrot.slane %v5887, 7
      %v5890 = vshll.u32 %v5847, 16
      %v5892 = vor.u32 %v5889, %v5890
      %v5893 = vsel %vm2146, %v5885, %v5892
      %v5894 = vrot.slane %v5889, 4
      %v5896 = vshrl.u32 %v5848, 16
      %v5898 = vrot.slane %v5896, 7
      %v5899 = vshll.u32 %v5848, 16
      %v5901 = vor.u32 %v5898, %v5899
      %v5902 = vrot.slane %v5898, 4
      %v5904 = vshrl.u32 %v5849, 16
      %v5906 = vrot.slane %v5904, 7
      %v5907 = vshll.u32 %v5849, 16
      %v5909 = vor.u32 %v5906, %v5907
      %v5910 = vsel %vm2146, %v5902, %v5909
      %v5911 = vrot.slane %v5906, 4
      %v5913 = vshrl.u32 %v5850, 16
      %v5915 = vrot.slane %v5913, 7
      %v5916 = vshll.u32 %v5850, 16
      %v5918 = vor.u32 %v5915, %v5916
      %v5919 = vrot.slane %v5915, 4
      %v5921 = vshrl.u32 %v5851, 16
      %v5923 = vrot.slane %v5921, 7
      %v5924 = vshll.u32 %v5851, 16
      %v5926 = vor.u32 %v5923, %v5924
      %v5927 = vsel %vm2146, %v5919, %v5926
      %v5928 = vrot.slane %v5923, 4
      %v5930 = vshrl.u32 %v5852, 16
      %v5932 = vrot.slane %v5930, 7
      %v5933 = vshll.u32 %v5852, 16
      %v5935 = vor.u32 %v5932, %v5933
      %v5936 = vrot.slane %v5932, 4
      %v5938 = vshrl.u32 %v5853, 16
      %v5940 = vrot.slane %v5938, 7
      %v5941 = vshll.u32 %v5853, 16
      %v5943 = vor.u32 %v5940, %v5941
      %v5944 = vsel %vm2146, %v5936, %v5943
      %v5945 = vrot.slane %v5940, 4
      %v5947 = vshrl.u32 %v5854, 16
      %v5949 = vrot.slane %v5947, 7
      %v5950 = vshll.u32 %v5854, 16
      %v5952 = vor.u32 %v5949, %v5950
      %v5953 = vrot.slane %v5949, 4
      %v5955 = vshrl.u32 %v5855, 16
      %v5957 = vrot.slane %v5955, 7
      %v5958 = vshll.u32 %v5855, 16
      %v5960 = vor.u32 %v5957, %v5958
      %v5961 = vsel %vm2146, %v5953, %v5960
      %v5962 = vrot.slane %v5957, 4
      %v5964 = vshrl.u32 %v5856, 16
      %v5966 = vrot.slane %v5964, 7
      %v5967 = vshll.u32 %v5856, 16
      %v5969 = vor.u32 %v5966, %v5967
      %v5970 = vrot.slane %v5966, 4
      %v5972 = vshrl.u32 %v5857, 16
      %v5974 = vrot.slane %v5972, 7
      %v5975 = vshll.u32 %v5857, 16
      %v5977 = vor.u32 %v5974, %v5975
      %v5978 = vsel %vm2146, %v5970, %v5977
      %v5979 = vrot.slane %v5974, 4
      %v5981 = vshrl.u32 %v5858, 16
      %v5983 = vrot.slane %v5981, 7
      %v5984 = vshll.u32 %v5858, 16
      %v5986 = vor.u32 %v5983, %v5984
      %v5987 = vrot.slane %v5983, 4
      %v5989 = vshrl.u32 %v5859, 16
      %v5991 = vrot.slane %v5989, 7
      %v5992 = vshll.u32 %v5859, 16
      %v5994 = vor.u32 %v5991, %v5992
      %v5995 = vsel %vm2146, %v5987, %v5994
      %v5996 = vrot.slane %v5991, 4
      %v5998 = vshrl.u32 %v5860, 16
      %v6000 = vrot.slane %v5998, 7
      %v6001 = vshll.u32 %v5860, 16
      %v6003 = vor.u32 %v6000, %v6001
      %v6004 = vrot.slane %v6000, 4
      %v6006 = vshrl.u32 %v5861, 16
      %v6008 = vrot.slane %v6006, 7
      %v6009 = vshll.u32 %v5861, 16
      %v6011 = vor.u32 %v6008, %v6009
      %v6012 = vsel %vm2146, %v6004, %v6011
      %v6013 = vrot.slane %v6008, 4
      %v6015 = vshrl.u32 %v5862, 16
      %v6017 = vrot.slane %v6015, 7
      %v6018 = vshll.u32 %v5862, 16
      %v6020 = vor.u32 %v6017, %v6018
      %v6021 = vrot.slane %v6017, 4
      %v6023 = vshrl.u32 %v5863, 16
      %v6025 = vrot.slane %v6023, 7
      %v6026 = vshll.u32 %v5863, 16
      %v6028 = vor.u32 %v6025, %v6026
      %v6029 = vsel %vm2146, %v6021, %v6028
      %v6030 = vrot.slane %v6025, 4
      %v6032 = vshrl.u32 %v5864, 16
      %v6034 = vrot.slane %v6032, 7
      %v6035 = vshll.u32 %v5864, 16
      %v6037 = vor.u32 %v6034, %v6035
      %v6038 = vrot.slane %v6034, 4
      %v6040 = vshrl.u32 %v5865, 16
      %v6042 = vrot.slane %v6040, 7
      %v6043 = vshll.u32 %v5865, 16
      %v6045 = vor.u32 %v6042, %v6043
      %v6046 = vsel %vm2146, %v6038, %v6045
      %v6047 = vrot.slane %v6042, 4
      %v6049 = vshrl.u32 %v5866, 16
      %v6051 = vrot.slane %v6049, 7
      %v6052 = vshll.u32 %v5866, 16
      %v6054 = vor.u32 %v6051, %v6052
      %v6055 = vrot.slane %v6051, 4
      %v6057 = vshrl.u32 %v5867, 16
      %v6059 = vrot.slane %v6057, 7
      %v6060 = vshll.u32 %v5867, 16
      %v6062 = vor.u32 %v6059, %v6060
      %v6063 = vsel %vm2146, %v6055, %v6062
      %v6064 = vrot.slane %v6059, 4
      %v6066 = vshrl.u32 %v5868, 16
      %v6068 = vrot.slane %v6066, 7
      %v6069 = vshll.u32 %v5868, 16
      %v6071 = vor.u32 %v6068, %v6069
      %v6072 = vrot.slane %v6068, 4
      %v6074 = vshrl.u32 %v5869, 16
      %v6076 = vrot.slane %v6074, 7
      %v6077 = vshll.u32 %v5869, 16
      %v6079 = vor.u32 %v6076, %v6077
      %v6080 = vsel %vm2146, %v6072, %v6079
      %v6081 = vrot.slane %v6076, 4
      %v6083 = vshrl.u32 %v5870, 16
      %v6085 = vrot.slane %v6083, 7
      %v6086 = vshll.u32 %v5870, 16
      %v6088 = vor.u32 %v6085, %v6086
      %v6089 = vrot.slane %v6085, 4
      %v6091 = vshrl.u32 %v5871, 16
      %v6093 = vrot.slane %v6091, 7
      %v6094 = vshll.u32 %v5871, 16
      %v6096 = vor.u32 %v6093, %v6094
      %v6097 = vsel %vm2146, %v6089, %v6096
      %v6098 = vrot.slane %v6093, 4
      %v6100 = vshrl.u32 %v5872, 16
      %v6102 = vrot.slane %v6100, 7
      %v6103 = vshll.u32 %v5872, 16
      %v6105 = vor.u32 %v6102, %v6103
      %v6106 = vrot.slane %v6102, 4
      %v6108 = vshrl.u32 %v5873, 16
      %v6110 = vrot.slane %v6108, 7
      %v6111 = vshll.u32 %v5873, 16
      %v6113 = vor.u32 %v6110, %v6111
      %v6114 = vsel %vm2146, %v6106, %v6113
      %v6115 = vrot.slane %v6110, 4
      %v6117 = vshrl.u32 %v5874, 16
      %v6119 = vrot.slane %v6117, 7
      %v6120 = vshll.u32 %v5874, 16
      %v6122 = vor.u32 %v6119, %v6120
      %v6123 = vrot.slane %v6119, 4
      %v6125 = vshrl.u32 %v5875, 16
      %v6127 = vrot.slane %v6125, 7
      %v6128 = vshll.u32 %v5875, 16
      %v6130 = vor.u32 %v6127, %v6128
      %v6131 = vsel %vm2146, %v6123, %v6130
      %v6132 = vrot.slane %v6127, 4
      %v6134 = vshrl.u32 %v5876, 16
      %v6136 = vrot.slane %v6134, 7
      %v6137 = vshll.u32 %v5876, 16
      %v6139 = vor.u32 %v6136, %v6137
      %v6140 = vrot.slane %v6136, 4
      %v6142 = vshrl.u32 %v5877, 16
      %v6144 = vrot.slane %v6142, 7
      %v6145 = vshll.u32 %v5877, 16
      %v6147 = vor.u32 %v6144, %v6145
      %v6148 = vsel %vm2146, %v6140, %v6147
      %v6149 = vrot.slane %v6144, 4
      %s6198 = scalar_lea.vmem [#allocation4], 12
      %v6199 = vld [vmem:[%s6198] sm:$0xf]
      %v6200 = vsel %vm2776, %v5884, %v6199
      %6201 = vst [vmem:[%s6198] sm:$0xf] %v6200
      %6202 = vst.msk [vmem:[%s6198 + $0x4] sm:$0xf] %vm422, %v5893
      %v6203 = vld [vmem:[%s6198 + $0x8] sm:$0x1]
      %v6204 = vsel %vm432, %v5894, %v6203
      %6205 = vst [vmem:[%s6198 + $0x8] sm:$0x1] %v6204
      %v6206 = vld [vmem:[%s6198 + $0xc] sm:$0xf]
      %v6207 = vsel %vm2776, %v5901, %v6206
      %6208 = vst [vmem:[%s6198 + $0xc] sm:$0xf] %v6207
      %6209 = vst.msk [vmem:[%s6198 + $0x10] sm:$0xf] %vm422, %v5910
      %v6210 = vld [vmem:[%s6198 + $0x14] sm:$0x1]
      %v6211 = vsel %vm432, %v5911, %v6210
      %6212 = vst [vmem:[%s6198 + $0x14] sm:$0x1] %v6211
      %v6213 = vld [vmem:[%s6198 + $0x18] sm:$0xf]
      %v6214 = vsel %vm2776, %v5918, %v6213
      %6215 = vst [vmem:[%s6198 + $0x18] sm:$0xf] %v6214
      %6216 = vst.msk [vmem:[%s6198 + $0x1c] sm:$0xf] %vm422, %v5927
      %v6217 = vld [vmem:[%s6198 + $0x20] sm:$0x1]
      %v6218 = vsel %vm432, %v5928, %v6217
      %6219 = vst [vmem:[%s6198 + $0x20] sm:$0x1] %v6218
      %v6220 = vld [vmem:[%s6198 + $0x24] sm:$0xf]
      %v6221 = vsel %vm2776, %v5935, %v6220
      %6222 = vst [vmem:[%s6198 + $0x24] sm:$0xf] %v6221
      %6223 = vst.msk [vmem:[%s6198 + $0x28] sm:$0xf] %vm422, %v5944
      %v6224 = vld [vmem:[%s6198 + $0x2c] sm:$0x1]
      %v6225 = vsel %vm432, %v5945, %v6224
      %6226 = vst [vmem:[%s6198 + $0x2c] sm:$0x1] %v6225
      %v6227 = vld [vmem:[%s6198 + $0x30] sm:$0xf]
      %v6228 = vsel %vm2776, %v5952, %v6227
      %6229 = vst [vmem:[%s6198 + $0x30] sm:$0xf] %v6228
      %6230 = vst.msk [vmem:[%s6198 + $0x34] sm:$0xf] %vm422, %v5961
      %v6231 = vld [vmem:[%s6198 + $0x38] sm:$0x1]
      %v6232 = vsel %vm432, %v5962, %v6231
      %6233 = vst [vmem:[%s6198 + $0x38] sm:$0x1] %v6232
      %v6234 = vld [vmem:[%s6198 + $0x3c] sm:$0xf]
      %v6235 = vsel %vm2776, %v5969, %v6234
      %6236 = vst [vmem:[%s6198 + $0x3c] sm:$0xf] %v6235
      %6237 = vst.msk [vmem:[%s6198 + $0x40] sm:$0xf] %vm422, %v5978
      %v6238 = vld [vmem:[%s6198 + $0x44] sm:$0x1]
      %v6239 = vsel %vm432, %v5979, %v6238
      %6240 = vst [vmem:[%s6198 + $0x44] sm:$0x1] %v6239
      %v6241 = vld [vmem:[%s6198 + $0x48] sm:$0xf]
      %v6242 = vsel %vm2776, %v5986, %v6241
      %6243 = vst [vmem:[%s6198 + $0x48] sm:$0xf] %v6242
      %6244 = vst.msk [vmem:[%s6198 + $0x4c] sm:$0xf] %vm422, %v5995
      %v6245 = vld [vmem:[%s6198 + $0x50] sm:$0x1]
      %v6246 = vsel %vm432, %v5996, %v6245
      %6247 = vst [vmem:[%s6198 + $0x50] sm:$0x1] %v6246
      %v6248 = vld [vmem:[%s6198 + $0x54] sm:$0xf]
      %v6249 = vsel %vm2776, %v6003, %v6248
      %6250 = vst [vmem:[%s6198 + $0x54] sm:$0xf] %v6249
      %6251 = vst.msk [vmem:[%s6198 + $0x58] sm:$0xf] %vm422, %v6012
      %v6252 = vld [vmem:[%s6198 + $0x5c] sm:$0x1]
      %v6253 = vsel %vm432, %v6013, %v6252
      %6254 = vst [vmem:[%s6198 + $0x5c] sm:$0x1] %v6253
      %v6255 = vld [vmem:[%s6198 + $0x60] sm:$0xf]
      %v6256 = vsel %vm2776, %v6020, %v6255
      %6257 = vst [vmem:[%s6198 + $0x60] sm:$0xf] %v6256
      %6258 = vst.msk [vmem:[%s6198 + $0x64] sm:$0xf] %vm422, %v6029
      %v6259 = vld [vmem:[%s6198 + $0x68] sm:$0x1]
      %v6260 = vsel %vm432, %v6030, %v6259
      %6261 = vst [vmem:[%s6198 + $0x68] sm:$0x1] %v6260
      %v6262 = vld [vmem:[%s6198 + $0x6c] sm:$0xf]
      %v6263 = vsel %vm2776, %v6037, %v6262
      %6264 = vst [vmem:[%s6198 + $0x6c] sm:$0xf] %v6263
      %6265 = vst.msk [vmem:[%s6198 + $0x70] sm:$0xf] %vm422, %v6046
      %v6266 = vld [vmem:[%s6198 + $0x74] sm:$0x1]
      %v6267 = vsel %vm432, %v6047, %v6266
      %6268 = vst [vmem:[%s6198 + $0x74] sm:$0x1] %v6267
      %v6269 = vld [vmem:[%s6198 + $0x78] sm:$0xf]
      %v6270 = vsel %vm2776, %v6054, %v6269
      %6271 = vst [vmem:[%s6198 + $0x78] sm:$0xf] %v6270
      %6272 = vst.msk [vmem:[%s6198 + $0x7c] sm:$0xf] %vm422, %v6063
      %v6273 = vld [vmem:[%s6198 + $0x80] sm:$0x1]
      %v6274 = vsel %vm432, %v6064, %v6273
      %6275 = vst [vmem:[%s6198 + $0x80] sm:$0x1] %v6274
      %v6276 = vld [vmem:[%s6198 + $0x84] sm:$0xf]
      %v6277 = vsel %vm2776, %v6071, %v6276
      %6278 = vst [vmem:[%s6198 + $0x84] sm:$0xf] %v6277
      %6279 = vst.msk [vmem:[%s6198 + $0x88] sm:$0xf] %vm422, %v6080
      %v6280 = vld [vmem:[%s6198 + $0x8c] sm:$0x1]
      %v6281 = vsel %vm432, %v6081, %v6280
      %6282 = vst [vmem:[%s6198 + $0x8c] sm:$0x1] %v6281
      %v6283 = vld [vmem:[%s6198 + $0x90] sm:$0xf]
      %v6284 = vsel %vm2776, %v6088, %v6283
      %6285 = vst [vmem:[%s6198 + $0x90] sm:$0xf] %v6284
      %6286 = vst.msk [vmem:[%s6198 + $0x94] sm:$0xf] %vm422, %v6097
      %v6287 = vld [vmem:[%s6198 + $0x98] sm:$0x1]
      %v6288 = vsel %vm432, %v6098, %v6287
      %6289 = vst [vmem:[%s6198 + $0x98] sm:$0x1] %v6288
      %v6290 = vld [vmem:[%s6198 + $0x9c] sm:$0xf]
      %v6291 = vsel %vm2776, %v6105, %v6290
      %6292 = vst [vmem:[%s6198 + $0x9c] sm:$0xf] %v6291
      %6293 = vst.msk [vmem:[%s6198 + $0xa0] sm:$0xf] %vm422, %v6114
      %v6294 = vld [vmem:[%s6198 + $0xa4] sm:$0x1]
      %v6295 = vsel %vm432, %v6115, %v6294
      %6296 = vst [vmem:[%s6198 + $0xa4] sm:$0x1] %v6295
      %v6297 = vld [vmem:[%s6198 + $0xa8] sm:$0xf]
      %v6298 = vsel %vm2776, %v6122, %v6297
      %6299 = vst [vmem:[%s6198 + $0xa8] sm:$0xf] %v6298
      %6300 = vst.msk [vmem:[%s6198 + $0xac] sm:$0xf] %vm422, %v6131
      %v6301 = vld [vmem:[%s6198 + $0xb0] sm:$0x1]
      %v6302 = vsel %vm432, %v6132, %v6301
      %6303 = vst [vmem:[%s6198 + $0xb0] sm:$0x1] %v6302
      %v6304 = vld [vmem:[%s6198 + $0xb4] sm:$0xf]
      %v6305 = vsel %vm2776, %v6139, %v6304
      %6306 = vst [vmem:[%s6198 + $0xb4] sm:$0xf] %v6305
      %6307 = vst.msk [vmem:[%s6198 + $0xb8] sm:$0xf] %vm422, %v6148
      %v6308 = vld [vmem:[%s6198 + $0xbc] sm:$0x1]
      %v6309 = vsel %vm432, %v6149, %v6308
      %6310 = vst [vmem:[%s6198 + $0xbc] sm:$0x1] %v6309
      %v6311 = vld [vmem:[#allocation3] sm:$0xf]
      %v6312 = vld [vmem:[#allocation3 + $0x4] sm:$0xf]
      %v6313 = vld [vmem:[#allocation3 + $0x8] sm:$0x1]
      %v6314 = vld [vmem:[#allocation3 + $0xc] sm:$0xf]
      %v6315 = vld [vmem:[#allocation3 + $0x10] sm:$0xf]
      %v6316 = vld [vmem:[#allocation3 + $0x14] sm:$0x1]
      %v6317 = vld [vmem:[#allocation3 + $0x18] sm:$0xf]
      %v6318 = vld [vmem:[#allocation3 + $0x1c] sm:$0xf]
      %v6319 = vld [vmem:[#allocation3 + $0x20] sm:$0x1]
      %v6320 = vld [vmem:[#allocation3 + $0x24] sm:$0xf]
      %v6321 = vld [vmem:[#allocation3 + $0x28] sm:$0xf]
      %v6322 = vld [vmem:[#allocation3 + $0x2c] sm:$0x1]
      %v6323 = vld [vmem:[#allocation3 + $0x30] sm:$0xf]
      %v6324 = vld [vmem:[#allocation3 + $0x34] sm:$0xf]
      %v6325 = vld [vmem:[#allocation3 + $0x38] sm:$0x1]
      %v6326 = vld [vmem:[#allocation3 + $0x3c] sm:$0xf]
      %v6327 = vld [vmem:[#allocation3 + $0x40] sm:$0xf]
      %v6328 = vld [vmem:[#allocation3 + $0x44] sm:$0x1]
      %v6329 = vld [vmem:[#allocation3 + $0x48] sm:$0xf]
      %v6330 = vld [vmem:[#allocation3 + $0x4c] sm:$0xf]
      %v6331 = vld [vmem:[#allocation3 + $0x50] sm:$0x1]
      %v6332 = vld [vmem:[#allocation3 + $0x54] sm:$0xf]
      %v6333 = vld [vmem:[#allocation3 + $0x58] sm:$0xf]
      %v6334 = vld [vmem:[#allocation3 + $0x5c] sm:$0x1]
      %v6335 = vld [vmem:[#allocation3 + $0x60] sm:$0xf]
      %v6336 = vld [vmem:[#allocation3 + $0x64] sm:$0xf]
      %v6337 = vld [vmem:[#allocation3 + $0x68] sm:$0x1]
      %v6338 = vld [vmem:[#allocation3 + $0x6c] sm:$0xf]
      %v6339 = vld [vmem:[#allocation3 + $0x70] sm:$0xf]
      %v6340 = vld [vmem:[#allocation3 + $0x74] sm:$0x1]
      %v6341 = vld [vmem:[#allocation3 + $0x78] sm:$0xf]
      %v6342 = vld [vmem:[#allocation3 + $0x7c] sm:$0xf]
      %v6343 = vld [vmem:[#allocation3 + $0x80] sm:$0x1]
      %v6344 = vld [vmem:[#allocation3 + $0x84] sm:$0xf]
      %v6345 = vld [vmem:[#allocation3 + $0x88] sm:$0xf]
      %v6346 = vld [vmem:[#allocation3 + $0x8c] sm:$0x1]
      %v6347 = vld [vmem:[#allocation3 + $0x90] sm:$0xf]
      %v6348 = vld [vmem:[#allocation3 + $0x94] sm:$0xf]
      %v6349 = vld [vmem:[#allocation3 + $0x98] sm:$0x1]
      %v6350 = vld [vmem:[#allocation3 + $0x9c] sm:$0xf]
      %v6351 = vld [vmem:[#allocation3 + $0xa0] sm:$0xf]
      %v6352 = vld [vmem:[#allocation3 + $0xa4] sm:$0x1]
      %v6353 = vld [vmem:[#allocation3 + $0xa8] sm:$0xf]
      %v6354 = vld [vmem:[#allocation3 + $0xac] sm:$0xf]
      %v6355 = vld [vmem:[#allocation3 + $0xb0] sm:$0x1]
      %v6356 = vld [vmem:[#allocation3 + $0xb4] sm:$0xf]
      %v6357 = vld [vmem:[#allocation3 + $0xb8] sm:$0xf]
      %v6358 = vld [vmem:[#allocation3 + $0xbc] sm:$0x1]
      %v6359 = vld [vmem:[#allocation3 + $0xc0] sm:$0xf]
      %v6360 = vld [vmem:[#allocation3 + $0xc4] sm:$0xf]
      %v6361 = vld [vmem:[#allocation3 + $0xc8] sm:$0x1]
      %v6362 = vld [vmem:[#allocation3 + $0xcc] sm:$0xf]
      %v6363 = vld [vmem:[#allocation3 + $0xd0] sm:$0xf]
      %v6364 = vld [vmem:[#allocation3 + $0xd4] sm:$0x1]
      %v6365 = vld [vmem:[#allocation4] sm:$0xf]
      %v6366 = vld [vmem:[#allocation4 + $0x4] sm:$0xf]
      %v6367 = vld [vmem:[#allocation4 + $0x8] sm:$0x1]
      %v6368 = vld [vmem:[#allocation4 + $0xc] sm:$0xf]
      %v6369 = vld [vmem:[#allocation4 + $0x10] sm:$0xf]
      %v6370 = vld [vmem:[#allocation4 + $0x14] sm:$0x1]
      %v6371 = vld [vmem:[#allocation4 + $0x18] sm:$0xf]
      %v6372 = vld [vmem:[#allocation4 + $0x1c] sm:$0xf]
      %v6373 = vld [vmem:[#allocation4 + $0x20] sm:$0x1]
      %v6374 = vld [vmem:[#allocation4 + $0x24] sm:$0xf]
      %v6375 = vld [vmem:[#allocation4 + $0x28] sm:$0xf]
      %v6376 = vld [vmem:[#allocation4 + $0x2c] sm:$0x1]
      %v6377 = vld [vmem:[#allocation4 + $0x30] sm:$0xf]
      %v6378 = vld [vmem:[#allocation4 + $0x34] sm:$0xf]
      %v6379 = vld [vmem:[#allocation4 + $0x38] sm:$0x1]
      %v6380 = vld [vmem:[#allocation4 + $0x3c] sm:$0xf]
      %v6381 = vld [vmem:[#allocation4 + $0x40] sm:$0xf]
      %v6382 = vld [vmem:[#allocation4 + $0x44] sm:$0x1]
      %v6383 = vld [vmem:[#allocation4 + $0x48] sm:$0xf]
      %v6384 = vld [vmem:[#allocation4 + $0x4c] sm:$0xf]
      %v6385 = vld [vmem:[#allocation4 + $0x50] sm:$0x1]
      %v6386 = vld [vmem:[#allocation4 + $0x54] sm:$0xf]
      %v6387 = vld [vmem:[#allocation4 + $0x58] sm:$0xf]
      %v6388 = vld [vmem:[#allocation4 + $0x5c] sm:$0x1]
      %v6389 = vld [vmem:[#allocation4 + $0x60] sm:$0xf]
      %v6390 = vld [vmem:[#allocation4 + $0x64] sm:$0xf]
      %v6391 = vld [vmem:[#allocation4 + $0x68] sm:$0x1]
      %v6392 = vld [vmem:[#allocation4 + $0x6c] sm:$0xf]
      %v6393 = vld [vmem:[#allocation4 + $0x70] sm:$0xf]
      %v6394 = vld [vmem:[#allocation4 + $0x74] sm:$0x1]
      %v6395 = vld [vmem:[#allocation4 + $0x78] sm:$0xf]
      %v6396 = vld [vmem:[#allocation4 + $0x7c] sm:$0xf]
      %v6397 = vld [vmem:[#allocation4 + $0x80] sm:$0x1]
      %v6398 = vld [vmem:[#allocation4 + $0x84] sm:$0xf]
      %v6399 = vld [vmem:[#allocation4 + $0x88] sm:$0xf]
      %v6400 = vld [vmem:[#allocation4 + $0x8c] sm:$0x1]
      %v6401 = vld [vmem:[#allocation4 + $0x90] sm:$0xf]
      %v6402 = vld [vmem:[#allocation4 + $0x94] sm:$0xf]
      %v6403 = vld [vmem:[#allocation4 + $0x98] sm:$0x1]
      %v6404 = vld [vmem:[#allocation4 + $0x9c] sm:$0xf]
      %v6405 = vld [vmem:[#allocation4 + $0xa0] sm:$0xf]
      %v6406 = vld [vmem:[#allocation4 + $0xa4] sm:$0x1]
      %v6407 = vld [vmem:[#allocation4 + $0xa8] sm:$0xf]
      %v6408 = vld [vmem:[#allocation4 + $0xac] sm:$0xf]
      %v6409 = vld [vmem:[#allocation4 + $0xb0] sm:$0x1]
      %v6410 = vld [vmem:[#allocation4 + $0xb4] sm:$0xf]
      %v6411 = vld [vmem:[#allocation4 + $0xb8] sm:$0xf]
      %v6412 = vld [vmem:[#allocation4 + $0xbc] sm:$0x1]
      %v6413 = vld [vmem:[#allocation4 + $0xc0] sm:$0xf]
      %v6414 = vld [vmem:[#allocation4 + $0xc4] sm:$0xf]
      %v6415 = vld [vmem:[#allocation4 + $0xc8] sm:$0x1]
      %v6416 = vld [vmem:[#allocation4 + $0xcc] sm:$0xf]
      %v6417 = vld [vmem:[#allocation4 + $0xd0] sm:$0xf]
      %v6418 = vld [vmem:[#allocation4 + $0xd4] sm:$0x1]
      %v6419 = vld [vmem:[%s4] sm:$0xf]
      %v6420 = vld [vmem:[%s4 + $0x4] sm:$0xf]
      %v6421 = vld [vmem:[%s5] sm:$0xf]
      %v6422 = vld [vmem:[%s5 + $0x4] sm:$0xf]
      %v6455 = vunpack.c.l.b16 %v6365
      %v6456 = vunpack.c.l.b16 %v6366
      %v6457 = vunpack.c.l.b16 %v6368
      %v6458 = vunpack.c.l.b16 %v6369
      %v6459 = vunpack.c.l.b16 %v6371
      %v6460 = vunpack.c.l.b16 %v6372
      %v6461 = vunpack.c.l.b16 %v6374
      %v6462 = vunpack.c.l.b16 %v6375
      %v6463 = vunpack.c.l.b16 %v6377
      %v6464 = vunpack.c.l.b16 %v6378
      %v6465 = vunpack.c.l.b16 %v6380
      %v6466 = vunpack.c.l.b16 %v6381
      %v6467 = vunpack.c.l.b16 %v6383
      %v6468 = vunpack.c.l.b16 %v6384
      %v6469 = vunpack.c.l.b16 %v6386
      %v6470 = vunpack.c.l.b16 %v6387
      %v6471 = vunpack.c.l.b16 %v6389
      %v6472 = vunpack.c.l.b16 %v6390
      %v6473 = vunpack.c.l.b16 %v6392
      %v6474 = vunpack.c.l.b16 %v6393
      %v6475 = vunpack.c.l.b16 %v6395
      %v6476 = vunpack.c.l.b16 %v6396
      %v6477 = vunpack.c.l.b16 %v6398
      %v6478 = vunpack.c.l.b16 %v6399
      %v6479 = vunpack.c.l.b16 %v6401
      %v6480 = vunpack.c.l.b16 %v6402
      %v6481 = vunpack.c.l.b16 %v6404
      %v6482 = vunpack.c.l.b16 %v6405
      %v6483 = vunpack.c.l.b16 %v6407
      %v6484 = vunpack.c.l.b16 %v6408
      %v6485 = vunpack.c.l.b16 %v6410
      %v6486 = vunpack.c.l.b16 %v6411
      %v6487 = vpack.c.b16 %v6456, %v6455
      %v6488 = vpack.c.b16 %v6458, %v6457
      %v6489 = vpack.c.b16 %v6460, %v6459
      %v6490 = vpack.c.b16 %v6462, %v6461
      %v6491 = vpack.c.b16 %v6464, %v6463
      %v6492 = vpack.c.b16 %v6466, %v6465
      %v6493 = vpack.c.b16 %v6468, %v6467
      %v6494 = vpack.c.b16 %v6470, %v6469
      %v6495 = vpack.c.b16 %v6472, %v6471
      %v6496 = vpack.c.b16 %v6474, %v6473
      %v6497 = vpack.c.b16 %v6476, %v6475
      %v6498 = vpack.c.b16 %v6478, %v6477
      %v6499 = vpack.c.b16 %v6480, %v6479
      %v6500 = vpack.c.b16 %v6482, %v6481
      %v6501 = vpack.c.b16 %v6484, %v6483
      %v6502 = vpack.c.b16 %v6486, %v6485
      %v6505 = vunpack.c.l.b16 %v6421
      %v6506 = vunpack.c.l.b16 %v6422
      %v6507 = vpack.c.b16 %v6506, %v6505
      %vm6509 = vcmask 130048
      %v6511 = vsel %vm6509, %v6487, 0
      %v6514 = vsel %vm6509, %v6488, 0
      %v6517 = vsel %vm6509, %v6489, 0
      %v6520 = vsel %vm6509, %v6490, 0
      %v6523 = vsel %vm6509, %v6491, 0
      %v6526 = vsel %vm6509, %v6492, 0
      %v6529 = vsel %vm6509, %v6493, 0
      %v6532 = vsel %vm6509, %v6494, 0
      %v6535 = vsel %vm6509, %v6495, 0
      %v6538 = vsel %vm6509, %v6496, 0
      %v6541 = vsel %vm6509, %v6497, 0
      %v6544 = vsel %vm6509, %v6498, 0
      %v6547 = vsel %vm6509, %v6499, 0
      %v6550 = vsel %vm6509, %v6500, 0
      %v6553 = vsel %vm6509, %v6501, 0
      %v6556 = vsel %vm6509, %v6502, 0
      %6558 = vmatprep.subr.bf16.mxu0 0
      %6559 = vmatpush1.bf16.msra.mxu0 %v6507
      %6560 = vmatprep.subr.bf16.mxu0 0
      %6561 = vmatpush1.bf16.msra.mxu0 0
      %6562 = vmatprep.subr.bf16.mxu0 0
      %6563 = vmatpush1.bf16.msra.mxu0 0
      %6564 = vmatprep.subr.bf16.mxu0 0
      %6565 = vmatpush1.bf16.msra.mxu0 0
      %6566 = vmatprep.subr.bf16.mxu0 0
      %6567 = vmatpush1.bf16.msra.mxu0 0
      %6568 = vmatprep.subr.bf16.mxu0 0
      %6569 = vmatpush1.bf16.msra.mxu0 0
      %6570 = vmatprep.subr.bf16.mxu0 0
      %6571 = vmatpush1.bf16.msra.mxu0 0
      %6572 = vmatprep.subr.bf16.mxu0 0
      %6573 = vmatpush1.bf16.msra.mxu0 0
      %6574 = vmatprep.subr.bf16.mxu0 0
      %6575 = vmatpush1.bf16.msra.mxu0 0
      %6576 = vmatprep.subr.bf16.mxu0 0
      %6577 = vmatpush1.bf16.msra.mxu0 0
      %6578 = vmatprep.subr.bf16.mxu0 0
      %6579 = vmatpush1.bf16.msra.mxu0 0
      %6580 = vmatprep.subr.bf16.mxu0 0
      %6581 = vmatpush1.bf16.msra.mxu0 0
      %6582 = vmatprep.subr.bf16.mxu0 0
      %6583 = vmatpush1.bf16.msra.mxu0 0
      %6584 = vmatprep.subr.bf16.mxu0 0
      %6585 = vmatpush1.bf16.msra.mxu0 0
      %6586 = vmatprep.subr.bf16.mxu0 0
      %6587 = vmatpush1.bf16.msra.mxu0 0
      %6588 = vmatprep.subr.bf16.mxu0 0
      %6589 = vmatpush1.bf16.msra.mxu0 0
      %6590 = vmatprep.mubr.bf16.mxu0 0
      %6591 = vmatmul.mubr.bf16.gmra.mrb[0].mxu0 %v6511
      %v6592 = vpop.f32.mrb[0].mxu0
      %v6593 = vadd.f32 0.0, %v6592
      %v6594 = vpop.f32.mrb[0].mxu0
      %v6595 = vpop.f32.mrb[0].mxu0
      %v6596 = vadd.f32 0.0, %v6595
      %v6597 = vpop.f32.mrb[0].mxu0
      %6598 = vmatprep.mubr.bf16.mxu0 0
      %6599 = vmatmul.mubr.bf16.gmra.mrb[0].mxu0 %v6514
      %v6600 = vpop.f32.mrb[0].mxu0
      %v6601 = vadd.f32 0.0, %v6600
      %v6602 = vpop.f32.mrb[0].mxu0
      %v6603 = vpop.f32.mrb[0].mxu0
      %v6604 = vadd.f32 0.0, %v6603
      %v6605 = vpop.f32.mrb[0].mxu0
      %6606 = vmatprep.mubr.bf16.mxu0 0
      %6607 = vmatmul.mubr.bf16.gmra.mrb[0].mxu0 %v6517
      %v6608 = vpop.f32.mrb[0].mxu0
      %v6609 = vadd.f32 0.0, %v6608
      %v6610 = vpop.f32.mrb[0].mxu0
      %v6611 = vpop.f32.mrb[0].mxu0
      %v6612 = vadd.f32 0.0, %v6611
      %v6613 = vpop.f32.mrb[0].mxu0
      %6614 = vmatprep.mubr.bf16.mxu0 0
      %6615 = vmatmul.mubr.bf16.gmra.mrb[0].mxu0 %v6520
      %v6616 = vpop.f32.mrb[0].mxu0
      %v6617 = vadd.f32 0.0, %v6616
      %v6618 = vpop.f32.mrb[0].mxu0
      %v6619 = vpop.f32.mrb[0].mxu0
      %v6620 = vadd.f32 0.0, %v6619
      %v6621 = vpop.f32.mrb[0].mxu0
      %6622 = vmatprep.mubr.bf16.mxu0 0
      %6623 = vmatmul.mubr.bf16.gmra.mrb[0].mxu0 %v6523
      %v6624 = vpop.f32.mrb[0].mxu0
      %v6625 = vadd.f32 0.0, %v6624
      %v6626 = vpop.f32.mrb[0].mxu0
      %v6627 = vpop.f32.mrb[0].mxu0
      %v6628 = vadd.f32 0.0, %v6627
      %v6629 = vpop.f32.mrb[0].mxu0
      %6630 = vmatprep.mubr.bf16.mxu0 0
      %6631 = vmatmul.mubr.bf16.gmra.mrb[0].mxu0 %v6526
      %v6632 = vpop.f32.mrb[0].mxu0
      %v6633 = vadd.f32 0.0, %v6632
      %v6634 = vpop.f32.mrb[0].mxu0
      %v6635 = vpop.f32.mrb[0].mxu0
      %v6636 = vadd.f32 0.0, %v6635
      %v6637 = vpop.f32.mrb[0].mxu0
      %6638 = vmatprep.mubr.bf16.mxu0 0
      %6639 = vmatmul.mubr.bf16.gmra.mrb[0].mxu0 %v6529
      %v6640 = vpop.f32.mrb[0].mxu0
      %v6641 = vadd.f32 0.0, %v6640
      %v6642 = vpop.f32.mrb[0].mxu0
      %v6643 = vpop.f32.mrb[0].mxu0
      %v6644 = vadd.f32 0.0, %v6643
      %v6645 = vpop.f32.mrb[0].mxu0
      %6646 = vmatprep.mubr.bf16.mxu0 0
      %6647 = vmatmul.mubr.bf16.gmra.mrb[0].mxu0 %v6532
      %v6648 = vpop.f32.mrb[0].mxu0
      %v6649 = vadd.f32 0.0, %v6648
      %v6650 = vpop.f32.mrb[0].mxu0
      %v6651 = vpop.f32.mrb[0].mxu0
      %v6652 = vadd.f32 0.0, %v6651
      %v6653 = vpop.f32.mrb[0].mxu0
      %6654 = vmatprep.mubr.bf16.mxu0 0
      %6655 = vmatmul.mubr.bf16.gmra.mrb[0].mxu0 %v6535
      %v6656 = vpop.f32.mrb[0].mxu0
      %v6657 = vadd.f32 0.0, %v6656
      %v6658 = vpop.f32.mrb[0].mxu0
      %v6659 = vpop.f32.mrb[0].mxu0
      %v6660 = vadd.f32 0.0, %v6659
      %v6661 = vpop.f32.mrb[0].mxu0
      %6662 = vmatprep.mubr.bf16.mxu0 0
      %6663 = vmatmul.mubr.bf16.gmra.mrb[0].mxu0 %v6538
      %v6664 = vpop.f32.mrb[0].mxu0
      %v6665 = vadd.f32 0.0, %v6664
      %v6666 = vpop.f32.mrb[0].mxu0
      %v6667 = vpop.f32.mrb[0].mxu0
      %v6668 = vadd.f32 0.0, %v6667
      %v6669 = vpop.f32.mrb[0].mxu0
      %6670 = vmatprep.mubr.bf16.mxu0 0
      %6671 = vmatmul.mubr.bf16.gmra.mrb[0].mxu0 %v6541
      %v6672 = vpop.f32.mrb[0].mxu0
      %v6673 = vadd.f32 0.0, %v6672
      %v6674 = vpop.f32.mrb[0].mxu0
      %v6675 = vpop.f32.mrb[0].mxu0
      %v6676 = vadd.f32 0.0, %v6675
      %v6677 = vpop.f32.mrb[0].mxu0
      %6678 = vmatprep.mubr.bf16.mxu0 0
      %6679 = vmatmul.mubr.bf16.gmra.mrb[0].mxu0 %v6544
      %v6680 = vpop.f32.mrb[0].mxu0
      %v6681 = vadd.f32 0.0, %v6680
      %v6682 = vpop.f32.mrb[0].mxu0
      %v6683 = vpop.f32.mrb[0].mxu0
      %v6684 = vadd.f32 0.0, %v6683
      %v6685 = vpop.f32.mrb[0].mxu0
      %6686 = vmatprep.mubr.bf16.mxu0 0
      %6687 = vmatmul.mubr.bf16.gmra.mrb[0].mxu0 %v6547
      %v6688 = vpop.f32.mrb[0].mxu0
      %v6689 = vadd.f32 0.0, %v6688
      %v6690 = vpop.f32.mrb[0].mxu0
      %v6691 = vpop.f32.mrb[0].mxu0
      %v6692 = vadd.f32 0.0, %v6691
      %v6693 = vpop.f32.mrb[0].mxu0
      %6694 = vmatprep.mubr.bf16.mxu0 0
      %6695 = vmatmul.mubr.bf16.gmra.mrb[0].mxu0 %v6550
      %v6696 = vpop.f32.mrb[0].mxu0
      %v6697 = vadd.f32 0.0, %v6696
      %v6698 = vpop.f32.mrb[0].mxu0
      %v6699 = vpop.f32.mrb[0].mxu0
      %v6700 = vadd.f32 0.0, %v6699
      %v6701 = vpop.f32.mrb[0].mxu0
      %6702 = vmatprep.mubr.bf16.mxu0 0
      %6703 = vmatmul.mubr.bf16.gmra.mrb[0].mxu0 %v6553
      %v6704 = vpop.f32.mrb[0].mxu0
      %v6705 = vadd.f32 0.0, %v6704
      %v6706 = vpop.f32.mrb[0].mxu0
      %v6707 = vpop.f32.mrb[0].mxu0
      %v6708 = vadd.f32 0.0, %v6707
      %v6709 = vpop.f32.mrb[0].mxu0
      %6710 = vmatprep.mubr.bf16.mxu0 0
      %6711 = vmatmul.mubr.bf16.gmra.mrb[0].mxu0 %v6556
      %v6712 = vpop.f32.mrb[0].mxu0
      %v6713 = vadd.f32 0.0, %v6712
      %v6714 = vpop.f32.mrb[0].mxu0
      %v6715 = vpop.f32.mrb[0].mxu0
      %v6716 = vadd.f32 0.0, %v6715
      %v6717 = vpop.f32.mrb[0].mxu0
      %6718 = vdwg.mxu0
      %v6751 = vunpack.c.l.b16 %v6311
      %v6752 = vunpack.c.l.b16 %v6312
      %v6753 = vunpack.c.l.b16 %v6314
      %v6754 = vunpack.c.l.b16 %v6315
      %v6755 = vunpack.c.l.b16 %v6317
      %v6756 = vunpack.c.l.b16 %v6318
      %v6757 = vunpack.c.l.b16 %v6320
      %v6758 = vunpack.c.l.b16 %v6321
      %v6759 = vunpack.c.l.b16 %v6323
      %v6760 = vunpack.c.l.b16 %v6324
      %v6761 = vunpack.c.l.b16 %v6326
      %v6762 = vunpack.c.l.b16 %v6327
      %v6763 = vunpack.c.l.b16 %v6329
      %v6764 = vunpack.c.l.b16 %v6330
      %v6765 = vunpack.c.l.b16 %v6332
      %v6766 = vunpack.c.l.b16 %v6333
      %v6767 = vunpack.c.l.b16 %v6335
      %v6768 = vunpack.c.l.b16 %v6336
      %v6769 = vunpack.c.l.b16 %v6338
      %v6770 = vunpack.c.l.b16 %v6339
      %v6771 = vunpack.c.l.b16 %v6341
      %v6772 = vunpack.c.l.b16 %v6342
      %v6773 = vunpack.c.l.b16 %v6344
      %v6774 = vunpack.c.l.b16 %v6345
      %v6775 = vunpack.c.l.b16 %v6347
      %v6776 = vunpack.c.l.b16 %v6348
      %v6777 = vunpack.c.l.b16 %v6350
      %v6778 = vunpack.c.l.b16 %v6351
      %v6779 = vunpack.c.l.b16 %v6353
      %v6780 = vunpack.c.l.b16 %v6354
      %v6781 = vunpack.c.l.b16 %v6356
      %v6782 = vunpack.c.l.b16 %v6357
      %v6783 = vpack.c.b16 %v6752, %v6751
      %v6784 = vpack.c.b16 %v6754, %v6753
      %v6785 = vpack.c.b16 %v6756, %v6755
      %v6786 = vpack.c.b16 %v6758, %v6757
      %v6787 = vpack.c.b16 %v6760, %v6759
      %v6788 = vpack.c.b16 %v6762, %v6761
      %v6789 = vpack.c.b16 %v6764, %v6763
      %v6790 = vpack.c.b16 %v6766, %v6765
      %v6791 = vpack.c.b16 %v6768, %v6767
      %v6792 = vpack.c.b16 %v6770, %v6769
      %v6793 = vpack.c.b16 %v6772, %v6771
      %v6794 = vpack.c.b16 %v6774, %v6773
      %v6795 = vpack.c.b16 %v6776, %v6775
      %v6796 = vpack.c.b16 %v6778, %v6777
      %v6797 = vpack.c.b16 %v6780, %v6779
      %v6798 = vpack.c.b16 %v6782, %v6781
      %v6801 = vunpack.c.l.b16 %v6419
      %v6802 = vunpack.c.l.b16 %v6420
      %v6803 = vpack.c.b16 %v6802, %v6801
      %v6806 = vsel %vm6509, %v6783, 0
      %v6809 = vsel %vm6509, %v6784, 0
      %v6812 = vsel %vm6509, %v6785, 0
      %v6815 = vsel %vm6509, %v6786, 0
      %v6818 = vsel %vm6509, %v6787, 0
      %v6821 = vsel %vm6509, %v6788, 0
      %v6824 = vsel %vm6509, %v6789, 0
      %v6827 = vsel %vm6509, %v6790, 0
      %v6830 = vsel %vm6509, %v6791, 0
      %v6833 = vsel %vm6509, %v6792, 0
      %v6836 = vsel %vm6509, %v6793, 0
      %v6839 = vsel %vm6509, %v6794, 0
      %v6842 = vsel %vm6509, %v6795, 0
      %v6845 = vsel %vm6509, %v6796, 0
      %v6848 = vsel %vm6509, %v6797, 0
      %v6851 = vsel %vm6509, %v6798, 0
      %6853 = vmatprep.subr.bf16.mxu0 0
      %6854 = vmatpush1.bf16.msra.mxu0 %v6803
      %6855 = vmatprep.subr.bf16.mxu0 0
      %6856 = vmatpush1.bf16.msra.mxu0 0
      %6857 = vmatprep.subr.bf16.mxu0 0
      %6858 = vmatpush1.bf16.msra.mxu0 0
      %6859 = vmatprep.subr.bf16.mxu0 0
      %6860 = vmatpush1.bf16.msra.mxu0 0
      %6861 = vmatprep.subr.bf16.mxu0 0
      %6862 = vmatpush1.bf16.msra.mxu0 0
      %6863 = vmatprep.subr.bf16.mxu0 0
      %6864 = vmatpush1.bf16.msra.mxu0 0
      %6865 = vmatprep.subr.bf16.mxu0 0
      %6866 = vmatpush1.bf16.msra.mxu0 0
      %6867 = vmatprep.subr.bf16.mxu0 0
      %6868 = vmatpush1.bf16.msra.mxu0 0
      %6869 = vmatprep.subr.bf16.mxu0 0
      %6870 = vmatpush1.bf16.msra.mxu0 0
      %6871 = vmatprep.subr.bf16.mxu0 0
      %6872 = vmatpush1.bf16.msra.mxu0 0
      %6873 = vmatprep.subr.bf16.mxu0 0
      %6874 = vmatpush1.bf16.msra.mxu0 0
      %6875 = vmatprep.subr.bf16.mxu0 0
      %6876 = vmatpush1.bf16.msra.mxu0 0
      %6877 = vmatprep.subr.bf16.mxu0 0
      %6878 = vmatpush1.bf16.msra.mxu0 0
      %6879 = vmatprep.subr.bf16.mxu0 0
      %6880 = vmatpush1.bf16.msra.mxu0 0
      %6881 = vmatprep.subr.bf16.mxu0 0
      %6882 = vmatpush1.bf16.msra.mxu0 0
      %6883 = vmatprep.subr.bf16.mxu0 0
      %6884 = vmatpush1.bf16.msra.mxu0 0
      %6885 = vmatprep.mubr.bf16.mxu0 0
      %6886 = vmatmul.mubr.bf16.gmra.mrb[0].mxu0 %v6806
      %v6887 = vpop.f32.mrb[0].mxu0
      %v6888 = vadd.f32 %v6593, %v6887
      %v6889 = vpop.f32.mrb[0].mxu0
      %v6890 = vpop.f32.mrb[0].mxu0
      %v6891 = vadd.f32 %v6596, %v6890
      %v6892 = vpop.f32.mrb[0].mxu0
      %6893 = vmatprep.mubr.bf16.mxu0 0
      %6894 = vmatmul.mubr.bf16.gmra.mrb[0].mxu0 %v6809
      %v6895 = vpop.f32.mrb[0].mxu0
      %v6896 = vadd.f32 %v6601, %v6895
      %v6897 = vpop.f32.mrb[0].mxu0
      %v6898 = vpop.f32.mrb[0].mxu0
      %v6899 = vadd.f32 %v6604, %v6898
      %v6900 = vpop.f32.mrb[0].mxu0
      %6901 = vmatprep.mubr.bf16.mxu0 0
      %6902 = vmatmul.mubr.bf16.gmra.mrb[0].mxu0 %v6812
      %v6903 = vpop.f32.mrb[0].mxu0
      %v6904 = vadd.f32 %v6609, %v6903
      %v6905 = vpop.f32.mrb[0].mxu0
      %v6906 = vpop.f32.mrb[0].mxu0
      %v6907 = vadd.f32 %v6612, %v6906
      %v6908 = vpop.f32.mrb[0].mxu0
      %6909 = vmatprep.mubr.bf16.mxu0 0
      %6910 = vmatmul.mubr.bf16.gmra.mrb[0].mxu0 %v6815
      %v6911 = vpop.f32.mrb[0].mxu0
      %v6912 = vadd.f32 %v6617, %v6911
      %v6913 = vpop.f32.mrb[0].mxu0
      %v6914 = vpop.f32.mrb[0].mxu0
      %v6915 = vadd.f32 %v6620, %v6914
      %v6916 = vpop.f32.mrb[0].mxu0
      %6917 = vmatprep.mubr.bf16.mxu0 0
      %6918 = vmatmul.mubr.bf16.gmra.mrb[0].mxu0 %v6818
      %v6919 = vpop.f32.mrb[0].mxu0
      %v6920 = vadd.f32 %v6625, %v6919
      %v6921 = vpop.f32.mrb[0].mxu0
      %v6922 = vpop.f32.mrb[0].mxu0
      %v6923 = vadd.f32 %v6628, %v6922
      %v6924 = vpop.f32.mrb[0].mxu0
      %6925 = vmatprep.mubr.bf16.mxu0 0
      %6926 = vmatmul.mubr.bf16.gmra.mrb[0].mxu0 %v6821
      %v6927 = vpop.f32.mrb[0].mxu0
      %v6928 = vadd.f32 %v6633, %v6927
      %v6929 = vpop.f32.mrb[0].mxu0
      %v6930 = vpop.f32.mrb[0].mxu0
      %v6931 = vadd.f32 %v6636, %v6930
      %v6932 = vpop.f32.mrb[0].mxu0
      %6933 = vmatprep.mubr.bf16.mxu0 0
      %6934 = vmatmul.mubr.bf16.gmra.mrb[0].mxu0 %v6824
      %v6935 = vpop.f32.mrb[0].mxu0
      %v6936 = vadd.f32 %v6641, %v6935
      %v6937 = vpop.f32.mrb[0].mxu0
      %v6938 = vpop.f32.mrb[0].mxu0
      %v6939 = vadd.f32 %v6644, %v6938
      %v6940 = vpop.f32.mrb[0].mxu0
      %6941 = vmatprep.mubr.bf16.mxu0 0
      %6942 = vmatmul.mubr.bf16.gmra.mrb[0].mxu0 %v6827
      %v6943 = vpop.f32.mrb[0].mxu0
      %v6944 = vadd.f32 %v6649, %v6943
      %v6945 = vpop.f32.mrb[0].mxu0
      %v6946 = vpop.f32.mrb[0].mxu0
      %v6947 = vadd.f32 %v6652, %v6946
      %v6948 = vpop.f32.mrb[0].mxu0
      %6949 = vmatprep.mubr.bf16.mxu0 0
      %6950 = vmatmul.mubr.bf16.gmra.mrb[0].mxu0 %v6830
      %v6951 = vpop.f32.mrb[0].mxu0
      %v6952 = vadd.f32 %v6657, %v6951
      %v6953 = vpop.f32.mrb[0].mxu0
      %v6954 = vpop.f32.mrb[0].mxu0
      %v6955 = vadd.f32 %v6660, %v6954
      %v6956 = vpop.f32.mrb[0].mxu0
      %6957 = vmatprep.mubr.bf16.mxu0 0
      %6958 = vmatmul.mubr.bf16.gmra.mrb[0].mxu0 %v6833
      %v6959 = vpop.f32.mrb[0].mxu0
      %v6960 = vadd.f32 %v6665, %v6959
      %v6961 = vpop.f32.mrb[0].mxu0
      %v6962 = vpop.f32.mrb[0].mxu0
      %v6963 = vadd.f32 %v6668, %v6962
      %v6964 = vpop.f32.mrb[0].mxu0
      %6965 = vmatprep.mubr.bf16.mxu0 0
      %6966 = vmatmul.mubr.bf16.gmra.mrb[0].mxu0 %v6836
      %v6967 = vpop.f32.mrb[0].mxu0
      %v6968 = vadd.f32 %v6673, %v6967
      %v6969 = vpop.f32.mrb[0].mxu0
      %v6970 = vpop.f32.mrb[0].mxu0
      %v6971 = vadd.f32 %v6676, %v6970
      %v6972 = vpop.f32.mrb[0].mxu0
      %6973 = vmatprep.mubr.bf16.mxu0 0
      %6974 = vmatmul.mubr.bf16.gmra.mrb[0].mxu0 %v6839
      %v6975 = vpop.f32.mrb[0].mxu0
      %v6976 = vadd.f32 %v6681, %v6975
      %v6977 = vpop.f32.mrb[0].mxu0
      %v6978 = vpop.f32.mrb[0].mxu0
      %v6979 = vadd.f32 %v6684, %v6978
      %v6980 = vpop.f32.mrb[0].mxu0
      %6981 = vmatprep.mubr.bf16.mxu0 0
      %6982 = vmatmul.mubr.bf16.gmra.mrb[0].mxu0 %v6842
      %v6983 = vpop.f32.mrb[0].mxu0
      %v6984 = vadd.f32 %v6689, %v6983
      %v6985 = vpop.f32.mrb[0].mxu0
      %v6986 = vpop.f32.mrb[0].mxu0
      %v6987 = vadd.f32 %v6692, %v6986
      %v6988 = vpop.f32.mrb[0].mxu0
      %6989 = vmatprep.mubr.bf16.mxu0 0
      %6990 = vmatmul.mubr.bf16.gmra.mrb[0].mxu0 %v6845
      %v6991 = vpop.f32.mrb[0].mxu0
      %v6992 = vadd.f32 %v6697, %v6991
      %v6993 = vpop.f32.mrb[0].mxu0
      %v6994 = vpop.f32.mrb[0].mxu0
      %v6995 = vadd.f32 %v6700, %v6994
      %v6996 = vpop.f32.mrb[0].mxu0
      %6997 = vmatprep.mubr.bf16.mxu0 0
      %6998 = vmatmul.mubr.bf16.gmra.mrb[0].mxu0 %v6848
      %v6999 = vpop.f32.mrb[0].mxu0
      %v7000 = vadd.f32 %v6705, %v6999
      %v7001 = vpop.f32.mrb[0].mxu0
      %v7002 = vpop.f32.mrb[0].mxu0
      %v7003 = vadd.f32 %v6708, %v7002
      %v7004 = vpop.f32.mrb[0].mxu0
      %7005 = vmatprep.mubr.bf16.mxu0 0
      %7006 = vmatmul.mubr.bf16.gmra.mrb[0].mxu0 %v6851
      %v7007 = vpop.f32.mrb[0].mxu0
      %v7008 = vadd.f32 %v6713, %v7007
      %v7009 = vpop.f32.mrb[0].mxu0
      %v7010 = vpop.f32.mrb[0].mxu0
      %v7011 = vadd.f32 %v6716, %v7010
      %v7012 = vpop.f32.mrb[0].mxu0
      %7013 = vdwg.mxu0
      %v7015 = vshrl.u32 %v6311, 16
      %v7017 = vrot.slane %v7015, 4
      %v7018 = vshll.u32 %v6311, 16
      %v7020 = vrot.slane %v7018, 5
      %v7021 = vor.u32 %v7017, %v7020
      %v7022 = vrot.slane %v7021, 4
      %v7024 = vshll.u32 %v6312, 16
      %v7026 = vrot.slane %v7024, 5
      %v7027 = vsel %vm2949, %v7022, %v7026
      %v7028 = vshrl.u32 %v6312, 16
      %v7030 = vrot.slane %v7028, 4
      %v7031 = vor.u32 %v7030, %v7026
      %v7032 = vrot.slane %v7031, 4
      %v7034 = vshll.u32 %v6313, 16
      %v7036 = vrot.slane %v7034, 5
      %v7037 = vsel %vm2949, %v7032, %v7036
      %v7039 = vshrl.u32 %v6314, 16
      %v7041 = vrot.slane %v7039, 4
      %v7042 = vshll.u32 %v6314, 16
      %v7044 = vrot.slane %v7042, 5
      %v7045 = vor.u32 %v7041, %v7044
      %v7046 = vrot.slane %v7045, 4
      %v7048 = vshll.u32 %v6315, 16
      %v7050 = vrot.slane %v7048, 5
      %v7051 = vsel %vm2949, %v7046, %v7050
      %v7052 = vshrl.u32 %v6315, 16
      %v7054 = vrot.slane %v7052, 4
      %v7055 = vor.u32 %v7054, %v7050
      %v7056 = vrot.slane %v7055, 4
      %v7058 = vshll.u32 %v6316, 16
      %v7060 = vrot.slane %v7058, 5
      %v7061 = vsel %vm2949, %v7056, %v7060
      %v7063 = vshrl.u32 %v6317, 16
      %v7065 = vrot.slane %v7063, 4
      %v7066 = vshll.u32 %v6317, 16
      %v7068 = vrot.slane %v7066, 5
      %v7069 = vor.u32 %v7065, %v7068
      %v7070 = vrot.slane %v7069, 4
      %v7072 = vshll.u32 %v6318, 16
      %v7074 = vrot.slane %v7072, 5
      %v7075 = vsel %vm2949, %v7070, %v7074
      %v7076 = vshrl.u32 %v6318, 16
      %v7078 = vrot.slane %v7076, 4
      %v7079 = vor.u32 %v7078, %v7074
      %v7080 = vrot.slane %v7079, 4
      %v7082 = vshll.u32 %v6319, 16
      %v7084 = vrot.slane %v7082, 5
      %v7085 = vsel %vm2949, %v7080, %v7084
      %v7087 = vshrl.u32 %v6320, 16
      %v7089 = vrot.slane %v7087, 4
      %v7090 = vshll.u32 %v6320, 16
      %v7092 = vrot.slane %v7090, 5
      %v7093 = vor.u32 %v7089, %v7092
      %v7094 = vrot.slane %v7093, 4
      %v7096 = vshll.u32 %v6321, 16
      %v7098 = vrot.slane %v7096, 5
      %v7099 = vsel %vm2949, %v7094, %v7098
      %v7100 = vshrl.u32 %v6321, 16
      %v7102 = vrot.slane %v7100, 4
      %v7103 = vor.u32 %v7102, %v7098
      %v7104 = vrot.slane %v7103, 4
      %v7106 = vshll.u32 %v6322, 16
      %v7108 = vrot.slane %v7106, 5
      %v7109 = vsel %vm2949, %v7104, %v7108
      %v7111 = vshrl.u32 %v6323, 16
      %v7113 = vrot.slane %v7111, 4
      %v7114 = vshll.u32 %v6323, 16
      %v7116 = vrot.slane %v7114, 5
      %v7117 = vor.u32 %v7113, %v7116
      %v7118 = vrot.slane %v7117, 4
      %v7120 = vshll.u32 %v6324, 16
      %v7122 = vrot.slane %v7120, 5
      %v7123 = vsel %vm2949, %v7118, %v7122
      %v7124 = vshrl.u32 %v6324, 16
      %v7126 = vrot.slane %v7124, 4
      %v7127 = vor.u32 %v7126, %v7122
      %v7128 = vrot.slane %v7127, 4
      %v7130 = vshll.u32 %v6325, 16
      %v7132 = vrot.slane %v7130, 5
      %v7133 = vsel %vm2949, %v7128, %v7132
      %v7135 = vshrl.u32 %v6326, 16
      %v7137 = vrot.slane %v7135, 4
      %v7138 = vshll.u32 %v6326, 16
      %v7140 = vrot.slane %v7138, 5
      %v7141 = vor.u32 %v7137, %v7140
      %v7142 = vrot.slane %v7141, 4
      %v7144 = vshll.u32 %v6327, 16
      %v7146 = vrot.slane %v7144, 5
      %v7147 = vsel %vm2949, %v7142, %v7146
      %v7148 = vshrl.u32 %v6327, 16
      %v7150 = vrot.slane %v7148, 4
      %v7151 = vor.u32 %v7150, %v7146
      %v7152 = vrot.slane %v7151, 4
      %v7154 = vshll.u32 %v6328, 16
      %v7156 = vrot.slane %v7154, 5
      %v7157 = vsel %vm2949, %v7152, %v7156
      %v7159 = vshrl.u32 %v6329, 16
      %v7161 = vrot.slane %v7159, 4
      %v7162 = vshll.u32 %v6329, 16
      %v7164 = vrot.slane %v7162, 5
      %v7165 = vor.u32 %v7161, %v7164
      %v7166 = vrot.slane %v7165, 4
      %v7168 = vshll.u32 %v6330, 16
      %v7170 = vrot.slane %v7168, 5
      %v7171 = vsel %vm2949, %v7166, %v7170
      %v7172 = vshrl.u32 %v6330, 16
      %v7174 = vrot.slane %v7172, 4
      %v7175 = vor.u32 %v7174, %v7170
      %v7176 = vrot.slane %v7175, 4
      %v7178 = vshll.u32 %v6331, 16
      %v7180 = vrot.slane %v7178, 5
      %v7181 = vsel %vm2949, %v7176, %v7180
      %v7183 = vshrl.u32 %v6332, 16
      %v7185 = vrot.slane %v7183, 4
      %v7186 = vshll.u32 %v6332, 16
      %v7188 = vrot.slane %v7186, 5
      %v7189 = vor.u32 %v7185, %v7188
      %v7190 = vrot.slane %v7189, 4
      %v7192 = vshll.u32 %v6333, 16
      %v7194 = vrot.slane %v7192, 5
      %v7195 = vsel %vm2949, %v7190, %v7194
      %v7196 = vshrl.u32 %v6333, 16
      %v7198 = vrot.slane %v7196, 4
      %v7199 = vor.u32 %v7198, %v7194
      %v7200 = vrot.slane %v7199, 4
      %v7202 = vshll.u32 %v6334, 16
      %v7204 = vrot.slane %v7202, 5
      %v7205 = vsel %vm2949, %v7200, %v7204
      %v7207 = vshrl.u32 %v6335, 16
      %v7209 = vrot.slane %v7207, 4
      %v7210 = vshll.u32 %v6335, 16
      %v7212 = vrot.slane %v7210, 5
      %v7213 = vor.u32 %v7209, %v7212
      %v7214 = vrot.slane %v7213, 4
      %v7216 = vshll.u32 %v6336, 16
      %v7218 = vrot.slane %v7216, 5
      %v7219 = vsel %vm2949, %v7214, %v7218
      %v7220 = vshrl.u32 %v6336, 16
      %v7222 = vrot.slane %v7220, 4
      %v7223 = vor.u32 %v7222, %v7218
      %v7224 = vrot.slane %v7223, 4
      %v7226 = vshll.u32 %v6337, 16
      %v7228 = vrot.slane %v7226, 5
      %v7229 = vsel %vm2949, %v7224, %v7228
      %v7231 = vshrl.u32 %v6338, 16
      %v7233 = vrot.slane %v7231, 4
      %v7234 = vshll.u32 %v6338, 16
      %v7236 = vrot.slane %v7234, 5
      %v7237 = vor.u32 %v7233, %v7236
      %v7238 = vrot.slane %v7237, 4
      %v7240 = vshll.u32 %v6339, 16
      %v7242 = vrot.slane %v7240, 5
      %v7243 = vsel %vm2949, %v7238, %v7242
      %v7244 = vshrl.u32 %v6339, 16
      %v7246 = vrot.slane %v7244, 4
      %v7247 = vor.u32 %v7246, %v7242
      %v7248 = vrot.slane %v7247, 4
      %v7250 = vshll.u32 %v6340, 16
      %v7252 = vrot.slane %v7250, 5
      %v7253 = vsel %vm2949, %v7248, %v7252
      %v7255 = vshrl.u32 %v6341, 16
      %v7257 = vrot.slane %v7255, 4
      %v7258 = vshll.u32 %v6341, 16
      %v7260 = vrot.slane %v7258, 5
      %v7261 = vor.u32 %v7257, %v7260
      %v7262 = vrot.slane %v7261, 4
      %v7264 = vshll.u32 %v6342, 16
      %v7266 = vrot.slane %v7264, 5
      %v7267 = vsel %vm2949, %v7262, %v7266
      %v7268 = vshrl.u32 %v6342, 16
      %v7270 = vrot.slane %v7268, 4
      %v7271 = vor.u32 %v7270, %v7266
      %v7272 = vrot.slane %v7271, 4
      %v7274 = vshll.u32 %v6343, 16
      %v7276 = vrot.slane %v7274, 5
      %v7277 = vsel %vm2949, %v7272, %v7276
      %v7279 = vshrl.u32 %v6344, 16
      %v7281 = vrot.slane %v7279, 4
      %v7282 = vshll.u32 %v6344, 16
      %v7284 = vrot.slane %v7282, 5
      %v7285 = vor.u32 %v7281, %v7284
      %v7286 = vrot.slane %v7285, 4
      %v7288 = vshll.u32 %v6345, 16
      %v7290 = vrot.slane %v7288, 5
      %v7291 = vsel %vm2949, %v7286, %v7290
      %v7292 = vshrl.u32 %v6345, 16
      %v7294 = vrot.slane %v7292, 4
      %v7295 = vor.u32 %v7294, %v7290
      %v7296 = vrot.slane %v7295, 4
      %v7298 = vshll.u32 %v6346, 16
      %v7300 = vrot.slane %v7298, 5
      %v7301 = vsel %vm2949, %v7296, %v7300
      %v7303 = vshrl.u32 %v6347, 16
      %v7305 = vrot.slane %v7303, 4
      %v7306 = vshll.u32 %v6347, 16
      %v7308 = vrot.slane %v7306, 5
      %v7309 = vor.u32 %v7305, %v7308
      %v7310 = vrot.slane %v7309, 4
      %v7312 = vshll.u32 %v6348, 16
      %v7314 = vrot.slane %v7312, 5
      %v7315 = vsel %vm2949, %v7310, %v7314
      %v7316 = vshrl.u32 %v6348, 16
      %v7318 = vrot.slane %v7316, 4
      %v7319 = vor.u32 %v7318, %v7314
      %v7320 = vrot.slane %v7319, 4
      %v7322 = vshll.u32 %v6349, 16
      %v7324 = vrot.slane %v7322, 5
      %v7325 = vsel %vm2949, %v7320, %v7324
      %v7327 = vshrl.u32 %v6350, 16
      %v7329 = vrot.slane %v7327, 4
      %v7330 = vshll.u32 %v6350, 16
      %v7332 = vrot.slane %v7330, 5
      %v7333 = vor.u32 %v7329, %v7332
      %v7334 = vrot.slane %v7333, 4
      %v7336 = vshll.u32 %v6351, 16
      %v7338 = vrot.slane %v7336, 5
      %v7339 = vsel %vm2949, %v7334, %v7338
      %v7340 = vshrl.u32 %v6351, 16
      %v7342 = vrot.slane %v7340, 4
      %v7343 = vor.u32 %v7342, %v7338
      %v7344 = vrot.slane %v7343, 4
      %v7346 = vshll.u32 %v6352, 16
      %v7348 = vrot.slane %v7346, 5
      %v7349 = vsel %vm2949, %v7344, %v7348
      %v7351 = vshrl.u32 %v6353, 16
      %v7353 = vrot.slane %v7351, 4
      %v7354 = vshll.u32 %v6353, 16
      %v7356 = vrot.slane %v7354, 5
      %v7357 = vor.u32 %v7353, %v7356
      %v7358 = vrot.slane %v7357, 4
      %v7360 = vshll.u32 %v6354, 16
      %v7362 = vrot.slane %v7360, 5
      %v7363 = vsel %vm2949, %v7358, %v7362
      %v7364 = vshrl.u32 %v6354, 16
      %v7366 = vrot.slane %v7364, 4
      %v7367 = vor.u32 %v7366, %v7362
      %v7368 = vrot.slane %v7367, 4
      %v7370 = vshll.u32 %v6355, 16
      %v7372 = vrot.slane %v7370, 5
      %v7373 = vsel %vm2949, %v7368, %v7372
      %v7375 = vshrl.u32 %v6356, 16
      %v7377 = vrot.slane %v7375, 4
      %v7378 = vshll.u32 %v6356, 16
      %v7380 = vrot.slane %v7378, 5
      %v7381 = vor.u32 %v7377, %v7380
      %v7382 = vrot.slane %v7381, 4
      %v7384 = vshll.u32 %v6357, 16
      %v7386 = vrot.slane %v7384, 5
      %v7387 = vsel %vm2949, %v7382, %v7386
      %v7388 = vshrl.u32 %v6357, 16
      %v7390 = vrot.slane %v7388, 4
      %v7391 = vor.u32 %v7390, %v7386
      %v7392 = vrot.slane %v7391, 4
      %v7394 = vshll.u32 %v6358, 16
      %v7396 = vrot.slane %v7394, 5
      %v7397 = vsel %vm2949, %v7392, %v7396
      %v7399 = vshrl.u32 %v6365, 16
      %v7401 = vrot.slane %v7399, 4
      %v7402 = vshll.u32 %v6365, 16
      %v7404 = vrot.slane %v7402, 5
      %v7405 = vor.u32 %v7401, %v7404
      %v7406 = vrot.slane %v7405, 4
      %v7408 = vshll.u32 %v6366, 16
      %v7410 = vrot.slane %v7408, 5
      %v7411 = vsel %vm2949, %v7406, %v7410
      %v7412 = vshrl.u32 %v6366, 16
      %v7414 = vrot.slane %v7412, 4
      %v7415 = vor.u32 %v7414, %v7410
      %v7416 = vrot.slane %v7415, 4
      %v7418 = vshll.u32 %v6367, 16
      %v7420 = vrot.slane %v7418, 5
      %v7421 = vsel %vm2949, %v7416, %v7420
      %v7423 = vshrl.u32 %v6368, 16
      %v7425 = vrot.slane %v7423, 4
      %v7426 = vshll.u32 %v6368, 16
      %v7428 = vrot.slane %v7426, 5
      %v7429 = vor.u32 %v7425, %v7428
      %v7430 = vrot.slane %v7429, 4
      %v7432 = vshll.u32 %v6369, 16
      %v7434 = vrot.slane %v7432, 5
      %v7435 = vsel %vm2949, %v7430, %v7434
      %v7436 = vshrl.u32 %v6369, 16
      %v7438 = vrot.slane %v7436, 4
      %v7439 = vor.u32 %v7438, %v7434
      %v7440 = vrot.slane %v7439, 4
      %v7442 = vshll.u32 %v6370, 16
      %v7444 = vrot.slane %v7442, 5
      %v7445 = vsel %vm2949, %v7440, %v7444
      %v7447 = vshrl.u32 %v6371, 16
      %v7449 = vrot.slane %v7447, 4
      %v7450 = vshll.u32 %v6371, 16
      %v7452 = vrot.slane %v7450, 5
      %v7453 = vor.u32 %v7449, %v7452
      %v7454 = vrot.slane %v7453, 4
      %v7456 = vshll.u32 %v6372, 16
      %v7458 = vrot.slane %v7456, 5
      %v7459 = vsel %vm2949, %v7454, %v7458
      %v7460 = vshrl.u32 %v6372, 16
      %v7462 = vrot.slane %v7460, 4
      %v7463 = vor.u32 %v7462, %v7458
      %v7464 = vrot.slane %v7463, 4
      %v7466 = vshll.u32 %v6373, 16
      %v7468 = vrot.slane %v7466, 5
      %v7469 = vsel %vm2949, %v7464, %v7468
      %v7471 = vshrl.u32 %v6374, 16
      %v7473 = vrot.slane %v7471, 4
      %v7474 = vshll.u32 %v6374, 16
      %v7476 = vrot.slane %v7474, 5
      %v7477 = vor.u32 %v7473, %v7476
      %v7478 = vrot.slane %v7477, 4
      %v7480 = vshll.u32 %v6375, 16
      %v7482 = vrot.slane %v7480, 5
      %v7483 = vsel %vm2949, %v7478, %v7482
      %v7484 = vshrl.u32 %v6375, 16
      %v7486 = vrot.slane %v7484, 4
      %v7487 = vor.u32 %v7486, %v7482
      %v7488 = vrot.slane %v7487, 4
      %v7490 = vshll.u32 %v6376, 16
      %v7492 = vrot.slane %v7490, 5
      %v7493 = vsel %vm2949, %v7488, %v7492
      %v7495 = vshrl.u32 %v6377, 16
      %v7497 = vrot.slane %v7495, 4
      %v7498 = vshll.u32 %v6377, 16
      %v7500 = vrot.slane %v7498, 5
      %v7501 = vor.u32 %v7497, %v7500
      %v7502 = vrot.slane %v7501, 4
      %v7504 = vshll.u32 %v6378, 16
      %v7506 = vrot.slane %v7504, 5
      %v7507 = vsel %vm2949, %v7502, %v7506
      %v7508 = vshrl.u32 %v6378, 16
      %v7510 = vrot.slane %v7508, 4
      %v7511 = vor.u32 %v7510, %v7506
      %v7512 = vrot.slane %v7511, 4
      %v7514 = vshll.u32 %v6379, 16
      %v7516 = vrot.slane %v7514, 5
      %v7517 = vsel %vm2949, %v7512, %v7516
      %v7519 = vshrl.u32 %v6380, 16
      %v7521 = vrot.slane %v7519, 4
      %v7522 = vshll.u32 %v6380, 16
      %v7524 = vrot.slane %v7522, 5
      %v7525 = vor.u32 %v7521, %v7524
      %v7526 = vrot.slane %v7525, 4
      %v7528 = vshll.u32 %v6381, 16
      %v7530 = vrot.slane %v7528, 5
      %v7531 = vsel %vm2949, %v7526, %v7530
      %v7532 = vshrl.u32 %v6381, 16
      %v7534 = vrot.slane %v7532, 4
      %v7535 = vor.u32 %v7534, %v7530
      %v7536 = vrot.slane %v7535, 4
      %v7538 = vshll.u32 %v6382, 16
      %v7540 = vrot.slane %v7538, 5
      %v7541 = vsel %vm2949, %v7536, %v7540
      %v7543 = vshrl.u32 %v6383, 16
      %v7545 = vrot.slane %v7543, 4
      %v7546 = vshll.u32 %v6383, 16
      %v7548 = vrot.slane %v7546, 5
      %v7549 = vor.u32 %v7545, %v7548
      %v7550 = vrot.slane %v7549, 4
      %v7552 = vshll.u32 %v6384, 16
      %v7554 = vrot.slane %v7552, 5
      %v7555 = vsel %vm2949, %v7550, %v7554
      %v7556 = vshrl.u32 %v6384, 16
      %v7558 = vrot.slane %v7556, 4
      %v7559 = vor.u32 %v7558, %v7554
      %v7560 = vrot.slane %v7559, 4
      %v7562 = vshll.u32 %v6385, 16
      %v7564 = vrot.slane %v7562, 5
      %v7565 = vsel %vm2949, %v7560, %v7564
      %v7567 = vshrl.u32 %v6386, 16
      %v7569 = vrot.slane %v7567, 4
      %v7570 = vshll.u32 %v6386, 16
      %v7572 = vrot.slane %v7570, 5
      %v7573 = vor.u32 %v7569, %v7572
      %v7574 = vrot.slane %v7573, 4
      %v7576 = vshll.u32 %v6387, 16
      %v7578 = vrot.slane %v7576, 5
      %v7579 = vsel %vm2949, %v7574, %v7578
      %v7580 = vshrl.u32 %v6387, 16
      %v7582 = vrot.slane %v7580, 4
      %v7583 = vor.u32 %v7582, %v7578
      %v7584 = vrot.slane %v7583, 4
      %v7586 = vshll.u32 %v6388, 16
      %v7588 = vrot.slane %v7586, 5
      %v7589 = vsel %vm2949, %v7584, %v7588
      %v7591 = vshrl.u32 %v6389, 16
      %v7593 = vrot.slane %v7591, 4
      %v7594 = vshll.u32 %v6389, 16
      %v7596 = vrot.slane %v7594, 5
      %v7597 = vor.u32 %v7593, %v7596
      %v7598 = vrot.slane %v7597, 4
      %v7600 = vshll.u32 %v6390, 16
      %v7602 = vrot.slane %v7600, 5
      %v7603 = vsel %vm2949, %v7598, %v7602
      %v7604 = vshrl.u32 %v6390, 16
      %v7606 = vrot.slane %v7604, 4
      %v7607 = vor.u32 %v7606, %v7602
      %v7608 = vrot.slane %v7607, 4
      %v7610 = vshll.u32 %v6391, 16
      %v7612 = vrot.slane %v7610, 5
      %v7613 = vsel %vm2949, %v7608, %v7612
      %v7615 = vshrl.u32 %v6392, 16
      %v7617 = vrot.slane %v7615, 4
      %v7618 = vshll.u32 %v6392, 16
      %v7620 = vrot.slane %v7618, 5
      %v7621 = vor.u32 %v7617, %v7620
      %v7622 = vrot.slane %v7621, 4
      %v7624 = vshll.u32 %v6393, 16
      %v7626 = vrot.slane %v7624, 5
      %v7627 = vsel %vm2949, %v7622, %v7626
      %v7628 = vshrl.u32 %v6393, 16
      %v7630 = vrot.slane %v7628, 4
      %v7631 = vor.u32 %v7630, %v7626
      %v7632 = vrot.slane %v7631, 4
      %v7634 = vshll.u32 %v6394, 16
      %v7636 = vrot.slane %v7634, 5
      %v7637 = vsel %vm2949, %v7632, %v7636
      %v7639 = vshrl.u32 %v6395, 16
      %v7641 = vrot.slane %v7639, 4
      %v7642 = vshll.u32 %v6395, 16
      %v7644 = vrot.slane %v7642, 5
      %v7645 = vor.u32 %v7641, %v7644
      %v7646 = vrot.slane %v7645, 4
      %v7648 = vshll.u32 %v6396, 16
      %v7650 = vrot.slane %v7648, 5
      %v7651 = vsel %vm2949, %v7646, %v7650
      %v7652 = vshrl.u32 %v6396, 16
      %v7654 = vrot.slane %v7652, 4
      %v7655 = vor.u32 %v7654, %v7650
      %v7656 = vrot.slane %v7655, 4
      %v7658 = vshll.u32 %v6397, 16
      %v7660 = vrot.slane %v7658, 5
      %v7661 = vsel %vm2949, %v7656, %v7660
      %v7663 = vshrl.u32 %v6398, 16
      %v7665 = vrot.slane %v7663, 4
      %v7666 = vshll.u32 %v6398, 16
      %v7668 = vrot.slane %v7666, 5
      %v7669 = vor.u32 %v7665, %v7668
      %v7670 = vrot.slane %v7669, 4
      %v7672 = vshll.u32 %v6399, 16
      %v7674 = vrot.slane %v7672, 5
      %v7675 = vsel %vm2949, %v7670, %v7674
      %v7676 = vshrl.u32 %v6399, 16
      %v7678 = vrot.slane %v7676, 4
      %v7679 = vor.u32 %v7678, %v7674
      %v7680 = vrot.slane %v7679, 4
      %v7682 = vshll.u32 %v6400, 16
      %v7684 = vrot.slane %v7682, 5
      %v7685 = vsel %vm2949, %v7680, %v7684
      %v7687 = vshrl.u32 %v6401, 16
      %v7689 = vrot.slane %v7687, 4
      %v7690 = vshll.u32 %v6401, 16
      %v7692 = vrot.slane %v7690, 5
      %v7693 = vor.u32 %v7689, %v7692
      %v7694 = vrot.slane %v7693, 4
      %v7696 = vshll.u32 %v6402, 16
      %v7698 = vrot.slane %v7696, 5
      %v7699 = vsel %vm2949, %v7694, %v7698
      %v7700 = vshrl.u32 %v6402, 16
      %v7702 = vrot.slane %v7700, 4
      %v7703 = vor.u32 %v7702, %v7698
      %v7704 = vrot.slane %v7703, 4
      %v7706 = vshll.u32 %v6403, 16
      %v7708 = vrot.slane %v7706, 5
      %v7709 = vsel %vm2949, %v7704, %v7708
      %v7711 = vshrl.u32 %v6404, 16
      %v7713 = vrot.slane %v7711, 4
      %v7714 = vshll.u32 %v6404, 16
      %v7716 = vrot.slane %v7714, 5
      %v7717 = vor.u32 %v7713, %v7716
      %v7718 = vrot.slane %v7717, 4
      %v7720 = vshll.u32 %v6405, 16
      %v7722 = vrot.slane %v7720, 5
      %v7723 = vsel %vm2949, %v7718, %v7722
      %v7724 = vshrl.u32 %v6405, 16
      %v7726 = vrot.slane %v7724, 4
      %v7727 = vor.u32 %v7726, %v7722
      %v7728 = vrot.slane %v7727, 4
      %v7730 = vshll.u32 %v6406, 16
      %v7732 = vrot.slane %v7730, 5
      %v7733 = vsel %vm2949, %v7728, %v7732
      %v7735 = vshrl.u32 %v6407, 16
      %v7737 = vrot.slane %v7735, 4
      %v7738 = vshll.u32 %v6407, 16
      %v7740 = vrot.slane %v7738, 5
      %v7741 = vor.u32 %v7737, %v7740
      %v7742 = vrot.slane %v7741, 4
      %v7744 = vshll.u32 %v6408, 16
      %v7746 = vrot.slane %v7744, 5
      %v7747 = vsel %vm2949, %v7742, %v7746
      %v7748 = vshrl.u32 %v6408, 16
      %v7750 = vrot.slane %v7748, 4
      %v7751 = vor.u32 %v7750, %v7746
      %v7752 = vrot.slane %v7751, 4
      %v7754 = vshll.u32 %v6409, 16
      %v7756 = vrot.slane %v7754, 5
      %v7757 = vsel %vm2949, %v7752, %v7756
      %v7759 = vshrl.u32 %v6410, 16
      %v7761 = vrot.slane %v7759, 4
      %v7762 = vshll.u32 %v6410, 16
      %v7764 = vrot.slane %v7762, 5
      %v7765 = vor.u32 %v7761, %v7764
      %v7766 = vrot.slane %v7765, 4
      %v7768 = vshll.u32 %v6411, 16
      %v7770 = vrot.slane %v7768, 5
      %v7771 = vsel %vm2949, %v7766, %v7770
      %v7772 = vshrl.u32 %v6411, 16
      %v7774 = vrot.slane %v7772, 4
      %v7775 = vor.u32 %v7774, %v7770
      %v7776 = vrot.slane %v7775, 4
      %v7778 = vshll.u32 %v6412, 16
      %v7780 = vrot.slane %v7778, 5
      %v7781 = vsel %vm2949, %v7776, %v7780
      %s7782 = scalar_lea.vmem %s4, 8
      %v7783 = vld [vmem:[%s7782] sm:$0xf]
      %v7784 = vld [vmem:[%s7782 + $0x4] sm:$0xf]
      %v7785 = vunpack.c.l.b16 %v7027
      %v7786 = vunpack.c.l.b16 %v7037
      %v7787 = vunpack.c.l.b16 %v7051
      %v7788 = vunpack.c.l.b16 %v7061
      %v7789 = vunpack.c.l.b16 %v7075
      %v7790 = vunpack.c.l.b16 %v7085
      %v7791 = vunpack.c.l.b16 %v7099
      %v7792 = vunpack.c.l.b16 %v7109
      %v7793 = vunpack.c.l.b16 %v7123
      %v7794 = vunpack.c.l.b16 %v7133
      %v7795 = vunpack.c.l.b16 %v7147
      %v7796 = vunpack.c.l.b16 %v7157
      %v7797 = vunpack.c.l.b16 %v7171
      %v7798 = vunpack.c.l.b16 %v7181
      %v7799 = vunpack.c.l.b16 %v7195
      %v7800 = vunpack.c.l.b16 %v7205
      %v7801 = vunpack.c.l.b16 %v7219
      %v7802 = vunpack.c.l.b16 %v7229
      %v7803 = vunpack.c.l.b16 %v7243
      %v7804 = vunpack.c.l.b16 %v7253
      %v7805 = vunpack.c.l.b16 %v7267
      %v7806 = vunpack.c.l.b16 %v7277
      %v7807 = vunpack.c.l.b16 %v7291
      %v7808 = vunpack.c.l.b16 %v7301
      %v7809 = vunpack.c.l.b16 %v7315
      %v7810 = vunpack.c.l.b16 %v7325
      %v7811 = vunpack.c.l.b16 %v7339
      %v7812 = vunpack.c.l.b16 %v7349
      %v7813 = vunpack.c.l.b16 %v7363
      %v7814 = vunpack.c.l.b16 %v7373
      %v7815 = vunpack.c.l.b16 %v7387
      %v7816 = vunpack.c.l.b16 %v7397
      %v7817 = vpack.c.b16 %v7786, %v7785
      %v7818 = vpack.c.b16 %v7788, %v7787
      %v7819 = vpack.c.b16 %v7790, %v7789
      %v7820 = vpack.c.b16 %v7792, %v7791
      %v7821 = vpack.c.b16 %v7794, %v7793
      %v7822 = vpack.c.b16 %v7796, %v7795
      %v7823 = vpack.c.b16 %v7798, %v7797
      %v7824 = vpack.c.b16 %v7800, %v7799
      %v7825 = vpack.c.b16 %v7802, %v7801
      %v7826 = vpack.c.b16 %v7804, %v7803
      %v7827 = vpack.c.b16 %v7806, %v7805
      %v7828 = vpack.c.b16 %v7808, %v7807
      %v7829 = vpack.c.b16 %v7810, %v7809
      %v7830 = vpack.c.b16 %v7812, %v7811
      %v7831 = vpack.c.b16 %v7814, %v7813
      %v7832 = vpack.c.b16 %v7816, %v7815
      %v7835 = vunpack.c.l.b16 %v7783
      %v7836 = vunpack.c.l.b16 %v7784
      %v7837 = vpack.c.b16 %v7836, %v7835
      %v7840 = vsel %vm6509, %v7817, 0
      %v7843 = vsel %vm6509, %v7818, 0
      %v7846 = vsel %vm6509, %v7819, 0
      %v7849 = vsel %vm6509, %v7820, 0
      %v7852 = vsel %vm6509, %v7821, 0
      %v7855 = vsel %vm6509, %v7822, 0
      %v7858 = vsel %vm6509, %v7823, 0
      %v7861 = vsel %vm6509, %v7824, 0
      %v7864 = vsel %vm6509, %v7825, 0
      %v7867 = vsel %vm6509, %v7826, 0
      %v7870 = vsel %vm6509, %v7827, 0
      %v7873 = vsel %vm6509, %v7828, 0
      %v7876 = vsel %vm6509, %v7829, 0
      %v7879 = vsel %vm6509, %v7830, 0
      %v7882 = vsel %vm6509, %v7831, 0
      %v7885 = vsel %vm6509, %v7832, 0
      %7887 = vmatprep.subr.bf16.mxu0 0
      %7888 = vmatpush1.bf16.msra.mxu0 %v7837
      %7889 = vmatprep.subr.bf16.mxu0 0
      %7890 = vmatpush1.bf16.msra.mxu0 0
      %7891 = vmatprep.subr.bf16.mxu0 0
      %7892 = vmatpush1.bf16.msra.mxu0 0
      %7893 = vmatprep.subr.bf16.mxu0 0
      %7894 = vmatpush1.bf16.msra.mxu0 0
      %7895 = vmatprep.subr.bf16.mxu0 0
      %7896 = vmatpush1.bf16.msra.mxu0 0
      %7897 = vmatprep.subr.bf16.mxu0 0
      %7898 = vmatpush1.bf16.msra.mxu0 0
      %7899 = vmatprep.subr.bf16.mxu0 0
      %7900 = vmatpush1.bf16.msra.mxu0 0
      %7901 = vmatprep.subr.bf16.mxu0 0
      %7902 = vmatpush1.bf16.msra.mxu0 0
      %7903 = vmatprep.subr.bf16.mxu0 0
      %7904 = vmatpush1.bf16.msra.mxu0 0
      %7905 = vmatprep.subr.bf16.mxu0 0
      %7906 = vmatpush1.bf16.msra.mxu0 0
      %7907 = vmatprep.subr.bf16.mxu0 0
      %7908 = vmatpush1.bf16.msra.mxu0 0
      %7909 = vmatprep.subr.bf16.mxu0 0
      %7910 = vmatpush1.bf16.msra.mxu0 0
      %7911 = vmatprep.subr.bf16.mxu0 0
      %7912 = vmatpush1.bf16.msra.mxu0 0
      %7913 = vmatprep.subr.bf16.mxu0 0
      %7914 = vmatpush1.bf16.msra.mxu0 0
      %7915 = vmatprep.subr.bf16.mxu0 0
      %7916 = vmatpush1.bf16.msra.mxu0 0
      %7917 = vmatprep.subr.bf16.mxu0 0
      %7918 = vmatpush1.bf16.msra.mxu0 0
      %7919 = vmatprep.mubr.bf16.mxu0 0
      %7920 = vmatmul.mubr.bf16.gmra.mrb[0].mxu0 %v7840
      %v7921 = vpop.f32.mrb[0].mxu0
      %v7922 = vadd.f32 0.0, %v7921
      %v7923 = vpop.f32.mrb[0].mxu0
      %v7924 = vpop.f32.mrb[0].mxu0
      %v7925 = vadd.f32 0.0, %v7924
      %v7926 = vpop.f32.mrb[0].mxu0
      %7927 = vmatprep.mubr.bf16.mxu0 0
      %7928 = vmatmul.mubr.bf16.gmra.mrb[0].mxu0 %v7843
      %v7929 = vpop.f32.mrb[0].mxu0
      %v7930 = vadd.f32 0.0, %v7929
      %v7931 = vpop.f32.mrb[0].mxu0
      %v7932 = vpop.f32.mrb[0].mxu0
      %v7933 = vadd.f32 0.0, %v7932
      %v7934 = vpop.f32.mrb[0].mxu0
      %7935 = vmatprep.mubr.bf16.mxu0 0
      %7936 = vmatmul.mubr.bf16.gmra.mrb[0].mxu0 %v7846
      %v7937 = vpop.f32.mrb[0].mxu0
      %v7938 = vadd.f32 0.0, %v7937
      %v7939 = vpop.f32.mrb[0].mxu0
      %v7940 = vpop.f32.mrb[0].mxu0
      %v7941 = vadd.f32 0.0, %v7940
      %v7942 = vpop.f32.mrb[0].mxu0
      %7943 = vmatprep.mubr.bf16.mxu0 0
      %7944 = vmatmul.mubr.bf16.gmra.mrb[0].mxu0 %v7849
      %v7945 = vpop.f32.mrb[0].mxu0
      %v7946 = vadd.f32 0.0, %v7945
      %v7947 = vpop.f32.mrb[0].mxu0
      %v7948 = vpop.f32.mrb[0].mxu0
      %v7949 = vadd.f32 0.0, %v7948
      %v7950 = vpop.f32.mrb[0].mxu0
      %7951 = vmatprep.mubr.bf16.mxu0 0
      %7952 = vmatmul.mubr.bf16.gmra.mrb[0].mxu0 %v7852
      %v7953 = vpop.f32.mrb[0].mxu0
      %v7954 = vadd.f32 0.0, %v7953
      %v7955 = vpop.f32.mrb[0].mxu0
      %v7956 = vpop.f32.mrb[0].mxu0
      %v7957 = vadd.f32 0.0, %v7956
      %v7958 = vpop.f32.mrb[0].mxu0
      %7959 = vmatprep.mubr.bf16.mxu0 0
      %7960 = vmatmul.mubr.bf16.gmra.mrb[0].mxu0 %v7855
      %v7961 = vpop.f32.mrb[0].mxu0
      %v7962 = vadd.f32 0.0, %v7961
      %v7963 = vpop.f32.mrb[0].mxu0
      %v7964 = vpop.f32.mrb[0].mxu0
      %v7965 = vadd.f32 0.0, %v7964
      %v7966 = vpop.f32.mrb[0].mxu0
      %7967 = vmatprep.mubr.bf16.mxu0 0
      %7968 = vmatmul.mubr.bf16.gmra.mrb[0].mxu0 %v7858
      %v7969 = vpop.f32.mrb[0].mxu0
      %v7970 = vadd.f32 0.0, %v7969
      %v7971 = vpop.f32.mrb[0].mxu0
      %v7972 = vpop.f32.mrb[0].mxu0
      %v7973 = vadd.f32 0.0, %v7972
      %v7974 = vpop.f32.mrb[0].mxu0
      %7975 = vmatprep.mubr.bf16.mxu0 0
      %7976 = vmatmul.mubr.bf16.gmra.mrb[0].mxu0 %v7861
      %v7977 = vpop.f32.mrb[0].mxu0
      %v7978 = vadd.f32 0.0, %v7977
      %v7979 = vpop.f32.mrb[0].mxu0
      %v7980 = vpop.f32.mrb[0].mxu0
      %v7981 = vadd.f32 0.0, %v7980
      %v7982 = vpop.f32.mrb[0].mxu0
      %7983 = vmatprep.mubr.bf16.mxu0 0
      %7984 = vmatmul.mubr.bf16.gmra.mrb[0].mxu0 %v7864
      %v7985 = vpop.f32.mrb[0].mxu0
      %v7986 = vadd.f32 0.0, %v7985
      %v7987 = vpop.f32.mrb[0].mxu0
      %v7988 = vpop.f32.mrb[0].mxu0
      %v7989 = vadd.f32 0.0, %v7988
      %v7990 = vpop.f32.mrb[0].mxu0
      %7991 = vmatprep.mubr.bf16.mxu0 0
      %7992 = vmatmul.mubr.bf16.gmra.mrb[0].mxu0 %v7867
      %v7993 = vpop.f32.mrb[0].mxu0
      %v7994 = vadd.f32 0.0, %v7993
      %v7995 = vpop.f32.mrb[0].mxu0
      %v7996 = vpop.f32.mrb[0].mxu0
      %v7997 = vadd.f32 0.0, %v7996
      %v7998 = vpop.f32.mrb[0].mxu0
      %7999 = vmatprep.mubr.bf16.mxu0 0
      %8000 = vmatmul.mubr.bf16.gmra.mrb[0].mxu0 %v7870
      %v8001 = vpop.f32.mrb[0].mxu0
      %v8002 = vadd.f32 0.0, %v8001
      %v8003 = vpop.f32.mrb[0].mxu0
      %v8004 = vpop.f32.mrb[0].mxu0
      %v8005 = vadd.f32 0.0, %v8004
      %v8006 = vpop.f32.mrb[0].mxu0
      %8007 = vmatprep.mubr.bf16.mxu0 0
      %8008 = vmatmul.mubr.bf16.gmra.mrb[0].mxu0 %v7873
      %v8009 = vpop.f32.mrb[0].mxu0
      %v8010 = vadd.f32 0.0, %v8009
      %v8011 = vpop.f32.mrb[0].mxu0
      %v8012 = vpop.f32.mrb[0].mxu0
      %v8013 = vadd.f32 0.0, %v8012
      %v8014 = vpop.f32.mrb[0].mxu0
      %8015 = vmatprep.mubr.bf16.mxu0 0
      %8016 = vmatmul.mubr.bf16.gmra.mrb[0].mxu0 %v7876
      %v8017 = vpop.f32.mrb[0].mxu0
      %v8018 = vadd.f32 0.0, %v8017
      %v8019 = vpop.f32.mrb[0].mxu0
      %v8020 = vpop.f32.mrb[0].mxu0
      %v8021 = vadd.f32 0.0, %v8020
      %v8022 = vpop.f32.mrb[0].mxu0
      %8023 = vmatprep.mubr.bf16.mxu0 0
      %8024 = vmatmul.mubr.bf16.gmra.mrb[0].mxu0 %v7879
      %v8025 = vpop.f32.mrb[0].mxu0
      %v8026 = vadd.f32 0.0, %v8025
      %v8027 = vpop.f32.mrb[0].mxu0
      %v8028 = vpop.f32.mrb[0].mxu0
      %v8029 = vadd.f32 0.0, %v8028
      %v8030 = vpop.f32.mrb[0].mxu0
      %8031 = vmatprep.mubr.bf16.mxu0 0
      %8032 = vmatmul.mubr.bf16.gmra.mrb[0].mxu0 %v7882
      %v8033 = vpop.f32.mrb[0].mxu0
      %v8034 = vadd.f32 0.0, %v8033
      %v8035 = vpop.f32.mrb[0].mxu0
      %v8036 = vpop.f32.mrb[0].mxu0
      %v8037 = vadd.f32 0.0, %v8036
      %v8038 = vpop.f32.mrb[0].mxu0
      %8039 = vmatprep.mubr.bf16.mxu0 0
      %8040 = vmatmul.mubr.bf16.gmra.mrb[0].mxu0 %v7885
      %v8041 = vpop.f32.mrb[0].mxu0
      %v8042 = vadd.f32 0.0, %v8041
      %v8043 = vpop.f32.mrb[0].mxu0
      %v8044 = vpop.f32.mrb[0].mxu0
      %v8045 = vadd.f32 0.0, %v8044
      %v8046 = vpop.f32.mrb[0].mxu0
      %8047 = vdwg.mxu0
      %v8048 = vadd.f32 %v6888, %v7922
      %v8049 = vadd.f32 %v6891, %v7925
      %v8050 = vadd.f32 %v6896, %v7930
      %v8051 = vadd.f32 %v6899, %v7933
      %v8052 = vadd.f32 %v6904, %v7938
      %v8053 = vadd.f32 %v6907, %v7941
      %v8054 = vadd.f32 %v6912, %v7946
      %v8055 = vadd.f32 %v6915, %v7949
      %v8056 = vadd.f32 %v6920, %v7954
      %v8057 = vadd.f32 %v6923, %v7957
      %v8058 = vadd.f32 %v6928, %v7962
      %v8059 = vadd.f32 %v6931, %v7965
      %v8060 = vadd.f32 %v6936, %v7970
      %v8061 = vadd.f32 %v6939, %v7973
      %v8062 = vadd.f32 %v6944, %v7978
      %v8063 = vadd.f32 %v6947, %v7981
      %v8064 = vadd.f32 %v6952, %v7986
      %v8065 = vadd.f32 %v6955, %v7989
      %v8066 = vadd.f32 %v6960, %v7994
      %v8067 = vadd.f32 %v6963, %v7997
      %v8068 = vadd.f32 %v6968, %v8002
      %v8069 = vadd.f32 %v6971, %v8005
      %v8070 = vadd.f32 %v6976, %v8010
      %v8071 = vadd.f32 %v6979, %v8013
      %v8072 = vadd.f32 %v6984, %v8018
      %v8073 = vadd.f32 %v6987, %v8021
      %v8074 = vadd.f32 %v6992, %v8026
      %v8075 = vadd.f32 %v6995, %v8029
      %v8076 = vadd.f32 %v7000, %v8034
      %v8077 = vadd.f32 %v7003, %v8037
      %v8078 = vadd.f32 %v7008, %v8042
      %v8079 = vadd.f32 %v7011, %v8045
      %s8080 = scalar_lea.vmem %s5, 8
      %v8081 = vld [vmem:[%s8080] sm:$0xf]
      %v8082 = vld [vmem:[%s8080 + $0x4] sm:$0xf]
      %v8083 = vunpack.c.l.b16 %v7411
      %v8084 = vunpack.c.l.b16 %v7421
      %v8085 = vunpack.c.l.b16 %v7435
      %v8086 = vunpack.c.l.b16 %v7445
      %v8087 = vunpack.c.l.b16 %v7459
      %v8088 = vunpack.c.l.b16 %v7469
      %v8089 = vunpack.c.l.b16 %v7483
      %v8090 = vunpack.c.l.b16 %v7493
      %v8091 = vunpack.c.l.b16 %v7507
      %v8092 = vunpack.c.l.b16 %v7517
      %v8093 = vunpack.c.l.b16 %v7531
      %v8094 = vunpack.c.l.b16 %v7541
      %v8095 = vunpack.c.l.b16 %v7555
      %v8096 = vunpack.c.l.b16 %v7565
      %v8097 = vunpack.c.l.b16 %v7579
      %v8098 = vunpack.c.l.b16 %v7589
      %v8099 = vunpack.c.l.b16 %v7603
      %v8100 = vunpack.c.l.b16 %v7613
      %v8101 = vunpack.c.l.b16 %v7627
      %v8102 = vunpack.c.l.b16 %v7637
      %v8103 = vunpack.c.l.b16 %v7651
      %v8104 = vunpack.c.l.b16 %v7661
      %v8105 = vunpack.c.l.b16 %v7675
      %v8106 = vunpack.c.l.b16 %v7685
      %v8107 = vunpack.c.l.b16 %v7699
      %v8108 = vunpack.c.l.b16 %v7709
      %v8109 = vunpack.c.l.b16 %v7723
      %v8110 = vunpack.c.l.b16 %v7733
      %v8111 = vunpack.c.l.b16 %v7747
      %v8112 = vunpack.c.l.b16 %v7757
      %v8113 = vunpack.c.l.b16 %v7771
      %v8114 = vunpack.c.l.b16 %v7781
      %v8115 = vpack.c.b16 %v8084, %v8083
      %v8116 = vpack.c.b16 %v8086, %v8085
      %v8117 = vpack.c.b16 %v8088, %v8087
      %v8118 = vpack.c.b16 %v8090, %v8089
      %v8119 = vpack.c.b16 %v8092, %v8091
      %v8120 = vpack.c.b16 %v8094, %v8093
      %v8121 = vpack.c.b16 %v8096, %v8095
      %v8122 = vpack.c.b16 %v8098, %v8097
      %v8123 = vpack.c.b16 %v8100, %v8099
      %v8124 = vpack.c.b16 %v8102, %v8101
      %v8125 = vpack.c.b16 %v8104, %v8103
      %v8126 = vpack.c.b16 %v8106, %v8105
      %v8127 = vpack.c.b16 %v8108, %v8107
      %v8128 = vpack.c.b16 %v8110, %v8109
      %v8129 = vpack.c.b16 %v8112, %v8111
      %v8130 = vpack.c.b16 %v8114, %v8113
      %v8133 = vunpack.c.l.b16 %v8081
      %v8134 = vunpack.c.l.b16 %v8082
      %v8135 = vpack.c.b16 %v8134, %v8133
      %v8138 = vsel %vm6509, %v8115, 0
      %v8141 = vsel %vm6509, %v8116, 0
      %v8144 = vsel %vm6509, %v8117, 0
      %v8147 = vsel %vm6509, %v8118, 0
      %v8150 = vsel %vm6509, %v8119, 0
      %v8153 = vsel %vm6509, %v8120, 0
      %v8156 = vsel %vm6509, %v8121, 0
      %v8159 = vsel %vm6509, %v8122, 0
      %v8162 = vsel %vm6509, %v8123, 0
      %v8165 = vsel %vm6509, %v8124, 0
      %v8168 = vsel %vm6509, %v8125, 0
      %v8171 = vsel %vm6509, %v8126, 0
      %v8174 = vsel %vm6509, %v8127, 0
      %v8177 = vsel %vm6509, %v8128, 0
      %v8180 = vsel %vm6509, %v8129, 0
      %v8183 = vsel %vm6509, %v8130, 0
      %8185 = vmatprep.subr.bf16.mxu0 0
      %8186 = vmatpush1.bf16.msra.mxu0 %v8135
      %8187 = vmatprep.subr.bf16.mxu0 0
      %8188 = vmatpush1.bf16.msra.mxu0 0
      %8189 = vmatprep.subr.bf16.mxu0 0
      %8190 = vmatpush1.bf16.msra.mxu0 0
      %8191 = vmatprep.subr.bf16.mxu0 0
      %8192 = vmatpush1.bf16.msra.mxu0 0
      %8193 = vmatprep.subr.bf16.mxu0 0
      %8194 = vmatpush1.bf16.msra.mxu0 0
      %8195 = vmatprep.subr.bf16.mxu0 0
      %8196 = vmatpush1.bf16.msra.mxu0 0
      %8197 = vmatprep.subr.bf16.mxu0 0
      %8198 = vmatpush1.bf16.msra.mxu0 0
      %8199 = vmatprep.subr.bf16.mxu0 0
      %8200 = vmatpush1.bf16.msra.mxu0 0
      %8201 = vmatprep.subr.bf16.mxu0 0
      %8202 = vmatpush1.bf16.msra.mxu0 0
      %8203 = vmatprep.subr.bf16.mxu0 0
      %8204 = vmatpush1.bf16.msra.mxu0 0
      %8205 = vmatprep.subr.bf16.mxu0 0
      %8206 = vmatpush1.bf16.msra.mxu0 0
      %8207 = vmatprep.subr.bf16.mxu0 0
      %8208 = vmatpush1.bf16.msra.mxu0 0
      %8209 = vmatprep.subr.bf16.mxu0 0
      %8210 = vmatpush1.bf16.msra.mxu0 0
      %8211 = vmatprep.subr.bf16.mxu0 0
      %8212 = vmatpush1.bf16.msra.mxu0 0
      %8213 = vmatprep.subr.bf16.mxu0 0
      %8214 = vmatpush1.bf16.msra.mxu0 0
      %8215 = vmatprep.subr.bf16.mxu0 0
      %8216 = vmatpush1.bf16.msra.mxu0 0
      %8217 = vmatprep.mubr.bf16.mxu0 0
      %8218 = vmatmul.mubr.bf16.gmra.mrb[0].mxu0 %v8138
      %v8219 = vpop.f32.mrb[0].mxu0
      %v8220 = vadd.f32 0.0, %v8219
      %v8221 = vpop.f32.mrb[0].mxu0
      %v8222 = vpop.f32.mrb[0].mxu0
      %v8223 = vadd.f32 0.0, %v8222
      %v8224 = vpop.f32.mrb[0].mxu0
      %8225 = vmatprep.mubr.bf16.mxu0 0
      %8226 = vmatmul.mubr.bf16.gmra.mrb[0].mxu0 %v8141
      %v8227 = vpop.f32.mrb[0].mxu0
      %v8228 = vadd.f32 0.0, %v8227
      %v8229 = vpop.f32.mrb[0].mxu0
      %v8230 = vpop.f32.mrb[0].mxu0
      %v8231 = vadd.f32 0.0, %v8230
      %v8232 = vpop.f32.mrb[0].mxu0
      %8233 = vmatprep.mubr.bf16.mxu0 0
      %8234 = vmatmul.mubr.bf16.gmra.mrb[0].mxu0 %v8144
      %v8235 = vpop.f32.mrb[0].mxu0
      %v8236 = vadd.f32 0.0, %v8235
      %v8237 = vpop.f32.mrb[0].mxu0
      %v8238 = vpop.f32.mrb[0].mxu0
      %v8239 = vadd.f32 0.0, %v8238
      %v8240 = vpop.f32.mrb[0].mxu0
      %8241 = vmatprep.mubr.bf16.mxu0 0
      %8242 = vmatmul.mubr.bf16.gmra.mrb[0].mxu0 %v8147
      %v8243 = vpop.f32.mrb[0].mxu0
      %v8244 = vadd.f32 0.0, %v8243
      %v8245 = vpop.f32.mrb[0].mxu0
      %v8246 = vpop.f32.mrb[0].mxu0
      %v8247 = vadd.f32 0.0, %v8246
      %v8248 = vpop.f32.mrb[0].mxu0
      %8249 = vmatprep.mubr.bf16.mxu0 0
      %8250 = vmatmul.mubr.bf16.gmra.mrb[0].mxu0 %v8150
      %v8251 = vpop.f32.mrb[0].mxu0
      %v8252 = vadd.f32 0.0, %v8251
      %v8253 = vpop.f32.mrb[0].mxu0
      %v8254 = vpop.f32.mrb[0].mxu0
      %v8255 = vadd.f32 0.0, %v8254
      %v8256 = vpop.f32.mrb[0].mxu0
      %8257 = vmatprep.mubr.bf16.mxu0 0
      %8258 = vmatmul.mubr.bf16.gmra.mrb[0].mxu0 %v8153
      %v8259 = vpop.f32.mrb[0].mxu0
      %v8260 = vadd.f32 0.0, %v8259
      %v8261 = vpop.f32.mrb[0].mxu0
      %v8262 = vpop.f32.mrb[0].mxu0
      %v8263 = vadd.f32 0.0, %v8262
      %v8264 = vpop.f32.mrb[0].mxu0
      %8265 = vmatprep.mubr.bf16.mxu0 0
      %8266 = vmatmul.mubr.bf16.gmra.mrb[0].mxu0 %v8156
      %v8267 = vpop.f32.mrb[0].mxu0
      %v8268 = vadd.f32 0.0, %v8267
      %v8269 = vpop.f32.mrb[0].mxu0
      %v8270 = vpop.f32.mrb[0].mxu0
      %v8271 = vadd.f32 0.0, %v8270
      %v8272 = vpop.f32.mrb[0].mxu0
      %8273 = vmatprep.mubr.bf16.mxu0 0
      %8274 = vmatmul.mubr.bf16.gmra.mrb[0].mxu0 %v8159
      %v8275 = vpop.f32.mrb[0].mxu0
      %v8276 = vadd.f32 0.0, %v8275
      %v8277 = vpop.f32.mrb[0].mxu0
      %v8278 = vpop.f32.mrb[0].mxu0
      %v8279 = vadd.f32 0.0, %v8278
      %v8280 = vpop.f32.mrb[0].mxu0
      %8281 = vmatprep.mubr.bf16.mxu0 0
      %8282 = vmatmul.mubr.bf16.gmra.mrb[0].mxu0 %v8162
      %v8283 = vpop.f32.mrb[0].mxu0
      %v8284 = vadd.f32 0.0, %v8283
      %v8285 = vpop.f32.mrb[0].mxu0
      %v8286 = vpop.f32.mrb[0].mxu0
      %v8287 = vadd.f32 0.0, %v8286
      %v8288 = vpop.f32.mrb[0].mxu0
      %8289 = vmatprep.mubr.bf16.mxu0 0
      %8290 = vmatmul.mubr.bf16.gmra.mrb[0].mxu0 %v8165
      %v8291 = vpop.f32.mrb[0].mxu0
      %v8292 = vadd.f32 0.0, %v8291
      %v8293 = vpop.f32.mrb[0].mxu0
      %v8294 = vpop.f32.mrb[0].mxu0
      %v8295 = vadd.f32 0.0, %v8294
      %v8296 = vpop.f32.mrb[0].mxu0
      %8297 = vmatprep.mubr.bf16.mxu0 0
      %8298 = vmatmul.mubr.bf16.gmra.mrb[0].mxu0 %v8168
      %v8299 = vpop.f32.mrb[0].mxu0
      %v8300 = vadd.f32 0.0, %v8299
      %v8301 = vpop.f32.mrb[0].mxu0
      %v8302 = vpop.f32.mrb[0].mxu0
      %v8303 = vadd.f32 0.0, %v8302
      %v8304 = vpop.f32.mrb[0].mxu0
      %8305 = vmatprep.mubr.bf16.mxu0 0
      %8306 = vmatmul.mubr.bf16.gmra.mrb[0].mxu0 %v8171
      %v8307 = vpop.f32.mrb[0].mxu0
      %v8308 = vadd.f32 0.0, %v8307
      %v8309 = vpop.f32.mrb[0].mxu0
      %v8310 = vpop.f32.mrb[0].mxu0
      %v8311 = vadd.f32 0.0, %v8310
      %v8312 = vpop.f32.mrb[0].mxu0
      %8313 = vmatprep.mubr.bf16.mxu0 0
      %8314 = vmatmul.mubr.bf16.gmra.mrb[0].mxu0 %v8174
      %v8315 = vpop.f32.mrb[0].mxu0
      %v8316 = vadd.f32 0.0, %v8315
      %v8317 = vpop.f32.mrb[0].mxu0
      %v8318 = vpop.f32.mrb[0].mxu0
      %v8319 = vadd.f32 0.0, %v8318
      %v8320 = vpop.f32.mrb[0].mxu0
      %8321 = vmatprep.mubr.bf16.mxu0 0
      %8322 = vmatmul.mubr.bf16.gmra.mrb[0].mxu0 %v8177
      %v8323 = vpop.f32.mrb[0].mxu0
      %v8324 = vadd.f32 0.0, %v8323
      %v8325 = vpop.f32.mrb[0].mxu0
      %v8326 = vpop.f32.mrb[0].mxu0
      %v8327 = vadd.f32 0.0, %v8326
      %v8328 = vpop.f32.mrb[0].mxu0
      %8329 = vmatprep.mubr.bf16.mxu0 0
      %8330 = vmatmul.mubr.bf16.gmra.mrb[0].mxu0 %v8180
      %v8331 = vpop.f32.mrb[0].mxu0
      %v8332 = vadd.f32 0.0, %v8331
      %v8333 = vpop.f32.mrb[0].mxu0
      %v8334 = vpop.f32.mrb[0].mxu0
      %v8335 = vadd.f32 0.0, %v8334
      %v8336 = vpop.f32.mrb[0].mxu0
      %8337 = vmatprep.mubr.bf16.mxu0 0
      %8338 = vmatmul.mubr.bf16.gmra.mrb[0].mxu0 %v8183
      %v8339 = vpop.f32.mrb[0].mxu0
      %v8340 = vadd.f32 0.0, %v8339
      %v8341 = vpop.f32.mrb[0].mxu0
      %v8342 = vpop.f32.mrb[0].mxu0
      %v8343 = vadd.f32 0.0, %v8342
      %v8344 = vpop.f32.mrb[0].mxu0
      %8345 = vdwg.mxu0
      %v8346 = vadd.f32 %v8048, %v8220
      %v8347 = vadd.f32 %v8049, %v8223
      %v8348 = vadd.f32 %v8050, %v8228
      %v8349 = vadd.f32 %v8051, %v8231
      %v8350 = vadd.f32 %v8052, %v8236
      %v8351 = vadd.f32 %v8053, %v8239
      %v8352 = vadd.f32 %v8054, %v8244
      %v8353 = vadd.f32 %v8055, %v8247
      %v8354 = vadd.f32 %v8056, %v8252
      %v8355 = vadd.f32 %v8057, %v8255
      %v8356 = vadd.f32 %v8058, %v8260
      %v8357 = vadd.f32 %v8059, %v8263
      %v8358 = vadd.f32 %v8060, %v8268
      %v8359 = vadd.f32 %v8061, %v8271
      %v8360 = vadd.f32 %v8062, %v8276
      %v8361 = vadd.f32 %v8063, %v8279
      %v8362 = vadd.f32 %v8064, %v8284
      %v8363 = vadd.f32 %v8065, %v8287
      %v8364 = vadd.f32 %v8066, %v8292
      %v8365 = vadd.f32 %v8067, %v8295
      %v8366 = vadd.f32 %v8068, %v8300
      %v8367 = vadd.f32 %v8069, %v8303
      %v8368 = vadd.f32 %v8070, %v8308
      %v8369 = vadd.f32 %v8071, %v8311
      %v8370 = vadd.f32 %v8072, %v8316
      %v8371 = vadd.f32 %v8073, %v8319
      %v8372 = vadd.f32 %v8074, %v8324
      %v8373 = vadd.f32 %v8075, %v8327
      %v8374 = vadd.f32 %v8076, %v8332
      %v8375 = vadd.f32 %v8077, %v8335
      %v8376 = vadd.f32 %v8078, %v8340
      %v8377 = vadd.f32 %v8079, %v8343
      %v8394 = vrot.slane %v6311, 5
      %v8395 = vrot.slane %v8394, 4
      %v8396 = vrot.slane %v6312, 5
      %v8397 = vsel %vm3928, %v8395, %v8396
      %v8398 = vrot.slane %v8396, 4
      %v8399 = vrot.slane %v6313, 5
      %v8400 = vsel %vm3928, %v8398, %v8399
      %v8401 = vrot.slane %v6314, 5
      %v8402 = vrot.slane %v8401, 4
      %v8403 = vrot.slane %v6315, 5
      %v8404 = vsel %vm3928, %v8402, %v8403
      %v8405 = vrot.slane %v8403, 4
      %v8406 = vrot.slane %v6316, 5
      %v8407 = vsel %vm3928, %v8405, %v8406
      %v8408 = vrot.slane %v6317, 5
      %v8409 = vrot.slane %v8408, 4
      %v8410 = vrot.slane %v6318, 5
      %v8411 = vsel %vm3928, %v8409, %v8410
      %v8412 = vrot.slane %v8410, 4
      %v8413 = vrot.slane %v6319, 5
      %v8414 = vsel %vm3928, %v8412, %v8413
      %v8415 = vrot.slane %v6320, 5
      %v8416 = vrot.slane %v8415, 4
      %v8417 = vrot.slane %v6321, 5
      %v8418 = vsel %vm3928, %v8416, %v8417
      %v8419 = vrot.slane %v8417, 4
      %v8420 = vrot.slane %v6322, 5
      %v8421 = vsel %vm3928, %v8419, %v8420
      %v8422 = vrot.slane %v6323, 5
      %v8423 = vrot.slane %v8422, 4
      %v8424 = vrot.slane %v6324, 5
      %v8425 = vsel %vm3928, %v8423, %v8424
      %v8426 = vrot.slane %v8424, 4
      %v8427 = vrot.slane %v6325, 5
      %v8428 = vsel %vm3928, %v8426, %v8427
      %v8429 = vrot.slane %v6326, 5
      %v8430 = vrot.slane %v8429, 4
      %v8431 = vrot.slane %v6327, 5
      %v8432 = vsel %vm3928, %v8430, %v8431
      %v8433 = vrot.slane %v8431, 4
      %v8434 = vrot.slane %v6328, 5
      %v8435 = vsel %vm3928, %v8433, %v8434
      %v8436 = vrot.slane %v6329, 5
      %v8437 = vrot.slane %v8436, 4
      %v8438 = vrot.slane %v6330, 5
      %v8439 = vsel %vm3928, %v8437, %v8438
      %v8440 = vrot.slane %v8438, 4
      %v8441 = vrot.slane %v6331, 5
      %v8442 = vsel %vm3928, %v8440, %v8441
      %v8443 = vrot.slane %v6332, 5
      %v8444 = vrot.slane %v8443, 4
      %v8445 = vrot.slane %v6333, 5
      %v8446 = vsel %vm3928, %v8444, %v8445
      %v8447 = vrot.slane %v8445, 4
      %v8448 = vrot.slane %v6334, 5
      %v8449 = vsel %vm3928, %v8447, %v8448
      %v8450 = vrot.slane %v6335, 5
      %v8451 = vrot.slane %v8450, 4
      %v8452 = vrot.slane %v6336, 5
      %v8453 = vsel %vm3928, %v8451, %v8452
      %v8454 = vrot.slane %v8452, 4
      %v8455 = vrot.slane %v6337, 5
      %v8456 = vsel %vm3928, %v8454, %v8455
      %v8457 = vrot.slane %v6338, 5
      %v8458 = vrot.slane %v8457, 4
      %v8459 = vrot.slane %v6339, 5
      %v8460 = vsel %vm3928, %v8458, %v8459
      %v8461 = vrot.slane %v8459, 4
      %v8462 = vrot.slane %v6340, 5
      %v8463 = vsel %vm3928, %v8461, %v8462
      %v8464 = vrot.slane %v6341, 5
      %v8465 = vrot.slane %v8464, 4
      %v8466 = vrot.slane %v6342, 5
      %v8467 = vsel %vm3928, %v8465, %v8466
      %v8468 = vrot.slane %v8466, 4
      %v8469 = vrot.slane %v6343, 5
      %v8470 = vsel %vm3928, %v8468, %v8469
      %v8471 = vrot.slane %v6344, 5
      %v8472 = vrot.slane %v8471, 4
      %v8473 = vrot.slane %v6345, 5
      %v8474 = vsel %vm3928, %v8472, %v8473
      %v8475 = vrot.slane %v8473, 4
      %v8476 = vrot.slane %v6346, 5
      %v8477 = vsel %vm3928, %v8475, %v8476
      %v8478 = vrot.slane %v6347, 5
      %v8479 = vrot.slane %v8478, 4
      %v8480 = vrot.slane %v6348, 5
      %v8481 = vsel %vm3928, %v8479, %v8480
      %v8482 = vrot.slane %v8480, 4
      %v8483 = vrot.slane %v6349, 5
      %v8484 = vsel %vm3928, %v8482, %v8483
      %v8485 = vrot.slane %v6350, 5
      %v8486 = vrot.slane %v8485, 4
      %v8487 = vrot.slane %v6351, 5
      %v8488 = vsel %vm3928, %v8486, %v8487
      %v8489 = vrot.slane %v8487, 4
      %v8490 = vrot.slane %v6352, 5
      %v8491 = vsel %vm3928, %v8489, %v8490
      %v8492 = vrot.slane %v6353, 5
      %v8493 = vrot.slane %v8492, 4
      %v8494 = vrot.slane %v6354, 5
      %v8495 = vsel %vm3928, %v8493, %v8494
      %v8496 = vrot.slane %v8494, 4
      %v8497 = vrot.slane %v6355, 5
      %v8498 = vsel %vm3928, %v8496, %v8497
      %v8499 = vrot.slane %v6356, 5
      %v8500 = vrot.slane %v8499, 4
      %v8501 = vrot.slane %v6357, 5
      %v8502 = vsel %vm3928, %v8500, %v8501
      %v8503 = vrot.slane %v8501, 4
      %v8504 = vrot.slane %v6358, 5
      %v8505 = vsel %vm3928, %v8503, %v8504
      %v8522 = vrot.slane %v6365, 5
      %v8523 = vrot.slane %v8522, 4
      %v8524 = vrot.slane %v6366, 5
      %v8525 = vsel %vm3928, %v8523, %v8524
      %v8526 = vrot.slane %v8524, 4
      %v8527 = vrot.slane %v6367, 5
      %v8528 = vsel %vm3928, %v8526, %v8527
      %v8529 = vrot.slane %v6368, 5
      %v8530 = vrot.slane %v8529, 4
      %v8531 = vrot.slane %v6369, 5
      %v8532 = vsel %vm3928, %v8530, %v8531
      %v8533 = vrot.slane %v8531, 4
      %v8534 = vrot.slane %v6370, 5
      %v8535 = vsel %vm3928, %v8533, %v8534
      %v8536 = vrot.slane %v6371, 5
      %v8537 = vrot.slane %v8536, 4
      %v8538 = vrot.slane %v6372, 5
      %v8539 = vsel %vm3928, %v8537, %v8538
      %v8540 = vrot.slane %v8538, 4
      %v8541 = vrot.slane %v6373, 5
      %v8542 = vsel %vm3928, %v8540, %v8541
      %v8543 = vrot.slane %v6374, 5
      %v8544 = vrot.slane %v8543, 4
      %v8545 = vrot.slane %v6375, 5
      %v8546 = vsel %vm3928, %v8544, %v8545
      %v8547 = vrot.slane %v8545, 4
      %v8548 = vrot.slane %v6376, 5
      %v8549 = vsel %vm3928, %v8547, %v8548
      %v8550 = vrot.slane %v6377, 5
      %v8551 = vrot.slane %v8550, 4
      %v8552 = vrot.slane %v6378, 5
      %v8553 = vsel %vm3928, %v8551, %v8552
      %v8554 = vrot.slane %v8552, 4
      %v8555 = vrot.slane %v6379, 5
      %v8556 = vsel %vm3928, %v8554, %v8555
      %v8557 = vrot.slane %v6380, 5
      %v8558 = vrot.slane %v8557, 4
      %v8559 = vrot.slane %v6381, 5
      %v8560 = vsel %vm3928, %v8558, %v8559
      %v8561 = vrot.slane %v8559, 4
      %v8562 = vrot.slane %v6382, 5
      %v8563 = vsel %vm3928, %v8561, %v8562
      %v8564 = vrot.slane %v6383, 5
      %v8565 = vrot.slane %v8564, 4
      %v8566 = vrot.slane %v6384, 5
      %v8567 = vsel %vm3928, %v8565, %v8566
      %v8568 = vrot.slane %v8566, 4
      %v8569 = vrot.slane %v6385, 5
      %v8570 = vsel %vm3928, %v8568, %v8569
      %v8571 = vrot.slane %v6386, 5
      %v8572 = vrot.slane %v8571, 4
      %v8573 = vrot.slane %v6387, 5
      %v8574 = vsel %vm3928, %v8572, %v8573
      %v8575 = vrot.slane %v8573, 4
      %v8576 = vrot.slane %v6388, 5
      %v8577 = vsel %vm3928, %v8575, %v8576
      %v8578 = vrot.slane %v6389, 5
      %v8579 = vrot.slane %v8578, 4
      %v8580 = vrot.slane %v6390, 5
      %v8581 = vsel %vm3928, %v8579, %v8580
      %v8582 = vrot.slane %v8580, 4
      %v8583 = vrot.slane %v6391, 5
      %v8584 = vsel %vm3928, %v8582, %v8583
      %v8585 = vrot.slane %v6392, 5
      %v8586 = vrot.slane %v8585, 4
      %v8587 = vrot.slane %v6393, 5
      %v8588 = vsel %vm3928, %v8586, %v8587
      %v8589 = vrot.slane %v8587, 4
      %v8590 = vrot.slane %v6394, 5
      %v8591 = vsel %vm3928, %v8589, %v8590
      %v8592 = vrot.slane %v6395, 5
      %v8593 = vrot.slane %v8592, 4
      %v8594 = vrot.slane %v6396, 5
      %v8595 = vsel %vm3928, %v8593, %v8594
      %v8596 = vrot.slane %v8594, 4
      %v8597 = vrot.slane %v6397, 5
      %v8598 = vsel %vm3928, %v8596, %v8597
      %v8599 = vrot.slane %v6398, 5
      %v8600 = vrot.slane %v8599, 4
      %v8601 = vrot.slane %v6399, 5
      %v8602 = vsel %vm3928, %v8600, %v8601
      %v8603 = vrot.slane %v8601, 4
      %v8604 = vrot.slane %v6400, 5
      %v8605 = vsel %vm3928, %v8603, %v8604
      %v8606 = vrot.slane %v6401, 5
      %v8607 = vrot.slane %v8606, 4
      %v8608 = vrot.slane %v6402, 5
      %v8609 = vsel %vm3928, %v8607, %v8608
      %v8610 = vrot.slane %v8608, 4
      %v8611 = vrot.slane %v6403, 5
      %v8612 = vsel %vm3928, %v8610, %v8611
      %v8613 = vrot.slane %v6404, 5
      %v8614 = vrot.slane %v8613, 4
      %v8615 = vrot.slane %v6405, 5
      %v8616 = vsel %vm3928, %v8614, %v8615
      %v8617 = vrot.slane %v8615, 4
      %v8618 = vrot.slane %v6406, 5
      %v8619 = vsel %vm3928, %v8617, %v8618
      %v8620 = vrot.slane %v6407, 5
      %v8621 = vrot.slane %v8620, 4
      %v8622 = vrot.slane %v6408, 5
      %v8623 = vsel %vm3928, %v8621, %v8622
      %v8624 = vrot.slane %v8622, 4
      %v8625 = vrot.slane %v6409, 5
      %v8626 = vsel %vm3928, %v8624, %v8625
      %v8627 = vrot.slane %v6410, 5
      %v8628 = vrot.slane %v8627, 4
      %v8629 = vrot.slane %v6411, 5
      %v8630 = vsel %vm3928, %v8628, %v8629
      %v8631 = vrot.slane %v8629, 4
      %v8632 = vrot.slane %v6412, 5
      %v8633 = vsel %vm3928, %v8631, %v8632
      %s8634 = scalar_lea.vmem %s4, 16
      %v8635 = vld [vmem:[%s8634] sm:$0xf]
      %v8636 = vld [vmem:[%s8634 + $0x4] sm:$0xf]
      %v8637 = vunpack.c.l.b16 %v8397
      %v8638 = vunpack.c.l.b16 %v8400
      %v8639 = vunpack.c.l.b16 %v8404
      %v8640 = vunpack.c.l.b16 %v8407
      %v8641 = vunpack.c.l.b16 %v8411
      %v8642 = vunpack.c.l.b16 %v8414
      %v8643 = vunpack.c.l.b16 %v8418
      %v8644 = vunpack.c.l.b16 %v8421
      %v8645 = vunpack.c.l.b16 %v8425
      %v8646 = vunpack.c.l.b16 %v8428
      %v8647 = vunpack.c.l.b16 %v8432
      %v8648 = vunpack.c.l.b16 %v8435
      %v8649 = vunpack.c.l.b16 %v8439
      %v8650 = vunpack.c.l.b16 %v8442
      %v8651 = vunpack.c.l.b16 %v8446
      %v8652 = vunpack.c.l.b16 %v8449
      %v8653 = vunpack.c.l.b16 %v8453
      %v8654 = vunpack.c.l.b16 %v8456
      %v8655 = vunpack.c.l.b16 %v8460
      %v8656 = vunpack.c.l.b16 %v8463
      %v8657 = vunpack.c.l.b16 %v8467
      %v8658 = vunpack.c.l.b16 %v8470
      %v8659 = vunpack.c.l.b16 %v8474
      %v8660 = vunpack.c.l.b16 %v8477
      %v8661 = vunpack.c.l.b16 %v8481
      %v8662 = vunpack.c.l.b16 %v8484
      %v8663 = vunpack.c.l.b16 %v8488
      %v8664 = vunpack.c.l.b16 %v8491
      %v8665 = vunpack.c.l.b16 %v8495
      %v8666 = vunpack.c.l.b16 %v8498
      %v8667 = vunpack.c.l.b16 %v8502
      %v8668 = vunpack.c.l.b16 %v8505
      %v8669 = vpack.c.b16 %v8638, %v8637
      %v8670 = vpack.c.b16 %v8640, %v8639
      %v8671 = vpack.c.b16 %v8642, %v8641
      %v8672 = vpack.c.b16 %v8644, %v8643
      %v8673 = vpack.c.b16 %v8646, %v8645
      %v8674 = vpack.c.b16 %v8648, %v8647
      %v8675 = vpack.c.b16 %v8650, %v8649
      %v8676 = vpack.c.b16 %v8652, %v8651
      %v8677 = vpack.c.b16 %v8654, %v8653
      %v8678 = vpack.c.b16 %v8656, %v8655
      %v8679 = vpack.c.b16 %v8658, %v8657
      %v8680 = vpack.c.b16 %v8660, %v8659
      %v8681 = vpack.c.b16 %v8662, %v8661
      %v8682 = vpack.c.b16 %v8664, %v8663
      %v8683 = vpack.c.b16 %v8666, %v8665
      %v8684 = vpack.c.b16 %v8668, %v8667
      %v8687 = vunpack.c.l.b16 %v8635
      %v8688 = vunpack.c.l.b16 %v8636
      %v8689 = vpack.c.b16 %v8688, %v8687
      %v8692 = vsel %vm6509, %v8669, 0
      %v8695 = vsel %vm6509, %v8670, 0
      %v8698 = vsel %vm6509, %v8671, 0
      %v8701 = vsel %vm6509, %v8672, 0
      %v8704 = vsel %vm6509, %v8673, 0
      %v8707 = vsel %vm6509, %v8674, 0
      %v8710 = vsel %vm6509, %v8675, 0
      %v8713 = vsel %vm6509, %v8676, 0
      %v8716 = vsel %vm6509, %v8677, 0
      %v8719 = vsel %vm6509, %v8678, 0
      %v8722 = vsel %vm6509, %v8679, 0
      %v8725 = vsel %vm6509, %v8680, 0
      %v8728 = vsel %vm6509, %v8681, 0
      %v8731 = vsel %vm6509, %v8682, 0
      %v8734 = vsel %vm6509, %v8683, 0
      %v8737 = vsel %vm6509, %v8684, 0
      %8739 = vmatprep.subr.bf16.mxu0 0
      %8740 = vmatpush1.bf16.msra.mxu0 %v8689
      %8741 = vmatprep.subr.bf16.mxu0 0
      %8742 = vmatpush1.bf16.msra.mxu0 0
      %8743 = vmatprep.subr.bf16.mxu0 0
      %8744 = vmatpush1.bf16.msra.mxu0 0
      %8745 = vmatprep.subr.bf16.mxu0 0
      %8746 = vmatpush1.bf16.msra.mxu0 0
      %8747 = vmatprep.subr.bf16.mxu0 0
      %8748 = vmatpush1.bf16.msra.mxu0 0
      %8749 = vmatprep.subr.bf16.mxu0 0
      %8750 = vmatpush1.bf16.msra.mxu0 0
      %8751 = vmatprep.subr.bf16.mxu0 0
      %8752 = vmatpush1.bf16.msra.mxu0 0
      %8753 = vmatprep.subr.bf16.mxu0 0
      %8754 = vmatpush1.bf16.msra.mxu0 0
      %8755 = vmatprep.subr.bf16.mxu0 0
      %8756 = vmatpush1.bf16.msra.mxu0 0
      %8757 = vmatprep.subr.bf16.mxu0 0
      %8758 = vmatpush1.bf16.msra.mxu0 0
      %8759 = vmatprep.subr.bf16.mxu0 0
      %8760 = vmatpush1.bf16.msra.mxu0 0
      %8761 = vmatprep.subr.bf16.mxu0 0
      %8762 = vmatpush1.bf16.msra.mxu0 0
      %8763 = vmatprep.subr.bf16.mxu0 0
      %8764 = vmatpush1.bf16.msra.mxu0 0
      %8765 = vmatprep.subr.bf16.mxu0 0
      %8766 = vmatpush1.bf16.msra.mxu0 0
      %8767 = vmatprep.subr.bf16.mxu0 0
      %8768 = vmatpush1.bf16.msra.mxu0 0
      %8769 = vmatprep.subr.bf16.mxu0 0
      %8770 = vmatpush1.bf16.msra.mxu0 0
      %8771 = vmatprep.mubr.bf16.mxu0 0
      %8772 = vmatmul.mubr.bf16.gmra.mrb[0].mxu0 %v8692
      %v8773 = vpop.f32.mrb[0].mxu0
      %v8774 = vadd.f32 0.0, %v8773
      %v8775 = vpop.f32.mrb[0].mxu0
      %v8776 = vpop.f32.mrb[0].mxu0
      %v8777 = vadd.f32 0.0, %v8776
      %v8778 = vpop.f32.mrb[0].mxu0
      %8779 = vmatprep.mubr.bf16.mxu0 0
      %8780 = vmatmul.mubr.bf16.gmra.mrb[0].mxu0 %v8695
      %v8781 = vpop.f32.mrb[0].mxu0
      %v8782 = vadd.f32 0.0, %v8781
      %v8783 = vpop.f32.mrb[0].mxu0
      %v8784 = vpop.f32.mrb[0].mxu0
      %v8785 = vadd.f32 0.0, %v8784
      %v8786 = vpop.f32.mrb[0].mxu0
      %8787 = vmatprep.mubr.bf16.mxu0 0
      %8788 = vmatmul.mubr.bf16.gmra.mrb[0].mxu0 %v8698
      %v8789 = vpop.f32.mrb[0].mxu0
      %v8790 = vadd.f32 0.0, %v8789
      %v8791 = vpop.f32.mrb[0].mxu0
      %v8792 = vpop.f32.mrb[0].mxu0
      %v8793 = vadd.f32 0.0, %v8792
      %v8794 = vpop.f32.mrb[0].mxu0
      %8795 = vmatprep.mubr.bf16.mxu0 0
      %8796 = vmatmul.mubr.bf16.gmra.mrb[0].mxu0 %v8701
      %v8797 = vpop.f32.mrb[0].mxu0
      %v8798 = vadd.f32 0.0, %v8797
      %v8799 = vpop.f32.mrb[0].mxu0
      %v8800 = vpop.f32.mrb[0].mxu0
      %v8801 = vadd.f32 0.0, %v8800
      %v8802 = vpop.f32.mrb[0].mxu0
      %8803 = vmatprep.mubr.bf16.mxu0 0
      %8804 = vmatmul.mubr.bf16.gmra.mrb[0].mxu0 %v8704
      %v8805 = vpop.f32.mrb[0].mxu0
      %v8806 = vadd.f32 0.0, %v8805
      %v8807 = vpop.f32.mrb[0].mxu0
      %v8808 = vpop.f32.mrb[0].mxu0
      %v8809 = vadd.f32 0.0, %v8808
      %v8810 = vpop.f32.mrb[0].mxu0
      %8811 = vmatprep.mubr.bf16.mxu0 0
      %8812 = vmatmul.mubr.bf16.gmra.mrb[0].mxu0 %v8707
      %v8813 = vpop.f32.mrb[0].mxu0
      %v8814 = vadd.f32 0.0, %v8813
      %v8815 = vpop.f32.mrb[0].mxu0
      %v8816 = vpop.f32.mrb[0].mxu0
      %v8817 = vadd.f32 0.0, %v8816
      %v8818 = vpop.f32.mrb[0].mxu0
      %8819 = vmatprep.mubr.bf16.mxu0 0
      %8820 = vmatmul.mubr.bf16.gmra.mrb[0].mxu0 %v8710
      %v8821 = vpop.f32.mrb[0].mxu0
      %v8822 = vadd.f32 0.0, %v8821
      %v8823 = vpop.f32.mrb[0].mxu0
      %v8824 = vpop.f32.mrb[0].mxu0
      %v8825 = vadd.f32 0.0, %v8824
      %v8826 = vpop.f32.mrb[0].mxu0
      %8827 = vmatprep.mubr.bf16.mxu0 0
      %8828 = vmatmul.mubr.bf16.gmra.mrb[0].mxu0 %v8713
      %v8829 = vpop.f32.mrb[0].mxu0
      %v8830 = vadd.f32 0.0, %v8829
      %v8831 = vpop.f32.mrb[0].mxu0
      %v8832 = vpop.f32.mrb[0].mxu0
      %v8833 = vadd.f32 0.0, %v8832
      %v8834 = vpop.f32.mrb[0].mxu0
      %8835 = vmatprep.mubr.bf16.mxu0 0
      %8836 = vmatmul.mubr.bf16.gmra.mrb[0].mxu0 %v8716
      %v8837 = vpop.f32.mrb[0].mxu0
      %v8838 = vadd.f32 0.0, %v8837
      %v8839 = vpop.f32.mrb[0].mxu0
      %v8840 = vpop.f32.mrb[0].mxu0
      %v8841 = vadd.f32 0.0, %v8840
      %v8842 = vpop.f32.mrb[0].mxu0
      %8843 = vmatprep.mubr.bf16.mxu0 0
      %8844 = vmatmul.mubr.bf16.gmra.mrb[0].mxu0 %v8719
      %v8845 = vpop.f32.mrb[0].mxu0
      %v8846 = vadd.f32 0.0, %v8845
      %v8847 = vpop.f32.mrb[0].mxu0
      %v8848 = vpop.f32.mrb[0].mxu0
      %v8849 = vadd.f32 0.0, %v8848
      %v8850 = vpop.f32.mrb[0].mxu0
      %8851 = vmatprep.mubr.bf16.mxu0 0
      %8852 = vmatmul.mubr.bf16.gmra.mrb[0].mxu0 %v8722
      %v8853 = vpop.f32.mrb[0].mxu0
      %v8854 = vadd.f32 0.0, %v8853
      %v8855 = vpop.f32.mrb[0].mxu0
      %v8856 = vpop.f32.mrb[0].mxu0
      %v8857 = vadd.f32 0.0, %v8856
      %v8858 = vpop.f32.mrb[0].mxu0
      %8859 = vmatprep.mubr.bf16.mxu0 0
      %8860 = vmatmul.mubr.bf16.gmra.mrb[0].mxu0 %v8725
      %v8861 = vpop.f32.mrb[0].mxu0
      %v8862 = vadd.f32 0.0, %v8861
      %v8863 = vpop.f32.mrb[0].mxu0
      %v8864 = vpop.f32.mrb[0].mxu0
      %v8865 = vadd.f32 0.0, %v8864
      %v8866 = vpop.f32.mrb[0].mxu0
      %8867 = vmatprep.mubr.bf16.mxu0 0
      %8868 = vmatmul.mubr.bf16.gmra.mrb[0].mxu0 %v8728
      %v8869 = vpop.f32.mrb[0].mxu0
      %v8870 = vadd.f32 0.0, %v8869
      %v8871 = vpop.f32.mrb[0].mxu0
      %v8872 = vpop.f32.mrb[0].mxu0
      %v8873 = vadd.f32 0.0, %v8872
      %v8874 = vpop.f32.mrb[0].mxu0
      %8875 = vmatprep.mubr.bf16.mxu0 0
      %8876 = vmatmul.mubr.bf16.gmra.mrb[0].mxu0 %v8731
      %v8877 = vpop.f32.mrb[0].mxu0
      %v8878 = vadd.f32 0.0, %v8877
      %v8879 = vpop.f32.mrb[0].mxu0
      %v8880 = vpop.f32.mrb[0].mxu0
      %v8881 = vadd.f32 0.0, %v8880
      %v8882 = vpop.f32.mrb[0].mxu0
      %8883 = vmatprep.mubr.bf16.mxu0 0
      %8884 = vmatmul.mubr.bf16.gmra.mrb[0].mxu0 %v8734
      %v8885 = vpop.f32.mrb[0].mxu0
      %v8886 = vadd.f32 0.0, %v8885
      %v8887 = vpop.f32.mrb[0].mxu0
      %v8888 = vpop.f32.mrb[0].mxu0
      %v8889 = vadd.f32 0.0, %v8888
      %v8890 = vpop.f32.mrb[0].mxu0
      %8891 = vmatprep.mubr.bf16.mxu0 0
      %8892 = vmatmul.mubr.bf16.gmra.mrb[0].mxu0 %v8737
      %v8893 = vpop.f32.mrb[0].mxu0
      %v8894 = vadd.f32 0.0, %v8893
      %v8895 = vpop.f32.mrb[0].mxu0
      %v8896 = vpop.f32.mrb[0].mxu0
      %v8897 = vadd.f32 0.0, %v8896
      %v8898 = vpop.f32.mrb[0].mxu0
      %8899 = vdwg.mxu0
      %v8900 = vadd.f32 %v8346, %v8774
      %v8901 = vadd.f32 %v8347, %v8777
      %v8902 = vadd.f32 %v8348, %v8782
      %v8903 = vadd.f32 %v8349, %v8785
      %v8904 = vadd.f32 %v8350, %v8790
      %v8905 = vadd.f32 %v8351, %v8793
      %v8906 = vadd.f32 %v8352, %v8798
      %v8907 = vadd.f32 %v8353, %v8801
      %v8908 = vadd.f32 %v8354, %v8806
      %v8909 = vadd.f32 %v8355, %v8809
      %v8910 = vadd.f32 %v8356, %v8814
      %v8911 = vadd.f32 %v8357, %v8817
      %v8912 = vadd.f32 %v8358, %v8822
      %v8913 = vadd.f32 %v8359, %v8825
      %v8914 = vadd.f32 %v8360, %v8830
      %v8915 = vadd.f32 %v8361, %v8833
      %v8916 = vadd.f32 %v8362, %v8838
      %v8917 = vadd.f32 %v8363, %v8841
      %v8918 = vadd.f32 %v8364, %v8846
      %v8919 = vadd.f32 %v8365, %v8849
      %v8920 = vadd.f32 %v8366, %v8854
      %v8921 = vadd.f32 %v8367, %v8857
      %v8922 = vadd.f32 %v8368, %v8862
      %v8923 = vadd.f32 %v8369, %v8865
      %v8924 = vadd.f32 %v8370, %v8870
      %v8925 = vadd.f32 %v8371, %v8873
      %v8926 = vadd.f32 %v8372, %v8878
      %v8927 = vadd.f32 %v8373, %v8881
      %v8928 = vadd.f32 %v8374, %v8886
      %v8929 = vadd.f32 %v8375, %v8889
      %v8930 = vadd.f32 %v8376, %v8894
      %v8931 = vadd.f32 %v8377, %v8897
      %s8932 = scalar_lea.vmem %s5, 16
      %v8933 = vld [vmem:[%s8932] sm:$0xf]
      %v8934 = vld [vmem:[%s8932 + $0x4] sm:$0xf]
      %v8935 = vunpack.c.l.b16 %v8525
      %v8936 = vunpack.c.l.b16 %v8528
      %v8937 = vunpack.c.l.b16 %v8532
      %v8938 = vunpack.c.l.b16 %v8535
      %v8939 = vunpack.c.l.b16 %v8539
      %v8940 = vunpack.c.l.b16 %v8542
      %v8941 = vunpack.c.l.b16 %v8546
      %v8942 = vunpack.c.l.b16 %v8549
      %v8943 = vunpack.c.l.b16 %v8553
      %v8944 = vunpack.c.l.b16 %v8556
      %v8945 = vunpack.c.l.b16 %v8560
      %v8946 = vunpack.c.l.b16 %v8563
      %v8947 = vunpack.c.l.b16 %v8567
      %v8948 = vunpack.c.l.b16 %v8570
      %v8949 = vunpack.c.l.b16 %v8574
      %v8950 = vunpack.c.l.b16 %v8577
      %v8951 = vunpack.c.l.b16 %v8581
      %v8952 = vunpack.c.l.b16 %v8584
      %v8953 = vunpack.c.l.b16 %v8588
      %v8954 = vunpack.c.l.b16 %v8591
      %v8955 = vunpack.c.l.b16 %v8595
      %v8956 = vunpack.c.l.b16 %v8598
      %v8957 = vunpack.c.l.b16 %v8602
      %v8958 = vunpack.c.l.b16 %v8605
      %v8959 = vunpack.c.l.b16 %v8609
      %v8960 = vunpack.c.l.b16 %v8612
      %v8961 = vunpack.c.l.b16 %v8616
      %v8962 = vunpack.c.l.b16 %v8619
      %v8963 = vunpack.c.l.b16 %v8623
      %v8964 = vunpack.c.l.b16 %v8626
      %v8965 = vunpack.c.l.b16 %v8630
      %v8966 = vunpack.c.l.b16 %v8633
      %v8967 = vpack.c.b16 %v8936, %v8935
      %v8968 = vpack.c.b16 %v8938, %v8937
      %v8969 = vpack.c.b16 %v8940, %v8939
      %v8970 = vpack.c.b16 %v8942, %v8941
      %v8971 = vpack.c.b16 %v8944, %v8943
      %v8972 = vpack.c.b16 %v8946, %v8945
      %v8973 = vpack.c.b16 %v8948, %v8947
      %v8974 = vpack.c.b16 %v8950, %v8949
      %v8975 = vpack.c.b16 %v8952, %v8951
      %v8976 = vpack.c.b16 %v8954, %v8953
      %v8977 = vpack.c.b16 %v8956, %v8955
      %v8978 = vpack.c.b16 %v8958, %v8957
      %v8979 = vpack.c.b16 %v8960, %v8959
      %v8980 = vpack.c.b16 %v8962, %v8961
      %v8981 = vpack.c.b16 %v8964, %v8963
      %v8982 = vpack.c.b16 %v8966, %v8965
      %v8985 = vunpack.c.l.b16 %v8933
      %v8986 = vunpack.c.l.b16 %v8934
      %v8987 = vpack.c.b16 %v8986, %v8985
      %v8990 = vsel %vm6509, %v8967, 0
      %v8993 = vsel %vm6509, %v8968, 0
      %v8996 = vsel %vm6509, %v8969, 0
      %v8999 = vsel %vm6509, %v8970, 0
      %v9002 = vsel %vm6509, %v8971, 0
      %v9005 = vsel %vm6509, %v8972, 0
      %v9008 = vsel %vm6509, %v8973, 0
      %v9011 = vsel %vm6509, %v8974, 0
      %v9014 = vsel %vm6509, %v8975, 0
      %v9017 = vsel %vm6509, %v8976, 0
      %v9020 = vsel %vm6509, %v8977, 0
      %v9023 = vsel %vm6509, %v8978, 0
      %v9026 = vsel %vm6509, %v8979, 0
      %v9029 = vsel %vm6509, %v8980, 0
      %v9032 = vsel %vm6509, %v8981, 0
      %v9035 = vsel %vm6509, %v8982, 0
      %9037 = vmatprep.subr.bf16.mxu0 0
      %9038 = vmatpush1.bf16.msra.mxu0 %v8987
      %9039 = vmatprep.subr.bf16.mxu0 0
      %9040 = vmatpush1.bf16.msra.mxu0 0
      %9041 = vmatprep.subr.bf16.mxu0 0
      %9042 = vmatpush1.bf16.msra.mxu0 0
      %9043 = vmatprep.subr.bf16.mxu0 0
      %9044 = vmatpush1.bf16.msra.mxu0 0
      %9045 = vmatprep.subr.bf16.mxu0 0
      %9046 = vmatpush1.bf16.msra.mxu0 0
      %9047 = vmatprep.subr.bf16.mxu0 0
      %9048 = vmatpush1.bf16.msra.mxu0 0
      %9049 = vmatprep.subr.bf16.mxu0 0
      %9050 = vmatpush1.bf16.msra.mxu0 0
      %9051 = vmatprep.subr.bf16.mxu0 0
      %9052 = vmatpush1.bf16.msra.mxu0 0
      %9053 = vmatprep.subr.bf16.mxu0 0
      %9054 = vmatpush1.bf16.msra.mxu0 0
      %9055 = vmatprep.subr.bf16.mxu0 0
      %9056 = vmatpush1.bf16.msra.mxu0 0
      %9057 = vmatprep.subr.bf16.mxu0 0
      %9058 = vmatpush1.bf16.msra.mxu0 0
      %9059 = vmatprep.subr.bf16.mxu0 0
      %9060 = vmatpush1.bf16.msra.mxu0 0
      %9061 = vmatprep.subr.bf16.mxu0 0
      %9062 = vmatpush1.bf16.msra.mxu0 0
      %9063 = vmatprep.subr.bf16.mxu0 0
      %9064 = vmatpush1.bf16.msra.mxu0 0
      %9065 = vmatprep.subr.bf16.mxu0 0
      %9066 = vmatpush1.bf16.msra.mxu0 0
      %9067 = vmatprep.subr.bf16.mxu0 0
      %9068 = vmatpush1.bf16.msra.mxu0 0
      %9069 = vmatprep.mubr.bf16.mxu0 0
      %9070 = vmatmul.mubr.bf16.gmra.mrb[0].mxu0 %v8990
      %v9071 = vpop.f32.mrb[0].mxu0
      %v9072 = vadd.f32 0.0, %v9071
      %v9073 = vpop.f32.mrb[0].mxu0
      %v9074 = vpop.f32.mrb[0].mxu0
      %v9075 = vadd.f32 0.0, %v9074
      %v9076 = vpop.f32.mrb[0].mxu0
      %9077 = vmatprep.mubr.bf16.mxu0 0
      %9078 = vmatmul.mubr.bf16.gmra.mrb[0].mxu0 %v8993
      %v9079 = vpop.f32.mrb[0].mxu0
      %v9080 = vadd.f32 0.0, %v9079
      %v9081 = vpop.f32.mrb[0].mxu0
      %v9082 = vpop.f32.mrb[0].mxu0
      %v9083 = vadd.f32 0.0, %v9082
      %v9084 = vpop.f32.mrb[0].mxu0
      %9085 = vmatprep.mubr.bf16.mxu0 0
      %9086 = vmatmul.mubr.bf16.gmra.mrb[0].mxu0 %v8996
      %v9087 = vpop.f32.mrb[0].mxu0
      %v9088 = vadd.f32 0.0, %v9087
      %v9089 = vpop.f32.mrb[0].mxu0
      %v9090 = vpop.f32.mrb[0].mxu0
      %v9091 = vadd.f32 0.0, %v9090
      %v9092 = vpop.f32.mrb[0].mxu0
      %9093 = vmatprep.mubr.bf16.mxu0 0
      %9094 = vmatmul.mubr.bf16.gmra.mrb[0].mxu0 %v8999
      %v9095 = vpop.f32.mrb[0].mxu0
      %v9096 = vadd.f32 0.0, %v9095
      %v9097 = vpop.f32.mrb[0].mxu0
      %v9098 = vpop.f32.mrb[0].mxu0
      %v9099 = vadd.f32 0.0, %v9098
      %v9100 = vpop.f32.mrb[0].mxu0
      %9101 = vmatprep.mubr.bf16.mxu0 0
      %9102 = vmatmul.mubr.bf16.gmra.mrb[0].mxu0 %v9002
      %v9103 = vpop.f32.mrb[0].mxu0
      %v9104 = vadd.f32 0.0, %v9103
      %v9105 = vpop.f32.mrb[0].mxu0
      %v9106 = vpop.f32.mrb[0].mxu0
      %v9107 = vadd.f32 0.0, %v9106
      %v9108 = vpop.f32.mrb[0].mxu0
      %9109 = vmatprep.mubr.bf16.mxu0 0
      %9110 = vmatmul.mubr.bf16.gmra.mrb[0].mxu0 %v9005
      %v9111 = vpop.f32.mrb[0].mxu0
      %v9112 = vadd.f32 0.0, %v9111
      %v9113 = vpop.f32.mrb[0].mxu0
      %v9114 = vpop.f32.mrb[0].mxu0
      %v9115 = vadd.f32 0.0, %v9114
      %v9116 = vpop.f32.mrb[0].mxu0
      %9117 = vmatprep.mubr.bf16.mxu0 0
      %9118 = vmatmul.mubr.bf16.gmra.mrb[0].mxu0 %v9008
      %v9119 = vpop.f32.mrb[0].mxu0
      %v9120 = vadd.f32 0.0, %v9119
      %v9121 = vpop.f32.mrb[0].mxu0
      %v9122 = vpop.f32.mrb[0].mxu0
      %v9123 = vadd.f32 0.0, %v9122
      %v9124 = vpop.f32.mrb[0].mxu0
      %9125 = vmatprep.mubr.bf16.mxu0 0
      %9126 = vmatmul.mubr.bf16.gmra.mrb[0].mxu0 %v9011
      %v9127 = vpop.f32.mrb[0].mxu0
      %v9128 = vadd.f32 0.0, %v9127
      %v9129 = vpop.f32.mrb[0].mxu0
      %v9130 = vpop.f32.mrb[0].mxu0
      %v9131 = vadd.f32 0.0, %v9130
      %v9132 = vpop.f32.mrb[0].mxu0
      %9133 = vmatprep.mubr.bf16.mxu0 0
      %9134 = vmatmul.mubr.bf16.gmra.mrb[0].mxu0 %v9014
      %v9135 = vpop.f32.mrb[0].mxu0
      %v9136 = vadd.f32 0.0, %v9135
      %v9137 = vpop.f32.mrb[0].mxu0
      %v9138 = vpop.f32.mrb[0].mxu0
      %v9139 = vadd.f32 0.0, %v9138
      %v9140 = vpop.f32.mrb[0].mxu0
      %9141 = vmatprep.mubr.bf16.mxu0 0
      %9142 = vmatmul.mubr.bf16.gmra.mrb[0].mxu0 %v9017
      %v9143 = vpop.f32.mrb[0].mxu0
      %v9144 = vadd.f32 0.0, %v9143
      %v9145 = vpop.f32.mrb[0].mxu0
      %v9146 = vpop.f32.mrb[0].mxu0
      %v9147 = vadd.f32 0.0, %v9146
      %v9148 = vpop.f32.mrb[0].mxu0
      %9149 = vmatprep.mubr.bf16.mxu0 0
      %9150 = vmatmul.mubr.bf16.gmra.mrb[0].mxu0 %v9020
      %v9151 = vpop.f32.mrb[0].mxu0
      %v9152 = vadd.f32 0.0, %v9151
      %v9153 = vpop.f32.mrb[0].mxu0
      %v9154 = vpop.f32.mrb[0].mxu0
      %v9155 = vadd.f32 0.0, %v9154
      %v9156 = vpop.f32.mrb[0].mxu0
      %9157 = vmatprep.mubr.bf16.mxu0 0
      %9158 = vmatmul.mubr.bf16.gmra.mrb[0].mxu0 %v9023
      %v9159 = vpop.f32.mrb[0].mxu0
      %v9160 = vadd.f32 0.0, %v9159
      %v9161 = vpop.f32.mrb[0].mxu0
      %v9162 = vpop.f32.mrb[0].mxu0
      %v9163 = vadd.f32 0.0, %v9162
      %v9164 = vpop.f32.mrb[0].mxu0
      %9165 = vmatprep.mubr.bf16.mxu0 0
      %9166 = vmatmul.mubr.bf16.gmra.mrb[0].mxu0 %v9026
      %v9167 = vpop.f32.mrb[0].mxu0
      %v9168 = vadd.f32 0.0, %v9167
      %v9169 = vpop.f32.mrb[0].mxu0
      %v9170 = vpop.f32.mrb[0].mxu0
      %v9171 = vadd.f32 0.0, %v9170
      %v9172 = vpop.f32.mrb[0].mxu0
      %9173 = vmatprep.mubr.bf16.mxu0 0
      %9174 = vmatmul.mubr.bf16.gmra.mrb[0].mxu0 %v9029
      %v9175 = vpop.f32.mrb[0].mxu0
      %v9176 = vadd.f32 0.0, %v9175
      %v9177 = vpop.f32.mrb[0].mxu0
      %v9178 = vpop.f32.mrb[0].mxu0
      %v9179 = vadd.f32 0.0, %v9178
      %v9180 = vpop.f32.mrb[0].mxu0
      %9181 = vmatprep.mubr.bf16.mxu0 0
      %9182 = vmatmul.mubr.bf16.gmra.mrb[0].mxu0 %v9032
      %v9183 = vpop.f32.mrb[0].mxu0
      %v9184 = vadd.f32 0.0, %v9183
      %v9185 = vpop.f32.mrb[0].mxu0
      %v9186 = vpop.f32.mrb[0].mxu0
      %v9187 = vadd.f32 0.0, %v9186
      %v9188 = vpop.f32.mrb[0].mxu0
      %9189 = vmatprep.mubr.bf16.mxu0 0
      %9190 = vmatmul.mubr.bf16.gmra.mrb[0].mxu0 %v9035
      %v9191 = vpop.f32.mrb[0].mxu0
      %v9192 = vadd.f32 0.0, %v9191
      %v9193 = vpop.f32.mrb[0].mxu0
      %v9194 = vpop.f32.mrb[0].mxu0
      %v9195 = vadd.f32 0.0, %v9194
      %v9196 = vpop.f32.mrb[0].mxu0
      %9197 = vdwg.mxu0
      %v9198 = vadd.f32 %v8900, %v9072
      %v9199 = vadd.f32 %v8901, %v9075
      %v9200 = vadd.f32 %v8902, %v9080
      %v9201 = vadd.f32 %v8903, %v9083
      %v9202 = vadd.f32 %v8904, %v9088
      %v9203 = vadd.f32 %v8905, %v9091
      %v9204 = vadd.f32 %v8906, %v9096
      %v9205 = vadd.f32 %v8907, %v9099
      %v9206 = vadd.f32 %v8908, %v9104
      %v9207 = vadd.f32 %v8909, %v9107
      %v9208 = vadd.f32 %v8910, %v9112
      %v9209 = vadd.f32 %v8911, %v9115
      %v9210 = vadd.f32 %v8912, %v9120
      %v9211 = vadd.f32 %v8913, %v9123
      %v9212 = vadd.f32 %v8914, %v9128
      %v9213 = vadd.f32 %v8915, %v9131
      %v9214 = vadd.f32 %v8916, %v9136
      %v9215 = vadd.f32 %v8917, %v9139
      %v9216 = vadd.f32 %v8918, %v9144
      %v9217 = vadd.f32 %v8919, %v9147
      %v9218 = vadd.f32 %v8920, %v9152
      %v9219 = vadd.f32 %v8921, %v9155
      %v9220 = vadd.f32 %v8922, %v9160
      %v9221 = vadd.f32 %v8923, %v9163
      %v9222 = vadd.f32 %v8924, %v9168
      %v9223 = vadd.f32 %v8925, %v9171
      %v9224 = vadd.f32 %v8926, %v9176
      %v9225 = vadd.f32 %v8927, %v9179
      %v9226 = vadd.f32 %v8928, %v9184
      %v9227 = vadd.f32 %v8929, %v9187
      %v9228 = vadd.f32 %v8930, %v9192
      %v9229 = vadd.f32 %v8931, %v9195
      %s9230 = scalar_lea.vmem %s4, 24
      %v9231 = vld [vmem:[%s9230] sm:$0xf]
      %v9232 = vld [vmem:[%s9230 + $0x4] sm:$0xf]
      %v9235 = vunpack.c.l.b16 %v6359
      %v9236 = vunpack.c.l.b16 %v6360
      %v9237 = vpack.c.b16 %v9236, %v9235
      %v9240 = vunpack.c.l.b16 %v9231
      %v9241 = vunpack.c.l.b16 %v9232
      %v9242 = vpack.c.b16 %v9241, %v9240
      %v9245 = vsel %vm6509, %v9237, 0
      %9247 = vmatprep.subr.bf16.mxu0 0
      %9248 = vmatpush1.bf16.msra.mxu0 %v9242
      %9249 = vmatprep.subr.bf16.mxu0 0
      %9250 = vmatpush1.bf16.msra.mxu0 0
      %9251 = vmatprep.subr.bf16.mxu0 0
      %9252 = vmatpush1.bf16.msra.mxu0 0
      %9253 = vmatprep.subr.bf16.mxu0 0
      %9254 = vmatpush1.bf16.msra.mxu0 0
      %9255 = vmatprep.subr.bf16.mxu0 0
      %9256 = vmatpush1.bf16.msra.mxu0 0
      %9257 = vmatprep.subr.bf16.mxu0 0
      %9258 = vmatpush1.bf16.msra.mxu0 0
      %9259 = vmatprep.subr.bf16.mxu0 0
      %9260 = vmatpush1.bf16.msra.mxu0 0
      %9261 = vmatprep.subr.bf16.mxu0 0
      %9262 = vmatpush1.bf16.msra.mxu0 0
      %9263 = vmatprep.subr.bf16.mxu0 0
      %9264 = vmatpush1.bf16.msra.mxu0 0
      %9265 = vmatprep.subr.bf16.mxu0 0
      %9266 = vmatpush1.bf16.msra.mxu0 0
      %9267 = vmatprep.subr.bf16.mxu0 0
      %9268 = vmatpush1.bf16.msra.mxu0 0
      %9269 = vmatprep.subr.bf16.mxu0 0
      %9270 = vmatpush1.bf16.msra.mxu0 0
      %9271 = vmatprep.subr.bf16.mxu0 0
      %9272 = vmatpush1.bf16.msra.mxu0 0
      %9273 = vmatprep.subr.bf16.mxu0 0
      %9274 = vmatpush1.bf16.msra.mxu0 0
      %9275 = vmatprep.subr.bf16.mxu0 0
      %9276 = vmatpush1.bf16.msra.mxu0 0
      %9277 = vmatprep.subr.bf16.mxu0 0
      %9278 = vmatpush1.bf16.msra.mxu0 0
      %9279 = vmatprep.mubr.bf16.mxu0 0
      %9280 = vmatmul.mubr.bf16.gmra.mrb[0].mxu0 %v6809
      %v9281 = vpop.f32.mrb[0].mxu0
      %v9282 = vadd.f32 0.0, %v9281
      %v9283 = vpop.f32.mrb[0].mxu0
      %v9284 = vpop.f32.mrb[0].mxu0
      %v9285 = vadd.f32 0.0, %v9284
      %v9286 = vpop.f32.mrb[0].mxu0
      %9287 = vmatprep.mubr.bf16.mxu0 0
      %9288 = vmatmul.mubr.bf16.gmra.mrb[0].mxu0 %v6812
      %v9289 = vpop.f32.mrb[0].mxu0
      %v9290 = vadd.f32 0.0, %v9289
      %v9291 = vpop.f32.mrb[0].mxu0
      %v9292 = vpop.f32.mrb[0].mxu0
      %v9293 = vadd.f32 0.0, %v9292
      %v9294 = vpop.f32.mrb[0].mxu0
      %9295 = vmatprep.mubr.bf16.mxu0 0
      %9296 = vmatmul.mubr.bf16.gmra.mrb[0].mxu0 %v6815
      %v9297 = vpop.f32.mrb[0].mxu0
      %v9298 = vadd.f32 0.0, %v9297
      %v9299 = vpop.f32.mrb[0].mxu0
      %v9300 = vpop.f32.mrb[0].mxu0
      %v9301 = vadd.f32 0.0, %v9300
      %v9302 = vpop.f32.mrb[0].mxu0
      %9303 = vmatprep.mubr.bf16.mxu0 0
      %9304 = vmatmul.mubr.bf16.gmra.mrb[0].mxu0 %v6818
      %v9305 = vpop.f32.mrb[0].mxu0
      %v9306 = vadd.f32 0.0, %v9305
      %v9307 = vpop.f32.mrb[0].mxu0
      %v9308 = vpop.f32.mrb[0].mxu0
      %v9309 = vadd.f32 0.0, %v9308
      %v9310 = vpop.f32.mrb[0].mxu0
      %9311 = vmatprep.mubr.bf16.mxu0 0
      %9312 = vmatmul.mubr.bf16.gmra.mrb[0].mxu0 %v6821
      %v9313 = vpop.f32.mrb[0].mxu0
      %v9314 = vadd.f32 0.0, %v9313
      %v9315 = vpop.f32.mrb[0].mxu0
      %v9316 = vpop.f32.mrb[0].mxu0
      %v9317 = vadd.f32 0.0, %v9316
      %v9318 = vpop.f32.mrb[0].mxu0
      %9319 = vmatprep.mubr.bf16.mxu0 0
      %9320 = vmatmul.mubr.bf16.gmra.mrb[0].mxu0 %v6824
      %v9321 = vpop.f32.mrb[0].mxu0
      %v9322 = vadd.f32 0.0, %v9321
      %v9323 = vpop.f32.mrb[0].mxu0
      %v9324 = vpop.f32.mrb[0].mxu0
      %v9325 = vadd.f32 0.0, %v9324
      %v9326 = vpop.f32.mrb[0].mxu0
      %9327 = vmatprep.mubr.bf16.mxu0 0
      %9328 = vmatmul.mubr.bf16.gmra.mrb[0].mxu0 %v6827
      %v9329 = vpop.f32.mrb[0].mxu0
      %v9330 = vadd.f32 0.0, %v9329
      %v9331 = vpop.f32.mrb[0].mxu0
      %v9332 = vpop.f32.mrb[0].mxu0
      %v9333 = vadd.f32 0.0, %v9332
      %v9334 = vpop.f32.mrb[0].mxu0
      %9335 = vmatprep.mubr.bf16.mxu0 0
      %9336 = vmatmul.mubr.bf16.gmra.mrb[0].mxu0 %v6830
      %v9337 = vpop.f32.mrb[0].mxu0
      %v9338 = vadd.f32 0.0, %v9337
      %v9339 = vpop.f32.mrb[0].mxu0
      %v9340 = vpop.f32.mrb[0].mxu0
      %v9341 = vadd.f32 0.0, %v9340
      %v9342 = vpop.f32.mrb[0].mxu0
      %9343 = vmatprep.mubr.bf16.mxu0 0
      %9344 = vmatmul.mubr.bf16.gmra.mrb[0].mxu0 %v6833
      %v9345 = vpop.f32.mrb[0].mxu0
      %v9346 = vadd.f32 0.0, %v9345
      %v9347 = vpop.f32.mrb[0].mxu0
      %v9348 = vpop.f32.mrb[0].mxu0
      %v9349 = vadd.f32 0.0, %v9348
      %v9350 = vpop.f32.mrb[0].mxu0
      %9351 = vmatprep.mubr.bf16.mxu0 0
      %9352 = vmatmul.mubr.bf16.gmra.mrb[0].mxu0 %v6836
      %v9353 = vpop.f32.mrb[0].mxu0
      %v9354 = vadd.f32 0.0, %v9353
      %v9355 = vpop.f32.mrb[0].mxu0
      %v9356 = vpop.f32.mrb[0].mxu0
      %v9357 = vadd.f32 0.0, %v9356
      %v9358 = vpop.f32.mrb[0].mxu0
      %9359 = vmatprep.mubr.bf16.mxu0 0
      %9360 = vmatmul.mubr.bf16.gmra.mrb[0].mxu0 %v6839
      %v9361 = vpop.f32.mrb[0].mxu0
      %v9362 = vadd.f32 0.0, %v9361
      %v9363 = vpop.f32.mrb[0].mxu0
      %v9364 = vpop.f32.mrb[0].mxu0
      %v9365 = vadd.f32 0.0, %v9364
      %v9366 = vpop.f32.mrb[0].mxu0
      %9367 = vmatprep.mubr.bf16.mxu0 0
      %9368 = vmatmul.mubr.bf16.gmra.mrb[0].mxu0 %v6842
      %v9369 = vpop.f32.mrb[0].mxu0
      %v9370 = vadd.f32 0.0, %v9369
      %v9371 = vpop.f32.mrb[0].mxu0
      %v9372 = vpop.f32.mrb[0].mxu0
      %v9373 = vadd.f32 0.0, %v9372
      %v9374 = vpop.f32.mrb[0].mxu0
      %9375 = vmatprep.mubr.bf16.mxu0 0
      %9376 = vmatmul.mubr.bf16.gmra.mrb[0].mxu0 %v6845
      %v9377 = vpop.f32.mrb[0].mxu0
      %v9378 = vadd.f32 0.0, %v9377
      %v9379 = vpop.f32.mrb[0].mxu0
      %v9380 = vpop.f32.mrb[0].mxu0
      %v9381 = vadd.f32 0.0, %v9380
      %v9382 = vpop.f32.mrb[0].mxu0
      %9383 = vmatprep.mubr.bf16.mxu0 0
      %9384 = vmatmul.mubr.bf16.gmra.mrb[0].mxu0 %v6848
      %v9385 = vpop.f32.mrb[0].mxu0
      %v9386 = vadd.f32 0.0, %v9385
      %v9387 = vpop.f32.mrb[0].mxu0
      %v9388 = vpop.f32.mrb[0].mxu0
      %v9389 = vadd.f32 0.0, %v9388
      %v9390 = vpop.f32.mrb[0].mxu0
      %9391 = vmatprep.mubr.bf16.mxu0 0
      %9392 = vmatmul.mubr.bf16.gmra.mrb[0].mxu0 %v6851
      %v9393 = vpop.f32.mrb[0].mxu0
      %v9394 = vadd.f32 0.0, %v9393
      %v9395 = vpop.f32.mrb[0].mxu0
      %v9396 = vpop.f32.mrb[0].mxu0
      %v9397 = vadd.f32 0.0, %v9396
      %v9398 = vpop.f32.mrb[0].mxu0
      %9399 = vmatprep.mubr.bf16.mxu0 0
      %9400 = vmatmul.mubr.bf16.gmra.mrb[0].mxu0 %v9245
      %v9401 = vpop.f32.mrb[0].mxu0
      %v9402 = vadd.f32 0.0, %v9401
      %v9403 = vpop.f32.mrb[0].mxu0
      %v9404 = vpop.f32.mrb[0].mxu0
      %v9405 = vadd.f32 0.0, %v9404
      %v9406 = vpop.f32.mrb[0].mxu0
      %9407 = vdwg.mxu0
      %v9408 = vadd.f32 %v9198, %v9282
      %v9409 = vadd.f32 %v9199, %v9285
      %v9410 = vadd.f32 %v9200, %v9290
      %v9411 = vadd.f32 %v9201, %v9293
      %v9412 = vadd.f32 %v9202, %v9298
      %v9413 = vadd.f32 %v9203, %v9301
      %v9414 = vadd.f32 %v9204, %v9306
      %v9415 = vadd.f32 %v9205, %v9309
      %v9416 = vadd.f32 %v9206, %v9314
      %v9417 = vadd.f32 %v9207, %v9317
      %v9418 = vadd.f32 %v9208, %v9322
      %v9419 = vadd.f32 %v9209, %v9325
      %v9420 = vadd.f32 %v9210, %v9330
      %v9421 = vadd.f32 %v9211, %v9333
      %v9422 = vadd.f32 %v9212, %v9338
      %v9423 = vadd.f32 %v9213, %v9341
      %v9424 = vadd.f32 %v9214, %v9346
      %v9425 = vadd.f32 %v9215, %v9349
      %v9426 = vadd.f32 %v9216, %v9354
      %v9427 = vadd.f32 %v9217, %v9357
      %v9428 = vadd.f32 %v9218, %v9362
      %v9429 = vadd.f32 %v9219, %v9365
      %v9430 = vadd.f32 %v9220, %v9370
      %v9431 = vadd.f32 %v9221, %v9373
      %v9432 = vadd.f32 %v9222, %v9378
      %v9433 = vadd.f32 %v9223, %v9381
      %v9434 = vadd.f32 %v9224, %v9386
      %v9435 = vadd.f32 %v9225, %v9389
      %v9436 = vadd.f32 %v9226, %v9394
      %v9437 = vadd.f32 %v9227, %v9397
      %v9438 = vadd.f32 %v9228, %v9402
      %v9439 = vadd.f32 %v9229, %v9405
      %s9440 = scalar_lea.vmem %s5, 24
      %v9441 = vld [vmem:[%s9440] sm:$0xf]
      %v9442 = vld [vmem:[%s9440 + $0x4] sm:$0xf]
      %v9445 = vunpack.c.l.b16 %v6413
      %v9446 = vunpack.c.l.b16 %v6414
      %v9447 = vpack.c.b16 %v9446, %v9445
      %v9450 = vunpack.c.l.b16 %v9441
      %v9451 = vunpack.c.l.b16 %v9442
      %v9452 = vpack.c.b16 %v9451, %v9450
      %v9455 = vsel %vm6509, %v9447, 0
      %9457 = vmatprep.subr.bf16.mxu0 0
      %9458 = vmatpush1.bf16.msra.mxu0 %v9452
      %9459 = vmatprep.subr.bf16.mxu0 0
      %9460 = vmatpush1.bf16.msra.mxu0 0
      %9461 = vmatprep.subr.bf16.mxu0 0
      %9462 = vmatpush1.bf16.msra.mxu0 0
      %9463 = vmatprep.subr.bf16.mxu0 0
      %9464 = vmatpush1.bf16.msra.mxu0 0
      %9465 = vmatprep.subr.bf16.mxu0 0
      %9466 = vmatpush1.bf16.msra.mxu0 0
      %9467 = vmatprep.subr.bf16.mxu0 0
      %9468 = vmatpush1.bf16.msra.mxu0 0
      %9469 = vmatprep.subr.bf16.mxu0 0
      %9470 = vmatpush1.bf16.msra.mxu0 0
      %9471 = vmatprep.subr.bf16.mxu0 0
      %9472 = vmatpush1.bf16.msra.mxu0 0
      %9473 = vmatprep.subr.bf16.mxu0 0
      %9474 = vmatpush1.bf16.msra.mxu0 0
      %9475 = vmatprep.subr.bf16.mxu0 0
      %9476 = vmatpush1.bf16.msra.mxu0 0
      %9477 = vmatprep.subr.bf16.mxu0 0
      %9478 = vmatpush1.bf16.msra.mxu0 0
      %9479 = vmatprep.subr.bf16.mxu0 0
      %9480 = vmatpush1.bf16.msra.mxu0 0
      %9481 = vmatprep.subr.bf16.mxu0 0
      %9482 = vmatpush1.bf16.msra.mxu0 0
      %9483 = vmatprep.subr.bf16.mxu0 0
      %9484 = vmatpush1.bf16.msra.mxu0 0
      %9485 = vmatprep.subr.bf16.mxu0 0
      %9486 = vmatpush1.bf16.msra.mxu0 0
      %9487 = vmatprep.subr.bf16.mxu0 0
      %9488 = vmatpush1.bf16.msra.mxu0 0
      %9489 = vmatprep.mubr.bf16.mxu0 0
      %9490 = vmatmul.mubr.bf16.gmra.mrb[0].mxu0 %v6514
      %v9491 = vpop.f32.mrb[0].mxu0
      %v9492 = vadd.f32 0.0, %v9491
      %v9493 = vpop.f32.mrb[0].mxu0
      %v9494 = vpop.f32.mrb[0].mxu0
      %v9495 = vadd.f32 0.0, %v9494
      %v9496 = vpop.f32.mrb[0].mxu0
      %9497 = vmatprep.mubr.bf16.mxu0 0
      %9498 = vmatmul.mubr.bf16.gmra.mrb[0].mxu0 %v6517
      %v9499 = vpop.f32.mrb[0].mxu0
      %v9500 = vadd.f32 0.0, %v9499
      %v9501 = vpop.f32.mrb[0].mxu0
      %v9502 = vpop.f32.mrb[0].mxu0
      %v9503 = vadd.f32 0.0, %v9502
      %v9504 = vpop.f32.mrb[0].mxu0
      %9505 = vmatprep.mubr.bf16.mxu0 0
      %9506 = vmatmul.mubr.bf16.gmra.mrb[0].mxu0 %v6520
      %v9507 = vpop.f32.mrb[0].mxu0
      %v9508 = vadd.f32 0.0, %v9507
      %v9509 = vpop.f32.mrb[0].mxu0
      %v9510 = vpop.f32.mrb[0].mxu0
      %v9511 = vadd.f32 0.0, %v9510
      %v9512 = vpop.f32.mrb[0].mxu0
      %9513 = vmatprep.mubr.bf16.mxu0 0
      %9514 = vmatmul.mubr.bf16.gmra.mrb[0].mxu0 %v6523
      %v9515 = vpop.f32.mrb[0].mxu0
      %v9516 = vadd.f32 0.0, %v9515
      %v9517 = vpop.f32.mrb[0].mxu0
      %v9518 = vpop.f32.mrb[0].mxu0
      %v9519 = vadd.f32 0.0, %v9518
      %v9520 = vpop.f32.mrb[0].mxu0
      %9521 = vmatprep.mubr.bf16.mxu0 0
      %9522 = vmatmul.mubr.bf16.gmra.mrb[0].mxu0 %v6526
      %v9523 = vpop.f32.mrb[0].mxu0
      %v9524 = vadd.f32 0.0, %v9523
      %v9525 = vpop.f32.mrb[0].mxu0
      %v9526 = vpop.f32.mrb[0].mxu0
      %v9527 = vadd.f32 0.0, %v9526
      %v9528 = vpop.f32.mrb[0].mxu0
      %9529 = vmatprep.mubr.bf16.mxu0 0
      %9530 = vmatmul.mubr.bf16.gmra.mrb[0].mxu0 %v6529
      %v9531 = vpop.f32.mrb[0].mxu0
      %v9532 = vadd.f32 0.0, %v9531
      %v9533 = vpop.f32.mrb[0].mxu0
      %v9534 = vpop.f32.mrb[0].mxu0
      %v9535 = vadd.f32 0.0, %v9534
      %v9536 = vpop.f32.mrb[0].mxu0
      %9537 = vmatprep.mubr.bf16.mxu0 0
      %9538 = vmatmul.mubr.bf16.gmra.mrb[0].mxu0 %v6532
      %v9539 = vpop.f32.mrb[0].mxu0
      %v9540 = vadd.f32 0.0, %v9539
      %v9541 = vpop.f32.mrb[0].mxu0
      %v9542 = vpop.f32.mrb[0].mxu0
      %v9543 = vadd.f32 0.0, %v9542
      %v9544 = vpop.f32.mrb[0].mxu0
      %9545 = vmatprep.mubr.bf16.mxu0 0
      %9546 = vmatmul.mubr.bf16.gmra.mrb[0].mxu0 %v6535
      %v9547 = vpop.f32.mrb[0].mxu0
      %v9548 = vadd.f32 0.0, %v9547
      %v9549 = vpop.f32.mrb[0].mxu0
      %v9550 = vpop.f32.mrb[0].mxu0
      %v9551 = vadd.f32 0.0, %v9550
      %v9552 = vpop.f32.mrb[0].mxu0
      %9553 = vmatprep.mubr.bf16.mxu0 0
      %9554 = vmatmul.mubr.bf16.gmra.mrb[0].mxu0 %v6538
      %v9555 = vpop.f32.mrb[0].mxu0
      %v9556 = vadd.f32 0.0, %v9555
      %v9557 = vpop.f32.mrb[0].mxu0
      %v9558 = vpop.f32.mrb[0].mxu0
      %v9559 = vadd.f32 0.0, %v9558
      %v9560 = vpop.f32.mrb[0].mxu0
      %9561 = vmatprep.mubr.bf16.mxu0 0
      %9562 = vmatmul.mubr.bf16.gmra.mrb[0].mxu0 %v6541
      %v9563 = vpop.f32.mrb[0].mxu0
      %v9564 = vadd.f32 0.0, %v9563
      %v9565 = vpop.f32.mrb[0].mxu0
      %v9566 = vpop.f32.mrb[0].mxu0
      %v9567 = vadd.f32 0.0, %v9566
      %v9568 = vpop.f32.mrb[0].mxu0
      %9569 = vmatprep.mubr.bf16.mxu0 0
      %9570 = vmatmul.mubr.bf16.gmra.mrb[0].mxu0 %v6544
      %v9571 = vpop.f32.mrb[0].mxu0
      %v9572 = vadd.f32 0.0, %v9571
      %v9573 = vpop.f32.mrb[0].mxu0
      %v9574 = vpop.f32.mrb[0].mxu0
      %v9575 = vadd.f32 0.0, %v9574
      %v9576 = vpop.f32.mrb[0].mxu0
      %9577 = vmatprep.mubr.bf16.mxu0 0
      %9578 = vmatmul.mubr.bf16.gmra.mrb[0].mxu0 %v6547
      %v9579 = vpop.f32.mrb[0].mxu0
      %v9580 = vadd.f32 0.0, %v9579
      %v9581 = vpop.f32.mrb[0].mxu0
      %v9582 = vpop.f32.mrb[0].mxu0
      %v9583 = vadd.f32 0.0, %v9582
      %v9584 = vpop.f32.mrb[0].mxu0
      %9585 = vmatprep.mubr.bf16.mxu0 0
      %9586 = vmatmul.mubr.bf16.gmra.mrb[0].mxu0 %v6550
      %v9587 = vpop.f32.mrb[0].mxu0
      %v9588 = vadd.f32 0.0, %v9587
      %v9589 = vpop.f32.mrb[0].mxu0
      %v9590 = vpop.f32.mrb[0].mxu0
      %v9591 = vadd.f32 0.0, %v9590
      %v9592 = vpop.f32.mrb[0].mxu0
      %9593 = vmatprep.mubr.bf16.mxu0 0
      %9594 = vmatmul.mubr.bf16.gmra.mrb[0].mxu0 %v6553
      %v9595 = vpop.f32.mrb[0].mxu0
      %v9596 = vadd.f32 0.0, %v9595
      %v9597 = vpop.f32.mrb[0].mxu0
      %v9598 = vpop.f32.mrb[0].mxu0
      %v9599 = vadd.f32 0.0, %v9598
      %v9600 = vpop.f32.mrb[0].mxu0
      %9601 = vmatprep.mubr.bf16.mxu0 0
      %9602 = vmatmul.mubr.bf16.gmra.mrb[0].mxu0 %v6556
      %v9603 = vpop.f32.mrb[0].mxu0
      %v9604 = vadd.f32 0.0, %v9603
      %v9605 = vpop.f32.mrb[0].mxu0
      %v9606 = vpop.f32.mrb[0].mxu0
      %v9607 = vadd.f32 0.0, %v9606
      %v9608 = vpop.f32.mrb[0].mxu0
      %9609 = vmatprep.mubr.bf16.mxu0 0
      %9610 = vmatmul.mubr.bf16.gmra.mrb[0].mxu0 %v9455
      %v9611 = vpop.f32.mrb[0].mxu0
      %v9612 = vadd.f32 0.0, %v9611
      %v9613 = vpop.f32.mrb[0].mxu0
      %v9614 = vpop.f32.mrb[0].mxu0
      %v9615 = vadd.f32 0.0, %v9614
      %v9616 = vpop.f32.mrb[0].mxu0
      %9617 = vdwg.mxu0
      %v9618 = vadd.f32 %v9408, %v9492
      %v9619 = vadd.f32 %v9409, %v9495
      %v9620 = vadd.f32 %v9410, %v9500
      %v9621 = vadd.f32 %v9411, %v9503
      %v9622 = vadd.f32 %v9412, %v9508
      %v9623 = vadd.f32 %v9413, %v9511
      %v9624 = vadd.f32 %v9414, %v9516
      %v9625 = vadd.f32 %v9415, %v9519
      %v9626 = vadd.f32 %v9416, %v9524
      %v9627 = vadd.f32 %v9417, %v9527
      %v9628 = vadd.f32 %v9418, %v9532
      %v9629 = vadd.f32 %v9419, %v9535
      %v9630 = vadd.f32 %v9420, %v9540
      %v9631 = vadd.f32 %v9421, %v9543
      %v9632 = vadd.f32 %v9422, %v9548
      %v9633 = vadd.f32 %v9423, %v9551
      %v9634 = vadd.f32 %v9424, %v9556
      %v9635 = vadd.f32 %v9425, %v9559
      %v9636 = vadd.f32 %v9426, %v9564
      %v9637 = vadd.f32 %v9427, %v9567
      %v9638 = vadd.f32 %v9428, %v9572
      %v9639 = vadd.f32 %v9429, %v9575
      %v9640 = vadd.f32 %v9430, %v9580
      %v9641 = vadd.f32 %v9431, %v9583
      %v9642 = vadd.f32 %v9432, %v9588
      %v9643 = vadd.f32 %v9433, %v9591
      %v9644 = vadd.f32 %v9434, %v9596
      %v9645 = vadd.f32 %v9435, %v9599
      %v9646 = vadd.f32 %v9436, %v9604
      %v9647 = vadd.f32 %v9437, %v9607
      %v9648 = vadd.f32 %v9438, %v9612
      %v9649 = vadd.f32 %v9439, %v9615
      %v9651 = vshrl.u32 %v6359, 16
      %v9653 = vrot.slane %v9651, 4
      %v9654 = vshll.u32 %v6359, 16
      %v9656 = vrot.slane %v9654, 5
      %v9657 = vor.u32 %v9653, %v9656
      %v9658 = vrot.slane %v9657, 4
      %v9660 = vshll.u32 %v6360, 16
      %v9662 = vrot.slane %v9660, 5
      %v9663 = vsel %vm2949, %v9658, %v9662
      %v9664 = vshrl.u32 %v6360, 16
      %v9666 = vrot.slane %v9664, 4
      %v9667 = vor.u32 %v9666, %v9662
      %v9668 = vrot.slane %v9667, 4
      %v9670 = vshll.u32 %v6361, 16
      %v9672 = vrot.slane %v9670, 5
      %v9673 = vsel %vm2949, %v9668, %v9672
      %v9675 = vshrl.u32 %v6413, 16
      %v9677 = vrot.slane %v9675, 4
      %v9678 = vshll.u32 %v6413, 16
      %v9680 = vrot.slane %v9678, 5
      %v9681 = vor.u32 %v9677, %v9680
      %v9682 = vrot.slane %v9681, 4
      %v9684 = vshll.u32 %v6414, 16
      %v9686 = vrot.slane %v9684, 5
      %v9687 = vsel %vm2949, %v9682, %v9686
      %v9688 = vshrl.u32 %v6414, 16
      %v9690 = vrot.slane %v9688, 4
      %v9691 = vor.u32 %v9690, %v9686
      %v9692 = vrot.slane %v9691, 4
      %v9694 = vshll.u32 %v6415, 16
      %v9696 = vrot.slane %v9694, 5
      %v9697 = vsel %vm2949, %v9692, %v9696
      %s9698 = scalar_lea.vmem %s4, 32
      %v9699 = vld [vmem:[%s9698] sm:$0xf]
      %v9700 = vld [vmem:[%s9698 + $0x4] sm:$0xf]
      %v9701 = vunpack.c.l.b16 %v9663
      %v9702 = vunpack.c.l.b16 %v9673
      %v9703 = vpack.c.b16 %v9702, %v9701
      %v9706 = vunpack.c.l.b16 %v9699
      %v9707 = vunpack.c.l.b16 %v9700
      %v9708 = vpack.c.b16 %v9707, %v9706
      %v9711 = vsel %vm6509, %v9703, 0
      %9713 = vmatprep.subr.bf16.mxu0 0
      %9714 = vmatpush1.bf16.msra.mxu0 %v9708
      %9715 = vmatprep.subr.bf16.mxu0 0
      %9716 = vmatpush1.bf16.msra.mxu0 0
      %9717 = vmatprep.subr.bf16.mxu0 0
      %9718 = vmatpush1.bf16.msra.mxu0 0
      %9719 = vmatprep.subr.bf16.mxu0 0
      %9720 = vmatpush1.bf16.msra.mxu0 0
      %9721 = vmatprep.subr.bf16.mxu0 0
      %9722 = vmatpush1.bf16.msra.mxu0 0
      %9723 = vmatprep.subr.bf16.mxu0 0
      %9724 = vmatpush1.bf16.msra.mxu0 0
      %9725 = vmatprep.subr.bf16.mxu0 0
      %9726 = vmatpush1.bf16.msra.mxu0 0
      %9727 = vmatprep.subr.bf16.mxu0 0
      %9728 = vmatpush1.bf16.msra.mxu0 0
      %9729 = vmatprep.subr.bf16.mxu0 0
      %9730 = vmatpush1.bf16.msra.mxu0 0
      %9731 = vmatprep.subr.bf16.mxu0 0
      %9732 = vmatpush1.bf16.msra.mxu0 0
      %9733 = vmatprep.subr.bf16.mxu0 0
      %9734 = vmatpush1.bf16.msra.mxu0 0
      %9735 = vmatprep.subr.bf16.mxu0 0
      %9736 = vmatpush1.bf16.msra.mxu0 0
      %9737 = vmatprep.subr.bf16.mxu0 0
      %9738 = vmatpush1.bf16.msra.mxu0 0
      %9739 = vmatprep.subr.bf16.mxu0 0
      %9740 = vmatpush1.bf16.msra.mxu0 0
      %9741 = vmatprep.subr.bf16.mxu0 0
      %9742 = vmatpush1.bf16.msra.mxu0 0
      %9743 = vmatprep.subr.bf16.mxu0 0
      %9744 = vmatpush1.bf16.msra.mxu0 0
      %9745 = vmatprep.mubr.bf16.mxu0 0
      %9746 = vmatmul.mubr.bf16.gmra.mrb[0].mxu0 %v7843
      %v9747 = vpop.f32.mrb[0].mxu0
      %v9748 = vadd.f32 0.0, %v9747
      %v9749 = vpop.f32.mrb[0].mxu0
      %v9750 = vpop.f32.mrb[0].mxu0
      %v9751 = vadd.f32 0.0, %v9750
      %v9752 = vpop.f32.mrb[0].mxu0
      %9753 = vmatprep.mubr.bf16.mxu0 0
      %9754 = vmatmul.mubr.bf16.gmra.mrb[0].mxu0 %v7846
      %v9755 = vpop.f32.mrb[0].mxu0
      %v9756 = vadd.f32 0.0, %v9755
      %v9757 = vpop.f32.mrb[0].mxu0
      %v9758 = vpop.f32.mrb[0].mxu0
      %v9759 = vadd.f32 0.0, %v9758
      %v9760 = vpop.f32.mrb[0].mxu0
      %9761 = vmatprep.mubr.bf16.mxu0 0
      %9762 = vmatmul.mubr.bf16.gmra.mrb[0].mxu0 %v7849
      %v9763 = vpop.f32.mrb[0].mxu0
      %v9764 = vadd.f32 0.0, %v9763
      %v9765 = vpop.f32.mrb[0].mxu0
      %v9766 = vpop.f32.mrb[0].mxu0
      %v9767 = vadd.f32 0.0, %v9766
      %v9768 = vpop.f32.mrb[0].mxu0
      %9769 = vmatprep.mubr.bf16.mxu0 0
      %9770 = vmatmul.mubr.bf16.gmra.mrb[0].mxu0 %v7852
      %v9771 = vpop.f32.mrb[0].mxu0
      %v9772 = vadd.f32 0.0, %v9771
      %v9773 = vpop.f32.mrb[0].mxu0
      %v9774 = vpop.f32.mrb[0].mxu0
      %v9775 = vadd.f32 0.0, %v9774
      %v9776 = vpop.f32.mrb[0].mxu0
      %9777 = vmatprep.mubr.bf16.mxu0 0
      %9778 = vmatmul.mubr.bf16.gmra.mrb[0].mxu0 %v7855
      %v9779 = vpop.f32.mrb[0].mxu0
      %v9780 = vadd.f32 0.0, %v9779
      %v9781 = vpop.f32.mrb[0].mxu0
      %v9782 = vpop.f32.mrb[0].mxu0
      %v9783 = vadd.f32 0.0, %v9782
      %v9784 = vpop.f32.mrb[0].mxu0
      %9785 = vmatprep.mubr.bf16.mxu0 0
      %9786 = vmatmul.mubr.bf16.gmra.mrb[0].mxu0 %v7858
      %v9787 = vpop.f32.mrb[0].mxu0
      %v9788 = vadd.f32 0.0, %v9787
      %v9789 = vpop.f32.mrb[0].mxu0
      %v9790 = vpop.f32.mrb[0].mxu0
      %v9791 = vadd.f32 0.0, %v9790
      %v9792 = vpop.f32.mrb[0].mxu0
      %9793 = vmatprep.mubr.bf16.mxu0 0
      %9794 = vmatmul.mubr.bf16.gmra.mrb[0].mxu0 %v7861
      %v9795 = vpop.f32.mrb[0].mxu0
      %v9796 = vadd.f32 0.0, %v9795
      %v9797 = vpop.f32.mrb[0].mxu0
      %v9798 = vpop.f32.mrb[0].mxu0
      %v9799 = vadd.f32 0.0, %v9798
      %v9800 = vpop.f32.mrb[0].mxu0
      %9801 = vmatprep.mubr.bf16.mxu0 0
      %9802 = vmatmul.mubr.bf16.gmra.mrb[0].mxu0 %v7864
      %v9803 = vpop.f32.mrb[0].mxu0
      %v9804 = vadd.f32 0.0, %v9803
      %v9805 = vpop.f32.mrb[0].mxu0
      %v9806 = vpop.f32.mrb[0].mxu0
      %v9807 = vadd.f32 0.0, %v9806
      %v9808 = vpop.f32.mrb[0].mxu0
      %9809 = vmatprep.mubr.bf16.mxu0 0
      %9810 = vmatmul.mubr.bf16.gmra.mrb[0].mxu0 %v7867
      %v9811 = vpop.f32.mrb[0].mxu0
      %v9812 = vadd.f32 0.0, %v9811
      %v9813 = vpop.f32.mrb[0].mxu0
      %v9814 = vpop.f32.mrb[0].mxu0
      %v9815 = vadd.f32 0.0, %v9814
      %v9816 = vpop.f32.mrb[0].mxu0
      %9817 = vmatprep.mubr.bf16.mxu0 0
      %9818 = vmatmul.mubr.bf16.gmra.mrb[0].mxu0 %v7870
      %v9819 = vpop.f32.mrb[0].mxu0
      %v9820 = vadd.f32 0.0, %v9819
      %v9821 = vpop.f32.mrb[0].mxu0
      %v9822 = vpop.f32.mrb[0].mxu0
      %v9823 = vadd.f32 0.0, %v9822
      %v9824 = vpop.f32.mrb[0].mxu0
      %9825 = vmatprep.mubr.bf16.mxu0 0
      %9826 = vmatmul.mubr.bf16.gmra.mrb[0].mxu0 %v7873
      %v9827 = vpop.f32.mrb[0].mxu0
      %v9828 = vadd.f32 0.0, %v9827
      %v9829 = vpop.f32.mrb[0].mxu0
      %v9830 = vpop.f32.mrb[0].mxu0
      %v9831 = vadd.f32 0.0, %v9830
      %v9832 = vpop.f32.mrb[0].mxu0
      %9833 = vmatprep.mubr.bf16.mxu0 0
      %9834 = vmatmul.mubr.bf16.gmra.mrb[0].mxu0 %v7876
      %v9835 = vpop.f32.mrb[0].mxu0
      %v9836 = vadd.f32 0.0, %v9835
      %v9837 = vpop.f32.mrb[0].mxu0
      %v9838 = vpop.f32.mrb[0].mxu0
      %v9839 = vadd.f32 0.0, %v9838
      %v9840 = vpop.f32.mrb[0].mxu0
      %9841 = vmatprep.mubr.bf16.mxu0 0
      %9842 = vmatmul.mubr.bf16.gmra.mrb[0].mxu0 %v7879
      %v9843 = vpop.f32.mrb[0].mxu0
      %v9844 = vadd.f32 0.0, %v9843
      %v9845 = vpop.f32.mrb[0].mxu0
      %v9846 = vpop.f32.mrb[0].mxu0
      %v9847 = vadd.f32 0.0, %v9846
      %v9848 = vpop.f32.mrb[0].mxu0
      %9849 = vmatprep.mubr.bf16.mxu0 0
      %9850 = vmatmul.mubr.bf16.gmra.mrb[0].mxu0 %v7882
      %v9851 = vpop.f32.mrb[0].mxu0
      %v9852 = vadd.f32 0.0, %v9851
      %v9853 = vpop.f32.mrb[0].mxu0
      %v9854 = vpop.f32.mrb[0].mxu0
      %v9855 = vadd.f32 0.0, %v9854
      %v9856 = vpop.f32.mrb[0].mxu0
      %9857 = vmatprep.mubr.bf16.mxu0 0
      %9858 = vmatmul.mubr.bf16.gmra.mrb[0].mxu0 %v7885
      %v9859 = vpop.f32.mrb[0].mxu0
      %v9860 = vadd.f32 0.0, %v9859
      %v9861 = vpop.f32.mrb[0].mxu0
      %v9862 = vpop.f32.mrb[0].mxu0
      %v9863 = vadd.f32 0.0, %v9862
      %v9864 = vpop.f32.mrb[0].mxu0
      %9865 = vmatprep.mubr.bf16.mxu0 0
      %9866 = vmatmul.mubr.bf16.gmra.mrb[0].mxu0 %v9711
      %v9867 = vpop.f32.mrb[0].mxu0
      %v9868 = vadd.f32 0.0, %v9867
      %v9869 = vpop.f32.mrb[0].mxu0
      %v9870 = vpop.f32.mrb[0].mxu0
      %v9871 = vadd.f32 0.0, %v9870
      %v9872 = vpop.f32.mrb[0].mxu0
      %9873 = vdwg.mxu0
      %v9874 = vadd.f32 %v9618, %v9748
      %v9875 = vadd.f32 %v9619, %v9751
      %v9876 = vadd.f32 %v9620, %v9756
      %v9877 = vadd.f32 %v9621, %v9759
      %v9878 = vadd.f32 %v9622, %v9764
      %v9879 = vadd.f32 %v9623, %v9767
      %v9880 = vadd.f32 %v9624, %v9772
      %v9881 = vadd.f32 %v9625, %v9775
      %v9882 = vadd.f32 %v9626, %v9780
      %v9883 = vadd.f32 %v9627, %v9783
      %v9884 = vadd.f32 %v9628, %v9788
      %v9885 = vadd.f32 %v9629, %v9791
      %v9886 = vadd.f32 %v9630, %v9796
      %v9887 = vadd.f32 %v9631, %v9799
      %v9888 = vadd.f32 %v9632, %v9804
      %v9889 = vadd.f32 %v9633, %v9807
      %v9890 = vadd.f32 %v9634, %v9812
      %v9891 = vadd.f32 %v9635, %v9815
      %v9892 = vadd.f32 %v9636, %v9820
      %v9893 = vadd.f32 %v9637, %v9823
      %v9894 = vadd.f32 %v9638, %v9828
      %v9895 = vadd.f32 %v9639, %v9831
      %v9896 = vadd.f32 %v9640, %v9836
      %v9897 = vadd.f32 %v9641, %v9839
      %v9898 = vadd.f32 %v9642, %v9844
      %v9899 = vadd.f32 %v9643, %v9847
      %v9900 = vadd.f32 %v9644, %v9852
      %v9901 = vadd.f32 %v9645, %v9855
      %v9902 = vadd.f32 %v9646, %v9860
      %v9903 = vadd.f32 %v9647, %v9863
      %v9904 = vadd.f32 %v9648, %v9868
      %v9905 = vadd.f32 %v9649, %v9871
      %s9906 = scalar_lea.vmem %s5, 32
      %v9907 = vld [vmem:[%s9906] sm:$0xf]
      %v9908 = vld [vmem:[%s9906 + $0x4] sm:$0xf]
      %v9909 = vunpack.c.l.b16 %v9687
      %v9910 = vunpack.c.l.b16 %v9697
      %v9911 = vpack.c.b16 %v9910, %v9909
      %v9914 = vunpack.c.l.b16 %v9907
      %v9915 = vunpack.c.l.b16 %v9908
      %v9916 = vpack.c.b16 %v9915, %v9914
      %v9919 = vsel %vm6509, %v9911, 0
      %9921 = vmatprep.subr.bf16.mxu0 0
      %9922 = vmatpush1.bf16.msra.mxu0 %v9916
      %9923 = vmatprep.subr.bf16.mxu0 0
      %9924 = vmatpush1.bf16.msra.mxu0 0
      %9925 = vmatprep.subr.bf16.mxu0 0
      %9926 = vmatpush1.bf16.msra.mxu0 0
      %9927 = vmatprep.subr.bf16.mxu0 0
      %9928 = vmatpush1.bf16.msra.mxu0 0
      %9929 = vmatprep.subr.bf16.mxu0 0
      %9930 = vmatpush1.bf16.msra.mxu0 0
      %9931 = vmatprep.subr.bf16.mxu0 0
      %9932 = vmatpush1.bf16.msra.mxu0 0
      %9933 = vmatprep.subr.bf16.mxu0 0
      %9934 = vmatpush1.bf16.msra.mxu0 0
      %9935 = vmatprep.subr.bf16.mxu0 0
      %9936 = vmatpush1.bf16.msra.mxu0 0
      %9937 = vmatprep.subr.bf16.mxu0 0
      %9938 = vmatpush1.bf16.msra.mxu0 0
      %9939 = vmatprep.subr.bf16.mxu0 0
      %9940 = vmatpush1.bf16.msra.mxu0 0
      %9941 = vmatprep.subr.bf16.mxu0 0
      %9942 = vmatpush1.bf16.msra.mxu0 0
      %9943 = vmatprep.subr.bf16.mxu0 0
      %9944 = vmatpush1.bf16.msra.mxu0 0
      %9945 = vmatprep.subr.bf16.mxu0 0
      %9946 = vmatpush1.bf16.msra.mxu0 0
      %9947 = vmatprep.subr.bf16.mxu0 0
      %9948 = vmatpush1.bf16.msra.mxu0 0
      %9949 = vmatprep.subr.bf16.mxu0 0
      %9950 = vmatpush1.bf16.msra.mxu0 0
      %9951 = vmatprep.subr.bf16.mxu0 0
      %9952 = vmatpush1.bf16.msra.mxu0 0
      %9953 = vmatprep.mubr.bf16.mxu0 0
      %9954 = vmatmul.mubr.bf16.gmra.mrb[0].mxu0 %v8141
      %v9955 = vpop.f32.mrb[0].mxu0
      %v9956 = vadd.f32 0.0, %v9955
      %v9957 = vpop.f32.mrb[0].mxu0
      %v9958 = vpop.f32.mrb[0].mxu0
      %v9959 = vadd.f32 0.0, %v9958
      %v9960 = vpop.f32.mrb[0].mxu0
      %9961 = vmatprep.mubr.bf16.mxu0 0
      %9962 = vmatmul.mubr.bf16.gmra.mrb[0].mxu0 %v8144
      %v9963 = vpop.f32.mrb[0].mxu0
      %v9964 = vadd.f32 0.0, %v9963
      %v9965 = vpop.f32.mrb[0].mxu0
      %v9966 = vpop.f32.mrb[0].mxu0
      %v9967 = vadd.f32 0.0, %v9966
      %v9968 = vpop.f32.mrb[0].mxu0
      %9969 = vmatprep.mubr.bf16.mxu0 0
      %9970 = vmatmul.mubr.bf16.gmra.mrb[0].mxu0 %v8147
      %v9971 = vpop.f32.mrb[0].mxu0
      %v9972 = vadd.f32 0.0, %v9971
      %v9973 = vpop.f32.mrb[0].mxu0
      %v9974 = vpop.f32.mrb[0].mxu0
      %v9975 = vadd.f32 0.0, %v9974
      %v9976 = vpop.f32.mrb[0].mxu0
      %9977 = vmatprep.mubr.bf16.mxu0 0
      %9978 = vmatmul.mubr.bf16.gmra.mrb[0].mxu0 %v8150
      %v9979 = vpop.f32.mrb[0].mxu0
      %v9980 = vadd.f32 0.0, %v9979
      %v9981 = vpop.f32.mrb[0].mxu0
      %v9982 = vpop.f32.mrb[0].mxu0
      %v9983 = vadd.f32 0.0, %v9982
      %v9984 = vpop.f32.mrb[0].mxu0
      %9985 = vmatprep.mubr.bf16.mxu0 0
      %9986 = vmatmul.mubr.bf16.gmra.mrb[0].mxu0 %v8153
      %v9987 = vpop.f32.mrb[0].mxu0
      %v9988 = vadd.f32 0.0, %v9987
      %v9989 = vpop.f32.mrb[0].mxu0
      %v9990 = vpop.f32.mrb[0].mxu0
      %v9991 = vadd.f32 0.0, %v9990
      %v9992 = vpop.f32.mrb[0].mxu0
      %9993 = vmatprep.mubr.bf16.mxu0 0
      %9994 = vmatmul.mubr.bf16.gmra.mrb[0].mxu0 %v8156
      %v9995 = vpop.f32.mrb[0].mxu0
      %v9996 = vadd.f32 0.0, %v9995
      %v9997 = vpop.f32.mrb[0].mxu0
      %v9998 = vpop.f32.mrb[0].mxu0
      %v9999 = vadd.f32 0.0, %v9998
      %v10000 = vpop.f32.mrb[0].mxu0
      %10001 = vmatprep.mubr.bf16.mxu0 0
      %10002 = vmatmul.mubr.bf16.gmra.mrb[0].mxu0 %v8159
      %v10003 = vpop.f32.mrb[0].mxu0
      %v10004 = vadd.f32 0.0, %v10003
      %v10005 = vpop.f32.mrb[0].mxu0
      %v10006 = vpop.f32.mrb[0].mxu0
      %v10007 = vadd.f32 0.0, %v10006
      %v10008 = vpop.f32.mrb[0].mxu0
      %10009 = vmatprep.mubr.bf16.mxu0 0
      %10010 = vmatmul.mubr.bf16.gmra.mrb[0].mxu0 %v8162
      %v10011 = vpop.f32.mrb[0].mxu0
      %v10012 = vadd.f32 0.0, %v10011
      %v10013 = vpop.f32.mrb[0].mxu0
      %v10014 = vpop.f32.mrb[0].mxu0
      %v10015 = vadd.f32 0.0, %v10014
      %v10016 = vpop.f32.mrb[0].mxu0
      %10017 = vmatprep.mubr.bf16.mxu0 0
      %10018 = vmatmul.mubr.bf16.gmra.mrb[0].mxu0 %v8165
      %v10019 = vpop.f32.mrb[0].mxu0
      %v10020 = vadd.f32 0.0, %v10019
      %v10021 = vpop.f32.mrb[0].mxu0
      %v10022 = vpop.f32.mrb[0].mxu0
      %v10023 = vadd.f32 0.0, %v10022
      %v10024 = vpop.f32.mrb[0].mxu0
      %10025 = vmatprep.mubr.bf16.mxu0 0
      %10026 = vmatmul.mubr.bf16.gmra.mrb[0].mxu0 %v8168
      %v10027 = vpop.f32.mrb[0].mxu0
      %v10028 = vadd.f32 0.0, %v10027
      %v10029 = vpop.f32.mrb[0].mxu0
      %v10030 = vpop.f32.mrb[0].mxu0
      %v10031 = vadd.f32 0.0, %v10030
      %v10032 = vpop.f32.mrb[0].mxu0
      %10033 = vmatprep.mubr.bf16.mxu0 0
      %10034 = vmatmul.mubr.bf16.gmra.mrb[0].mxu0 %v8171
      %v10035 = vpop.f32.mrb[0].mxu0
      %v10036 = vadd.f32 0.0, %v10035
      %v10037 = vpop.f32.mrb[0].mxu0
      %v10038 = vpop.f32.mrb[0].mxu0
      %v10039 = vadd.f32 0.0, %v10038
      %v10040 = vpop.f32.mrb[0].mxu0
      %10041 = vmatprep.mubr.bf16.mxu0 0
      %10042 = vmatmul.mubr.bf16.gmra.mrb[0].mxu0 %v8174
      %v10043 = vpop.f32.mrb[0].mxu0
      %v10044 = vadd.f32 0.0, %v10043
      %v10045 = vpop.f32.mrb[0].mxu0
      %v10046 = vpop.f32.mrb[0].mxu0
      %v10047 = vadd.f32 0.0, %v10046
      %v10048 = vpop.f32.mrb[0].mxu0
      %10049 = vmatprep.mubr.bf16.mxu0 0
      %10050 = vmatmul.mubr.bf16.gmra.mrb[0].mxu0 %v8177
      %v10051 = vpop.f32.mrb[0].mxu0
      %v10052 = vadd.f32 0.0, %v10051
      %v10053 = vpop.f32.mrb[0].mxu0
      %v10054 = vpop.f32.mrb[0].mxu0
      %v10055 = vadd.f32 0.0, %v10054
      %v10056 = vpop.f32.mrb[0].mxu0
      %10057 = vmatprep.mubr.bf16.mxu0 0
      %10058 = vmatmul.mubr.bf16.gmra.mrb[0].mxu0 %v8180
      %v10059 = vpop.f32.mrb[0].mxu0
      %v10060 = vadd.f32 0.0, %v10059
      %v10061 = vpop.f32.mrb[0].mxu0
      %v10062 = vpop.f32.mrb[0].mxu0
      %v10063 = vadd.f32 0.0, %v10062
      %v10064 = vpop.f32.mrb[0].mxu0
      %10065 = vmatprep.mubr.bf16.mxu0 0
      %10066 = vmatmul.mubr.bf16.gmra.mrb[0].mxu0 %v8183
      %v10067 = vpop.f32.mrb[0].mxu0
      %v10068 = vadd.f32 0.0, %v10067
      %v10069 = vpop.f32.mrb[0].mxu0
      %v10070 = vpop.f32.mrb[0].mxu0
      %v10071 = vadd.f32 0.0, %v10070
      %v10072 = vpop.f32.mrb[0].mxu0
      %10073 = vmatprep.mubr.bf16.mxu0 0
      %10074 = vmatmul.mubr.bf16.gmra.mrb[0].mxu0 %v9919
      %v10075 = vpop.f32.mrb[0].mxu0
      %v10076 = vadd.f32 0.0, %v10075
      %v10077 = vpop.f32.mrb[0].mxu0
      %v10078 = vpop.f32.mrb[0].mxu0
      %v10079 = vadd.f32 0.0, %v10078
      %v10080 = vpop.f32.mrb[0].mxu0
      %10081 = vdwg.mxu0
      %v10082 = vadd.f32 %v9874, %v9956
      %v10083 = vadd.f32 %v9875, %v9959
      %v10084 = vadd.f32 %v9876, %v9964
      %v10085 = vadd.f32 %v9877, %v9967
      %v10086 = vadd.f32 %v9878, %v9972
      %v10087 = vadd.f32 %v9879, %v9975
      %v10088 = vadd.f32 %v9880, %v9980
      %v10089 = vadd.f32 %v9881, %v9983
      %v10090 = vadd.f32 %v9882, %v9988
      %v10091 = vadd.f32 %v9883, %v9991
      %v10092 = vadd.f32 %v9884, %v9996
      %v10093 = vadd.f32 %v9885, %v9999
      %v10094 = vadd.f32 %v9886, %v10004
      %v10095 = vadd.f32 %v9887, %v10007
      %v10096 = vadd.f32 %v9888, %v10012
      %v10097 = vadd.f32 %v9889, %v10015
      %v10098 = vadd.f32 %v9890, %v10020
      %v10099 = vadd.f32 %v9891, %v10023
      %v10100 = vadd.f32 %v9892, %v10028
      %v10101 = vadd.f32 %v9893, %v10031
      %v10102 = vadd.f32 %v9894, %v10036
      %v10103 = vadd.f32 %v9895, %v10039
      %v10104 = vadd.f32 %v9896, %v10044
      %v10105 = vadd.f32 %v9897, %v10047
      %v10106 = vadd.f32 %v9898, %v10052
      %v10107 = vadd.f32 %v9899, %v10055
      %v10108 = vadd.f32 %v9900, %v10060
      %v10109 = vadd.f32 %v9901, %v10063
      %v10110 = vadd.f32 %v9902, %v10068
      %v10111 = vadd.f32 %v9903, %v10071
      %v10112 = vadd.f32 %v9904, %v10076
      %v10113 = vadd.f32 %v9905, %v10079
      %v10115 = vrot.slane %v6359, 5
      %v10116 = vrot.slane %v10115, 4
      %v10117 = vrot.slane %v6360, 5
      %v10118 = vsel %vm3928, %v10116, %v10117
      %v10119 = vrot.slane %v10117, 4
      %v10120 = vrot.slane %v6361, 5
      %v10121 = vsel %vm3928, %v10119, %v10120
      %v10123 = vrot.slane %v6413, 5
      %v10124 = vrot.slane %v10123, 4
      %v10125 = vrot.slane %v6414, 5
      %v10126 = vsel %vm3928, %v10124, %v10125
      %v10127 = vrot.slane %v10125, 4
      %v10128 = vrot.slane %v6415, 5
      %v10129 = vsel %vm3928, %v10127, %v10128
      %s10130 = scalar_lea.vmem %s4, 40
      %v10131 = vld [vmem:[%s10130] sm:$0xf]
      %v10132 = vld [vmem:[%s10130 + $0x4] sm:$0xf]
      %v10133 = vunpack.c.l.b16 %v10118
      %v10134 = vunpack.c.l.b16 %v10121
      %v10135 = vpack.c.b16 %v10134, %v10133
      %v10138 = vunpack.c.l.b16 %v10131
      %v10139 = vunpack.c.l.b16 %v10132
      %v10140 = vpack.c.b16 %v10139, %v10138
      %v10143 = vsel %vm6509, %v10135, 0
      %10145 = vmatprep.subr.bf16.mxu0 0
      %10146 = vmatpush1.bf16.msra.mxu0 %v10140
      %10147 = vmatprep.subr.bf16.mxu0 0
      %10148 = vmatpush1.bf16.msra.mxu0 0
      %10149 = vmatprep.subr.bf16.mxu0 0
      %10150 = vmatpush1.bf16.msra.mxu0 0
      %10151 = vmatprep.subr.bf16.mxu0 0
      %10152 = vmatpush1.bf16.msra.mxu0 0
      %10153 = vmatprep.subr.bf16.mxu0 0
      %10154 = vmatpush1.bf16.msra.mxu0 0
      %10155 = vmatprep.subr.bf16.mxu0 0
      %10156 = vmatpush1.bf16.msra.mxu0 0
      %10157 = vmatprep.subr.bf16.mxu0 0
      %10158 = vmatpush1.bf16.msra.mxu0 0
      %10159 = vmatprep.subr.bf16.mxu0 0
      %10160 = vmatpush1.bf16.msra.mxu0 0
      %10161 = vmatprep.subr.bf16.mxu0 0
      %10162 = vmatpush1.bf16.msra.mxu0 0
      %10163 = vmatprep.subr.bf16.mxu0 0
      %10164 = vmatpush1.bf16.msra.mxu0 0
      %10165 = vmatprep.subr.bf16.mxu0 0
      %10166 = vmatpush1.bf16.msra.mxu0 0
      %10167 = vmatprep.subr.bf16.mxu0 0
      %10168 = vmatpush1.bf16.msra.mxu0 0
      %10169 = vmatprep.subr.bf16.mxu0 0
      %10170 = vmatpush1.bf16.msra.mxu0 0
      %10171 = vmatprep.subr.bf16.mxu0 0
      %10172 = vmatpush1.bf16.msra.mxu0 0
      %10173 = vmatprep.subr.bf16.mxu0 0
      %10174 = vmatpush1.bf16.msra.mxu0 0
      %10175 = vmatprep.subr.bf16.mxu0 0
      %10176 = vmatpush1.bf16.msra.mxu0 0
      %10177 = vmatprep.mubr.bf16.mxu0 0
      %10178 = vmatmul.mubr.bf16.gmra.mrb[0].mxu0 %v8695
      %v10179 = vpop.f32.mrb[0].mxu0
      %v10180 = vadd.f32 0.0, %v10179
      %v10181 = vpop.f32.mrb[0].mxu0
      %v10182 = vpop.f32.mrb[0].mxu0
      %v10183 = vadd.f32 0.0, %v10182
      %v10184 = vpop.f32.mrb[0].mxu0
      %10185 = vmatprep.mubr.bf16.mxu0 0
      %10186 = vmatmul.mubr.bf16.gmra.mrb[0].mxu0 %v8698
      %v10187 = vpop.f32.mrb[0].mxu0
      %v10188 = vadd.f32 0.0, %v10187
      %v10189 = vpop.f32.mrb[0].mxu0
      %v10190 = vpop.f32.mrb[0].mxu0
      %v10191 = vadd.f32 0.0, %v10190
      %v10192 = vpop.f32.mrb[0].mxu0
      %10193 = vmatprep.mubr.bf16.mxu0 0
      %10194 = vmatmul.mubr.bf16.gmra.mrb[0].mxu0 %v8701
      %v10195 = vpop.f32.mrb[0].mxu0
      %v10196 = vadd.f32 0.0, %v10195
      %v10197 = vpop.f32.mrb[0].mxu0
      %v10198 = vpop.f32.mrb[0].mxu0
      %v10199 = vadd.f32 0.0, %v10198
      %v10200 = vpop.f32.mrb[0].mxu0
      %10201 = vmatprep.mubr.bf16.mxu0 0
      %10202 = vmatmul.mubr.bf16.gmra.mrb[0].mxu0 %v8704
      %v10203 = vpop.f32.mrb[0].mxu0
      %v10204 = vadd.f32 0.0, %v10203
      %v10205 = vpop.f32.mrb[0].mxu0
      %v10206 = vpop.f32.mrb[0].mxu0
      %v10207 = vadd.f32 0.0, %v10206
      %v10208 = vpop.f32.mrb[0].mxu0
      %10209 = vmatprep.mubr.bf16.mxu0 0
      %10210 = vmatmul.mubr.bf16.gmra.mrb[0].mxu0 %v8707
      %v10211 = vpop.f32.mrb[0].mxu0
      %v10212 = vadd.f32 0.0, %v10211
      %v10213 = vpop.f32.mrb[0].mxu0
      %v10214 = vpop.f32.mrb[0].mxu0
      %v10215 = vadd.f32 0.0, %v10214
      %v10216 = vpop.f32.mrb[0].mxu0
      %10217 = vmatprep.mubr.bf16.mxu0 0
      %10218 = vmatmul.mubr.bf16.gmra.mrb[0].mxu0 %v8710
      %v10219 = vpop.f32.mrb[0].mxu0
      %v10220 = vadd.f32 0.0, %v10219
      %v10221 = vpop.f32.mrb[0].mxu0
      %v10222 = vpop.f32.mrb[0].mxu0
      %v10223 = vadd.f32 0.0, %v10222
      %v10224 = vpop.f32.mrb[0].mxu0
      %10225 = vmatprep.mubr.bf16.mxu0 0
      %10226 = vmatmul.mubr.bf16.gmra.mrb[0].mxu0 %v8713
      %v10227 = vpop.f32.mrb[0].mxu0
      %v10228 = vadd.f32 0.0, %v10227
      %v10229 = vpop.f32.mrb[0].mxu0
      %v10230 = vpop.f32.mrb[0].mxu0
      %v10231 = vadd.f32 0.0, %v10230
      %v10232 = vpop.f32.mrb[0].mxu0
      %10233 = vmatprep.mubr.bf16.mxu0 0
      %10234 = vmatmul.mubr.bf16.gmra.mrb[0].mxu0 %v8716
      %v10235 = vpop.f32.mrb[0].mxu0
      %v10236 = vadd.f32 0.0, %v10235
      %v10237 = vpop.f32.mrb[0].mxu0
      %v10238 = vpop.f32.mrb[0].mxu0
      %v10239 = vadd.f32 0.0, %v10238
      %v10240 = vpop.f32.mrb[0].mxu0
      %10241 = vmatprep.mubr.bf16.mxu0 0
      %10242 = vmatmul.mubr.bf16.gmra.mrb[0].mxu0 %v8719
      %v10243 = vpop.f32.mrb[0].mxu0
      %v10244 = vadd.f32 0.0, %v10243
      %v10245 = vpop.f32.mrb[0].mxu0
      %v10246 = vpop.f32.mrb[0].mxu0
      %v10247 = vadd.f32 0.0, %v10246
      %v10248 = vpop.f32.mrb[0].mxu0
      %10249 = vmatprep.mubr.bf16.mxu0 0
      %10250 = vmatmul.mubr.bf16.gmra.mrb[0].mxu0 %v8722
      %v10251 = vpop.f32.mrb[0].mxu0
      %v10252 = vadd.f32 0.0, %v10251
      %v10253 = vpop.f32.mrb[0].mxu0
      %v10254 = vpop.f32.mrb[0].mxu0
      %v10255 = vadd.f32 0.0, %v10254
      %v10256 = vpop.f32.mrb[0].mxu0
      %10257 = vmatprep.mubr.bf16.mxu0 0
      %10258 = vmatmul.mubr.bf16.gmra.mrb[0].mxu0 %v8725
      %v10259 = vpop.f32.mrb[0].mxu0
      %v10260 = vadd.f32 0.0, %v10259
      %v10261 = vpop.f32.mrb[0].mxu0
      %v10262 = vpop.f32.mrb[0].mxu0
      %v10263 = vadd.f32 0.0, %v10262
      %v10264 = vpop.f32.mrb[0].mxu0
      %10265 = vmatprep.mubr.bf16.mxu0 0
      %10266 = vmatmul.mubr.bf16.gmra.mrb[0].mxu0 %v8728
      %v10267 = vpop.f32.mrb[0].mxu0
      %v10268 = vadd.f32 0.0, %v10267
      %v10269 = vpop.f32.mrb[0].mxu0
      %v10270 = vpop.f32.mrb[0].mxu0
      %v10271 = vadd.f32 0.0, %v10270
      %v10272 = vpop.f32.mrb[0].mxu0
      %10273 = vmatprep.mubr.bf16.mxu0 0
      %10274 = vmatmul.mubr.bf16.gmra.mrb[0].mxu0 %v8731
      %v10275 = vpop.f32.mrb[0].mxu0
      %v10276 = vadd.f32 0.0, %v10275
      %v10277 = vpop.f32.mrb[0].mxu0
      %v10278 = vpop.f32.mrb[0].mxu0
      %v10279 = vadd.f32 0.0, %v10278
      %v10280 = vpop.f32.mrb[0].mxu0
      %10281 = vmatprep.mubr.bf16.mxu0 0
      %10282 = vmatmul.mubr.bf16.gmra.mrb[0].mxu0 %v8734
      %v10283 = vpop.f32.mrb[0].mxu0
      %v10284 = vadd.f32 0.0, %v10283
      %v10285 = vpop.f32.mrb[0].mxu0
      %v10286 = vpop.f32.mrb[0].mxu0
      %v10287 = vadd.f32 0.0, %v10286
      %v10288 = vpop.f32.mrb[0].mxu0
      %10289 = vmatprep.mubr.bf16.mxu0 0
      %10290 = vmatmul.mubr.bf16.gmra.mrb[0].mxu0 %v8737
      %v10291 = vpop.f32.mrb[0].mxu0
      %v10292 = vadd.f32 0.0, %v10291
      %v10293 = vpop.f32.mrb[0].mxu0
      %v10294 = vpop.f32.mrb[0].mxu0
      %v10295 = vadd.f32 0.0, %v10294
      %v10296 = vpop.f32.mrb[0].mxu0
      %10297 = vmatprep.mubr.bf16.mxu0 0
      %10298 = vmatmul.mubr.bf16.gmra.mrb[0].mxu0 %v10143
      %v10299 = vpop.f32.mrb[0].mxu0
      %v10300 = vadd.f32 0.0, %v10299
      %v10301 = vpop.f32.mrb[0].mxu0
      %v10302 = vpop.f32.mrb[0].mxu0
      %v10303 = vadd.f32 0.0, %v10302
      %v10304 = vpop.f32.mrb[0].mxu0
      %10305 = vdwg.mxu0
      %v10306 = vadd.f32 %v10082, %v10180
      %v10307 = vadd.f32 %v10083, %v10183
      %v10308 = vadd.f32 %v10084, %v10188
      %v10309 = vadd.f32 %v10085, %v10191
      %v10310 = vadd.f32 %v10086, %v10196
      %v10311 = vadd.f32 %v10087, %v10199
      %v10312 = vadd.f32 %v10088, %v10204
      %v10313 = vadd.f32 %v10089, %v10207
      %v10314 = vadd.f32 %v10090, %v10212
      %v10315 = vadd.f32 %v10091, %v10215
      %v10316 = vadd.f32 %v10092, %v10220
      %v10317 = vadd.f32 %v10093, %v10223
      %v10318 = vadd.f32 %v10094, %v10228
      %v10319 = vadd.f32 %v10095, %v10231
      %v10320 = vadd.f32 %v10096, %v10236
      %v10321 = vadd.f32 %v10097, %v10239
      %v10322 = vadd.f32 %v10098, %v10244
      %v10323 = vadd.f32 %v10099, %v10247
      %v10324 = vadd.f32 %v10100, %v10252
      %v10325 = vadd.f32 %v10101, %v10255
      %v10326 = vadd.f32 %v10102, %v10260
      %v10327 = vadd.f32 %v10103, %v10263
      %v10328 = vadd.f32 %v10104, %v10268
      %v10329 = vadd.f32 %v10105, %v10271
      %v10330 = vadd.f32 %v10106, %v10276
      %v10331 = vadd.f32 %v10107, %v10279
      %v10332 = vadd.f32 %v10108, %v10284
      %v10333 = vadd.f32 %v10109, %v10287
      %v10334 = vadd.f32 %v10110, %v10292
      %v10335 = vadd.f32 %v10111, %v10295
      %v10336 = vadd.f32 %v10112, %v10300
      %v10337 = vadd.f32 %v10113, %v10303
      %s10338 = scalar_lea.vmem %s5, 40
      %v10339 = vld [vmem:[%s10338] sm:$0xf]
      %v10340 = vld [vmem:[%s10338 + $0x4] sm:$0xf]
      %v10341 = vunpack.c.l.b16 %v10126
      %v10342 = vunpack.c.l.b16 %v10129
      %v10343 = vpack.c.b16 %v10342, %v10341
      %v10346 = vunpack.c.l.b16 %v10339
      %v10347 = vunpack.c.l.b16 %v10340
      %v10348 = vpack.c.b16 %v10347, %v10346
      %v10351 = vsel %vm6509, %v10343, 0
      %10353 = vmatprep.subr.bf16.mxu0 0
      %10354 = vmatpush1.bf16.msra.mxu0 %v10348
      %10355 = vmatprep.subr.bf16.mxu0 0
      %10356 = vmatpush1.bf16.msra.mxu0 0
      %10357 = vmatprep.subr.bf16.mxu0 0
      %10358 = vmatpush1.bf16.msra.mxu0 0
      %10359 = vmatprep.subr.bf16.mxu0 0
      %10360 = vmatpush1.bf16.msra.mxu0 0
      %10361 = vmatprep.subr.bf16.mxu0 0
      %10362 = vmatpush1.bf16.msra.mxu0 0
      %10363 = vmatprep.subr.bf16.mxu0 0
      %10364 = vmatpush1.bf16.msra.mxu0 0
      %10365 = vmatprep.subr.bf16.mxu0 0
      %10366 = vmatpush1.bf16.msra.mxu0 0
      %10367 = vmatprep.subr.bf16.mxu0 0
      %10368 = vmatpush1.bf16.msra.mxu0 0
      %10369 = vmatprep.subr.bf16.mxu0 0
      %10370 = vmatpush1.bf16.msra.mxu0 0
      %10371 = vmatprep.subr.bf16.mxu0 0
      %10372 = vmatpush1.bf16.msra.mxu0 0
      %10373 = vmatprep.subr.bf16.mxu0 0
      %10374 = vmatpush1.bf16.msra.mxu0 0
      %10375 = vmatprep.subr.bf16.mxu0 0
      %10376 = vmatpush1.bf16.msra.mxu0 0
      %10377 = vmatprep.subr.bf16.mxu0 0
      %10378 = vmatpush1.bf16.msra.mxu0 0
      %10379 = vmatprep.subr.bf16.mxu0 0
      %10380 = vmatpush1.bf16.msra.mxu0 0
      %10381 = vmatprep.subr.bf16.mxu0 0
      %10382 = vmatpush1.bf16.msra.mxu0 0
      %10383 = vmatprep.subr.bf16.mxu0 0
      %10384 = vmatpush1.bf16.msra.mxu0 0
      %10385 = vmatprep.mubr.bf16.mxu0 0
      %10386 = vmatmul.mubr.bf16.gmra.mrb[0].mxu0 %v8993
      %v10387 = vpop.f32.mrb[0].mxu0
      %v10388 = vadd.f32 0.0, %v10387
      %v10389 = vpop.f32.mrb[0].mxu0
      %v10390 = vpop.f32.mrb[0].mxu0
      %v10391 = vadd.f32 0.0, %v10390
      %v10392 = vpop.f32.mrb[0].mxu0
      %10393 = vmatprep.mubr.bf16.mxu0 0
      %10394 = vmatmul.mubr.bf16.gmra.mrb[0].mxu0 %v8996
      %v10395 = vpop.f32.mrb[0].mxu0
      %v10396 = vadd.f32 0.0, %v10395
      %v10397 = vpop.f32.mrb[0].mxu0
      %v10398 = vpop.f32.mrb[0].mxu0
      %v10399 = vadd.f32 0.0, %v10398
      %v10400 = vpop.f32.mrb[0].mxu0
      %10401 = vmatprep.mubr.bf16.mxu0 0
      %10402 = vmatmul.mubr.bf16.gmra.mrb[0].mxu0 %v8999
      %v10403 = vpop.f32.mrb[0].mxu0
      %v10404 = vadd.f32 0.0, %v10403
      %v10405 = vpop.f32.mrb[0].mxu0
      %v10406 = vpop.f32.mrb[0].mxu0
      %v10407 = vadd.f32 0.0, %v10406
      %v10408 = vpop.f32.mrb[0].mxu0
      %10409 = vmatprep.mubr.bf16.mxu0 0
      %10410 = vmatmul.mubr.bf16.gmra.mrb[0].mxu0 %v9002
      %v10411 = vpop.f32.mrb[0].mxu0
      %v10412 = vadd.f32 0.0, %v10411
      %v10413 = vpop.f32.mrb[0].mxu0
      %v10414 = vpop.f32.mrb[0].mxu0
      %v10415 = vadd.f32 0.0, %v10414
      %v10416 = vpop.f32.mrb[0].mxu0
      %10417 = vmatprep.mubr.bf16.mxu0 0
      %10418 = vmatmul.mubr.bf16.gmra.mrb[0].mxu0 %v9005
      %v10419 = vpop.f32.mrb[0].mxu0
      %v10420 = vadd.f32 0.0, %v10419
      %v10421 = vpop.f32.mrb[0].mxu0
      %v10422 = vpop.f32.mrb[0].mxu0
      %v10423 = vadd.f32 0.0, %v10422
      %v10424 = vpop.f32.mrb[0].mxu0
      %10425 = vmatprep.mubr.bf16.mxu0 0
      %10426 = vmatmul.mubr.bf16.gmra.mrb[0].mxu0 %v9008
      %v10427 = vpop.f32.mrb[0].mxu0
      %v10428 = vadd.f32 0.0, %v10427
      %v10429 = vpop.f32.mrb[0].mxu0
      %v10430 = vpop.f32.mrb[0].mxu0
      %v10431 = vadd.f32 0.0, %v10430
      %v10432 = vpop.f32.mrb[0].mxu0
      %10433 = vmatprep.mubr.bf16.mxu0 0
      %10434 = vmatmul.mubr.bf16.gmra.mrb[0].mxu0 %v9011
      %v10435 = vpop.f32.mrb[0].mxu0
      %v10436 = vadd.f32 0.0, %v10435
      %v10437 = vpop.f32.mrb[0].mxu0
      %v10438 = vpop.f32.mrb[0].mxu0
      %v10439 = vadd.f32 0.0, %v10438
      %v10440 = vpop.f32.mrb[0].mxu0
      %10441 = vmatprep.mubr.bf16.mxu0 0
      %10442 = vmatmul.mubr.bf16.gmra.mrb[0].mxu0 %v9014
      %v10443 = vpop.f32.mrb[0].mxu0
      %v10444 = vadd.f32 0.0, %v10443
      %v10445 = vpop.f32.mrb[0].mxu0
      %v10446 = vpop.f32.mrb[0].mxu0
      %v10447 = vadd.f32 0.0, %v10446
      %v10448 = vpop.f32.mrb[0].mxu0
      %10449 = vmatprep.mubr.bf16.mxu0 0
      %10450 = vmatmul.mubr.bf16.gmra.mrb[0].mxu0 %v9017
      %v10451 = vpop.f32.mrb[0].mxu0
      %v10452 = vadd.f32 0.0, %v10451
      %v10453 = vpop.f32.mrb[0].mxu0
      %v10454 = vpop.f32.mrb[0].mxu0
      %v10455 = vadd.f32 0.0, %v10454
      %v10456 = vpop.f32.mrb[0].mxu0
      %10457 = vmatprep.mubr.bf16.mxu0 0
      %10458 = vmatmul.mubr.bf16.gmra.mrb[0].mxu0 %v9020
      %v10459 = vpop.f32.mrb[0].mxu0
      %v10460 = vadd.f32 0.0, %v10459
      %v10461 = vpop.f32.mrb[0].mxu0
      %v10462 = vpop.f32.mrb[0].mxu0
      %v10463 = vadd.f32 0.0, %v10462
      %v10464 = vpop.f32.mrb[0].mxu0
      %10465 = vmatprep.mubr.bf16.mxu0 0
      %10466 = vmatmul.mubr.bf16.gmra.mrb[0].mxu0 %v9023
      %v10467 = vpop.f32.mrb[0].mxu0
      %v10468 = vadd.f32 0.0, %v10467
      %v10469 = vpop.f32.mrb[0].mxu0
      %v10470 = vpop.f32.mrb[0].mxu0
      %v10471 = vadd.f32 0.0, %v10470
      %v10472 = vpop.f32.mrb[0].mxu0
      %10473 = vmatprep.mubr.bf16.mxu0 0
      %10474 = vmatmul.mubr.bf16.gmra.mrb[0].mxu0 %v9026
      %v10475 = vpop.f32.mrb[0].mxu0
      %v10476 = vadd.f32 0.0, %v10475
      %v10477 = vpop.f32.mrb[0].mxu0
      %v10478 = vpop.f32.mrb[0].mxu0
      %v10479 = vadd.f32 0.0, %v10478
      %v10480 = vpop.f32.mrb[0].mxu0
      %10481 = vmatprep.mubr.bf16.mxu0 0
      %10482 = vmatmul.mubr.bf16.gmra.mrb[0].mxu0 %v9029
      %v10483 = vpop.f32.mrb[0].mxu0
      %v10484 = vadd.f32 0.0, %v10483
      %v10485 = vpop.f32.mrb[0].mxu0
      %v10486 = vpop.f32.mrb[0].mxu0
      %v10487 = vadd.f32 0.0, %v10486
      %v10488 = vpop.f32.mrb[0].mxu0
      %10489 = vmatprep.mubr.bf16.mxu0 0
      %10490 = vmatmul.mubr.bf16.gmra.mrb[0].mxu0 %v9032
      %v10491 = vpop.f32.mrb[0].mxu0
      %v10492 = vadd.f32 0.0, %v10491
      %v10493 = vpop.f32.mrb[0].mxu0
      %v10494 = vpop.f32.mrb[0].mxu0
      %v10495 = vadd.f32 0.0, %v10494
      %v10496 = vpop.f32.mrb[0].mxu0
      %10497 = vmatprep.mubr.bf16.mxu0 0
      %10498 = vmatmul.mubr.bf16.gmra.mrb[0].mxu0 %v9035
      %v10499 = vpop.f32.mrb[0].mxu0
      %v10500 = vadd.f32 0.0, %v10499
      %v10501 = vpop.f32.mrb[0].mxu0
      %v10502 = vpop.f32.mrb[0].mxu0
      %v10503 = vadd.f32 0.0, %v10502
      %v10504 = vpop.f32.mrb[0].mxu0
      %10505 = vmatprep.mubr.bf16.mxu0 0
      %10506 = vmatmul.mubr.bf16.gmra.mrb[0].mxu0 %v10351
      %v10507 = vpop.f32.mrb[0].mxu0
      %v10508 = vadd.f32 0.0, %v10507
      %v10509 = vpop.f32.mrb[0].mxu0
      %v10510 = vpop.f32.mrb[0].mxu0
      %v10511 = vadd.f32 0.0, %v10510
      %v10512 = vpop.f32.mrb[0].mxu0
      %10513 = vdwg.mxu0
      %v10514 = vadd.f32 %v10306, %v10388
      %v10515 = vadd.f32 %v10307, %v10391
      %v10516 = vadd.f32 %v10308, %v10396
      %v10517 = vadd.f32 %v10309, %v10399
      %v10518 = vadd.f32 %v10310, %v10404
      %v10519 = vadd.f32 %v10311, %v10407
      %v10520 = vadd.f32 %v10312, %v10412
      %v10521 = vadd.f32 %v10313, %v10415
      %v10522 = vadd.f32 %v10314, %v10420
      %v10523 = vadd.f32 %v10315, %v10423
      %v10524 = vadd.f32 %v10316, %v10428
      %v10525 = vadd.f32 %v10317, %v10431
      %v10526 = vadd.f32 %v10318, %v10436
      %v10527 = vadd.f32 %v10319, %v10439
      %v10528 = vadd.f32 %v10320, %v10444
      %v10529 = vadd.f32 %v10321, %v10447
      %v10530 = vadd.f32 %v10322, %v10452
      %v10531 = vadd.f32 %v10323, %v10455
      %v10532 = vadd.f32 %v10324, %v10460
      %v10533 = vadd.f32 %v10325, %v10463
      %v10534 = vadd.f32 %v10326, %v10468
      %v10535 = vadd.f32 %v10327, %v10471
      %v10536 = vadd.f32 %v10328, %v10476
      %v10537 = vadd.f32 %v10329, %v10479
      %v10538 = vadd.f32 %v10330, %v10484
      %v10539 = vadd.f32 %v10331, %v10487
      %v10540 = vadd.f32 %v10332, %v10492
      %v10541 = vadd.f32 %v10333, %v10495
      %v10542 = vadd.f32 %v10334, %v10500
      %v10543 = vadd.f32 %v10335, %v10503
      %v10544 = vadd.f32 %v10336, %v10508
      %v10545 = vadd.f32 %v10337, %v10511
      %s10546 = scalar_lea.vmem %s4, 48
      %v10547 = vld [vmem:[%s10546] sm:$0xf]
      %v10548 = vld [vmem:[%s10546 + $0x4] sm:$0xf]
      %v10551 = vunpack.c.l.b16 %v6362
      %v10552 = vunpack.c.l.b16 %v6363
      %v10553 = vpack.c.b16 %v10552, %v10551
      %v10556 = vunpack.c.l.b16 %v10547
      %v10557 = vunpack.c.l.b16 %v10548
      %v10558 = vpack.c.b16 %v10557, %v10556
      %v10561 = vsel %vm6509, %v10553, 0
      %10563 = vmatprep.subr.bf16.mxu0 0
      %10564 = vmatpush1.bf16.msra.mxu0 %v10558
      %10565 = vmatprep.subr.bf16.mxu0 0
      %10566 = vmatpush1.bf16.msra.mxu0 0
      %10567 = vmatprep.subr.bf16.mxu0 0
      %10568 = vmatpush1.bf16.msra.mxu0 0
      %10569 = vmatprep.subr.bf16.mxu0 0
      %10570 = vmatpush1.bf16.msra.mxu0 0
      %10571 = vmatprep.subr.bf16.mxu0 0
      %10572 = vmatpush1.bf16.msra.mxu0 0
      %10573 = vmatprep.subr.bf16.mxu0 0
      %10574 = vmatpush1.bf16.msra.mxu0 0
      %10575 = vmatprep.subr.bf16.mxu0 0
      %10576 = vmatpush1.bf16.msra.mxu0 0
      %10577 = vmatprep.subr.bf16.mxu0 0
      %10578 = vmatpush1.bf16.msra.mxu0 0
      %10579 = vmatprep.subr.bf16.mxu0 0
      %10580 = vmatpush1.bf16.msra.mxu0 0
      %10581 = vmatprep.subr.bf16.mxu0 0
      %10582 = vmatpush1.bf16.msra.mxu0 0
      %10583 = vmatprep.subr.bf16.mxu0 0
      %10584 = vmatpush1.bf16.msra.mxu0 0
      %10585 = vmatprep.subr.bf16.mxu0 0
      %10586 = vmatpush1.bf16.msra.mxu0 0
      %10587 = vmatprep.subr.bf16.mxu0 0
      %10588 = vmatpush1.bf16.msra.mxu0 0
      %10589 = vmatprep.subr.bf16.mxu0 0
      %10590 = vmatpush1.bf16.msra.mxu0 0
      %10591 = vmatprep.subr.bf16.mxu0 0
      %10592 = vmatpush1.bf16.msra.mxu0 0
      %10593 = vmatprep.subr.bf16.mxu0 0
      %10594 = vmatpush1.bf16.msra.mxu0 0
      %10595 = vmatprep.mubr.bf16.mxu0 0
      %10596 = vmatmul.mubr.bf16.gmra.mrb[0].mxu0 %v6812
      %v10597 = vpop.f32.mrb[0].mxu0
      %v10598 = vadd.f32 0.0, %v10597
      %v10599 = vpop.f32.mrb[0].mxu0
      %v10600 = vpop.f32.mrb[0].mxu0
      %v10601 = vadd.f32 0.0, %v10600
      %v10602 = vpop.f32.mrb[0].mxu0
      %10603 = vmatprep.mubr.bf16.mxu0 0
      %10604 = vmatmul.mubr.bf16.gmra.mrb[0].mxu0 %v6815
      %v10605 = vpop.f32.mrb[0].mxu0
      %v10606 = vadd.f32 0.0, %v10605
      %v10607 = vpop.f32.mrb[0].mxu0
      %v10608 = vpop.f32.mrb[0].mxu0
      %v10609 = vadd.f32 0.0, %v10608
      %v10610 = vpop.f32.mrb[0].mxu0
      %10611 = vmatprep.mubr.bf16.mxu0 0
      %10612 = vmatmul.mubr.bf16.gmra.mrb[0].mxu0 %v6818
      %v10613 = vpop.f32.mrb[0].mxu0
      %v10614 = vadd.f32 0.0, %v10613
      %v10615 = vpop.f32.mrb[0].mxu0
      %v10616 = vpop.f32.mrb[0].mxu0
      %v10617 = vadd.f32 0.0, %v10616
      %v10618 = vpop.f32.mrb[0].mxu0
      %10619 = vmatprep.mubr.bf16.mxu0 0
      %10620 = vmatmul.mubr.bf16.gmra.mrb[0].mxu0 %v6821
      %v10621 = vpop.f32.mrb[0].mxu0
      %v10622 = vadd.f32 0.0, %v10621
      %v10623 = vpop.f32.mrb[0].mxu0
      %v10624 = vpop.f32.mrb[0].mxu0
      %v10625 = vadd.f32 0.0, %v10624
      %v10626 = vpop.f32.mrb[0].mxu0
      %10627 = vmatprep.mubr.bf16.mxu0 0
      %10628 = vmatmul.mubr.bf16.gmra.mrb[0].mxu0 %v6824
      %v10629 = vpop.f32.mrb[0].mxu0
      %v10630 = vadd.f32 0.0, %v10629
      %v10631 = vpop.f32.mrb[0].mxu0
      %v10632 = vpop.f32.mrb[0].mxu0
      %v10633 = vadd.f32 0.0, %v10632
      %v10634 = vpop.f32.mrb[0].mxu0
      %10635 = vmatprep.mubr.bf16.mxu0 0
      %10636 = vmatmul.mubr.bf16.gmra.mrb[0].mxu0 %v6827
      %v10637 = vpop.f32.mrb[0].mxu0
      %v10638 = vadd.f32 0.0, %v10637
      %v10639 = vpop.f32.mrb[0].mxu0
      %v10640 = vpop.f32.mrb[0].mxu0
      %v10641 = vadd.f32 0.0, %v10640
      %v10642 = vpop.f32.mrb[0].mxu0
      %10643 = vmatprep.mubr.bf16.mxu0 0
      %10644 = vmatmul.mubr.bf16.gmra.mrb[0].mxu0 %v6830
      %v10645 = vpop.f32.mrb[0].mxu0
      %v10646 = vadd.f32 0.0, %v10645
      %v10647 = vpop.f32.mrb[0].mxu0
      %v10648 = vpop.f32.mrb[0].mxu0
      %v10649 = vadd.f32 0.0, %v10648
      %v10650 = vpop.f32.mrb[0].mxu0
      %10651 = vmatprep.mubr.bf16.mxu0 0
      %10652 = vmatmul.mubr.bf16.gmra.mrb[0].mxu0 %v6833
      %v10653 = vpop.f32.mrb[0].mxu0
      %v10654 = vadd.f32 0.0, %v10653
      %v10655 = vpop.f32.mrb[0].mxu0
      %v10656 = vpop.f32.mrb[0].mxu0
      %v10657 = vadd.f32 0.0, %v10656
      %v10658 = vpop.f32.mrb[0].mxu0
      %10659 = vmatprep.mubr.bf16.mxu0 0
      %10660 = vmatmul.mubr.bf16.gmra.mrb[0].mxu0 %v6836
      %v10661 = vpop.f32.mrb[0].mxu0
      %v10662 = vadd.f32 0.0, %v10661
      %v10663 = vpop.f32.mrb[0].mxu0
      %v10664 = vpop.f32.mrb[0].mxu0
      %v10665 = vadd.f32 0.0, %v10664
      %v10666 = vpop.f32.mrb[0].mxu0
      %10667 = vmatprep.mubr.bf16.mxu0 0
      %10668 = vmatmul.mubr.bf16.gmra.mrb[0].mxu0 %v6839
      %v10669 = vpop.f32.mrb[0].mxu0
      %v10670 = vadd.f32 0.0, %v10669
      %v10671 = vpop.f32.mrb[0].mxu0
      %v10672 = vpop.f32.mrb[0].mxu0
      %v10673 = vadd.f32 0.0, %v10672
      %v10674 = vpop.f32.mrb[0].mxu0
      %10675 = vmatprep.mubr.bf16.mxu0 0
      %10676 = vmatmul.mubr.bf16.gmra.mrb[0].mxu0 %v6842
      %v10677 = vpop.f32.mrb[0].mxu0
      %v10678 = vadd.f32 0.0, %v10677
      %v10679 = vpop.f32.mrb[0].mxu0
      %v10680 = vpop.f32.mrb[0].mxu0
      %v10681 = vadd.f32 0.0, %v10680
      %v10682 = vpop.f32.mrb[0].mxu0
      %10683 = vmatprep.mubr.bf16.mxu0 0
      %10684 = vmatmul.mubr.bf16.gmra.mrb[0].mxu0 %v6845
      %v10685 = vpop.f32.mrb[0].mxu0
      %v10686 = vadd.f32 0.0, %v10685
      %v10687 = vpop.f32.mrb[0].mxu0
      %v10688 = vpop.f32.mrb[0].mxu0
      %v10689 = vadd.f32 0.0, %v10688
      %v10690 = vpop.f32.mrb[0].mxu0
      %10691 = vmatprep.mubr.bf16.mxu0 0
      %10692 = vmatmul.mubr.bf16.gmra.mrb[0].mxu0 %v6848
      %v10693 = vpop.f32.mrb[0].mxu0
      %v10694 = vadd.f32 0.0, %v10693
      %v10695 = vpop.f32.mrb[0].mxu0
      %v10696 = vpop.f32.mrb[0].mxu0
      %v10697 = vadd.f32 0.0, %v10696
      %v10698 = vpop.f32.mrb[0].mxu0
      %10699 = vmatprep.mubr.bf16.mxu0 0
      %10700 = vmatmul.mubr.bf16.gmra.mrb[0].mxu0 %v6851
      %v10701 = vpop.f32.mrb[0].mxu0
      %v10702 = vadd.f32 0.0, %v10701
      %v10703 = vpop.f32.mrb[0].mxu0
      %v10704 = vpop.f32.mrb[0].mxu0
      %v10705 = vadd.f32 0.0, %v10704
      %v10706 = vpop.f32.mrb[0].mxu0
      %10707 = vmatprep.mubr.bf16.mxu0 0
      %10708 = vmatmul.mubr.bf16.gmra.mrb[0].mxu0 %v9245
      %v10709 = vpop.f32.mrb[0].mxu0
      %v10710 = vadd.f32 0.0, %v10709
      %v10711 = vpop.f32.mrb[0].mxu0
      %v10712 = vpop.f32.mrb[0].mxu0
      %v10713 = vadd.f32 0.0, %v10712
      %v10714 = vpop.f32.mrb[0].mxu0
      %10715 = vmatprep.mubr.bf16.mxu0 0
      %10716 = vmatmul.mubr.bf16.gmra.mrb[0].mxu0 %v10561
      %v10717 = vpop.f32.mrb[0].mxu0
      %v10718 = vadd.f32 0.0, %v10717
      %v10719 = vpop.f32.mrb[0].mxu0
      %v10720 = vpop.f32.mrb[0].mxu0
      %v10721 = vadd.f32 0.0, %v10720
      %v10722 = vpop.f32.mrb[0].mxu0
      %10723 = vdwg.mxu0
      %v10724 = vadd.f32 %v10514, %v10598
      %v10725 = vadd.f32 %v10515, %v10601
      %v10726 = vadd.f32 %v10516, %v10606
      %v10727 = vadd.f32 %v10517, %v10609
      %v10728 = vadd.f32 %v10518, %v10614
      %v10729 = vadd.f32 %v10519, %v10617
      %v10730 = vadd.f32 %v10520, %v10622
      %v10731 = vadd.f32 %v10521, %v10625
      %v10732 = vadd.f32 %v10522, %v10630
      %v10733 = vadd.f32 %v10523, %v10633
      %v10734 = vadd.f32 %v10524, %v10638
      %v10735 = vadd.f32 %v10525, %v10641
      %v10736 = vadd.f32 %v10526, %v10646
      %v10737 = vadd.f32 %v10527, %v10649
      %v10738 = vadd.f32 %v10528, %v10654
      %v10739 = vadd.f32 %v10529, %v10657
      %v10740 = vadd.f32 %v10530, %v10662
      %v10741 = vadd.f32 %v10531, %v10665
      %v10742 = vadd.f32 %v10532, %v10670
      %v10743 = vadd.f32 %v10533, %v10673
      %v10744 = vadd.f32 %v10534, %v10678
      %v10745 = vadd.f32 %v10535, %v10681
      %v10746 = vadd.f32 %v10536, %v10686
      %v10747 = vadd.f32 %v10537, %v10689
      %v10748 = vadd.f32 %v10538, %v10694
      %v10749 = vadd.f32 %v10539, %v10697
      %v10750 = vadd.f32 %v10540, %v10702
      %v10751 = vadd.f32 %v10541, %v10705
      %v10752 = vadd.f32 %v10542, %v10710
      %v10753 = vadd.f32 %v10543, %v10713
      %v10754 = vadd.f32 %v10544, %v10718
      %v10755 = vadd.f32 %v10545, %v10721
      %s10756 = scalar_lea.vmem %s5, 48
      %v10757 = vld [vmem:[%s10756] sm:$0xf]
      %v10758 = vld [vmem:[%s10756 + $0x4] sm:$0xf]
      %v10761 = vunpack.c.l.b16 %v6416
      %v10762 = vunpack.c.l.b16 %v6417
      %v10763 = vpack.c.b16 %v10762, %v10761
      %v10766 = vunpack.c.l.b16 %v10757
      %v10767 = vunpack.c.l.b16 %v10758
      %v10768 = vpack.c.b16 %v10767, %v10766
      %v10771 = vsel %vm6509, %v10763, 0
      %10773 = vmatprep.subr.bf16.mxu0 0
      %10774 = vmatpush1.bf16.msra.mxu0 %v10768
      %10775 = vmatprep.subr.bf16.mxu0 0
      %10776 = vmatpush1.bf16.msra.mxu0 0
      %10777 = vmatprep.subr.bf16.mxu0 0
      %10778 = vmatpush1.bf16.msra.mxu0 0
      %10779 = vmatprep.subr.bf16.mxu0 0
      %10780 = vmatpush1.bf16.msra.mxu0 0
      %10781 = vmatprep.subr.bf16.mxu0 0
      %10782 = vmatpush1.bf16.msra.mxu0 0
      %10783 = vmatprep.subr.bf16.mxu0 0
      %10784 = vmatpush1.bf16.msra.mxu0 0
      %10785 = vmatprep.subr.bf16.mxu0 0
      %10786 = vmatpush1.bf16.msra.mxu0 0
      %10787 = vmatprep.subr.bf16.mxu0 0
      %10788 = vmatpush1.bf16.msra.mxu0 0
      %10789 = vmatprep.subr.bf16.mxu0 0
      %10790 = vmatpush1.bf16.msra.mxu0 0
      %10791 = vmatprep.subr.bf16.mxu0 0
      %10792 = vmatpush1.bf16.msra.mxu0 0
      %10793 = vmatprep.subr.bf16.mxu0 0
      %10794 = vmatpush1.bf16.msra.mxu0 0
      %10795 = vmatprep.subr.bf16.mxu0 0
      %10796 = vmatpush1.bf16.msra.mxu0 0
      %10797 = vmatprep.subr.bf16.mxu0 0
      %10798 = vmatpush1.bf16.msra.mxu0 0
      %10799 = vmatprep.subr.bf16.mxu0 0
      %10800 = vmatpush1.bf16.msra.mxu0 0
      %10801 = vmatprep.subr.bf16.mxu0 0
      %10802 = vmatpush1.bf16.msra.mxu0 0
      %10803 = vmatprep.subr.bf16.mxu0 0
      %10804 = vmatpush1.bf16.msra.mxu0 0
      %10805 = vmatprep.mubr.bf16.mxu0 0
      %10806 = vmatmul.mubr.bf16.gmra.mrb[0].mxu0 %v6517
      %v10807 = vpop.f32.mrb[0].mxu0
      %v10808 = vadd.f32 0.0, %v10807
      %v10809 = vpop.f32.mrb[0].mxu0
      %v10810 = vpop.f32.mrb[0].mxu0
      %v10811 = vadd.f32 0.0, %v10810
      %v10812 = vpop.f32.mrb[0].mxu0
      %10813 = vmatprep.mubr.bf16.mxu0 0
      %10814 = vmatmul.mubr.bf16.gmra.mrb[0].mxu0 %v6520
      %v10815 = vpop.f32.mrb[0].mxu0
      %v10816 = vadd.f32 0.0, %v10815
      %v10817 = vpop.f32.mrb[0].mxu0
      %v10818 = vpop.f32.mrb[0].mxu0
      %v10819 = vadd.f32 0.0, %v10818
      %v10820 = vpop.f32.mrb[0].mxu0
      %10821 = vmatprep.mubr.bf16.mxu0 0
      %10822 = vmatmul.mubr.bf16.gmra.mrb[0].mxu0 %v6523
      %v10823 = vpop.f32.mrb[0].mxu0
      %v10824 = vadd.f32 0.0, %v10823
      %v10825 = vpop.f32.mrb[0].mxu0
      %v10826 = vpop.f32.mrb[0].mxu0
      %v10827 = vadd.f32 0.0, %v10826
      %v10828 = vpop.f32.mrb[0].mxu0
      %10829 = vmatprep.mubr.bf16.mxu0 0
      %10830 = vmatmul.mubr.bf16.gmra.mrb[0].mxu0 %v6526
      %v10831 = vpop.f32.mrb[0].mxu0
      %v10832 = vadd.f32 0.0, %v10831
      %v10833 = vpop.f32.mrb[0].mxu0
      %v10834 = vpop.f32.mrb[0].mxu0
      %v10835 = vadd.f32 0.0, %v10834
      %v10836 = vpop.f32.mrb[0].mxu0
      %10837 = vmatprep.mubr.bf16.mxu0 0
      %10838 = vmatmul.mubr.bf16.gmra.mrb[0].mxu0 %v6529
      %v10839 = vpop.f32.mrb[0].mxu0
      %v10840 = vadd.f32 0.0, %v10839
      %v10841 = vpop.f32.mrb[0].mxu0
      %v10842 = vpop.f32.mrb[0].mxu0
      %v10843 = vadd.f32 0.0, %v10842
      %v10844 = vpop.f32.mrb[0].mxu0
      %10845 = vmatprep.mubr.bf16.mxu0 0
      %10846 = vmatmul.mubr.bf16.gmra.mrb[0].mxu0 %v6532
      %v10847 = vpop.f32.mrb[0].mxu0
      %v10848 = vadd.f32 0.0, %v10847
      %v10849 = vpop.f32.mrb[0].mxu0
      %v10850 = vpop.f32.mrb[0].mxu0
      %v10851 = vadd.f32 0.0, %v10850
      %v10852 = vpop.f32.mrb[0].mxu0
      %10853 = vmatprep.mubr.bf16.mxu0 0
      %10854 = vmatmul.mubr.bf16.gmra.mrb[0].mxu0 %v6535
      %v10855 = vpop.f32.mrb[0].mxu0
      %v10856 = vadd.f32 0.0, %v10855
      %v10857 = vpop.f32.mrb[0].mxu0
      %v10858 = vpop.f32.mrb[0].mxu0
      %v10859 = vadd.f32 0.0, %v10858
      %v10860 = vpop.f32.mrb[0].mxu0
      %10861 = vmatprep.mubr.bf16.mxu0 0
      %10862 = vmatmul.mubr.bf16.gmra.mrb[0].mxu0 %v6538
      %v10863 = vpop.f32.mrb[0].mxu0
      %v10864 = vadd.f32 0.0, %v10863
      %v10865 = vpop.f32.mrb[0].mxu0
      %v10866 = vpop.f32.mrb[0].mxu0
      %v10867 = vadd.f32 0.0, %v10866
      %v10868 = vpop.f32.mrb[0].mxu0
      %10869 = vmatprep.mubr.bf16.mxu0 0
      %10870 = vmatmul.mubr.bf16.gmra.mrb[0].mxu0 %v6541
      %v10871 = vpop.f32.mrb[0].mxu0
      %v10872 = vadd.f32 0.0, %v10871
      %v10873 = vpop.f32.mrb[0].mxu0
      %v10874 = vpop.f32.mrb[0].mxu0
      %v10875 = vadd.f32 0.0, %v10874
      %v10876 = vpop.f32.mrb[0].mxu0
      %10877 = vmatprep.mubr.bf16.mxu0 0
      %10878 = vmatmul.mubr.bf16.gmra.mrb[0].mxu0 %v6544
      %v10879 = vpop.f32.mrb[0].mxu0
      %v10880 = vadd.f32 0.0, %v10879
      %v10881 = vpop.f32.mrb[0].mxu0
      %v10882 = vpop.f32.mrb[0].mxu0
      %v10883 = vadd.f32 0.0, %v10882
      %v10884 = vpop.f32.mrb[0].mxu0
      %10885 = vmatprep.mubr.bf16.mxu0 0
      %10886 = vmatmul.mubr.bf16.gmra.mrb[0].mxu0 %v6547
      %v10887 = vpop.f32.mrb[0].mxu0
      %v10888 = vadd.f32 0.0, %v10887
      %v10889 = vpop.f32.mrb[0].mxu0
      %v10890 = vpop.f32.mrb[0].mxu0
      %v10891 = vadd.f32 0.0, %v10890
      %v10892 = vpop.f32.mrb[0].mxu0
      %10893 = vmatprep.mubr.bf16.mxu0 0
      %10894 = vmatmul.mubr.bf16.gmra.mrb[0].mxu0 %v6550
      %v10895 = vpop.f32.mrb[0].mxu0
      %v10896 = vadd.f32 0.0, %v10895
      %v10897 = vpop.f32.mrb[0].mxu0
      %v10898 = vpop.f32.mrb[0].mxu0
      %v10899 = vadd.f32 0.0, %v10898
      %v10900 = vpop.f32.mrb[0].mxu0
      %10901 = vmatprep.mubr.bf16.mxu0 0
      %10902 = vmatmul.mubr.bf16.gmra.mrb[0].mxu0 %v6553
      %v10903 = vpop.f32.mrb[0].mxu0
      %v10904 = vadd.f32 0.0, %v10903
      %v10905 = vpop.f32.mrb[0].mxu0
      %v10906 = vpop.f32.mrb[0].mxu0
      %v10907 = vadd.f32 0.0, %v10906
      %v10908 = vpop.f32.mrb[0].mxu0
      %10909 = vmatprep.mubr.bf16.mxu0 0
      %10910 = vmatmul.mubr.bf16.gmra.mrb[0].mxu0 %v6556
      %v10911 = vpop.f32.mrb[0].mxu0
      %v10912 = vadd.f32 0.0, %v10911
      %v10913 = vpop.f32.mrb[0].mxu0
      %v10914 = vpop.f32.mrb[0].mxu0
      %v10915 = vadd.f32 0.0, %v10914
      %v10916 = vpop.f32.mrb[0].mxu0
      %10917 = vmatprep.mubr.bf16.mxu0 0
      %10918 = vmatmul.mubr.bf16.gmra.mrb[0].mxu0 %v9455
      %v10919 = vpop.f32.mrb[0].mxu0
      %v10920 = vadd.f32 0.0, %v10919
      %v10921 = vpop.f32.mrb[0].mxu0
      %v10922 = vpop.f32.mrb[0].mxu0
      %v10923 = vadd.f32 0.0, %v10922
      %v10924 = vpop.f32.mrb[0].mxu0
      %10925 = vmatprep.mubr.bf16.mxu0 0
      %10926 = vmatmul.mubr.bf16.gmra.mrb[0].mxu0 %v10771
      %v10927 = vpop.f32.mrb[0].mxu0
      %v10928 = vadd.f32 0.0, %v10927
      %v10929 = vpop.f32.mrb[0].mxu0
      %v10930 = vpop.f32.mrb[0].mxu0
      %v10931 = vadd.f32 0.0, %v10930
      %v10932 = vpop.f32.mrb[0].mxu0
      %10933 = vdwg.mxu0
      %v10934 = vadd.f32 %v10724, %v10808
      %v10935 = vadd.f32 %v10725, %v10811
      %v10936 = vadd.f32 %v10726, %v10816
      %v10937 = vadd.f32 %v10727, %v10819
      %v10938 = vadd.f32 %v10728, %v10824
      %v10939 = vadd.f32 %v10729, %v10827
      %v10940 = vadd.f32 %v10730, %v10832
      %v10941 = vadd.f32 %v10731, %v10835
      %v10942 = vadd.f32 %v10732, %v10840
      %v10943 = vadd.f32 %v10733, %v10843
      %v10944 = vadd.f32 %v10734, %v10848
      %v10945 = vadd.f32 %v10735, %v10851
      %v10946 = vadd.f32 %v10736, %v10856
      %v10947 = vadd.f32 %v10737, %v10859
      %v10948 = vadd.f32 %v10738, %v10864
      %v10949 = vadd.f32 %v10739, %v10867
      %v10950 = vadd.f32 %v10740, %v10872
      %v10951 = vadd.f32 %v10741, %v10875
      %v10952 = vadd.f32 %v10742, %v10880
      %v10953 = vadd.f32 %v10743, %v10883
      %v10954 = vadd.f32 %v10744, %v10888
      %v10955 = vadd.f32 %v10745, %v10891
      %v10956 = vadd.f32 %v10746, %v10896
      %v10957 = vadd.f32 %v10747, %v10899
      %v10958 = vadd.f32 %v10748, %v10904
      %v10959 = vadd.f32 %v10749, %v10907
      %v10960 = vadd.f32 %v10750, %v10912
      %v10961 = vadd.f32 %v10751, %v10915
      %v10962 = vadd.f32 %v10752, %v10920
      %v10963 = vadd.f32 %v10753, %v10923
      %v10964 = vadd.f32 %v10754, %v10928
      %v10965 = vadd.f32 %v10755, %v10931
      %v10967 = vshrl.u32 %v6362, 16
      %v10969 = vrot.slane %v10967, 4
      %v10970 = vshll.u32 %v6362, 16
      %v10972 = vrot.slane %v10970, 5
      %v10973 = vor.u32 %v10969, %v10972
      %v10974 = vrot.slane %v10973, 4
      %v10976 = vshll.u32 %v6363, 16
      %v10978 = vrot.slane %v10976, 5
      %v10979 = vsel %vm2949, %v10974, %v10978
      %v10980 = vshrl.u32 %v6363, 16
      %v10982 = vrot.slane %v10980, 4
      %v10983 = vor.u32 %v10982, %v10978
      %v10984 = vrot.slane %v10983, 4
      %v10986 = vshll.u32 %v6364, 16
      %v10988 = vrot.slane %v10986, 5
      %v10989 = vsel %vm2949, %v10984, %v10988
      %v10991 = vshrl.u32 %v6416, 16
      %v10993 = vrot.slane %v10991, 4
      %v10994 = vshll.u32 %v6416, 16
      %v10996 = vrot.slane %v10994, 5
      %v10997 = vor.u32 %v10993, %v10996
      %v10998 = vrot.slane %v10997, 4
      %v11000 = vshll.u32 %v6417, 16
      %v11002 = vrot.slane %v11000, 5
      %v11003 = vsel %vm2949, %v10998, %v11002
      %v11004 = vshrl.u32 %v6417, 16
      %v11006 = vrot.slane %v11004, 4
      %v11007 = vor.u32 %v11006, %v11002
      %v11008 = vrot.slane %v11007, 4
      %v11010 = vshll.u32 %v6418, 16
      %v11012 = vrot.slane %v11010, 5
      %v11013 = vsel %vm2949, %v11008, %v11012
      %s11014 = scalar_lea.vmem %s4, 56
      %v11015 = vld [vmem:[%s11014] sm:$0xf]
      %v11016 = vld [vmem:[%s11014 + $0x4] sm:$0xf]
      %v11017 = vunpack.c.l.b16 %v10979
      %v11018 = vunpack.c.l.b16 %v10989
      %v11019 = vpack.c.b16 %v11018, %v11017
      %v11022 = vunpack.c.l.b16 %v11015
      %v11023 = vunpack.c.l.b16 %v11016
      %v11024 = vpack.c.b16 %v11023, %v11022
      %v11027 = vsel %vm6509, %v11019, 0
      %11029 = vmatprep.subr.bf16.mxu0 0
      %11030 = vmatpush1.bf16.msra.mxu0 %v11024
      %11031 = vmatprep.subr.bf16.mxu0 0
      %11032 = vmatpush1.bf16.msra.mxu0 0
      %11033 = vmatprep.subr.bf16.mxu0 0
      %11034 = vmatpush1.bf16.msra.mxu0 0
      %11035 = vmatprep.subr.bf16.mxu0 0
      %11036 = vmatpush1.bf16.msra.mxu0 0
      %11037 = vmatprep.subr.bf16.mxu0 0
      %11038 = vmatpush1.bf16.msra.mxu0 0
      %11039 = vmatprep.subr.bf16.mxu0 0
      %11040 = vmatpush1.bf16.msra.mxu0 0
      %11041 = vmatprep.subr.bf16.mxu0 0
      %11042 = vmatpush1.bf16.msra.mxu0 0
      %11043 = vmatprep.subr.bf16.mxu0 0
      %11044 = vmatpush1.bf16.msra.mxu0 0
      %11045 = vmatprep.subr.bf16.mxu0 0
      %11046 = vmatpush1.bf16.msra.mxu0 0
      %11047 = vmatprep.subr.bf16.mxu0 0
      %11048 = vmatpush1.bf16.msra.mxu0 0
      %11049 = vmatprep.subr.bf16.mxu0 0
      %11050 = vmatpush1.bf16.msra.mxu0 0
      %11051 = vmatprep.subr.bf16.mxu0 0
      %11052 = vmatpush1.bf16.msra.mxu0 0
      %11053 = vmatprep.subr.bf16.mxu0 0
      %11054 = vmatpush1.bf16.msra.mxu0 0
      %11055 = vmatprep.subr.bf16.mxu0 0
      %11056 = vmatpush1.bf16.msra.mxu0 0
      %11057 = vmatprep.subr.bf16.mxu0 0
      %11058 = vmatpush1.bf16.msra.mxu0 0
      %11059 = vmatprep.subr.bf16.mxu0 0
      %11060 = vmatpush1.bf16.msra.mxu0 0
      %11061 = vmatprep.mubr.bf16.mxu0 0
      %11062 = vmatmul.mubr.bf16.gmra.mrb[0].mxu0 %v7846
      %v11063 = vpop.f32.mrb[0].mxu0
      %v11064 = vadd.f32 0.0, %v11063
      %v11065 = vpop.f32.mrb[0].mxu0
      %v11066 = vpop.f32.mrb[0].mxu0
      %v11067 = vadd.f32 0.0, %v11066
      %v11068 = vpop.f32.mrb[0].mxu0
      %11069 = vmatprep.mubr.bf16.mxu0 0
      %11070 = vmatmul.mubr.bf16.gmra.mrb[0].mxu0 %v7849
      %v11071 = vpop.f32.mrb[0].mxu0
      %v11072 = vadd.f32 0.0, %v11071
      %v11073 = vpop.f32.mrb[0].mxu0
      %v11074 = vpop.f32.mrb[0].mxu0
      %v11075 = vadd.f32 0.0, %v11074
      %v11076 = vpop.f32.mrb[0].mxu0
      %11077 = vmatprep.mubr.bf16.mxu0 0
      %11078 = vmatmul.mubr.bf16.gmra.mrb[0].mxu0 %v7852
      %v11079 = vpop.f32.mrb[0].mxu0
      %v11080 = vadd.f32 0.0, %v11079
      %v11081 = vpop.f32.mrb[0].mxu0
      %v11082 = vpop.f32.mrb[0].mxu0
      %v11083 = vadd.f32 0.0, %v11082
      %v11084 = vpop.f32.mrb[0].mxu0
      %11085 = vmatprep.mubr.bf16.mxu0 0
      %11086 = vmatmul.mubr.bf16.gmra.mrb[0].mxu0 %v7855
      %v11087 = vpop.f32.mrb[0].mxu0
      %v11088 = vadd.f32 0.0, %v11087
      %v11089 = vpop.f32.mrb[0].mxu0
      %v11090 = vpop.f32.mrb[0].mxu0
      %v11091 = vadd.f32 0.0, %v11090
      %v11092 = vpop.f32.mrb[0].mxu0
      %11093 = vmatprep.mubr.bf16.mxu0 0
      %11094 = vmatmul.mubr.bf16.gmra.mrb[0].mxu0 %v7858
      %v11095 = vpop.f32.mrb[0].mxu0
      %v11096 = vadd.f32 0.0, %v11095
      %v11097 = vpop.f32.mrb[0].mxu0
      %v11098 = vpop.f32.mrb[0].mxu0
      %v11099 = vadd.f32 0.0, %v11098
      %v11100 = vpop.f32.mrb[0].mxu0
      %11101 = vmatprep.mubr.bf16.mxu0 0
      %11102 = vmatmul.mubr.bf16.gmra.mrb[0].mxu0 %v7861
      %v11103 = vpop.f32.mrb[0].mxu0
      %v11104 = vadd.f32 0.0, %v11103
      %v11105 = vpop.f32.mrb[0].mxu0
      %v11106 = vpop.f32.mrb[0].mxu0
      %v11107 = vadd.f32 0.0, %v11106
      %v11108 = vpop.f32.mrb[0].mxu0
      %11109 = vmatprep.mubr.bf16.mxu0 0
      %11110 = vmatmul.mubr.bf16.gmra.mrb[0].mxu0 %v7864
      %v11111 = vpop.f32.mrb[0].mxu0
      %v11112 = vadd.f32 0.0, %v11111
      %v11113 = vpop.f32.mrb[0].mxu0
      %v11114 = vpop.f32.mrb[0].mxu0
      %v11115 = vadd.f32 0.0, %v11114
      %v11116 = vpop.f32.mrb[0].mxu0
      %11117 = vmatprep.mubr.bf16.mxu0 0
      %11118 = vmatmul.mubr.bf16.gmra.mrb[0].mxu0 %v7867
      %v11119 = vpop.f32.mrb[0].mxu0
      %v11120 = vadd.f32 0.0, %v11119
      %v11121 = vpop.f32.mrb[0].mxu0
      %v11122 = vpop.f32.mrb[0].mxu0
      %v11123 = vadd.f32 0.0, %v11122
      %v11124 = vpop.f32.mrb[0].mxu0
      %11125 = vmatprep.mubr.bf16.mxu0 0
      %11126 = vmatmul.mubr.bf16.gmra.mrb[0].mxu0 %v7870
      %v11127 = vpop.f32.mrb[0].mxu0
      %v11128 = vadd.f32 0.0, %v11127
      %v11129 = vpop.f32.mrb[0].mxu0
      %v11130 = vpop.f32.mrb[0].mxu0
      %v11131 = vadd.f32 0.0, %v11130
      %v11132 = vpop.f32.mrb[0].mxu0
      %11133 = vmatprep.mubr.bf16.mxu0 0
      %11134 = vmatmul.mubr.bf16.gmra.mrb[0].mxu0 %v7873
      %v11135 = vpop.f32.mrb[0].mxu0
      %v11136 = vadd.f32 0.0, %v11135
      %v11137 = vpop.f32.mrb[0].mxu0
      %v11138 = vpop.f32.mrb[0].mxu0
      %v11139 = vadd.f32 0.0, %v11138
      %v11140 = vpop.f32.mrb[0].mxu0
      %11141 = vmatprep.mubr.bf16.mxu0 0
      %11142 = vmatmul.mubr.bf16.gmra.mrb[0].mxu0 %v7876
      %v11143 = vpop.f32.mrb[0].mxu0
      %v11144 = vadd.f32 0.0, %v11143
      %v11145 = vpop.f32.mrb[0].mxu0
      %v11146 = vpop.f32.mrb[0].mxu0
      %v11147 = vadd.f32 0.0, %v11146
      %v11148 = vpop.f32.mrb[0].mxu0
      %11149 = vmatprep.mubr.bf16.mxu0 0
      %11150 = vmatmul.mubr.bf16.gmra.mrb[0].mxu0 %v7879
      %v11151 = vpop.f32.mrb[0].mxu0
      %v11152 = vadd.f32 0.0, %v11151
      %v11153 = vpop.f32.mrb[0].mxu0
      %v11154 = vpop.f32.mrb[0].mxu0
      %v11155 = vadd.f32 0.0, %v11154
      %v11156 = vpop.f32.mrb[0].mxu0
      %11157 = vmatprep.mubr.bf16.mxu0 0
      %11158 = vmatmul.mubr.bf16.gmra.mrb[0].mxu0 %v7882
      %v11159 = vpop.f32.mrb[0].mxu0
      %v11160 = vadd.f32 0.0, %v11159
      %v11161 = vpop.f32.mrb[0].mxu0
      %v11162 = vpop.f32.mrb[0].mxu0
      %v11163 = vadd.f32 0.0, %v11162
      %v11164 = vpop.f32.mrb[0].mxu0
      %11165 = vmatprep.mubr.bf16.mxu0 0
      %11166 = vmatmul.mubr.bf16.gmra.mrb[0].mxu0 %v7885
      %v11167 = vpop.f32.mrb[0].mxu0
      %v11168 = vadd.f32 0.0, %v11167
      %v11169 = vpop.f32.mrb[0].mxu0
      %v11170 = vpop.f32.mrb[0].mxu0
      %v11171 = vadd.f32 0.0, %v11170
      %v11172 = vpop.f32.mrb[0].mxu0
      %11173 = vmatprep.mubr.bf16.mxu0 0
      %11174 = vmatmul.mubr.bf16.gmra.mrb[0].mxu0 %v9711
      %v11175 = vpop.f32.mrb[0].mxu0
      %v11176 = vadd.f32 0.0, %v11175
      %v11177 = vpop.f32.mrb[0].mxu0
      %v11178 = vpop.f32.mrb[0].mxu0
      %v11179 = vadd.f32 0.0, %v11178
      %v11180 = vpop.f32.mrb[0].mxu0
      %11181 = vmatprep.mubr.bf16.mxu0 0
      %11182 = vmatmul.mubr.bf16.gmra.mrb[0].mxu0 %v11027
      %v11183 = vpop.f32.mrb[0].mxu0
      %v11184 = vadd.f32 0.0, %v11183
      %v11185 = vpop.f32.mrb[0].mxu0
      %v11186 = vpop.f32.mrb[0].mxu0
      %v11187 = vadd.f32 0.0, %v11186
      %v11188 = vpop.f32.mrb[0].mxu0
      %11189 = vdwg.mxu0
      %v11190 = vadd.f32 %v10934, %v11064
      %v11191 = vadd.f32 %v10935, %v11067
      %v11192 = vadd.f32 %v10936, %v11072
      %v11193 = vadd.f32 %v10937, %v11075
      %v11194 = vadd.f32 %v10938, %v11080
      %v11195 = vadd.f32 %v10939, %v11083
      %v11196 = vadd.f32 %v10940, %v11088
      %v11197 = vadd.f32 %v10941, %v11091
      %v11198 = vadd.f32 %v10942, %v11096
      %v11199 = vadd.f32 %v10943, %v11099
      %v11200 = vadd.f32 %v10944, %v11104
      %v11201 = vadd.f32 %v10945, %v11107
      %v11202 = vadd.f32 %v10946, %v11112
      %v11203 = vadd.f32 %v10947, %v11115
      %v11204 = vadd.f32 %v10948, %v11120
      %v11205 = vadd.f32 %v10949, %v11123
      %v11206 = vadd.f32 %v10950, %v11128
      %v11207 = vadd.f32 %v10951, %v11131
      %v11208 = vadd.f32 %v10952, %v11136
      %v11209 = vadd.f32 %v10953, %v11139
      %v11210 = vadd.f32 %v10954, %v11144
      %v11211 = vadd.f32 %v10955, %v11147
      %v11212 = vadd.f32 %v10956, %v11152
      %v11213 = vadd.f32 %v10957, %v11155
      %v11214 = vadd.f32 %v10958, %v11160
      %v11215 = vadd.f32 %v10959, %v11163
      %v11216 = vadd.f32 %v10960, %v11168
      %v11217 = vadd.f32 %v10961, %v11171
      %v11218 = vadd.f32 %v10962, %v11176
      %v11219 = vadd.f32 %v10963, %v11179
      %v11220 = vadd.f32 %v10964, %v11184
      %v11221 = vadd.f32 %v10965, %v11187
      %s11222 = scalar_lea.vmem %s5, 56
      %v11223 = vld [vmem:[%s11222] sm:$0xf]
      %v11224 = vld [vmem:[%s11222 + $0x4] sm:$0xf]
      %v11225 = vunpack.c.l.b16 %v11003
      %v11226 = vunpack.c.l.b16 %v11013
      %v11227 = vpack.c.b16 %v11226, %v11225
      %v11230 = vunpack.c.l.b16 %v11223
      %v11231 = vunpack.c.l.b16 %v11224
      %v11232 = vpack.c.b16 %v11231, %v11230
      %v11235 = vsel %vm6509, %v11227, 0
      %11237 = vmatprep.subr.bf16.mxu0 0
      %11238 = vmatpush1.bf16.msra.mxu0 %v11232
      %11239 = vmatprep.subr.bf16.mxu0 0
      %11240 = vmatpush1.bf16.msra.mxu0 0
      %11241 = vmatprep.subr.bf16.mxu0 0
      %11242 = vmatpush1.bf16.msra.mxu0 0
      %11243 = vmatprep.subr.bf16.mxu0 0
      %11244 = vmatpush1.bf16.msra.mxu0 0
      %11245 = vmatprep.subr.bf16.mxu0 0
      %11246 = vmatpush1.bf16.msra.mxu0 0
      %11247 = vmatprep.subr.bf16.mxu0 0
      %11248 = vmatpush1.bf16.msra.mxu0 0
      %11249 = vmatprep.subr.bf16.mxu0 0
      %11250 = vmatpush1.bf16.msra.mxu0 0
      %11251 = vmatprep.subr.bf16.mxu0 0
      %11252 = vmatpush1.bf16.msra.mxu0 0
      %11253 = vmatprep.subr.bf16.mxu0 0
      %11254 = vmatpush1.bf16.msra.mxu0 0
      %11255 = vmatprep.subr.bf16.mxu0 0
      %11256 = vmatpush1.bf16.msra.mxu0 0
      %11257 = vmatprep.subr.bf16.mxu0 0
      %11258 = vmatpush1.bf16.msra.mxu0 0
      %11259 = vmatprep.subr.bf16.mxu0 0
      %11260 = vmatpush1.bf16.msra.mxu0 0
      %11261 = vmatprep.subr.bf16.mxu0 0
      %11262 = vmatpush1.bf16.msra.mxu0 0
      %11263 = vmatprep.subr.bf16.mxu0 0
      %11264 = vmatpush1.bf16.msra.mxu0 0
      %11265 = vmatprep.subr.bf16.mxu0 0
      %11266 = vmatpush1.bf16.msra.mxu0 0
      %11267 = vmatprep.subr.bf16.mxu0 0
      %11268 = vmatpush1.bf16.msra.mxu0 0
      %11269 = vmatprep.mubr.bf16.mxu0 0
      %11270 = vmatmul.mubr.bf16.gmra.mrb[0].mxu0 %v8144
      %v11271 = vpop.f32.mrb[0].mxu0
      %v11272 = vadd.f32 0.0, %v11271
      %v11273 = vpop.f32.mrb[0].mxu0
      %v11274 = vpop.f32.mrb[0].mxu0
      %v11275 = vadd.f32 0.0, %v11274
      %v11276 = vpop.f32.mrb[0].mxu0
      %11277 = vmatprep.mubr.bf16.mxu0 0
      %11278 = vmatmul.mubr.bf16.gmra.mrb[0].mxu0 %v8147
      %v11279 = vpop.f32.mrb[0].mxu0
      %v11280 = vadd.f32 0.0, %v11279
      %v11281 = vpop.f32.mrb[0].mxu0
      %v11282 = vpop.f32.mrb[0].mxu0
      %v11283 = vadd.f32 0.0, %v11282
      %v11284 = vpop.f32.mrb[0].mxu0
      %11285 = vmatprep.mubr.bf16.mxu0 0
      %11286 = vmatmul.mubr.bf16.gmra.mrb[0].mxu0 %v8150
      %v11287 = vpop.f32.mrb[0].mxu0
      %v11288 = vadd.f32 0.0, %v11287
      %v11289 = vpop.f32.mrb[0].mxu0
      %v11290 = vpop.f32.mrb[0].mxu0
      %v11291 = vadd.f32 0.0, %v11290
      %v11292 = vpop.f32.mrb[0].mxu0
      %11293 = vmatprep.mubr.bf16.mxu0 0
      %11294 = vmatmul.mubr.bf16.gmra.mrb[0].mxu0 %v8153
      %v11295 = vpop.f32.mrb[0].mxu0
      %v11296 = vadd.f32 0.0, %v11295
      %v11297 = vpop.f32.mrb[0].mxu0
      %v11298 = vpop.f32.mrb[0].mxu0
      %v11299 = vadd.f32 0.0, %v11298
      %v11300 = vpop.f32.mrb[0].mxu0
      %11301 = vmatprep.mubr.bf16.mxu0 0
      %11302 = vmatmul.mubr.bf16.gmra.mrb[0].mxu0 %v8156
      %v11303 = vpop.f32.mrb[0].mxu0
      %v11304 = vadd.f32 0.0, %v11303
      %v11305 = vpop.f32.mrb[0].mxu0
      %v11306 = vpop.f32.mrb[0].mxu0
      %v11307 = vadd.f32 0.0, %v11306
      %v11308 = vpop.f32.mrb[0].mxu0
      %11309 = vmatprep.mubr.bf16.mxu0 0
      %11310 = vmatmul.mubr.bf16.gmra.mrb[0].mxu0 %v8159
      %v11311 = vpop.f32.mrb[0].mxu0
      %v11312 = vadd.f32 0.0, %v11311
      %v11313 = vpop.f32.mrb[0].mxu0
      %v11314 = vpop.f32.mrb[0].mxu0
      %v11315 = vadd.f32 0.0, %v11314
      %v11316 = vpop.f32.mrb[0].mxu0
      %11317 = vmatprep.mubr.bf16.mxu0 0
      %11318 = vmatmul.mubr.bf16.gmra.mrb[0].mxu0 %v8162
      %v11319 = vpop.f32.mrb[0].mxu0
      %v11320 = vadd.f32 0.0, %v11319
      %v11321 = vpop.f32.mrb[0].mxu0
      %v11322 = vpop.f32.mrb[0].mxu0
      %v11323 = vadd.f32 0.0, %v11322
      %v11324 = vpop.f32.mrb[0].mxu0
      %11325 = vmatprep.mubr.bf16.mxu0 0
      %11326 = vmatmul.mubr.bf16.gmra.mrb[0].mxu0 %v8165
      %v11327 = vpop.f32.mrb[0].mxu0
      %v11328 = vadd.f32 0.0, %v11327
      %v11329 = vpop.f32.mrb[0].mxu0
      %v11330 = vpop.f32.mrb[0].mxu0
      %v11331 = vadd.f32 0.0, %v11330
      %v11332 = vpop.f32.mrb[0].mxu0
      %11333 = vmatprep.mubr.bf16.mxu0 0
      %11334 = vmatmul.mubr.bf16.gmra.mrb[0].mxu0 %v8168
      %v11335 = vpop.f32.mrb[0].mxu0
      %v11336 = vadd.f32 0.0, %v11335
      %v11337 = vpop.f32.mrb[0].mxu0
      %v11338 = vpop.f32.mrb[0].mxu0
      %v11339 = vadd.f32 0.0, %v11338
      %v11340 = vpop.f32.mrb[0].mxu0
      %11341 = vmatprep.mubr.bf16.mxu0 0
      %11342 = vmatmul.mubr.bf16.gmra.mrb[0].mxu0 %v8171
      %v11343 = vpop.f32.mrb[0].mxu0
      %v11344 = vadd.f32 0.0, %v11343
      %v11345 = vpop.f32.mrb[0].mxu0
      %v11346 = vpop.f32.mrb[0].mxu0
      %v11347 = vadd.f32 0.0, %v11346
      %v11348 = vpop.f32.mrb[0].mxu0
      %11349 = vmatprep.mubr.bf16.mxu0 0
      %11350 = vmatmul.mubr.bf16.gmra.mrb[0].mxu0 %v8174
      %v11351 = vpop.f32.mrb[0].mxu0
      %v11352 = vadd.f32 0.0, %v11351
      %v11353 = vpop.f32.mrb[0].mxu0
      %v11354 = vpop.f32.mrb[0].mxu0
      %v11355 = vadd.f32 0.0, %v11354
      %v11356 = vpop.f32.mrb[0].mxu0
      %11357 = vmatprep.mubr.bf16.mxu0 0
      %11358 = vmatmul.mubr.bf16.gmra.mrb[0].mxu0 %v8177
      %v11359 = vpop.f32.mrb[0].mxu0
      %v11360 = vadd.f32 0.0, %v11359
      %v11361 = vpop.f32.mrb[0].mxu0
      %v11362 = vpop.f32.mrb[0].mxu0
      %v11363 = vadd.f32 0.0, %v11362
      %v11364 = vpop.f32.mrb[0].mxu0
      %11365 = vmatprep.mubr.bf16.mxu0 0
      %11366 = vmatmul.mubr.bf16.gmra.mrb[0].mxu0 %v8180
      %v11367 = vpop.f32.mrb[0].mxu0
      %v11368 = vadd.f32 0.0, %v11367
      %v11369 = vpop.f32.mrb[0].mxu0
      %v11370 = vpop.f32.mrb[0].mxu0
      %v11371 = vadd.f32 0.0, %v11370
      %v11372 = vpop.f32.mrb[0].mxu0
      %11373 = vmatprep.mubr.bf16.mxu0 0
      %11374 = vmatmul.mubr.bf16.gmra.mrb[0].mxu0 %v8183
      %v11375 = vpop.f32.mrb[0].mxu0
      %v11376 = vadd.f32 0.0, %v11375
      %v11377 = vpop.f32.mrb[0].mxu0
      %v11378 = vpop.f32.mrb[0].mxu0
      %v11379 = vadd.f32 0.0, %v11378
      %v11380 = vpop.f32.mrb[0].mxu0
      %11381 = vmatprep.mubr.bf16.mxu0 0
      %11382 = vmatmul.mubr.bf16.gmra.mrb[0].mxu0 %v9919
      %v11383 = vpop.f32.mrb[0].mxu0
      %v11384 = vadd.f32 0.0, %v11383
      %v11385 = vpop.f32.mrb[0].mxu0
      %v11386 = vpop.f32.mrb[0].mxu0
      %v11387 = vadd.f32 0.0, %v11386
      %v11388 = vpop.f32.mrb[0].mxu0
      %11389 = vmatprep.mubr.bf16.mxu0 0
      %11390 = vmatmul.mubr.bf16.gmra.mrb[0].mxu0 %v11235
      %v11391 = vpop.f32.mrb[0].mxu0
      %v11392 = vadd.f32 0.0, %v11391
      %v11393 = vpop.f32.mrb[0].mxu0
      %v11394 = vpop.f32.mrb[0].mxu0
      %v11395 = vadd.f32 0.0, %v11394
      %v11396 = vpop.f32.mrb[0].mxu0
      %11397 = vdwg.mxu0
      %v11398 = vadd.f32 %v11190, %v11272
      %v11399 = vadd.f32 %v11191, %v11275
      %v11400 = vadd.f32 %v11192, %v11280
      %v11401 = vadd.f32 %v11193, %v11283
      %v11402 = vadd.f32 %v11194, %v11288
      %v11403 = vadd.f32 %v11195, %v11291
      %v11404 = vadd.f32 %v11196, %v11296
      %v11405 = vadd.f32 %v11197, %v11299
      %v11406 = vadd.f32 %v11198, %v11304
      %v11407 = vadd.f32 %v11199, %v11307
      %v11408 = vadd.f32 %v11200, %v11312
      %v11409 = vadd.f32 %v11201, %v11315
      %v11410 = vadd.f32 %v11202, %v11320
      %v11411 = vadd.f32 %v11203, %v11323
      %v11412 = vadd.f32 %v11204, %v11328
      %v11413 = vadd.f32 %v11205, %v11331
      %v11414 = vadd.f32 %v11206, %v11336
      %v11415 = vadd.f32 %v11207, %v11339
      %v11416 = vadd.f32 %v11208, %v11344
      %v11417 = vadd.f32 %v11209, %v11347
      %v11418 = vadd.f32 %v11210, %v11352
      %v11419 = vadd.f32 %v11211, %v11355
      %v11420 = vadd.f32 %v11212, %v11360
      %v11421 = vadd.f32 %v11213, %v11363
      %v11422 = vadd.f32 %v11214, %v11368
      %v11423 = vadd.f32 %v11215, %v11371
      %v11424 = vadd.f32 %v11216, %v11376
      %v11425 = vadd.f32 %v11217, %v11379
      %v11426 = vadd.f32 %v11218, %v11384
      %v11427 = vadd.f32 %v11219, %v11387
      %v11428 = vadd.f32 %v11220, %v11392
      %v11429 = vadd.f32 %v11221, %v11395
      %v11431 = vrot.slane %v6362, 5
      %v11432 = vrot.slane %v11431, 4
      %v11433 = vrot.slane %v6363, 5
      %v11434 = vsel %vm3928, %v11432, %v11433
      %v11435 = vrot.slane %v11433, 4
      %v11436 = vrot.slane %v6364, 5
      %v11437 = vsel %vm3928, %v11435, %v11436
      %v11439 = vrot.slane %v6416, 5
      %v11440 = vrot.slane %v11439, 4
      %v11441 = vrot.slane %v6417, 5
      %v11442 = vsel %vm3928, %v11440, %v11441
      %v11443 = vrot.slane %v11441, 4
      %v11444 = vrot.slane %v6418, 5
      %v11445 = vsel %vm3928, %v11443, %v11444
      %s11446 = scalar_lea.vmem %s4, 64
      %v11447 = vld [vmem:[%s11446] sm:$0xf]
      %v11448 = vld [vmem:[%s11446 + $0x4] sm:$0xf]
      %v11449 = vunpack.c.l.b16 %v11434
      %v11450 = vunpack.c.l.b16 %v11437
      %v11451 = vpack.c.b16 %v11450, %v11449
      %v11454 = vunpack.c.l.b16 %v11447
      %v11455 = vunpack.c.l.b16 %v11448
      %v11456 = vpack.c.b16 %v11455, %v11454
      %v11459 = vsel %vm6509, %v11451, 0
      %11461 = vmatprep.subr.bf16.mxu0 0
      %11462 = vmatpush1.bf16.msra.mxu0 %v11456
      %11463 = vmatprep.subr.bf16.mxu0 0
      %11464 = vmatpush1.bf16.msra.mxu0 0
      %11465 = vmatprep.subr.bf16.mxu0 0
      %11466 = vmatpush1.bf16.msra.mxu0 0
      %11467 = vmatprep.subr.bf16.mxu0 0
      %11468 = vmatpush1.bf16.msra.mxu0 0
      %11469 = vmatprep.subr.bf16.mxu0 0
      %11470 = vmatpush1.bf16.msra.mxu0 0
      %11471 = vmatprep.subr.bf16.mxu0 0
      %11472 = vmatpush1.bf16.msra.mxu0 0
      %11473 = vmatprep.subr.bf16.mxu0 0
      %11474 = vmatpush1.bf16.msra.mxu0 0
      %11475 = vmatprep.subr.bf16.mxu0 0
      %11476 = vmatpush1.bf16.msra.mxu0 0
      %11477 = vmatprep.subr.bf16.mxu0 0
      %11478 = vmatpush1.bf16.msra.mxu0 0
      %11479 = vmatprep.subr.bf16.mxu0 0
      %11480 = vmatpush1.bf16.msra.mxu0 0
      %11481 = vmatprep.subr.bf16.mxu0 0
      %11482 = vmatpush1.bf16.msra.mxu0 0
      %11483 = vmatprep.subr.bf16.mxu0 0
      %11484 = vmatpush1.bf16.msra.mxu0 0
      %11485 = vmatprep.subr.bf16.mxu0 0
      %11486 = vmatpush1.bf16.msra.mxu0 0
      %11487 = vmatprep.subr.bf16.mxu0 0
      %11488 = vmatpush1.bf16.msra.mxu0 0
      %11489 = vmatprep.subr.bf16.mxu0 0
      %11490 = vmatpush1.bf16.msra.mxu0 0
      %11491 = vmatprep.subr.bf16.mxu0 0
      %11492 = vmatpush1.bf16.msra.mxu0 0
      %11493 = vmatprep.mubr.bf16.mxu0 0
      %11494 = vmatmul.mubr.bf16.gmra.mrb[0].mxu0 %v8698
      %v11495 = vpop.f32.mrb[0].mxu0
      %v11496 = vadd.f32 0.0, %v11495
      %v11497 = vpop.f32.mrb[0].mxu0
      %v11498 = vpop.f32.mrb[0].mxu0
      %v11499 = vadd.f32 0.0, %v11498
      %v11500 = vpop.f32.mrb[0].mxu0
      %11501 = vmatprep.mubr.bf16.mxu0 0
      %11502 = vmatmul.mubr.bf16.gmra.mrb[0].mxu0 %v8701
      %v11503 = vpop.f32.mrb[0].mxu0
      %v11504 = vadd.f32 0.0, %v11503
      %v11505 = vpop.f32.mrb[0].mxu0
      %v11506 = vpop.f32.mrb[0].mxu0
      %v11507 = vadd.f32 0.0, %v11506
      %v11508 = vpop.f32.mrb[0].mxu0
      %11509 = vmatprep.mubr.bf16.mxu0 0
      %11510 = vmatmul.mubr.bf16.gmra.mrb[0].mxu0 %v8704
      %v11511 = vpop.f32.mrb[0].mxu0
      %v11512 = vadd.f32 0.0, %v11511
      %v11513 = vpop.f32.mrb[0].mxu0
      %v11514 = vpop.f32.mrb[0].mxu0
      %v11515 = vadd.f32 0.0, %v11514
      %v11516 = vpop.f32.mrb[0].mxu0
      %11517 = vmatprep.mubr.bf16.mxu0 0
      %11518 = vmatmul.mubr.bf16.gmra.mrb[0].mxu0 %v8707
      %v11519 = vpop.f32.mrb[0].mxu0
      %v11520 = vadd.f32 0.0, %v11519
      %v11521 = vpop.f32.mrb[0].mxu0
      %v11522 = vpop.f32.mrb[0].mxu0
      %v11523 = vadd.f32 0.0, %v11522
      %v11524 = vpop.f32.mrb[0].mxu0
      %11525 = vmatprep.mubr.bf16.mxu0 0
      %11526 = vmatmul.mubr.bf16.gmra.mrb[0].mxu0 %v8710
      %v11527 = vpop.f32.mrb[0].mxu0
      %v11528 = vadd.f32 0.0, %v11527
      %v11529 = vpop.f32.mrb[0].mxu0
      %v11530 = vpop.f32.mrb[0].mxu0
      %v11531 = vadd.f32 0.0, %v11530
      %v11532 = vpop.f32.mrb[0].mxu0
      %11533 = vmatprep.mubr.bf16.mxu0 0
      %11534 = vmatmul.mubr.bf16.gmra.mrb[0].mxu0 %v8713
      %v11535 = vpop.f32.mrb[0].mxu0
      %v11536 = vadd.f32 0.0, %v11535
      %v11537 = vpop.f32.mrb[0].mxu0
      %v11538 = vpop.f32.mrb[0].mxu0
      %v11539 = vadd.f32 0.0, %v11538
      %v11540 = vpop.f32.mrb[0].mxu0
      %11541 = vmatprep.mubr.bf16.mxu0 0
      %11542 = vmatmul.mubr.bf16.gmra.mrb[0].mxu0 %v8716
      %v11543 = vpop.f32.mrb[0].mxu0
      %v11544 = vadd.f32 0.0, %v11543
      %v11545 = vpop.f32.mrb[0].mxu0
      %v11546 = vpop.f32.mrb[0].mxu0
      %v11547 = vadd.f32 0.0, %v11546
      %v11548 = vpop.f32.mrb[0].mxu0
      %11549 = vmatprep.mubr.bf16.mxu0 0
      %11550 = vmatmul.mubr.bf16.gmra.mrb[0].mxu0 %v8719
      %v11551 = vpop.f32.mrb[0].mxu0
      %v11552 = vadd.f32 0.0, %v11551
      %v11553 = vpop.f32.mrb[0].mxu0
      %v11554 = vpop.f32.mrb[0].mxu0
      %v11555 = vadd.f32 0.0, %v11554
      %v11556 = vpop.f32.mrb[0].mxu0
      %11557 = vmatprep.mubr.bf16.mxu0 0
      %11558 = vmatmul.mubr.bf16.gmra.mrb[0].mxu0 %v8722
      %v11559 = vpop.f32.mrb[0].mxu0
      %v11560 = vadd.f32 0.0, %v11559
      %v11561 = vpop.f32.mrb[0].mxu0
      %v11562 = vpop.f32.mrb[0].mxu0
      %v11563 = vadd.f32 0.0, %v11562
      %v11564 = vpop.f32.mrb[0].mxu0
      %11565 = vmatprep.mubr.bf16.mxu0 0
      %11566 = vmatmul.mubr.bf16.gmra.mrb[0].mxu0 %v8725
      %v11567 = vpop.f32.mrb[0].mxu0
      %v11568 = vadd.f32 0.0, %v11567
      %v11569 = vpop.f32.mrb[0].mxu0
      %v11570 = vpop.f32.mrb[0].mxu0
      %v11571 = vadd.f32 0.0, %v11570
      %v11572 = vpop.f32.mrb[0].mxu0
      %11573 = vmatprep.mubr.bf16.mxu0 0
      %11574 = vmatmul.mubr.bf16.gmra.mrb[0].mxu0 %v8728
      %v11575 = vpop.f32.mrb[0].mxu0
      %v11576 = vadd.f32 0.0, %v11575
      %v11577 = vpop.f32.mrb[0].mxu0
      %v11578 = vpop.f32.mrb[0].mxu0
      %v11579 = vadd.f32 0.0, %v11578
      %v11580 = vpop.f32.mrb[0].mxu0
      %11581 = vmatprep.mubr.bf16.mxu0 0
      %11582 = vmatmul.mubr.bf16.gmra.mrb[0].mxu0 %v8731
      %v11583 = vpop.f32.mrb[0].mxu0
      %v11584 = vadd.f32 0.0, %v11583
      %v11585 = vpop.f32.mrb[0].mxu0
      %v11586 = vpop.f32.mrb[0].mxu0
      %v11587 = vadd.f32 0.0, %v11586
      %v11588 = vpop.f32.mrb[0].mxu0
      %11589 = vmatprep.mubr.bf16.mxu0 0
      %11590 = vmatmul.mubr.bf16.gmra.mrb[0].mxu0 %v8734
      %v11591 = vpop.f32.mrb[0].mxu0
      %v11592 = vadd.f32 0.0, %v11591
      %v11593 = vpop.f32.mrb[0].mxu0
      %v11594 = vpop.f32.mrb[0].mxu0
      %v11595 = vadd.f32 0.0, %v11594
      %v11596 = vpop.f32.mrb[0].mxu0
      %11597 = vmatprep.mubr.bf16.mxu0 0
      %11598 = vmatmul.mubr.bf16.gmra.mrb[0].mxu0 %v8737
      %v11599 = vpop.f32.mrb[0].mxu0
      %v11600 = vadd.f32 0.0, %v11599
      %v11601 = vpop.f32.mrb[0].mxu0
      %v11602 = vpop.f32.mrb[0].mxu0
      %v11603 = vadd.f32 0.0, %v11602
      %v11604 = vpop.f32.mrb[0].mxu0
      %11605 = vmatprep.mubr.bf16.mxu0 0
      %11606 = vmatmul.mubr.bf16.gmra.mrb[0].mxu0 %v10143
      %v11607 = vpop.f32.mrb[0].mxu0
      %v11608 = vadd.f32 0.0, %v11607
      %v11609 = vpop.f32.mrb[0].mxu0
      %v11610 = vpop.f32.mrb[0].mxu0
      %v11611 = vadd.f32 0.0, %v11610
      %v11612 = vpop.f32.mrb[0].mxu0
      %11613 = vmatprep.mubr.bf16.mxu0 0
      %11614 = vmatmul.mubr.bf16.gmra.mrb[0].mxu0 %v11459
      %v11615 = vpop.f32.mrb[0].mxu0
      %v11616 = vadd.f32 0.0, %v11615
      %v11617 = vpop.f32.mrb[0].mxu0
      %v11618 = vpop.f32.mrb[0].mxu0
      %v11619 = vadd.f32 0.0, %v11618
      %v11620 = vpop.f32.mrb[0].mxu0
      %11621 = vdwg.mxu0
      %v11622 = vadd.f32 %v11398, %v11496
      %v11623 = vadd.f32 %v11399, %v11499
      %v11624 = vadd.f32 %v11400, %v11504
      %v11625 = vadd.f32 %v11401, %v11507
      %v11626 = vadd.f32 %v11402, %v11512
      %v11627 = vadd.f32 %v11403, %v11515
      %v11628 = vadd.f32 %v11404, %v11520
      %v11629 = vadd.f32 %v11405, %v11523
      %v11630 = vadd.f32 %v11406, %v11528
      %v11631 = vadd.f32 %v11407, %v11531
      %v11632 = vadd.f32 %v11408, %v11536
      %v11633 = vadd.f32 %v11409, %v11539
      %v11634 = vadd.f32 %v11410, %v11544
      %v11635 = vadd.f32 %v11411, %v11547
      %v11636 = vadd.f32 %v11412, %v11552
      %v11637 = vadd.f32 %v11413, %v11555
      %v11638 = vadd.f32 %v11414, %v11560
      %v11639 = vadd.f32 %v11415, %v11563
      %v11640 = vadd.f32 %v11416, %v11568
      %v11641 = vadd.f32 %v11417, %v11571
      %v11642 = vadd.f32 %v11418, %v11576
      %v11643 = vadd.f32 %v11419, %v11579
      %v11644 = vadd.f32 %v11420, %v11584
      %v11645 = vadd.f32 %v11421, %v11587
      %v11646 = vadd.f32 %v11422, %v11592
      %v11647 = vadd.f32 %v11423, %v11595
      %v11648 = vadd.f32 %v11424, %v11600
      %v11649 = vadd.f32 %v11425, %v11603
      %v11650 = vadd.f32 %v11426, %v11608
      %v11651 = vadd.f32 %v11427, %v11611
      %v11652 = vadd.f32 %v11428, %v11616
      %v11653 = vadd.f32 %v11429, %v11619
      %s11654 = scalar_lea.vmem %s5, 64
      %v11655 = vld [vmem:[%s11654] sm:$0xf]
      %v11656 = vld [vmem:[%s11654 + $0x4] sm:$0xf]
      %v11657 = vunpack.c.l.b16 %v11442
      %v11658 = vunpack.c.l.b16 %v11445
      %v11659 = vpack.c.b16 %v11658, %v11657
      %v11662 = vunpack.c.l.b16 %v11655
      %v11663 = vunpack.c.l.b16 %v11656
      %v11664 = vpack.c.b16 %v11663, %v11662
      %v11667 = vsel %vm6509, %v11659, 0
      %11669 = vmatprep.subr.bf16.mxu0 0
      %11670 = vmatpush1.bf16.msra.mxu0 %v11664
      %11671 = vmatprep.subr.bf16.mxu0 0
      %11672 = vmatpush1.bf16.msra.mxu0 0
      %11673 = vmatprep.subr.bf16.mxu0 0
      %11674 = vmatpush1.bf16.msra.mxu0 0
      %11675 = vmatprep.subr.bf16.mxu0 0
      %11676 = vmatpush1.bf16.msra.mxu0 0
      %11677 = vmatprep.subr.bf16.mxu0 0
      %11678 = vmatpush1.bf16.msra.mxu0 0
      %11679 = vmatprep.subr.bf16.mxu0 0
      %11680 = vmatpush1.bf16.msra.mxu0 0
      %11681 = vmatprep.subr.bf16.mxu0 0
      %11682 = vmatpush1.bf16.msra.mxu0 0
      %11683 = vmatprep.subr.bf16.mxu0 0
      %11684 = vmatpush1.bf16.msra.mxu0 0
      %11685 = vmatprep.subr.bf16.mxu0 0
      %11686 = vmatpush1.bf16.msra.mxu0 0
      %11687 = vmatprep.subr.bf16.mxu0 0
      %11688 = vmatpush1.bf16.msra.mxu0 0
      %11689 = vmatprep.subr.bf16.mxu0 0
      %11690 = vmatpush1.bf16.msra.mxu0 0
      %11691 = vmatprep.subr.bf16.mxu0 0
      %11692 = vmatpush1.bf16.msra.mxu0 0
      %11693 = vmatprep.subr.bf16.mxu0 0
      %11694 = vmatpush1.bf16.msra.mxu0 0
      %11695 = vmatprep.subr.bf16.mxu0 0
      %11696 = vmatpush1.bf16.msra.mxu0 0
      %11697 = vmatprep.subr.bf16.mxu0 0
      %11698 = vmatpush1.bf16.msra.mxu0 0
      %11699 = vmatprep.subr.bf16.mxu0 0
      %11700 = vmatpush1.bf16.msra.mxu0 0
      %11701 = vmatprep.mubr.bf16.mxu0 0
      %11702 = vmatmul.mubr.bf16.gmra.mrb[0].mxu0 %v8996
      %v11703 = vpop.f32.mrb[0].mxu0
      %v11704 = vadd.f32 0.0, %v11703
      %v11705 = vpop.f32.mrb[0].mxu0
      %v11706 = vpop.f32.mrb[0].mxu0
      %v11707 = vadd.f32 0.0, %v11706
      %v11708 = vpop.f32.mrb[0].mxu0
      %11709 = vmatprep.mubr.bf16.mxu0 0
      %11710 = vmatmul.mubr.bf16.gmra.mrb[0].mxu0 %v8999
      %v11711 = vpop.f32.mrb[0].mxu0
      %v11712 = vadd.f32 0.0, %v11711
      %v11713 = vpop.f32.mrb[0].mxu0
      %v11714 = vpop.f32.mrb[0].mxu0
      %v11715 = vadd.f32 0.0, %v11714
      %v11716 = vpop.f32.mrb[0].mxu0
      %11717 = vmatprep.mubr.bf16.mxu0 0
      %11718 = vmatmul.mubr.bf16.gmra.mrb[0].mxu0 %v9002
      %v11719 = vpop.f32.mrb[0].mxu0
      %v11720 = vadd.f32 0.0, %v11719
      %v11721 = vpop.f32.mrb[0].mxu0
      %v11722 = vpop.f32.mrb[0].mxu0
      %v11723 = vadd.f32 0.0, %v11722
      %v11724 = vpop.f32.mrb[0].mxu0
      %11725 = vmatprep.mubr.bf16.mxu0 0
      %11726 = vmatmul.mubr.bf16.gmra.mrb[0].mxu0 %v9005
      %v11727 = vpop.f32.mrb[0].mxu0
      %v11728 = vadd.f32 0.0, %v11727
      %v11729 = vpop.f32.mrb[0].mxu0
      %v11730 = vpop.f32.mrb[0].mxu0
      %v11731 = vadd.f32 0.0, %v11730
      %v11732 = vpop.f32.mrb[0].mxu0
      %11733 = vmatprep.mubr.bf16.mxu0 0
      %11734 = vmatmul.mubr.bf16.gmra.mrb[0].mxu0 %v9008
      %v11735 = vpop.f32.mrb[0].mxu0
      %v11736 = vadd.f32 0.0, %v11735
      %v11737 = vpop.f32.mrb[0].mxu0
      %v11738 = vpop.f32.mrb[0].mxu0
      %v11739 = vadd.f32 0.0, %v11738
      %v11740 = vpop.f32.mrb[0].mxu0
      %11741 = vmatprep.mubr.bf16.mxu0 0
      %11742 = vmatmul.mubr.bf16.gmra.mrb[0].mxu0 %v9011
      %v11743 = vpop.f32.mrb[0].mxu0
      %v11744 = vadd.f32 0.0, %v11743
      %v11745 = vpop.f32.mrb[0].mxu0
      %v11746 = vpop.f32.mrb[0].mxu0
      %v11747 = vadd.f32 0.0, %v11746
      %v11748 = vpop.f32.mrb[0].mxu0
      %11749 = vmatprep.mubr.bf16.mxu0 0
      %11750 = vmatmul.mubr.bf16.gmra.mrb[0].mxu0 %v9014
      %v11751 = vpop.f32.mrb[0].mxu0
      %v11752 = vadd.f32 0.0, %v11751
      %v11753 = vpop.f32.mrb[0].mxu0
      %v11754 = vpop.f32.mrb[0].mxu0
      %v11755 = vadd.f32 0.0, %v11754
      %v11756 = vpop.f32.mrb[0].mxu0
      %11757 = vmatprep.mubr.bf16.mxu0 0
      %11758 = vmatmul.mubr.bf16.gmra.mrb[0].mxu0 %v9017
      %v11759 = vpop.f32.mrb[0].mxu0
      %v11760 = vadd.f32 0.0, %v11759
      %v11761 = vpop.f32.mrb[0].mxu0
      %v11762 = vpop.f32.mrb[0].mxu0
      %v11763 = vadd.f32 0.0, %v11762
      %v11764 = vpop.f32.mrb[0].mxu0
      %11765 = vmatprep.mubr.bf16.mxu0 0
      %11766 = vmatmul.mubr.bf16.gmra.mrb[0].mxu0 %v9020
      %v11767 = vpop.f32.mrb[0].mxu0
      %v11768 = vadd.f32 0.0, %v11767
      %v11769 = vpop.f32.mrb[0].mxu0
      %v11770 = vpop.f32.mrb[0].mxu0
      %v11771 = vadd.f32 0.0, %v11770
      %v11772 = vpop.f32.mrb[0].mxu0
      %11773 = vmatprep.mubr.bf16.mxu0 0
      %11774 = vmatmul.mubr.bf16.gmra.mrb[0].mxu0 %v9023
      %v11775 = vpop.f32.mrb[0].mxu0
      %v11776 = vadd.f32 0.0, %v11775
      %v11777 = vpop.f32.mrb[0].mxu0
      %v11778 = vpop.f32.mrb[0].mxu0
      %v11779 = vadd.f32 0.0, %v11778
      %v11780 = vpop.f32.mrb[0].mxu0
      %11781 = vmatprep.mubr.bf16.mxu0 0
      %11782 = vmatmul.mubr.bf16.gmra.mrb[0].mxu0 %v9026
      %v11783 = vpop.f32.mrb[0].mxu0
      %v11784 = vadd.f32 0.0, %v11783
      %v11785 = vpop.f32.mrb[0].mxu0
      %v11786 = vpop.f32.mrb[0].mxu0
      %v11787 = vadd.f32 0.0, %v11786
      %v11788 = vpop.f32.mrb[0].mxu0
      %11789 = vmatprep.mubr.bf16.mxu0 0
      %11790 = vmatmul.mubr.bf16.gmra.mrb[0].mxu0 %v9029
      %v11791 = vpop.f32.mrb[0].mxu0
      %v11792 = vadd.f32 0.0, %v11791
      %v11793 = vpop.f32.mrb[0].mxu0
      %v11794 = vpop.f32.mrb[0].mxu0
      %v11795 = vadd.f32 0.0, %v11794
      %v11796 = vpop.f32.mrb[0].mxu0
      %11797 = vmatprep.mubr.bf16.mxu0 0
      %11798 = vmatmul.mubr.bf16.gmra.mrb[0].mxu0 %v9032
      %v11799 = vpop.f32.mrb[0].mxu0
      %v11800 = vadd.f32 0.0, %v11799
      %v11801 = vpop.f32.mrb[0].mxu0
      %v11802 = vpop.f32.mrb[0].mxu0
      %v11803 = vadd.f32 0.0, %v11802
      %v11804 = vpop.f32.mrb[0].mxu0
      %11805 = vmatprep.mubr.bf16.mxu0 0
      %11806 = vmatmul.mubr.bf16.gmra.mrb[0].mxu0 %v9035
      %v11807 = vpop.f32.mrb[0].mxu0
      %v11808 = vadd.f32 0.0, %v11807
      %v11809 = vpop.f32.mrb[0].mxu0
      %v11810 = vpop.f32.mrb[0].mxu0
      %v11811 = vadd.f32 0.0, %v11810
      %v11812 = vpop.f32.mrb[0].mxu0
      %11813 = vmatprep.mubr.bf16.mxu0 0
      %11814 = vmatmul.mubr.bf16.gmra.mrb[0].mxu0 %v10351
      %v11815 = vpop.f32.mrb[0].mxu0
      %v11816 = vadd.f32 0.0, %v11815
      %v11817 = vpop.f32.mrb[0].mxu0
      %v11818 = vpop.f32.mrb[0].mxu0
      %v11819 = vadd.f32 0.0, %v11818
      %v11820 = vpop.f32.mrb[0].mxu0
      %11821 = vmatprep.mubr.bf16.mxu0 0
      %11822 = vmatmul.mubr.bf16.gmra.mrb[0].mxu0 %v11667
      %v11823 = vpop.f32.mrb[0].mxu0
      %v11824 = vadd.f32 0.0, %v11823
      %v11825 = vpop.f32.mrb[0].mxu0
      %v11826 = vpop.f32.mrb[0].mxu0
      %v11827 = vadd.f32 0.0, %v11826
      %v11828 = vpop.f32.mrb[0].mxu0
      %11829 = vdwg.mxu0
      %v11830 = vadd.f32 %v11622, %v11704
      %v11831 = vadd.f32 %v11623, %v11707
      %v11832 = vadd.f32 %v11624, %v11712
      %v11833 = vadd.f32 %v11625, %v11715
      %v11834 = vadd.f32 %v11626, %v11720
      %v11835 = vadd.f32 %v11627, %v11723
      %v11836 = vadd.f32 %v11628, %v11728
      %v11837 = vadd.f32 %v11629, %v11731
      %v11838 = vadd.f32 %v11630, %v11736
      %v11839 = vadd.f32 %v11631, %v11739
      %v11840 = vadd.f32 %v11632, %v11744
      %v11841 = vadd.f32 %v11633, %v11747
      %v11842 = vadd.f32 %v11634, %v11752
      %v11843 = vadd.f32 %v11635, %v11755
      %v11844 = vadd.f32 %v11636, %v11760
      %v11845 = vadd.f32 %v11637, %v11763
      %v11846 = vadd.f32 %v11638, %v11768
      %v11847 = vadd.f32 %v11639, %v11771
      %v11848 = vadd.f32 %v11640, %v11776
      %v11849 = vadd.f32 %v11641, %v11779
      %v11850 = vadd.f32 %v11642, %v11784
      %v11851 = vadd.f32 %v11643, %v11787
      %v11852 = vadd.f32 %v11644, %v11792
      %v11853 = vadd.f32 %v11645, %v11795
      %v11854 = vadd.f32 %v11646, %v11800
      %v11855 = vadd.f32 %v11647, %v11803
      %v11856 = vadd.f32 %v11648, %v11808
      %v11857 = vadd.f32 %v11649, %v11811
      %v11858 = vadd.f32 %v11650, %v11816
      %v11859 = vadd.f32 %v11651, %v11819
      %v11860 = vadd.f32 %v11652, %v11824
      %v11861 = vadd.f32 %v11653, %v11827
      %v11862 = vld [vmem:[%s6] sm:$0x1]
      %v11864 = vlaneseq
      %v11865 = vshrl.u32 %v11864, 7
      %v11866 = vsub.s32 0, %v11865
      %v11867 = vrot.slane %v11862, %v11866
      %v11869 = vadd.f32 %v11830, %v11867
      %v11870 = vadd.f32 %v11831, %v11867
      %v11871 = vadd.f32 %v11832, %v11867
      %v11872 = vadd.f32 %v11833, %v11867
      %v11873 = vadd.f32 %v11834, %v11867
      %v11874 = vadd.f32 %v11835, %v11867
      %v11875 = vadd.f32 %v11836, %v11867
      %v11876 = vadd.f32 %v11837, %v11867
      %v11877 = vadd.f32 %v11838, %v11867
      %v11878 = vadd.f32 %v11839, %v11867
      %v11879 = vadd.f32 %v11840, %v11867
      %v11880 = vadd.f32 %v11841, %v11867
      %v11881 = vadd.f32 %v11842, %v11867
      %v11882 = vadd.f32 %v11843, %v11867
      %v11883 = vadd.f32 %v11844, %v11867
      %v11884 = vadd.f32 %v11845, %v11867
      %v11885 = vadd.f32 %v11846, %v11867
      %v11886 = vadd.f32 %v11847, %v11867
      %v11887 = vadd.f32 %v11848, %v11867
      %v11888 = vadd.f32 %v11849, %v11867
      %v11889 = vadd.f32 %v11850, %v11867
      %v11890 = vadd.f32 %v11851, %v11867
      %v11891 = vadd.f32 %v11852, %v11867
      %v11892 = vadd.f32 %v11853, %v11867
      %v11893 = vadd.f32 %v11854, %v11867
      %v11894 = vadd.f32 %v11855, %v11867
      %v11895 = vadd.f32 %v11856, %v11867
      %v11896 = vadd.f32 %v11857, %v11867
      %v11897 = vadd.f32 %v11858, %v11867
      %v11898 = vadd.f32 %v11859, %v11867
      %v11899 = vadd.f32 %v11860, %v11867
      %v11900 = vadd.f32 %v11861, %v11867
      %v11901 = vmax.f32 %v11869, 0.0
      %v11902 = vmax.f32 %v11870, 0.0
      %v11903 = vmax.f32 %v11871, 0.0
      %v11904 = vmax.f32 %v11872, 0.0
      %v11905 = vmax.f32 %v11873, 0.0
      %v11906 = vmax.f32 %v11874, 0.0
      %v11907 = vmax.f32 %v11875, 0.0
      %v11908 = vmax.f32 %v11876, 0.0
      %v11909 = vmax.f32 %v11877, 0.0
      %v11910 = vmax.f32 %v11878, 0.0
      %v11911 = vmax.f32 %v11879, 0.0
      %v11912 = vmax.f32 %v11880, 0.0
      %v11913 = vmax.f32 %v11881, 0.0
      %v11914 = vmax.f32 %v11882, 0.0
      %v11915 = vmax.f32 %v11883, 0.0
      %v11916 = vmax.f32 %v11884, 0.0
      %v11917 = vmax.f32 %v11885, 0.0
      %v11918 = vmax.f32 %v11886, 0.0
      %v11919 = vmax.f32 %v11887, 0.0
      %v11920 = vmax.f32 %v11888, 0.0
      %v11921 = vmax.f32 %v11889, 0.0
      %v11922 = vmax.f32 %v11890, 0.0
      %v11923 = vmax.f32 %v11891, 0.0
      %v11924 = vmax.f32 %v11892, 0.0
      %v11925 = vmax.f32 %v11893, 0.0
      %v11926 = vmax.f32 %v11894, 0.0
      %v11927 = vmax.f32 %v11895, 0.0
      %v11928 = vmax.f32 %v11896, 0.0
      %v11929 = vmax.f32 %v11897, 0.0
      %v11930 = vmax.f32 %v11898, 0.0
      %v11931 = vmax.f32 %v11899, 0.0
      %v11932 = vmax.f32 %v11900, 0.0
      %11933 = vxpose.xlu0.b32.start [1/16] %v11901, 128
      %11934 = vxpose.xlu0.b32.cont [2/16] %v11902, 128
      %11935 = vxpose.xlu0.b32.cont [3/16] %v11903, 128
      %11936 = vxpose.xlu0.b32.cont [4/16] %v11904, 128
      %11937 = vxpose.xlu0.b32.cont [5/16] %v11905, 128
      %11938 = vxpose.xlu0.b32.cont [6/16] %v11906, 128
      %11939 = vxpose.xlu0.b32.cont [7/16] %v11907, 128
      %11940 = vxpose.xlu0.b32.cont [8/16] %v11908, 128
      %11941 = vxpose.xlu0.b32.cont [9/16] %v11909, 128
      %11942 = vxpose.xlu0.b32.cont [10/16] %v11910, 128
      %11943 = vxpose.xlu0.b32.cont [11/16] %v11911, 128
      %11944 = vxpose.xlu0.b32.cont [12/16] %v11912, 128
      %11945 = vxpose.xlu0.b32.cont [13/16] %v11913, 128
      %11946 = vxpose.xlu0.b32.cont [14/16] %v11914, 128
      %11947 = vxpose.xlu0.b32.cont [15/16] %v11915, 128
      %11948 = vxpose.xlu0.b32.end [16/16] %v11916, 128
      %v11949 = vpop.trf.xlu0
      %v11950 = vpop.trf.xlu0
      %v11951 = vpop.trf.xlu0
      %v11952 = vpop.trf.xlu0
      %v11953 = vpop.trf.xlu0
      %v11954 = vpop.trf.xlu0
      %v11955 = vpop.trf.xlu0
      %v11956 = vpop.trf.xlu0
      %v11957 = vpop.trf.xlu0
      %v11958 = vpop.trf.xlu0
      %v11959 = vpop.trf.xlu0
      %v11960 = vpop.trf.xlu0
      %v11961 = vpop.trf.xlu0
      %v11962 = vpop.trf.xlu0
      %v11963 = vpop.trf.xlu0
      %v11964 = vpop.trf.xlu0
      %11965 = vxpose.xlu0.b32.start [1/16] %v11917, 128
      %11966 = vxpose.xlu0.b32.cont [2/16] %v11918, 128
      %11967 = vxpose.xlu0.b32.cont [3/16] %v11919, 128
      %11968 = vxpose.xlu0.b32.cont [4/16] %v11920, 128
      %11969 = vxpose.xlu0.b32.cont [5/16] %v11921, 128
      %11970 = vxpose.xlu0.b32.cont [6/16] %v11922, 128
      %11971 = vxpose.xlu0.b32.cont [7/16] %v11923, 128
      %11972 = vxpose.xlu0.b32.cont [8/16] %v11924, 128
      %11973 = vxpose.xlu0.b32.cont [9/16] %v11925, 128
      %11974 = vxpose.xlu0.b32.cont [10/16] %v11926, 128
      %11975 = vxpose.xlu0.b32.cont [11/16] %v11927, 128
      %11976 = vxpose.xlu0.b32.cont [12/16] %v11928, 128
      %11977 = vxpose.xlu0.b32.cont [13/16] %v11929, 128
      %11978 = vxpose.xlu0.b32.cont [14/16] %v11930, 128
      %11979 = vxpose.xlu0.b32.cont [15/16] %v11931, 128
      %11980 = vxpose.xlu0.b32.end [16/16] %v11932, 128
      %v11981 = vpop.trf.xlu0
      %v11982 = vpop.trf.xlu0
      %v11983 = vpop.trf.xlu0
      %v11984 = vpop.trf.xlu0
      %v11985 = vpop.trf.xlu0
      %v11986 = vpop.trf.xlu0
      %v11987 = vpop.trf.xlu0
      %v11988 = vpop.trf.xlu0
      %v11989 = vpop.trf.xlu0
      %v11990 = vpop.trf.xlu0
      %v11991 = vpop.trf.xlu0
      %v11992 = vpop.trf.xlu0
      %v11993 = vpop.trf.xlu0
      %v11994 = vpop.trf.xlu0
      %v11995 = vpop.trf.xlu0
      %v11996 = vpop.trf.xlu0
      %11997 = vst [vmem:[%s298] sm:$0xff] %v11949
      %11998 = vst [vmem:[%s298 + $0x8] sm:$0xff] %v11981
      %11999 = vst [vmem:[%s298 + $0x10] sm:$0xff] %v11950
      %12000 = vst [vmem:[%s298 + $0x18] sm:$0xff] %v11982
      %p12001 = scmp.lt.s32.totalorder %s18, 1
      %s12002 = scalar_select %p12001, %s18, 1
      %s12003 = smul.addr %s12002, 4
      %s12004 = smul.addr %s12003, 8
      %s12005 = scalar_lea.vmem %s7, %s12004
      // Predicated region
      $region49: #{decoder_block_forward.1} parent=47 // pred_check
        %p12006 = pneg %p193
      $region50: #{decoder_block_forward.1} parent=47 // pred_check_branch
        %12008 = sbr.rel (%p12006) target = $region52
      $region51: #{decoder_block_forward.1} parent=47 // pred_region
        _
      $region52: #{decoder_block_forward.1} parent=47 // pred_fallthru
        _
    $region48: #{decoder_block_forward.1} parent=5 // pred_fallthru
      _
    %p12009 = scmp.le.s32.totalorder 2, %s13
    // Predicated region
    $region53: #{decoder_block_forward.1} parent=5 // pred_check
      %p12010 = pneg %p12009
    $region54: #{decoder_block_forward.1} parent=5 // pred_check_branch
      %12012 = sbr.rel (%p12010) target = $region56
    $region55: #{decoder_block_forward.1} parent=5 // pred_region
      %s12013 = ssub.s32 %s13, 2
      // Predicated region
      $region57: #{decoder_block_forward.1} parent=55 // pred_check
        %p12014 = pneg %p199
      $region58: #{decoder_block_forward.1} parent=55 // pred_check_branch
        %12016 = sbr.rel (%p12014) target = $region60
      $region59: #{decoder_block_forward.1} parent=55 // pred_region
        %p12017 = scmp.lt.s32.totalorder %s19, 1
        %s12018 = scalar_select %p12017, %s19, 1
        %s12019 = smul.addr %s12018, 4
        %s12020 = smul.addr %s12019, 8
        %s12021 = scalar_lea.vmem %s7, %s12020
      $region60: #{decoder_block_forward.1} parent=55 // pred_fallthru
        _
    $region56: #{decoder_block_forward.1} parent=5 // pred_fallthru
      _
  $region6: #{decoder_block_forward.1} parent=0 // loop_footer
    %s17 = sadd.s32 1, %s13
  $region7: #{decoder_block_forward.1} parent=0 // loop_footer_branch
    %12 = sbr.rel target = $region3
  $region8: #{decoder_block_forward.1} parent=0 // loop_exit
    _

</llo_original>
